<compile_context>
chip_gen: v7x
topology: tpu7x:2x2x1
jax: 0.10.0
libtpu: 0.0.40
codegen_flags: <defaults>
</compile_context>

<pallas_src>
import functools
import math

import jax
import jax.numpy as jnp
from jax.experimental import pallas as pl
from jax.experimental.pallas import tpu as pltpu

LN_EPS = 1e-5
NEG_INF = -1e9


# --------------------------------------------------------------------------------------
# Kernel
# --------------------------------------------------------------------------------------
def _fusion_kernel(xl_ref, xa_ref, xv_ref,
                   wl_ref, wa_ref, wv_ref, pos_ref,
                   inw_ref, outw_ref, f1w_ref, f2w_ref, vec_ref,
                   out_ref, *,
                   seq, batch_tile, embed_dim, num_heads, num_layers,
                   k_l, k_a, k_v, attn_mask):
    E = embed_dim
    H = num_heads
    DH = E // H
    scaling = DH ** -0.5
    f32 = jnp.float32
    bf16 = jnp.bfloat16

    def vrow(i, width):                       # one packed bias / LN row -> [1, width]
        return vec_ref[i:i + 1, :width]

    def layer_norm(h, row):                   # nn.LayerNorm(E), eps=1e-5 (f32)
        mu = jnp.mean(h, axis=-1, keepdims=True)
        xc = h - mu
        var = jnp.mean(xc * xc, axis=-1, keepdims=True)
        return xc * jax.lax.rsqrt(var + LN_EPS) * vrow(row, E) + vrow(row + 1, E)

    def conv_sum(x_ref, w_ref, k):            # Conv1d (no bias) as tap-sum of MXU matmuls
        acc = jnp.dot(x_ref[0], w_ref[0], preferred_element_type=f32)
        for j in range(1, k):
            acc = acc + jnp.dot(x_ref[j], w_ref[j], preferred_element_type=f32)
        return acc

    # --- modality projections (sqrt(E) folded into weights, zero-padded columns) ---
    # Each partial is a lane-dense [BT*seq, E] slab; summed in registers, + positions.
    x = (conv_sum(xl_ref, wl_ref, k_l)
         + conv_sum(xa_ref, wa_ref, k_a)
         + conv_sum(xv_ref, wv_ref, k_v)
         + pos_ref[...])                                      # [BT*seq, E] f32

    if attn_mask:  # hoisted out of the layer/head loops; finite constant (NaN-safe)
        r = jax.lax.broadcasted_iota(jnp.int32, (seq, seq), 0)
        c = jax.lax.broadcasted_iota(jnp.int32, (seq, seq), 1)
        neg_mask = jnp.where(c > r, NEG_INF, 0.0).astype(f32)

    # --- MulT-style pre-LN transformer encoder layers ---
    for l in range(num_layers):
        base = 8 * l

        # self-attention block
        y = layer_norm(x, base + 4).astype(bf16)
        qkv = (jnp.dot(y, inw_ref[l], preferred_element_type=f32)
               + vrow(base + 0, 3 * E))                       # [rows, 3E] f32
        q = (qkv[:, 0:E] * scaling).astype(bf16)
        kk = qkv[:, E:2 * E].astype(bf16)
        v = qkv[:, 2 * E:3 * E].astype(bf16)

        blocks = []
        for b in range(batch_tile):
            r0 = b * seq
            ctx = None                                        # register accumulator [seq, E]
            for h in range(H):
                lo = h * DH
                qh = q[r0:r0 + seq, lo:lo + DH]
                kh = kk[r0:r0 + seq, lo:lo + DH]
                vh = v[r0:r0 + seq, lo:lo + DH]
                s = jax.lax.dot_general(qh, kh, (((1,), (1,)), ((), ())),
                                        preferred_element_type=f32)   # [seq, seq]
                if attn_mask:
                    s = s + neg_mask
                s = s - jnp.max(s, axis=-1, keepdims=True)
                p = jnp.exp(s)
                denom = jnp.sum(p, axis=-1, keepdims=True)
                o = jnp.dot(p.astype(bf16), vh, preferred_element_type=f32)
                o = o * pl.reciprocal(denom, approx=True)     # normalize [seq,DH], EUP slot
                # fuse PV result with matching rows of out_proj -> lane-dense [seq, E]
                contrib = jnp.dot(o.astype(bf16), outw_ref[l, lo:lo + DH, :],
                                  preferred_element_type=f32)
                ctx = contrib if ctx is None else ctx + contrib
            blocks.append(ctx)
        attn = blocks[0] if batch_tile == 1 else jnp.concatenate(blocks, axis=0)
        x = x + attn + vrow(base + 1, E)                      # residual (+ out_proj bias)

        # position-wise feed-forward block
        y = layer_norm(x, base + 6).astype(bf16)
        hid = jnp.maximum(jnp.dot(y, f1w_ref[l], preferred_element_type=f32)
                          + vrow(base + 2, 4 * E), 0.0)
        x = x + jnp.dot(hid.astype(bf16), f2w_ref[l],
                        preferred_element_type=f32) + vrow(base + 3, E)

    # --- final LayerNorm, return time step 0 of every folded batch element ---
    x = layer_norm(x, 8 * num_layers)
    for b in range(batch_tile):
        out_ref[b:b + 1, :] = x[b * seq:b * seq + 1, :]


# --------------------------------------------------------------------------------------
# Host-side helpers
# --------------------------------------------------------------------------------------
def sinusoidal_positions(seq, dim):
    """fairseq SinusoidalPositionalEmbedding (padding_idx=0): positions 1..seq."""
    half = dim // 2
    freq = jnp.exp(jnp.arange(half, dtype=jnp.float32)
                   * -(math.log(10000.0) / (half - 1)))
    arg = jnp.arange(1, seq + 1, dtype=jnp.float32)[:, None] * freq[None, :]
    emb = jnp.concatenate([jnp.sin(arg), jnp.cos(arg)], axis=1)
    if dim % 2 == 1:
        emb = jnp.pad(emb, ((0, 0), (0, 1)))
    return emb


def pack_vec_slab(params, L, E):
    """All biases + LayerNorm vectors into one [8L+2, 4E] f32 slab (one DMA)."""
    width = 4 * E

    def row(v):
        v = v.reshape(-1)
        return jnp.pad(v, (0, width - v.shape[0]))

    rows = []
    for l in range(L):
        rows += [row(params["in_b"][l]), row(params["out_b"][l]),
                 row(params["fc1_b"][l]), row(params["fc2_b"][l]),
                 row(params["ln0_g"][l]), row(params["ln0_b"][l]),
                 row(params["ln1_g"][l]), row(params["ln1_b"][l])]
    rows += [row(params["lnf_g"]), row(params["lnf_b"])]
    return jnp.stack(rows, axis=0)


def _pick_batch_tile(B, seq):
    """Fold as many batch elements per grid step as possible while keeping the grid
    at >=2 steps (both v7x TensorCores busy) and <=512 rows per step."""
    if B <= 1:
        return 1
    cap = max(1, 512 // seq)
    return max(1, min(8, B // 2, cap))


def _tap_stack(x, k, num_blocks, batch_tile, seq):
    """x: [B_pad, seq, d] -> [num_blocks, k, BT*seq, d] bf16 tap-shifted stacks so the
    in-kernel conv is a plain tap-sum of [BT*seq, d] x [d, E] matmuls."""
    p = (k - 1) // 2
    xp = jnp.pad(x, ((0, 0), (p, p), (0, 0))) if p else x
    taps = jnp.stack([xp[:, j:j + seq, :] for j in range(k)], axis=1)  # [B_pad,k,seq,d]
    d = x.shape[-1]
    taps = taps.reshape(num_blocks, batch_tile, k, seq, d)
    taps = jnp.transpose(taps, (0, 2, 1, 3, 4)).reshape(num_blocks, k,
                                                        batch_tile * seq, d)
    return taps.astype(jnp.bfloat16)


def _pack_conv_w(w, col_off, E, scale):
    """[k, d, fd] conv weight -> [k, d, E] bf16, columns zero-padded into its feature
    block, sqrt(E) embed scale folded in."""
    k, d, fd = w.shape
    out = jnp.zeros((k, d, E), jnp.float32)
    out = out.at[:, :, col_off:col_off + fd].set(w * scale)
    return out.astype(jnp.bfloat16)


def fusion_forward(text_feat, audio_x, video_x, params, cfg, batch_tile=None):
    """text_feat: [B, seq, d_l] (pre-encoded text), audio_x: [B, seq, d_a],
    video_x: [B, seq, d_v].  Returns trans_seq[0]: [B, E]."""
    B, seq, _ = text_feat.shape
    fd_l, fd_a, fd_v = cfg["fus_d_l"], cfg["fus_d_a"], cfg["fus_d_v"]
    E = fd_l + fd_a + fd_v
    L, H = cfg["fus_layers"], cfg["fus_nheads"]
    k_l, k_a, k_v = (cfg["fus_conv1d_kernel_l"], cfg["fus_conv1d_kernel_a"],
                     cfg["fus_conv1d_kernel_v"])
    assert k_l % 2 == 1 and k_a % 2 == 1 and k_v % 2 == 1, "odd conv kernels expected"
    assert E % H == 0

    if batch_tile is None:
        batch_tile = _pick_batch_tile(B, seq)
    num_blocks = pl.cdiv(B, batch_tile)
    B_pad = num_blocks * batch_tile

    def pad_batch(x):
        return jnp.pad(x, ((0, B_pad - B), (0, 0), (0, 0))) if B_pad > B else x

    xl = _tap_stack(pad_batch(text_feat), k_l, num_blocks, batch_tile, seq)
    xa = _tap_stack(pad_batch(audio_x), k_a, num_blocks, batch_tile, seq)
    xv = _tap_stack(pad_batch(video_x), k_v, num_blocks, batch_tile, seq)

    embed_scale = math.sqrt(E)
    wl = _pack_conv_w(params["conv_l"], 0, E, embed_scale)
    wa = _pack_conv_w(params["conv_a"], fd_l, E, embed_scale)
    wv = _pack_conv_w(params["conv_v"], fd_l + fd_a, E, embed_scale)

    pos = jnp.tile(sinusoidal_positions(seq, E), (batch_tile, 1))  # [BT*seq, E] f32
    vec_slab = pack_vec_slab(params, L, E)                         # [8L+2, 4E] f32

    inw = params["in_w"].astype(jnp.bfloat16)
    outw = params["out_w"].astype(jnp.bfloat16)
    f1w = params["fc1_w"].astype(jnp.bfloat16)
    f2w = params["fc2_w"].astype(jnp.bfloat16)

    kern = functools.partial(
        _fusion_kernel, seq=seq, batch_tile=batch_tile, embed_dim=E,
        num_heads=H, num_layers=L, k_l=k_l, k_a=k_a, k_v=k_v,
        attn_mask=bool(cfg["fus_attn_mask"]))

    def tap_spec(a):
        _, k, r, d = a.shape
        return pl.BlockSpec((None, k, r, d), lambda g: (g, 0, 0, 0))

    def fixed_spec(a):
        nd = a.ndim
        return pl.BlockSpec(a.shape, lambda g, _nd=nd: (0,) * _nd)

    out = pl.pallas_call(
        kern,
        out_shape=jax.ShapeDtypeStruct((num_blocks, batch_tile, E), jnp.float32),
        grid=(num_blocks,),
        in_specs=[
            tap_spec(xl), tap_spec(xa), tap_spec(xv),
            fixed_spec(wl), fixed_spec(wa), fixed_spec(wv), fixed_spec(pos),
            fixed_spec(inw), fixed_spec(outw), fixed_spec(f1w), fixed_spec(f2w),
            fixed_spec(vec_slab),
        ],
        out_specs=pl.BlockSpec((None, batch_tile, E), lambda g: (g, 0, 0)),
        compiler_params=pltpu.CompilerParams(dimension_semantics=("parallel",)),
    )(xl, xa, xv, wl, wa, wv, pos, inw, outw, f1w, f2w, vec_slab)
    return out.reshape(B_pad, E)[:B]


# --------------------------------------------------------------------------------------
# Parameters + pure-JAX reference
# --------------------------------------------------------------------------------------
def init_params(key, cfg):
    d_l, d_a, d_v = cfg["feature_dims"]
    fd_l, fd_a, fd_v = cfg["fus_d_l"], cfg["fus_d_a"], cfg["fus_d_v"]
    E = fd_l + fd_a + fd_v
    L = cfg["fus_layers"]
    kit = iter(jax.random.split(key, 24))

    def mat(shape, fan_in):
        return jax.random.normal(next(kit), shape, jnp.float32) / jnp.sqrt(float(fan_in))

    def vec(shape, scale=0.01):
        return scale * jax.random.normal(next(kit), shape, jnp.float32)

    return {
        "conv_l": mat((cfg["fus_conv1d_kernel_l"], d_l, fd_l), d_l * cfg["fus_conv1d_kernel_l"]),
        "conv_a": mat((cfg["fus_conv1d_kernel_a"], d_a, fd_a), d_a * cfg["fus_conv1d_kernel_a"]),
        "conv_v": mat((cfg["fus_conv1d_kernel_v"], d_v, fd_v), d_v * cfg["fus_conv1d_kernel_v"]),
        "in_w": mat((L, E, 3 * E), E),      "in_b": vec((L, 3 * E)),
        "out_w": mat((L, E, E), E),         "out_b": vec((L, E)),
        "fc1_w": mat((L, E, 4 * E), E),     "fc1_b": vec((L, 4 * E)),
        "fc2_w": mat((L, 4 * E, E), 4 * E), "fc2_b": vec((L, E)),
        "ln0_g": 1.0 + vec((L, E), 0.1),    "ln0_b": vec((L, E), 0.1),
        "ln1_g": 1.0 + vec((L, E), 0.1),    "ln1_b": vec((L, E), 0.1),
        "lnf_g": 1.0 + vec((E,), 0.1),      "lnf_b": vec((E,), 0.1),
    }


def reference_forward(text_feat, audio_x, video_x, params, cfg):
    """Pure-JAX mirror of the PyTorch transformer_based forward (eval-mode dropout)."""
    fd_l, fd_a, fd_v = cfg["fus_d_l"], cfg["fus_d_a"], cfg["fus_d_v"]
    E = fd_l + fd_a + fd_v
    L, H = cfg["fus_layers"], cfg["fus_nheads"]
    DH = E // H
    B, seq, _ = text_feat.shape

    def conv1d(x, w, k):
        p = (k - 1) // 2
        return jax.lax.conv_general_dilated(
            x, w, window_strides=(1,), padding=[(p, p)],
            dimension_numbers=("NWC", "WIO", "NWC"))

    x = jnp.concatenate(
        [conv1d(text_feat, params["conv_l"], cfg["fus_conv1d_kernel_l"]),
         conv1d(audio_x, params["conv_a"], cfg["fus_conv1d_kernel_a"]),
         conv1d(video_x, params["conv_v"], cfg["fus_conv1d_kernel_v"])], axis=-1)
    x = x * math.sqrt(E) + sinusoidal_positions(seq, E)[None]

    def layer_norm(h, g, b):
        mu = jnp.mean(h, axis=-1, keepdims=True)
        var = jnp.mean((h - mu) ** 2, axis=-1, keepdims=True)
        return (h - mu) / jnp.sqrt(var + LN_EPS) * g + b

    for l in range(L):
        y = layer_norm(x, params["ln0_g"][l], params["ln0_b"][l])
        qkv = y @ params["in_w"][l] + params["in_b"][l]
        q, k, v = jnp.split(qkv, 3, axis=-1)
        q = q * (DH ** -0.5)
        qh = q.reshape(B, seq, H, DH)
        kh = k.reshape(B, seq, H, DH)
        vh = v.reshape(B, seq, H, DH)
        s = jnp.einsum("bqhd,bkhd->bhqk", qh, kh)
        if cfg["fus_attn_mask"]:
            s = s + jnp.triu(jnp.full((seq, seq), NEG_INF), k=1)
        p = jax.nn.softmax(s, axis=-1)
        o = jnp.einsum("bhqk,bkhd->bqhd", p, vh).reshape(B, seq, E)
        x = x + (o @ params["out_w"][l] + params["out_b"][l])
        y = layer_norm(x, params["ln1_g"][l], params["ln1_b"][l])
        h = jax.nn.relu(y @ params["fc1_w"][l] + params["fc1_b"][l])
        x = x + (h @ params["fc2_w"][l] + params["fc2_b"][l])

    x = layer_norm(x, params["lnf_g"], params["lnf_b"])
    return x[:, 0, :]


# --------------------------------------------------------------------------------------
if __name__ == "__main__":
    cfg = dict(
        feature_dims=(64, 16, 32),      # (d_l, d_a, d_v); d_l stands in for BERT's 768
        fus_d_l=64, fus_d_a=32, fus_d_v=32,          # E = 128 (lane-dense)
        fus_conv1d_kernel_l=1, fus_conv1d_kernel_a=3, fus_conv1d_kernel_v=3,
        fus_nheads=4, fus_layers=2,
        fus_attn_dropout=0.0, fus_relu_dropout=0.0, fus_res_dropout=0.0,
        fus_embed_dropout=0.0, fus_attn_mask=False,
    )
    B, seq = 4, 32                      # B=4 -> batch_tile=2, grid=(2,) (exercises folding)
    E = cfg["fus_d_l"] + cfg["fus_d_a"] + cfg["fus_d_v"]

    key = jax.random.PRNGKey(0)
    k_t, k_a, k_v, k_p = jax.random.split(key, 4)
    text_feat = jax.random.normal(k_t, (B, seq, cfg["feature_dims"][0]), jnp.float32)
    audio_x = jax.random.normal(k_a, (B, seq, cfg["feature_dims"][1]), jnp.float32)
    video_x = jax.random.normal(k_v, (B, seq, cfg["feature_dims"][2]), jnp.float32)
    params = init_params(k_p, cfg)

    out = fusion_forward(text_feat, audio_x, video_x, params, cfg)
    out = jax.block_until_ready(out)

    ref = reference_forward(text_feat, audio_x, video_x, params, cfg)
    assert out.shape == (B, E)
    max_err = float(jnp.max(jnp.abs(out - ref)))
    # kernel uses bf16 matmul inputs with f32 accumulation (LN/softmax/residuals in f32)
    assert jnp.allclose(out, ref, atol=2e-2, rtol=2e-2), f"mismatch vs reference (max err {max_err})"

    print("KERNEL_OK")
</pallas_src>

<mosaic_0001>
module attributes {stable_mosaic.version = 11 : i64} {
  func.func @_fusion_kernel(%arg0: i32, %arg1: memref<1x1x64x64xbf16, #tpu.memory_space<vmem>>, %arg2: memref<1x3x64x16xbf16, #tpu.memory_space<vmem>>, %arg3: memref<1x3x64x32xbf16, #tpu.memory_space<vmem>>, %arg4: memref<1x64x128xbf16, #tpu.memory_space<vmem>>, %arg5: memref<3x16x128xbf16, #tpu.memory_space<vmem>>, %arg6: memref<3x32x128xbf16, #tpu.memory_space<vmem>>, %arg7: memref<64x128xf32, #tpu.memory_space<vmem>>, %arg8: memref<2x128x384xbf16, #tpu.memory_space<vmem>>, %arg9: memref<2x128x128xbf16, #tpu.memory_space<vmem>>, %arg10: memref<2x128x512xbf16, #tpu.memory_space<vmem>>, %arg11: memref<2x512x128xbf16, #tpu.memory_space<vmem>>, %arg12: memref<18x512xf32, #tpu.memory_space<vmem>>, %arg13: memref<1x2x128xf32, #tpu.memory_space<vmem>>) attributes {dimension_semantics = [#tpu.dimension_semantics<parallel>], iteration_bounds = array<i64: 2>, scalar_prefetch = 0 : i64, scratch_operands = 0 : i64, tpu.core_type = #tpu.core_type<tc>, window_params = [{transform_indices = @transform_0, window_bounds = array<i64: 1, 1, 64, 64>}, {transform_indices = @transform_1, window_bounds = array<i64: 1, 3, 64, 16>}, {transform_indices = @transform_2, window_bounds = array<i64: 1, 3, 64, 32>}, {pipeline_mode = #tpu.pipeline_mode<synchronous>, transform_indices = @transform_3, window_bounds = array<i64: 1, 64, 128>}, {pipeline_mode = #tpu.pipeline_mode<synchronous>, transform_indices = @transform_4, window_bounds = array<i64: 3, 16, 128>}, {pipeline_mode = #tpu.pipeline_mode<synchronous>, transform_indices = @transform_5, window_bounds = array<i64: 3, 32, 128>}, {pipeline_mode = #tpu.pipeline_mode<synchronous>, transform_indices = @transform_6, window_bounds = array<i64: 64, 128>}, {pipeline_mode = #tpu.pipeline_mode<synchronous>, transform_indices = @transform_7, window_bounds = array<i64: 2, 128, 384>}, {pipeline_mode = #tpu.pipeline_mode<synchronous>, transform_indices = @transform_8, window_bounds = array<i64: 2, 128, 128>}, {pipeline_mode = #tpu.pipeline_mode<synchronous>, transform_indices = @transform_9, window_bounds = array<i64: 2, 128, 512>}, {pipeline_mode = #tpu.pipeline_mode<synchronous>, transform_indices = @transform_10, window_bounds = array<i64: 2, 512, 128>}, {pipeline_mode = #tpu.pipeline_mode<synchronous>, transform_indices = @transform_11, window_bounds = array<i64: 18, 512>}, {transform_indices = @transform_12, window_bounds = array<i64: 1, 2, 128>}]} {
    %c0 = arith.constant 0 : index
    %c0_0 = arith.constant 0 : index
    %c0_1 = arith.constant 0 : index
    %c0_2 = arith.constant 0 : index
    %0 = vector.load %arg1[%c0, %c0_0, %c0_1, %c0_2] : memref<1x1x64x64xbf16, #tpu.memory_space<vmem>>, vector<1x1x64x64xbf16>
    %1 = vector.shape_cast %0 : vector<1x1x64x64xbf16> to vector<64x64xbf16>
    %c0_3 = arith.constant 0 : index
    %c0_4 = arith.constant 0 : index
    %c0_5 = arith.constant 0 : index
    %2 = vector.load %arg4[%c0_3, %c0_4, %c0_5] : memref<1x64x128xbf16, #tpu.memory_space<vmem>>, vector<1x64x128xbf16>
    %3 = vector.shape_cast %2 : vector<1x64x128xbf16> to vector<64x128xbf16>
    %cst = arith.constant dense<0.000000e+00> : vector<64x128xf32>
    %4 = tpu.matmul %1, %3, %cst {dimension_numbers = #tpu.dot_dimension_numbers<[1], [0], [0], [1], [0, 0, 1, 1], [], []>} : vector<64x64xbf16>, vector<64x128xbf16>, vector<64x128xf32> -> vector<64x128xf32>
    %c0_6 = arith.constant 0 : index
    %c0_7 = arith.constant 0 : index
    %c0_8 = arith.constant 0 : index
    %c0_9 = arith.constant 0 : index
    %5 = vector.load %arg2[%c0_6, %c0_7, %c0_8, %c0_9] : memref<1x3x64x16xbf16, #tpu.memory_space<vmem>>, vector<1x1x64x16xbf16>
    %6 = vector.shape_cast %5 : vector<1x1x64x16xbf16> to vector<64x16xbf16>
    %c0_10 = arith.constant 0 : index
    %c0_11 = arith.constant 0 : index
    %c0_12 = arith.constant 0 : index
    %7 = vector.load %arg5[%c0_10, %c0_11, %c0_12] : memref<3x16x128xbf16, #tpu.memory_space<vmem>>, vector<1x16x128xbf16>
    %8 = vector.shape_cast %7 : vector<1x16x128xbf16> to vector<16x128xbf16>
    %cst_13 = arith.constant dense<0.000000e+00> : vector<64x128xf32>
    %9 = tpu.matmul %6, %8, %cst_13 {dimension_numbers = #tpu.dot_dimension_numbers<[1], [0], [0], [1], [0, 0, 1, 1], [], []>} : vector<64x16xbf16>, vector<16x128xbf16>, vector<64x128xf32> -> vector<64x128xf32>
    %c0_14 = arith.constant 0 : index
    %c1 = arith.constant 1 : index
    %c0_15 = arith.constant 0 : index
    %c0_16 = arith.constant 0 : index
    %10 = vector.load %arg2[%c0_14, %c1, %c0_15, %c0_16] : memref<1x3x64x16xbf16, #tpu.memory_space<vmem>>, vector<1x1x64x16xbf16>
    %11 = vector.shape_cast %10 : vector<1x1x64x16xbf16> to vector<64x16xbf16>
    %c1_17 = arith.constant 1 : index
    %c0_18 = arith.constant 0 : index
    %c0_19 = arith.constant 0 : index
    %12 = vector.load %arg5[%c1_17, %c0_18, %c0_19] : memref<3x16x128xbf16, #tpu.memory_space<vmem>>, vector<1x16x128xbf16>
    %13 = vector.shape_cast %12 : vector<1x16x128xbf16> to vector<16x128xbf16>
    %cst_20 = arith.constant dense<0.000000e+00> : vector<64x128xf32>
    %14 = tpu.matmul %11, %13, %cst_20 {dimension_numbers = #tpu.dot_dimension_numbers<[1], [0], [0], [1], [0, 0, 1, 1], [], []>} : vector<64x16xbf16>, vector<16x128xbf16>, vector<64x128xf32> -> vector<64x128xf32>
    %15 = arith.addf %9, %14 : vector<64x128xf32>
    %c0_21 = arith.constant 0 : index
    %c2 = arith.constant 2 : index
    %c0_22 = arith.constant 0 : index
    %c0_23 = arith.constant 0 : index
    %16 = vector.load %arg2[%c0_21, %c2, %c0_22, %c0_23] : memref<1x3x64x16xbf16, #tpu.memory_space<vmem>>, vector<1x1x64x16xbf16>
    %17 = vector.shape_cast %16 : vector<1x1x64x16xbf16> to vector<64x16xbf16>
    %c2_24 = arith.constant 2 : index
    %c0_25 = arith.constant 0 : index
    %c0_26 = arith.constant 0 : index
    %18 = vector.load %arg5[%c2_24, %c0_25, %c0_26] : memref<3x16x128xbf16, #tpu.memory_space<vmem>>, vector<1x16x128xbf16>
    %19 = vector.shape_cast %18 : vector<1x16x128xbf16> to vector<16x128xbf16>
    %cst_27 = arith.constant dense<0.000000e+00> : vector<64x128xf32>
    %20 = tpu.matmul %17, %19, %cst_27 {dimension_numbers = #tpu.dot_dimension_numbers<[1], [0], [0], [1], [0, 0, 1, 1], [], []>} : vector<64x16xbf16>, vector<16x128xbf16>, vector<64x128xf32> -> vector<64x128xf32>
    %21 = arith.addf %15, %20 : vector<64x128xf32>
    %22 = arith.addf %4, %21 : vector<64x128xf32>
    %c0_28 = arith.constant 0 : index
    %c0_29 = arith.constant 0 : index
    %c0_30 = arith.constant 0 : index
    %c0_31 = arith.constant 0 : index
    %23 = vector.load %arg3[%c0_28, %c0_29, %c0_30, %c0_31] : memref<1x3x64x32xbf16, #tpu.memory_space<vmem>>, vector<1x1x64x32xbf16>
    %24 = vector.shape_cast %23 : vector<1x1x64x32xbf16> to vector<64x32xbf16>
    %c0_32 = arith.constant 0 : index
    %c0_33 = arith.constant 0 : index
    %c0_34 = arith.constant 0 : index
    %25 = vector.load %arg6[%c0_32, %c0_33, %c0_34] : memref<3x32x128xbf16, #tpu.memory_space<vmem>>, vector<1x32x128xbf16>
    %26 = vector.shape_cast %25 : vector<1x32x128xbf16> to vector<32x128xbf16>
    %cst_35 = arith.constant dense<0.000000e+00> : vector<64x128xf32>
    %27 = tpu.matmul %24, %26, %cst_35 {dimension_numbers = #tpu.dot_dimension_numbers<[1], [0], [0], [1], [0, 0, 1, 1], [], []>} : vector<64x32xbf16>, vector<32x128xbf16>, vector<64x128xf32> -> vector<64x128xf32>
    %c0_36 = arith.constant 0 : index
    %c1_37 = arith.constant 1 : index
    %c0_38 = arith.constant 0 : index
    %c0_39 = arith.constant 0 : index
    %28 = vector.load %arg3[%c0_36, %c1_37, %c0_38, %c0_39] : memref<1x3x64x32xbf16, #tpu.memory_space<vmem>>, vector<1x1x64x32xbf16>
    %29 = vector.shape_cast %28 : vector<1x1x64x32xbf16> to vector<64x32xbf16>
    %c1_40 = arith.constant 1 : index
    %c0_41 = arith.constant 0 : index
    %c0_42 = arith.constant 0 : index
    %30 = vector.load %arg6[%c1_40, %c0_41, %c0_42] : memref<3x32x128xbf16, #tpu.memory_space<vmem>>, vector<1x32x128xbf16>
    %31 = vector.shape_cast %30 : vector<1x32x128xbf16> to vector<32x128xbf16>
    %cst_43 = arith.constant dense<0.000000e+00> : vector<64x128xf32>
    %32 = tpu.matmul %29, %31, %cst_43 {dimension_numbers = #tpu.dot_dimension_numbers<[1], [0], [0], [1], [0, 0, 1, 1], [], []>} : vector<64x32xbf16>, vector<32x128xbf16>, vector<64x128xf32> -> vector<64x128xf32>
    %33 = arith.addf %27, %32 : vector<64x128xf32>
    %c0_44 = arith.constant 0 : index
    %c2_45 = arith.constant 2 : index
    %c0_46 = arith.constant 0 : index
    %c0_47 = arith.constant 0 : index
    %34 = vector.load %arg3[%c0_44, %c2_45, %c0_46, %c0_47] : memref<1x3x64x32xbf16, #tpu.memory_space<vmem>>, vector<1x1x64x32xbf16>
    %35 = vector.shape_cast %34 : vector<1x1x64x32xbf16> to vector<64x32xbf16>
    %c2_48 = arith.constant 2 : index
    %c0_49 = arith.constant 0 : index
    %c0_50 = arith.constant 0 : index
    %36 = vector.load %arg6[%c2_48, %c0_49, %c0_50] : memref<3x32x128xbf16, #tpu.memory_space<vmem>>, vector<1x32x128xbf16>
    %37 = vector.shape_cast %36 : vector<1x32x128xbf16> to vector<32x128xbf16>
    %cst_51 = arith.constant dense<0.000000e+00> : vector<64x128xf32>
    %38 = tpu.matmul %35, %37, %cst_51 {dimension_numbers = #tpu.dot_dimension_numbers<[1], [0], [0], [1], [0, 0, 1, 1], [], []>} : vector<64x32xbf16>, vector<32x128xbf16>, vector<64x128xf32> -> vector<64x128xf32>
    %39 = arith.addf %33, %38 : vector<64x128xf32>
    %40 = arith.addf %22, %39 : vector<64x128xf32>
    %c0_52 = arith.constant 0 : index
    %c0_53 = arith.constant 0 : index
    %41 = vector.load %arg7[%c0_52, %c0_53] : memref<64x128xf32, #tpu.memory_space<vmem>>, vector<64x128xf32>
    %42 = arith.addf %40, %41 : vector<64x128xf32>
    %cst_54 = arith.constant dense<0.000000e+00> : vector<64xf32>
    %43 = vector.multi_reduction <add>, %42, %cst_54 [1] : vector<64x128xf32> to vector<64xf32>
    %44 = vector.shape_cast %43 : vector<64xf32> to vector<64x1xf32>
    %cst_55 = arith.constant 1.280000e+02 : f32
    %45 = vector.broadcast %cst_55 : f32 to vector<64x1xf32>
    %46 = arith.divf %44, %45 : vector<64x1xf32>
    %47 = vector.broadcast %46 : vector<64x1xf32> to vector<64x128xf32>
    %48 = arith.subf %42, %47 : vector<64x128xf32>
    %49 = arith.mulf %48, %48 : vector<64x128xf32>
    %cst_56 = arith.constant dense<0.000000e+00> : vector<64xf32>
    %50 = vector.multi_reduction <add>, %49, %cst_56 [1] : vector<64x128xf32> to vector<64xf32>
    %51 = vector.shape_cast %50 : vector<64xf32> to vector<64x1xf32>
    %cst_57 = arith.constant 1.280000e+02 : f32
    %52 = vector.broadcast %cst_57 : f32 to vector<64x1xf32>
    %53 = arith.divf %51, %52 : vector<64x1xf32>
    %cst_58 = arith.constant 9.99999974E-6 : f32
    %54 = vector.broadcast %cst_58 : f32 to vector<64x1xf32>
    %55 = arith.addf %53, %54 : vector<64x1xf32>
    %56 = math.rsqrt %55 : vector<64x1xf32>
    %57 = vector.broadcast %56 : vector<64x1xf32> to vector<64x128xf32>
    %58 = arith.mulf %48, %57 : vector<64x128xf32>
    %c4 = arith.constant 4 : index
    %c0_59 = arith.constant 0 : index
    %59 = vector.load %arg12[%c4, %c0_59] : memref<18x512xf32, #tpu.memory_space<vmem>>, vector<1x128xf32>
    %60 = vector.broadcast %59 : vector<1x128xf32> to vector<64x128xf32>
    %61 = arith.mulf %58, %60 : vector<64x128xf32>
    %c5 = arith.constant 5 : index
    %c0_60 = arith.constant 0 : index
    %62 = vector.load %arg12[%c5, %c0_60] : memref<18x512xf32, #tpu.memory_space<vmem>>, vector<1x128xf32>
    %63 = vector.broadcast %62 : vector<1x128xf32> to vector<64x128xf32>
    %64 = arith.addf %61, %63 : vector<64x128xf32>
    %65 = arith.truncf %64 : vector<64x128xf32> to vector<64x128xbf16>
    %c0_61 = arith.constant 0 : index
    %c0_62 = arith.constant 0 : index
    %c0_63 = arith.constant 0 : index
    %66 = vector.load %arg8[%c0_61, %c0_62, %c0_63] : memref<2x128x384xbf16, #tpu.memory_space<vmem>>, vector<1x128x384xbf16>
    %67 = vector.shape_cast %66 : vector<1x128x384xbf16> to vector<128x384xbf16>
    %cst_64 = arith.constant dense<0.000000e+00> : vector<64x384xf32>
    %68 = tpu.matmul %65, %67, %cst_64 {dimension_numbers = #tpu.dot_dimension_numbers<[1], [0], [0], [1], [0, 0, 1, 1], [], []>} : vector<64x128xbf16>, vector<128x384xbf16>, vector<64x384xf32> -> vector<64x384xf32>
    %c0_65 = arith.constant 0 : index
    %c0_66 = arith.constant 0 : index
    %69 = vector.load %arg12[%c0_65, %c0_66] : memref<18x512xf32, #tpu.memory_space<vmem>>, vector<1x384xf32>
    %70 = vector.broadcast %69 : vector<1x384xf32> to vector<64x384xf32>
    %71 = arith.addf %68, %70 : vector<64x384xf32>
    %72 = vector.extract_strided_slice %71 {offsets = [0, 0], sizes = [64, 128], strides = [1, 1]} : vector<64x384xf32> to vector<64x128xf32>
    %cst_67 = arith.constant 0.176776692 : f32
    %73 = vector.broadcast %cst_67 : f32 to vector<64x128xf32>
    %74 = arith.mulf %72, %73 : vector<64x128xf32>
    %75 = arith.truncf %74 : vector<64x128xf32> to vector<64x128xbf16>
    %76 = vector.extract_strided_slice %71 {offsets = [0, 128], sizes = [64, 128], strides = [1, 1]} : vector<64x384xf32> to vector<64x128xf32>
    %77 = arith.truncf %76 : vector<64x128xf32> to vector<64x128xbf16>
    %78 = vector.extract_strided_slice %71 {offsets = [0, 256], sizes = [64, 128], strides = [1, 1]} : vector<64x384xf32> to vector<64x128xf32>
    %79 = arith.truncf %78 : vector<64x128xf32> to vector<64x128xbf16>
    %80 = vector.extract_strided_slice %75 {offsets = [0, 0], sizes = [32, 32], strides = [1, 1]} : vector<64x128xbf16> to vector<32x32xbf16>
    %81 = vector.extract_strided_slice %77 {offsets = [0, 0], sizes = [32, 32], strides = [1, 1]} : vector<64x128xbf16> to vector<32x32xbf16>
    %82 = vector.extract_strided_slice %79 {offsets = [0, 0], sizes = [32, 32], strides = [1, 1]} : vector<64x128xbf16> to vector<32x32xbf16>
    %cst_68 = arith.constant dense<0.000000e+00> : vector<32x32xf32>
    %83 = tpu.matmul %80, %81, %cst_68 {dimension_numbers = #tpu.dot_dimension_numbers<[1], [1], [0], [0], [0, 0, 1, 0], [], []>} : vector<32x32xbf16>, vector<32x32xbf16>, vector<32x32xf32> -> vector<32x32xf32>
    %cst_69 = arith.constant dense<0xFF800000> : vector<32xf32>
    %84 = vector.multi_reduction <maximumf>, %83, %cst_69 [1] : vector<32x32xf32> to vector<32xf32>
    %85 = vector.shape_cast %84 : vector<32xf32> to vector<32x1xf32>
    %86 = vector.broadcast %85 : vector<32x1xf32> to vector<32x32xf32>
    %87 = arith.subf %83, %86 : vector<32x32xf32>
    %88 = math.exp %87 : vector<32x32xf32>
    %cst_70 = arith.constant dense<0.000000e+00> : vector<32xf32>
    %89 = vector.multi_reduction <add>, %88, %cst_70 [1] : vector<32x32xf32> to vector<32xf32>
    %90 = vector.shape_cast %89 : vector<32xf32> to vector<32x1xf32>
    %91 = arith.truncf %88 : vector<32x32xf32> to vector<32x32xbf16>
    %cst_71 = arith.constant dense<0.000000e+00> : vector<32x32xf32>
    %92 = tpu.matmul %91, %82, %cst_71 {dimension_numbers = #tpu.dot_dimension_numbers<[1], [0], [0], [1], [0, 0, 1, 1], [], []>} : vector<32x32xbf16>, vector<32x32xbf16>, vector<32x32xf32> -> vector<32x32xf32>
    %93 = tpu.reciprocal %90 {approx = true} : vector<32x1xf32> -> vector<32x1xf32>
    %94 = vector.broadcast %93 : vector<32x1xf32> to vector<32x32xf32>
    %95 = arith.mulf %92, %94 : vector<32x32xf32>
    %96 = arith.truncf %95 : vector<32x32xf32> to vector<32x32xbf16>
    %c0_72 = arith.constant 0 : index
    %c0_73 = arith.constant 0 : index
    %c0_74 = arith.constant 0 : index
    %97 = vector.load %arg9[%c0_72, %c0_73, %c0_74] : memref<2x128x128xbf16, #tpu.memory_space<vmem>>, vector<1x32x128xbf16>
    %98 = vector.shape_cast %97 : vector<1x32x128xbf16> to vector<32x128xbf16>
    %cst_75 = arith.constant dense<0.000000e+00> : vector<32x128xf32>
    %99 = tpu.matmul %96, %98, %cst_75 {dimension_numbers = #tpu.dot_dimension_numbers<[1], [0], [0], [1], [0, 0, 1, 1], [], []>} : vector<32x32xbf16>, vector<32x128xbf16>, vector<32x128xf32> -> vector<32x128xf32>
    %100 = vector.extract_strided_slice %75 {offsets = [0, 32], sizes = [32, 32], strides = [1, 1]} : vector<64x128xbf16> to vector<32x32xbf16>
    %101 = vector.extract_strided_slice %77 {offsets = [0, 32], sizes = [32, 32], strides = [1, 1]} : vector<64x128xbf16> to vector<32x32xbf16>
    %102 = vector.extract_strided_slice %79 {offsets = [0, 32], sizes = [32, 32], strides = [1, 1]} : vector<64x128xbf16> to vector<32x32xbf16>
    %cst_76 = arith.constant dense<0.000000e+00> : vector<32x32xf32>
    %103 = tpu.matmul %100, %101, %cst_76 {dimension_numbers = #tpu.dot_dimension_numbers<[1], [1], [0], [0], [0, 0, 1, 0], [], []>} : vector<32x32xbf16>, vector<32x32xbf16>, vector<32x32xf32> -> vector<32x32xf32>
    %cst_77 = arith.constant dense<0xFF800000> : vector<32xf32>
    %104 = vector.multi_reduction <maximumf>, %103, %cst_77 [1] : vector<32x32xf32> to vector<32xf32>
    %105 = vector.shape_cast %104 : vector<32xf32> to vector<32x1xf32>
    %106 = vector.broadcast %105 : vector<32x1xf32> to vector<32x32xf32>
    %107 = arith.subf %103, %106 : vector<32x32xf32>
    %108 = math.exp %107 : vector<32x32xf32>
    %cst_78 = arith.constant dense<0.000000e+00> : vector<32xf32>
    %109 = vector.multi_reduction <add>, %108, %cst_78 [1] : vector<32x32xf32> to vector<32xf32>
    %110 = vector.shape_cast %109 : vector<32xf32> to vector<32x1xf32>
    %111 = arith.truncf %108 : vector<32x32xf32> to vector<32x32xbf16>
    %cst_79 = arith.constant dense<0.000000e+00> : vector<32x32xf32>
    %112 = tpu.matmul %111, %102, %cst_79 {dimension_numbers = #tpu.dot_dimension_numbers<[1], [0], [0], [1], [0, 0, 1, 1], [], []>} : vector<32x32xbf16>, vector<32x32xbf16>, vector<32x32xf32> -> vector<32x32xf32>
    %113 = tpu.reciprocal %110 {approx = true} : vector<32x1xf32> -> vector<32x1xf32>
    %114 = vector.broadcast %113 : vector<32x1xf32> to vector<32x32xf32>
    %115 = arith.mulf %112, %114 : vector<32x32xf32>
    %116 = arith.truncf %115 : vector<32x32xf32> to vector<32x32xbf16>
    %c0_80 = arith.constant 0 : index
    %c32 = arith.constant 32 : index
    %c0_81 = arith.constant 0 : index
    %117 = vector.load %arg9[%c0_80, %c32, %c0_81] : memref<2x128x128xbf16, #tpu.memory_space<vmem>>, vector<1x32x128xbf16>
    %118 = vector.shape_cast %117 : vector<1x32x128xbf16> to vector<32x128xbf16>
    %cst_82 = arith.constant dense<0.000000e+00> : vector<32x128xf32>
    %119 = tpu.matmul %116, %118, %cst_82 {dimension_numbers = #tpu.dot_dimension_numbers<[1], [0], [0], [1], [0, 0, 1, 1], [], []>} : vector<32x32xbf16>, vector<32x128xbf16>, vector<32x128xf32> -> vector<32x128xf32>
    %120 = arith.addf %99, %119 : vector<32x128xf32>
    %121 = vector.extract_strided_slice %75 {offsets = [0, 64], sizes = [32, 32], strides = [1, 1]} : vector<64x128xbf16> to vector<32x32xbf16>
    %122 = vector.extract_strided_slice %77 {offsets = [0, 64], sizes = [32, 32], strides = [1, 1]} : vector<64x128xbf16> to vector<32x32xbf16>
    %123 = vector.extract_strided_slice %79 {offsets = [0, 64], sizes = [32, 32], strides = [1, 1]} : vector<64x128xbf16> to vector<32x32xbf16>
    %cst_83 = arith.constant dense<0.000000e+00> : vector<32x32xf32>
    %124 = tpu.matmul %121, %122, %cst_83 {dimension_numbers = #tpu.dot_dimension_numbers<[1], [1], [0], [0], [0, 0, 1, 0], [], []>} : vector<32x32xbf16>, vector<32x32xbf16>, vector<32x32xf32> -> vector<32x32xf32>
    %cst_84 = arith.constant dense<0xFF800000> : vector<32xf32>
    %125 = vector.multi_reduction <maximumf>, %124, %cst_84 [1] : vector<32x32xf32> to vector<32xf32>
    %126 = vector.shape_cast %125 : vector<32xf32> to vector<32x1xf32>
    %127 = vector.broadcast %126 : vector<32x1xf32> to vector<32x32xf32>
    %128 = arith.subf %124, %127 : vector<32x32xf32>
    %129 = math.exp %128 : vector<32x32xf32>
    %cst_85 = arith.constant dense<0.000000e+00> : vector<32xf32>
    %130 = vector.multi_reduction <add>, %129, %cst_85 [1] : vector<32x32xf32> to vector<32xf32>
    %131 = vector.shape_cast %130 : vector<32xf32> to vector<32x1xf32>
    %132 = arith.truncf %129 : vector<32x32xf32> to vector<32x32xbf16>
    %cst_86 = arith.constant dense<0.000000e+00> : vector<32x32xf32>
    %133 = tpu.matmul %132, %123, %cst_86 {dimension_numbers = #tpu.dot_dimension_numbers<[1], [0], [0], [1], [0, 0, 1, 1], [], []>} : vector<32x32xbf16>, vector<32x32xbf16>, vector<32x32xf32> -> vector<32x32xf32>
    %134 = tpu.reciprocal %131 {approx = true} : vector<32x1xf32> -> vector<32x1xf32>
    %135 = vector.broadcast %134 : vector<32x1xf32> to vector<32x32xf32>
    %136 = arith.mulf %133, %135 : vector<32x32xf32>
    %137 = arith.truncf %136 : vector<32x32xf32> to vector<32x32xbf16>
    %c0_87 = arith.constant 0 : index
    %c64 = arith.constant 64 : index
    %c0_88 = arith.constant 0 : index
    %138 = vector.load %arg9[%c0_87, %c64, %c0_88] : memref<2x128x128xbf16, #tpu.memory_space<vmem>>, vector<1x32x128xbf16>
    %139 = vector.shape_cast %138 : vector<1x32x128xbf16> to vector<32x128xbf16>
    %cst_89 = arith.constant dense<0.000000e+00> : vector<32x128xf32>
    %140 = tpu.matmul %137, %139, %cst_89 {dimension_numbers = #tpu.dot_dimension_numbers<[1], [0], [0], [1], [0, 0, 1, 1], [], []>} : vector<32x32xbf16>, vector<32x128xbf16>, vector<32x128xf32> -> vector<32x128xf32>
    %141 = arith.addf %120, %140 : vector<32x128xf32>
    %142 = vector.extract_strided_slice %75 {offsets = [0, 96], sizes = [32, 32], strides = [1, 1]} : vector<64x128xbf16> to vector<32x32xbf16>
    %143 = vector.extract_strided_slice %77 {offsets = [0, 96], sizes = [32, 32], strides = [1, 1]} : vector<64x128xbf16> to vector<32x32xbf16>
    %144 = vector.extract_strided_slice %79 {offsets = [0, 96], sizes = [32, 32], strides = [1, 1]} : vector<64x128xbf16> to vector<32x32xbf16>
    %cst_90 = arith.constant dense<0.000000e+00> : vector<32x32xf32>
    %145 = tpu.matmul %142, %143, %cst_90 {dimension_numbers = #tpu.dot_dimension_numbers<[1], [1], [0], [0], [0, 0, 1, 0], [], []>} : vector<32x32xbf16>, vector<32x32xbf16>, vector<32x32xf32> -> vector<32x32xf32>
    %cst_91 = arith.constant dense<0xFF800000> : vector<32xf32>
    %146 = vector.multi_reduction <maximumf>, %145, %cst_91 [1] : vector<32x32xf32> to vector<32xf32>
    %147 = vector.shape_cast %146 : vector<32xf32> to vector<32x1xf32>
    %148 = vector.broadcast %147 : vector<32x1xf32> to vector<32x32xf32>
    %149 = arith.subf %145, %148 : vector<32x32xf32>
    %150 = math.exp %149 : vector<32x32xf32>
    %cst_92 = arith.constant dense<0.000000e+00> : vector<32xf32>
    %151 = vector.multi_reduction <add>, %150, %cst_92 [1] : vector<32x32xf32> to vector<32xf32>
    %152 = vector.shape_cast %151 : vector<32xf32> to vector<32x1xf32>
    %153 = arith.truncf %150 : vector<32x32xf32> to vector<32x32xbf16>
    %cst_93 = arith.constant dense<0.000000e+00> : vector<32x32xf32>
    %154 = tpu.matmul %153, %144, %cst_93 {dimension_numbers = #tpu.dot_dimension_numbers<[1], [0], [0], [1], [0, 0, 1, 1], [], []>} : vector<32x32xbf16>, vector<32x32xbf16>, vector<32x32xf32> -> vector<32x32xf32>
    %155 = tpu.reciprocal %152 {approx = true} : vector<32x1xf32> -> vector<32x1xf32>
    %156 = vector.broadcast %155 : vector<32x1xf32> to vector<32x32xf32>
    %157 = arith.mulf %154, %156 : vector<32x32xf32>
    %158 = arith.truncf %157 : vector<32x32xf32> to vector<32x32xbf16>
    %c0_94 = arith.constant 0 : index
    %c96 = arith.constant 96 : index
    %c0_95 = arith.constant 0 : index
    %159 = vector.load %arg9[%c0_94, %c96, %c0_95] : memref<2x128x128xbf16, #tpu.memory_space<vmem>>, vector<1x32x128xbf16>
    %160 = vector.shape_cast %159 : vector<1x32x128xbf16> to vector<32x128xbf16>
    %cst_96 = arith.constant dense<0.000000e+00> : vector<32x128xf32>
    %161 = tpu.matmul %158, %160, %cst_96 {dimension_numbers = #tpu.dot_dimension_numbers<[1], [0], [0], [1], [0, 0, 1, 1], [], []>} : vector<32x32xbf16>, vector<32x128xbf16>, vector<32x128xf32> -> vector<32x128xf32>
    %162 = arith.addf %141, %161 : vector<32x128xf32>
    %163 = vector.extract_strided_slice %75 {offsets = [32, 0], sizes = [32, 32], strides = [1, 1]} : vector<64x128xbf16> to vector<32x32xbf16>
    %164 = vector.extract_strided_slice %77 {offsets = [32, 0], sizes = [32, 32], strides = [1, 1]} : vector<64x128xbf16> to vector<32x32xbf16>
    %165 = vector.extract_strided_slice %79 {offsets = [32, 0], sizes = [32, 32], strides = [1, 1]} : vector<64x128xbf16> to vector<32x32xbf16>
    %cst_97 = arith.constant dense<0.000000e+00> : vector<32x32xf32>
    %166 = tpu.matmul %163, %164, %cst_97 {dimension_numbers = #tpu.dot_dimension_numbers<[1], [1], [0], [0], [0, 0, 1, 0], [], []>} : vector<32x32xbf16>, vector<32x32xbf16>, vector<32x32xf32> -> vector<32x32xf32>
    %cst_98 = arith.constant dense<0xFF800000> : vector<32xf32>
    %167 = vector.multi_reduction <maximumf>, %166, %cst_98 [1] : vector<32x32xf32> to vector<32xf32>
    %168 = vector.shape_cast %167 : vector<32xf32> to vector<32x1xf32>
    %169 = vector.broadcast %168 : vector<32x1xf32> to vector<32x32xf32>
    %170 = arith.subf %166, %169 : vector<32x32xf32>
    %171 = math.exp %170 : vector<32x32xf32>
    %cst_99 = arith.constant dense<0.000000e+00> : vector<32xf32>
    %172 = vector.multi_reduction <add>, %171, %cst_99 [1] : vector<32x32xf32> to vector<32xf32>
    %173 = vector.shape_cast %172 : vector<32xf32> to vector<32x1xf32>
    %174 = arith.truncf %171 : vector<32x32xf32> to vector<32x32xbf16>
    %cst_100 = arith.constant dense<0.000000e+00> : vector<32x32xf32>
    %175 = tpu.matmul %174, %165, %cst_100 {dimension_numbers = #tpu.dot_dimension_numbers<[1], [0], [0], [1], [0, 0, 1, 1], [], []>} : vector<32x32xbf16>, vector<32x32xbf16>, vector<32x32xf32> -> vector<32x32xf32>
    %176 = tpu.reciprocal %173 {approx = true} : vector<32x1xf32> -> vector<32x1xf32>
    %177 = vector.broadcast %176 : vector<32x1xf32> to vector<32x32xf32>
    %178 = arith.mulf %175, %177 : vector<32x32xf32>
    %179 = arith.truncf %178 : vector<32x32xf32> to vector<32x32xbf16>
    %c0_101 = arith.constant 0 : index
    %c0_102 = arith.constant 0 : index
    %c0_103 = arith.constant 0 : index
    %180 = vector.load %arg9[%c0_101, %c0_102, %c0_103] : memref<2x128x128xbf16, #tpu.memory_space<vmem>>, vector<1x32x128xbf16>
    %181 = vector.shape_cast %180 : vector<1x32x128xbf16> to vector<32x128xbf16>
    %cst_104 = arith.constant dense<0.000000e+00> : vector<32x128xf32>
    %182 = tpu.matmul %179, %181, %cst_104 {dimension_numbers = #tpu.dot_dimension_numbers<[1], [0], [0], [1], [0, 0, 1, 1], [], []>} : vector<32x32xbf16>, vector<32x128xbf16>, vector<32x128xf32> -> vector<32x128xf32>
    %183 = vector.extract_strided_slice %75 {offsets = [32, 32], sizes = [32, 32], strides = [1, 1]} : vector<64x128xbf16> to vector<32x32xbf16>
    %184 = vector.extract_strided_slice %77 {offsets = [32, 32], sizes = [32, 32], strides = [1, 1]} : vector<64x128xbf16> to vector<32x32xbf16>
    %185 = vector.extract_strided_slice %79 {offsets = [32, 32], sizes = [32, 32], strides = [1, 1]} : vector<64x128xbf16> to vector<32x32xbf16>
    %cst_105 = arith.constant dense<0.000000e+00> : vector<32x32xf32>
    %186 = tpu.matmul %183, %184, %cst_105 {dimension_numbers = #tpu.dot_dimension_numbers<[1], [1], [0], [0], [0, 0, 1, 0], [], []>} : vector<32x32xbf16>, vector<32x32xbf16>, vector<32x32xf32> -> vector<32x32xf32>
    %cst_106 = arith.constant dense<0xFF800000> : vector<32xf32>
    %187 = vector.multi_reduction <maximumf>, %186, %cst_106 [1] : vector<32x32xf32> to vector<32xf32>
    %188 = vector.shape_cast %187 : vector<32xf32> to vector<32x1xf32>
    %189 = vector.broadcast %188 : vector<32x1xf32> to vector<32x32xf32>
    %190 = arith.subf %186, %189 : vector<32x32xf32>
    %191 = math.exp %190 : vector<32x32xf32>
    %cst_107 = arith.constant dense<0.000000e+00> : vector<32xf32>
    %192 = vector.multi_reduction <add>, %191, %cst_107 [1] : vector<32x32xf32> to vector<32xf32>
    %193 = vector.shape_cast %192 : vector<32xf32> to vector<32x1xf32>
    %194 = arith.truncf %191 : vector<32x32xf32> to vector<32x32xbf16>
    %cst_108 = arith.constant dense<0.000000e+00> : vector<32x32xf32>
    %195 = tpu.matmul %194, %185, %cst_108 {dimension_numbers = #tpu.dot_dimension_numbers<[1], [0], [0], [1], [0, 0, 1, 1], [], []>} : vector<32x32xbf16>, vector<32x32xbf16>, vector<32x32xf32> -> vector<32x32xf32>
    %196 = tpu.reciprocal %193 {approx = true} : vector<32x1xf32> -> vector<32x1xf32>
    %197 = vector.broadcast %196 : vector<32x1xf32> to vector<32x32xf32>
    %198 = arith.mulf %195, %197 : vector<32x32xf32>
    %199 = arith.truncf %198 : vector<32x32xf32> to vector<32x32xbf16>
    %c0_109 = arith.constant 0 : index
    %c32_110 = arith.constant 32 : index
    %c0_111 = arith.constant 0 : index
    %200 = vector.load %arg9[%c0_109, %c32_110, %c0_111] : memref<2x128x128xbf16, #tpu.memory_space<vmem>>, vector<1x32x128xbf16>
    %201 = vector.shape_cast %200 : vector<1x32x128xbf16> to vector<32x128xbf16>
    %cst_112 = arith.constant dense<0.000000e+00> : vector<32x128xf32>
    %202 = tpu.matmul %199, %201, %cst_112 {dimension_numbers = #tpu.dot_dimension_numbers<[1], [0], [0], [1], [0, 0, 1, 1], [], []>} : vector<32x32xbf16>, vector<32x128xbf16>, vector<32x128xf32> -> vector<32x128xf32>
    %203 = arith.addf %182, %202 : vector<32x128xf32>
    %204 = vector.extract_strided_slice %75 {offsets = [32, 64], sizes = [32, 32], strides = [1, 1]} : vector<64x128xbf16> to vector<32x32xbf16>
    %205 = vector.extract_strided_slice %77 {offsets = [32, 64], sizes = [32, 32], strides = [1, 1]} : vector<64x128xbf16> to vector<32x32xbf16>
    %206 = vector.extract_strided_slice %79 {offsets = [32, 64], sizes = [32, 32], strides = [1, 1]} : vector<64x128xbf16> to vector<32x32xbf16>
    %cst_113 = arith.constant dense<0.000000e+00> : vector<32x32xf32>
    %207 = tpu.matmul %204, %205, %cst_113 {dimension_numbers = #tpu.dot_dimension_numbers<[1], [1], [0], [0], [0, 0, 1, 0], [], []>} : vector<32x32xbf16>, vector<32x32xbf16>, vector<32x32xf32> -> vector<32x32xf32>
    %cst_114 = arith.constant dense<0xFF800000> : vector<32xf32>
    %208 = vector.multi_reduction <maximumf>, %207, %cst_114 [1] : vector<32x32xf32> to vector<32xf32>
    %209 = vector.shape_cast %208 : vector<32xf32> to vector<32x1xf32>
    %210 = vector.broadcast %209 : vector<32x1xf32> to vector<32x32xf32>
    %211 = arith.subf %207, %210 : vector<32x32xf32>
    %212 = math.exp %211 : vector<32x32xf32>
    %cst_115 = arith.constant dense<0.000000e+00> : vector<32xf32>
    %213 = vector.multi_reduction <add>, %212, %cst_115 [1] : vector<32x32xf32> to vector<32xf32>
    %214 = vector.shape_cast %213 : vector<32xf32> to vector<32x1xf32>
    %215 = arith.truncf %212 : vector<32x32xf32> to vector<32x32xbf16>
    %cst_116 = arith.constant dense<0.000000e+00> : vector<32x32xf32>
    %216 = tpu.matmul %215, %206, %cst_116 {dimension_numbers = #tpu.dot_dimension_numbers<[1], [0], [0], [1], [0, 0, 1, 1], [], []>} : vector<32x32xbf16>, vector<32x32xbf16>, vector<32x32xf32> -> vector<32x32xf32>
    %217 = tpu.reciprocal %214 {approx = true} : vector<32x1xf32> -> vector<32x1xf32>
    %218 = vector.broadcast %217 : vector<32x1xf32> to vector<32x32xf32>
    %219 = arith.mulf %216, %218 : vector<32x32xf32>
    %220 = arith.truncf %219 : vector<32x32xf32> to vector<32x32xbf16>
    %c0_117 = arith.constant 0 : index
    %c64_118 = arith.constant 64 : index
    %c0_119 = arith.constant 0 : index
    %221 = vector.load %arg9[%c0_117, %c64_118, %c0_119] : memref<2x128x128xbf16, #tpu.memory_space<vmem>>, vector<1x32x128xbf16>
    %222 = vector.shape_cast %221 : vector<1x32x128xbf16> to vector<32x128xbf16>
    %cst_120 = arith.constant dense<0.000000e+00> : vector<32x128xf32>
    %223 = tpu.matmul %220, %222, %cst_120 {dimension_numbers = #tpu.dot_dimension_numbers<[1], [0], [0], [1], [0, 0, 1, 1], [], []>} : vector<32x32xbf16>, vector<32x128xbf16>, vector<32x128xf32> -> vector<32x128xf32>
    %224 = arith.addf %203, %223 : vector<32x128xf32>
    %225 = vector.extract_strided_slice %75 {offsets = [32, 96], sizes = [32, 32], strides = [1, 1]} : vector<64x128xbf16> to vector<32x32xbf16>
    %226 = vector.extract_strided_slice %77 {offsets = [32, 96], sizes = [32, 32], strides = [1, 1]} : vector<64x128xbf16> to vector<32x32xbf16>
    %227 = vector.extract_strided_slice %79 {offsets = [32, 96], sizes = [32, 32], strides = [1, 1]} : vector<64x128xbf16> to vector<32x32xbf16>
    %cst_121 = arith.constant dense<0.000000e+00> : vector<32x32xf32>
    %228 = tpu.matmul %225, %226, %cst_121 {dimension_numbers = #tpu.dot_dimension_numbers<[1], [1], [0], [0], [0, 0, 1, 0], [], []>} : vector<32x32xbf16>, vector<32x32xbf16>, vector<32x32xf32> -> vector<32x32xf32>
    %cst_122 = arith.constant dense<0xFF800000> : vector<32xf32>
    %229 = vector.multi_reduction <maximumf>, %228, %cst_122 [1] : vector<32x32xf32> to vector<32xf32>
    %230 = vector.shape_cast %229 : vector<32xf32> to vector<32x1xf32>
    %231 = vector.broadcast %230 : vector<32x1xf32> to vector<32x32xf32>
    %232 = arith.subf %228, %231 : vector<32x32xf32>
    %233 = math.exp %232 : vector<32x32xf32>
    %cst_123 = arith.constant dense<0.000000e+00> : vector<32xf32>
    %234 = vector.multi_reduction <add>, %233, %cst_123 [1] : vector<32x32xf32> to vector<32xf32>
    %235 = vector.shape_cast %234 : vector<32xf32> to vector<32x1xf32>
    %236 = arith.truncf %233 : vector<32x32xf32> to vector<32x32xbf16>
    %cst_124 = arith.constant dense<0.000000e+00> : vector<32x32xf32>
    %237 = tpu.matmul %236, %227, %cst_124 {dimension_numbers = #tpu.dot_dimension_numbers<[1], [0], [0], [1], [0, 0, 1, 1], [], []>} : vector<32x32xbf16>, vector<32x32xbf16>, vector<32x32xf32> -> vector<32x32xf32>
    %238 = tpu.reciprocal %235 {approx = true} : vector<32x1xf32> -> vector<32x1xf32>
    %239 = vector.broadcast %238 : vector<32x1xf32> to vector<32x32xf32>
    %240 = arith.mulf %237, %239 : vector<32x32xf32>
    %241 = arith.truncf %240 : vector<32x32xf32> to vector<32x32xbf16>
    %c0_125 = arith.constant 0 : index
    %c96_126 = arith.constant 96 : index
    %c0_127 = arith.constant 0 : index
    %242 = vector.load %arg9[%c0_125, %c96_126, %c0_127] : memref<2x128x128xbf16, #tpu.memory_space<vmem>>, vector<1x32x128xbf16>
    %243 = vector.shape_cast %242 : vector<1x32x128xbf16> to vector<32x128xbf16>
    %cst_128 = arith.constant dense<0.000000e+00> : vector<32x128xf32>
    %244 = tpu.matmul %241, %243, %cst_128 {dimension_numbers = #tpu.dot_dimension_numbers<[1], [0], [0], [1], [0, 0, 1, 1], [], []>} : vector<32x32xbf16>, vector<32x128xbf16>, vector<32x128xf32> -> vector<32x128xf32>
    %245 = arith.addf %224, %244 : vector<32x128xf32>
    %246 = tpu.concatenate %162, %245 in 0 : vector<32x128xf32>, vector<32x128xf32> -> vector<64x128xf32>
    %247 = arith.addf %42, %246 : vector<64x128xf32>
    %c1_129 = arith.constant 1 : index
    %c0_130 = arith.constant 0 : index
    %248 = vector.load %arg12[%c1_129, %c0_130] : memref<18x512xf32, #tpu.memory_space<vmem>>, vector<1x128xf32>
    %249 = vector.broadcast %248 : vector<1x128xf32> to vector<64x128xf32>
    %250 = arith.addf %247, %249 : vector<64x128xf32>
    %cst_131 = arith.constant dense<0.000000e+00> : vector<64xf32>
    %251 = vector.multi_reduction <add>, %250, %cst_131 [1] : vector<64x128xf32> to vector<64xf32>
    %252 = vector.shape_cast %251 : vector<64xf32> to vector<64x1xf32>
    %cst_132 = arith.constant 1.280000e+02 : f32
    %253 = vector.broadcast %cst_132 : f32 to vector<64x1xf32>
    %254 = arith.divf %252, %253 : vector<64x1xf32>
    %255 = vector.broadcast %254 : vector<64x1xf32> to vector<64x128xf32>
    %256 = arith.subf %250, %255 : vector<64x128xf32>
    %257 = arith.mulf %256, %256 : vector<64x128xf32>
    %cst_133 = arith.constant dense<0.000000e+00> : vector<64xf32>
    %258 = vector.multi_reduction <add>, %257, %cst_133 [1] : vector<64x128xf32> to vector<64xf32>
    %259 = vector.shape_cast %258 : vector<64xf32> to vector<64x1xf32>
    %cst_134 = arith.constant 1.280000e+02 : f32
    %260 = vector.broadcast %cst_134 : f32 to vector<64x1xf32>
    %261 = arith.divf %259, %260 : vector<64x1xf32>
    %cst_135 = arith.constant 9.99999974E-6 : f32
    %262 = vector.broadcast %cst_135 : f32 to vector<64x1xf32>
    %263 = arith.addf %261, %262 : vector<64x1xf32>
    %264 = math.rsqrt %263 : vector<64x1xf32>
    %265 = vector.broadcast %264 : vector<64x1xf32> to vector<64x128xf32>
    %266 = arith.mulf %256, %265 : vector<64x128xf32>
    %c6 = arith.constant 6 : index
    %c0_136 = arith.constant 0 : index
    %267 = vector.load %arg12[%c6, %c0_136] : memref<18x512xf32, #tpu.memory_space<vmem>>, vector<1x128xf32>
    %268 = vector.broadcast %267 : vector<1x128xf32> to vector<64x128xf32>
    %269 = arith.mulf %266, %268 : vector<64x128xf32>
    %c7 = arith.constant 7 : index
    %c0_137 = arith.constant 0 : index
    %270 = vector.load %arg12[%c7, %c0_137] : memref<18x512xf32, #tpu.memory_space<vmem>>, vector<1x128xf32>
    %271 = vector.broadcast %270 : vector<1x128xf32> to vector<64x128xf32>
    %272 = arith.addf %269, %271 : vector<64x128xf32>
    %273 = arith.truncf %272 : vector<64x128xf32> to vector<64x128xbf16>
    %c0_138 = arith.constant 0 : index
    %c0_139 = arith.constant 0 : index
    %c0_140 = arith.constant 0 : index
    %274 = vector.load %arg10[%c0_138, %c0_139, %c0_140] : memref<2x128x512xbf16, #tpu.memory_space<vmem>>, vector<1x128x512xbf16>
    %275 = vector.shape_cast %274 : vector<1x128x512xbf16> to vector<128x512xbf16>
    %cst_141 = arith.constant dense<0.000000e+00> : vector<64x512xf32>
    %276 = tpu.matmul %273, %275, %cst_141 {dimension_numbers = #tpu.dot_dimension_numbers<[1], [0], [0], [1], [0, 0, 1, 1], [], []>} : vector<64x128xbf16>, vector<128x512xbf16>, vector<64x512xf32> -> vector<64x512xf32>
    %c2_142 = arith.constant 2 : index
    %c0_143 = arith.constant 0 : index
    %277 = vector.load %arg12[%c2_142, %c0_143] : memref<18x512xf32, #tpu.memory_space<vmem>>, vector<1x512xf32>
    %278 = vector.broadcast %277 : vector<1x512xf32> to vector<64x512xf32>
    %279 = arith.addf %276, %278 : vector<64x512xf32>
    %cst_144 = arith.constant 0.000000e+00 : f32
    %280 = vector.broadcast %cst_144 : f32 to vector<64x512xf32>
    %281 = arith.maximumf %279, %280 : vector<64x512xf32>
    %282 = arith.truncf %281 : vector<64x512xf32> to vector<64x512xbf16>
    %c0_145 = arith.constant 0 : index
    %c0_146 = arith.constant 0 : index
    %c0_147 = arith.constant 0 : index
    %283 = vector.load %arg11[%c0_145, %c0_146, %c0_147] : memref<2x512x128xbf16, #tpu.memory_space<vmem>>, vector<1x512x128xbf16>
    %284 = vector.shape_cast %283 : vector<1x512x128xbf16> to vector<512x128xbf16>
    %cst_148 = arith.constant dense<0.000000e+00> : vector<64x128xf32>
    %285 = tpu.matmul %282, %284, %cst_148 {dimension_numbers = #tpu.dot_dimension_numbers<[1], [0], [0], [1], [0, 0, 1, 1], [], []>} : vector<64x512xbf16>, vector<512x128xbf16>, vector<64x128xf32> -> vector<64x128xf32>
    %286 = arith.addf %250, %285 : vector<64x128xf32>
    %c3 = arith.constant 3 : index
    %c0_149 = arith.constant 0 : index
    %287 = vector.load %arg12[%c3, %c0_149] : memref<18x512xf32, #tpu.memory_space<vmem>>, vector<1x128xf32>
    %288 = vector.broadcast %287 : vector<1x128xf32> to vector<64x128xf32>
    %289 = arith.addf %286, %288 : vector<64x128xf32>
    %cst_150 = arith.constant dense<0.000000e+00> : vector<64xf32>
    %290 = vector.multi_reduction <add>, %289, %cst_150 [1] : vector<64x128xf32> to vector<64xf32>
    %291 = vector.shape_cast %290 : vector<64xf32> to vector<64x1xf32>
    %cst_151 = arith.constant 1.280000e+02 : f32
    %292 = vector.broadcast %cst_151 : f32 to vector<64x1xf32>
    %293 = arith.divf %291, %292 : vector<64x1xf32>
    %294 = vector.broadcast %293 : vector<64x1xf32> to vector<64x128xf32>
    %295 = arith.subf %289, %294 : vector<64x128xf32>
    %296 = arith.mulf %295, %295 : vector<64x128xf32>
    %cst_152 = arith.constant dense<0.000000e+00> : vector<64xf32>
    %297 = vector.multi_reduction <add>, %296, %cst_152 [1] : vector<64x128xf32> to vector<64xf32>
    %298 = vector.shape_cast %297 : vector<64xf32> to vector<64x1xf32>
    %cst_153 = arith.constant 1.280000e+02 : f32
    %299 = vector.broadcast %cst_153 : f32 to vector<64x1xf32>
    %300 = arith.divf %298, %299 : vector<64x1xf32>
    %cst_154 = arith.constant 9.99999974E-6 : f32
    %301 = vector.broadcast %cst_154 : f32 to vector<64x1xf32>
    %302 = arith.addf %300, %301 : vector<64x1xf32>
    %303 = math.rsqrt %302 : vector<64x1xf32>
    %304 = vector.broadcast %303 : vector<64x1xf32> to vector<64x128xf32>
    %305 = arith.mulf %295, %304 : vector<64x128xf32>
    %c12 = arith.constant 12 : index
    %c0_155 = arith.constant 0 : index
    %306 = vector.load %arg12[%c12, %c0_155] : memref<18x512xf32, #tpu.memory_space<vmem>>, vector<1x128xf32>
    %307 = vector.broadcast %306 : vector<1x128xf32> to vector<64x128xf32>
    %308 = arith.mulf %305, %307 : vector<64x128xf32>
    %c13 = arith.constant 13 : index
    %c0_156 = arith.constant 0 : index
    %309 = vector.load %arg12[%c13, %c0_156] : memref<18x512xf32, #tpu.memory_space<vmem>>, vector<1x128xf32>
    %310 = vector.broadcast %309 : vector<1x128xf32> to vector<64x128xf32>
    %311 = arith.addf %308, %310 : vector<64x128xf32>
    %312 = arith.truncf %311 : vector<64x128xf32> to vector<64x128xbf16>
    %c1_157 = arith.constant 1 : index
    %c0_158 = arith.constant 0 : index
    %c0_159 = arith.constant 0 : index
    %313 = vector.load %arg8[%c1_157, %c0_158, %c0_159] : memref<2x128x384xbf16, #tpu.memory_space<vmem>>, vector<1x128x384xbf16>
    %314 = vector.shape_cast %313 : vector<1x128x384xbf16> to vector<128x384xbf16>
    %cst_160 = arith.constant dense<0.000000e+00> : vector<64x384xf32>
    %315 = tpu.matmul %312, %314, %cst_160 {dimension_numbers = #tpu.dot_dimension_numbers<[1], [0], [0], [1], [0, 0, 1, 1], [], []>} : vector<64x128xbf16>, vector<128x384xbf16>, vector<64x384xf32> -> vector<64x384xf32>
    %c8 = arith.constant 8 : index
    %c0_161 = arith.constant 0 : index
    %316 = vector.load %arg12[%c8, %c0_161] : memref<18x512xf32, #tpu.memory_space<vmem>>, vector<1x384xf32>
    %317 = vector.broadcast %316 : vector<1x384xf32> to vector<64x384xf32>
    %318 = arith.addf %315, %317 : vector<64x384xf32>
    %319 = vector.extract_strided_slice %318 {offsets = [0, 0], sizes = [64, 128], strides = [1, 1]} : vector<64x384xf32> to vector<64x128xf32>
    %cst_162 = arith.constant 0.176776692 : f32
    %320 = vector.broadcast %cst_162 : f32 to vector<64x128xf32>
    %321 = arith.mulf %319, %320 : vector<64x128xf32>
    %322 = arith.truncf %321 : vector<64x128xf32> to vector<64x128xbf16>
    %323 = vector.extract_strided_slice %318 {offsets = [0, 128], sizes = [64, 128], strides = [1, 1]} : vector<64x384xf32> to vector<64x128xf32>
    %324 = arith.truncf %323 : vector<64x128xf32> to vector<64x128xbf16>
    %325 = vector.extract_strided_slice %318 {offsets = [0, 256], sizes = [64, 128], strides = [1, 1]} : vector<64x384xf32> to vector<64x128xf32>
    %326 = arith.truncf %325 : vector<64x128xf32> to vector<64x128xbf16>
    %327 = vector.extract_strided_slice %322 {offsets = [0, 0], sizes = [32, 32], strides = [1, 1]} : vector<64x128xbf16> to vector<32x32xbf16>
    %328 = vector.extract_strided_slice %324 {offsets = [0, 0], sizes = [32, 32], strides = [1, 1]} : vector<64x128xbf16> to vector<32x32xbf16>
    %329 = vector.extract_strided_slice %326 {offsets = [0, 0], sizes = [32, 32], strides = [1, 1]} : vector<64x128xbf16> to vector<32x32xbf16>
    %cst_163 = arith.constant dense<0.000000e+00> : vector<32x32xf32>
    %330 = tpu.matmul %327, %328, %cst_163 {dimension_numbers = #tpu.dot_dimension_numbers<[1], [1], [0], [0], [0, 0, 1, 0], [], []>} : vector<32x32xbf16>, vector<32x32xbf16>, vector<32x32xf32> -> vector<32x32xf32>
    %cst_164 = arith.constant dense<0xFF800000> : vector<32xf32>
    %331 = vector.multi_reduction <maximumf>, %330, %cst_164 [1] : vector<32x32xf32> to vector<32xf32>
    %332 = vector.shape_cast %331 : vector<32xf32> to vector<32x1xf32>
    %333 = vector.broadcast %332 : vector<32x1xf32> to vector<32x32xf32>
    %334 = arith.subf %330, %333 : vector<32x32xf32>
    %335 = math.exp %334 : vector<32x32xf32>
    %cst_165 = arith.constant dense<0.000000e+00> : vector<32xf32>
    %336 = vector.multi_reduction <add>, %335, %cst_165 [1] : vector<32x32xf32> to vector<32xf32>
    %337 = vector.shape_cast %336 : vector<32xf32> to vector<32x1xf32>
    %338 = arith.truncf %335 : vector<32x32xf32> to vector<32x32xbf16>
    %cst_166 = arith.constant dense<0.000000e+00> : vector<32x32xf32>
    %339 = tpu.matmul %338, %329, %cst_166 {dimension_numbers = #tpu.dot_dimension_numbers<[1], [0], [0], [1], [0, 0, 1, 1], [], []>} : vector<32x32xbf16>, vector<32x32xbf16>, vector<32x32xf32> -> vector<32x32xf32>
    %340 = tpu.reciprocal %337 {approx = true} : vector<32x1xf32> -> vector<32x1xf32>
    %341 = vector.broadcast %340 : vector<32x1xf32> to vector<32x32xf32>
    %342 = arith.mulf %339, %341 : vector<32x32xf32>
    %343 = arith.truncf %342 : vector<32x32xf32> to vector<32x32xbf16>
    %c1_167 = arith.constant 1 : index
    %c0_168 = arith.constant 0 : index
    %c0_169 = arith.constant 0 : index
    %344 = vector.load %arg9[%c1_167, %c0_168, %c0_169] : memref<2x128x128xbf16, #tpu.memory_space<vmem>>, vector<1x32x128xbf16>
    %345 = vector.shape_cast %344 : vector<1x32x128xbf16> to vector<32x128xbf16>
    %cst_170 = arith.constant dense<0.000000e+00> : vector<32x128xf32>
    %346 = tpu.matmul %343, %345, %cst_170 {dimension_numbers = #tpu.dot_dimension_numbers<[1], [0], [0], [1], [0, 0, 1, 1], [], []>} : vector<32x32xbf16>, vector<32x128xbf16>, vector<32x128xf32> -> vector<32x128xf32>
    %347 = vector.extract_strided_slice %322 {offsets = [0, 32], sizes = [32, 32], strides = [1, 1]} : vector<64x128xbf16> to vector<32x32xbf16>
    %348 = vector.extract_strided_slice %324 {offsets = [0, 32], sizes = [32, 32], strides = [1, 1]} : vector<64x128xbf16> to vector<32x32xbf16>
    %349 = vector.extract_strided_slice %326 {offsets = [0, 32], sizes = [32, 32], strides = [1, 1]} : vector<64x128xbf16> to vector<32x32xbf16>
    %cst_171 = arith.constant dense<0.000000e+00> : vector<32x32xf32>
    %350 = tpu.matmul %347, %348, %cst_171 {dimension_numbers = #tpu.dot_dimension_numbers<[1], [1], [0], [0], [0, 0, 1, 0], [], []>} : vector<32x32xbf16>, vector<32x32xbf16>, vector<32x32xf32> -> vector<32x32xf32>
    %cst_172 = arith.constant dense<0xFF800000> : vector<32xf32>
    %351 = vector.multi_reduction <maximumf>, %350, %cst_172 [1] : vector<32x32xf32> to vector<32xf32>
    %352 = vector.shape_cast %351 : vector<32xf32> to vector<32x1xf32>
    %353 = vector.broadcast %352 : vector<32x1xf32> to vector<32x32xf32>
    %354 = arith.subf %350, %353 : vector<32x32xf32>
    %355 = math.exp %354 : vector<32x32xf32>
    %cst_173 = arith.constant dense<0.000000e+00> : vector<32xf32>
    %356 = vector.multi_reduction <add>, %355, %cst_173 [1] : vector<32x32xf32> to vector<32xf32>
    %357 = vector.shape_cast %356 : vector<32xf32> to vector<32x1xf32>
    %358 = arith.truncf %355 : vector<32x32xf32> to vector<32x32xbf16>
    %cst_174 = arith.constant dense<0.000000e+00> : vector<32x32xf32>
    %359 = tpu.matmul %358, %349, %cst_174 {dimension_numbers = #tpu.dot_dimension_numbers<[1], [0], [0], [1], [0, 0, 1, 1], [], []>} : vector<32x32xbf16>, vector<32x32xbf16>, vector<32x32xf32> -> vector<32x32xf32>
    %360 = tpu.reciprocal %357 {approx = true} : vector<32x1xf32> -> vector<32x1xf32>
    %361 = vector.broadcast %360 : vector<32x1xf32> to vector<32x32xf32>
    %362 = arith.mulf %359, %361 : vector<32x32xf32>
    %363 = arith.truncf %362 : vector<32x32xf32> to vector<32x32xbf16>
    %c1_175 = arith.constant 1 : index
    %c32_176 = arith.constant 32 : index
    %c0_177 = arith.constant 0 : index
    %364 = vector.load %arg9[%c1_175, %c32_176, %c0_177] : memref<2x128x128xbf16, #tpu.memory_space<vmem>>, vector<1x32x128xbf16>
    %365 = vector.shape_cast %364 : vector<1x32x128xbf16> to vector<32x128xbf16>
    %cst_178 = arith.constant dense<0.000000e+00> : vector<32x128xf32>
    %366 = tpu.matmul %363, %365, %cst_178 {dimension_numbers = #tpu.dot_dimension_numbers<[1], [0], [0], [1], [0, 0, 1, 1], [], []>} : vector<32x32xbf16>, vector<32x128xbf16>, vector<32x128xf32> -> vector<32x128xf32>
    %367 = arith.addf %346, %366 : vector<32x128xf32>
    %368 = vector.extract_strided_slice %322 {offsets = [0, 64], sizes = [32, 32], strides = [1, 1]} : vector<64x128xbf16> to vector<32x32xbf16>
    %369 = vector.extract_strided_slice %324 {offsets = [0, 64], sizes = [32, 32], strides = [1, 1]} : vector<64x128xbf16> to vector<32x32xbf16>
    %370 = vector.extract_strided_slice %326 {offsets = [0, 64], sizes = [32, 32], strides = [1, 1]} : vector<64x128xbf16> to vector<32x32xbf16>
    %cst_179 = arith.constant dense<0.000000e+00> : vector<32x32xf32>
    %371 = tpu.matmul %368, %369, %cst_179 {dimension_numbers = #tpu.dot_dimension_numbers<[1], [1], [0], [0], [0, 0, 1, 0], [], []>} : vector<32x32xbf16>, vector<32x32xbf16>, vector<32x32xf32> -> vector<32x32xf32>
    %cst_180 = arith.constant dense<0xFF800000> : vector<32xf32>
    %372 = vector.multi_reduction <maximumf>, %371, %cst_180 [1] : vector<32x32xf32> to vector<32xf32>
    %373 = vector.shape_cast %372 : vector<32xf32> to vector<32x1xf32>
    %374 = vector.broadcast %373 : vector<32x1xf32> to vector<32x32xf32>
    %375 = arith.subf %371, %374 : vector<32x32xf32>
    %376 = math.exp %375 : vector<32x32xf32>
    %cst_181 = arith.constant dense<0.000000e+00> : vector<32xf32>
    %377 = vector.multi_reduction <add>, %376, %cst_181 [1] : vector<32x32xf32> to vector<32xf32>
    %378 = vector.shape_cast %377 : vector<32xf32> to vector<32x1xf32>
    %379 = arith.truncf %376 : vector<32x32xf32> to vector<32x32xbf16>
    %cst_182 = arith.constant dense<0.000000e+00> : vector<32x32xf32>
    %380 = tpu.matmul %379, %370, %cst_182 {dimension_numbers = #tpu.dot_dimension_numbers<[1], [0], [0], [1], [0, 0, 1, 1], [], []>} : vector<32x32xbf16>, vector<32x32xbf16>, vector<32x32xf32> -> vector<32x32xf32>
    %381 = tpu.reciprocal %378 {approx = true} : vector<32x1xf32> -> vector<32x1xf32>
    %382 = vector.broadcast %381 : vector<32x1xf32> to vector<32x32xf32>
    %383 = arith.mulf %380, %382 : vector<32x32xf32>
    %384 = arith.truncf %383 : vector<32x32xf32> to vector<32x32xbf16>
    %c1_183 = arith.constant 1 : index
    %c64_184 = arith.constant 64 : index
    %c0_185 = arith.constant 0 : index
    %385 = vector.load %arg9[%c1_183, %c64_184, %c0_185] : memref<2x128x128xbf16, #tpu.memory_space<vmem>>, vector<1x32x128xbf16>
    %386 = vector.shape_cast %385 : vector<1x32x128xbf16> to vector<32x128xbf16>
    %cst_186 = arith.constant dense<0.000000e+00> : vector<32x128xf32>
    %387 = tpu.matmul %384, %386, %cst_186 {dimension_numbers = #tpu.dot_dimension_numbers<[1], [0], [0], [1], [0, 0, 1, 1], [], []>} : vector<32x32xbf16>, vector<32x128xbf16>, vector<32x128xf32> -> vector<32x128xf32>
    %388 = arith.addf %367, %387 : vector<32x128xf32>
    %389 = vector.extract_strided_slice %322 {offsets = [0, 96], sizes = [32, 32], strides = [1, 1]} : vector<64x128xbf16> to vector<32x32xbf16>
    %390 = vector.extract_strided_slice %324 {offsets = [0, 96], sizes = [32, 32], strides = [1, 1]} : vector<64x128xbf16> to vector<32x32xbf16>
    %391 = vector.extract_strided_slice %326 {offsets = [0, 96], sizes = [32, 32], strides = [1, 1]} : vector<64x128xbf16> to vector<32x32xbf16>
    %cst_187 = arith.constant dense<0.000000e+00> : vector<32x32xf32>
    %392 = tpu.matmul %389, %390, %cst_187 {dimension_numbers = #tpu.dot_dimension_numbers<[1], [1], [0], [0], [0, 0, 1, 0], [], []>} : vector<32x32xbf16>, vector<32x32xbf16>, vector<32x32xf32> -> vector<32x32xf32>
    %cst_188 = arith.constant dense<0xFF800000> : vector<32xf32>
    %393 = vector.multi_reduction <maximumf>, %392, %cst_188 [1] : vector<32x32xf32> to vector<32xf32>
    %394 = vector.shape_cast %393 : vector<32xf32> to vector<32x1xf32>
    %395 = vector.broadcast %394 : vector<32x1xf32> to vector<32x32xf32>
    %396 = arith.subf %392, %395 : vector<32x32xf32>
    %397 = math.exp %396 : vector<32x32xf32>
    %cst_189 = arith.constant dense<0.000000e+00> : vector<32xf32>
    %398 = vector.multi_reduction <add>, %397, %cst_189 [1] : vector<32x32xf32> to vector<32xf32>
    %399 = vector.shape_cast %398 : vector<32xf32> to vector<32x1xf32>
    %400 = arith.truncf %397 : vector<32x32xf32> to vector<32x32xbf16>
    %cst_190 = arith.constant dense<0.000000e+00> : vector<32x32xf32>
    %401 = tpu.matmul %400, %391, %cst_190 {dimension_numbers = #tpu.dot_dimension_numbers<[1], [0], [0], [1], [0, 0, 1, 1], [], []>} : vector<32x32xbf16>, vector<32x32xbf16>, vector<32x32xf32> -> vector<32x32xf32>
    %402 = tpu.reciprocal %399 {approx = true} : vector<32x1xf32> -> vector<32x1xf32>
    %403 = vector.broadcast %402 : vector<32x1xf32> to vector<32x32xf32>
    %404 = arith.mulf %401, %403 : vector<32x32xf32>
    %405 = arith.truncf %404 : vector<32x32xf32> to vector<32x32xbf16>
    %c1_191 = arith.constant 1 : index
    %c96_192 = arith.constant 96 : index
    %c0_193 = arith.constant 0 : index
    %406 = vector.load %arg9[%c1_191, %c96_192, %c0_193] : memref<2x128x128xbf16, #tpu.memory_space<vmem>>, vector<1x32x128xbf16>
    %407 = vector.shape_cast %406 : vector<1x32x128xbf16> to vector<32x128xbf16>
    %cst_194 = arith.constant dense<0.000000e+00> : vector<32x128xf32>
    %408 = tpu.matmul %405, %407, %cst_194 {dimension_numbers = #tpu.dot_dimension_numbers<[1], [0], [0], [1], [0, 0, 1, 1], [], []>} : vector<32x32xbf16>, vector<32x128xbf16>, vector<32x128xf32> -> vector<32x128xf32>
    %409 = arith.addf %388, %408 : vector<32x128xf32>
    %410 = vector.extract_strided_slice %322 {offsets = [32, 0], sizes = [32, 32], strides = [1, 1]} : vector<64x128xbf16> to vector<32x32xbf16>
    %411 = vector.extract_strided_slice %324 {offsets = [32, 0], sizes = [32, 32], strides = [1, 1]} : vector<64x128xbf16> to vector<32x32xbf16>
    %412 = vector.extract_strided_slice %326 {offsets = [32, 0], sizes = [32, 32], strides = [1, 1]} : vector<64x128xbf16> to vector<32x32xbf16>
    %cst_195 = arith.constant dense<0.000000e+00> : vector<32x32xf32>
    %413 = tpu.matmul %410, %411, %cst_195 {dimension_numbers = #tpu.dot_dimension_numbers<[1], [1], [0], [0], [0, 0, 1, 0], [], []>} : vector<32x32xbf16>, vector<32x32xbf16>, vector<32x32xf32> -> vector<32x32xf32>
    %cst_196 = arith.constant dense<0xFF800000> : vector<32xf32>
    %414 = vector.multi_reduction <maximumf>, %413, %cst_196 [1] : vector<32x32xf32> to vector<32xf32>
    %415 = vector.shape_cast %414 : vector<32xf32> to vector<32x1xf32>
    %416 = vector.broadcast %415 : vector<32x1xf32> to vector<32x32xf32>
    %417 = arith.subf %413, %416 : vector<32x32xf32>
    %418 = math.exp %417 : vector<32x32xf32>
    %cst_197 = arith.constant dense<0.000000e+00> : vector<32xf32>
    %419 = vector.multi_reduction <add>, %418, %cst_197 [1] : vector<32x32xf32> to vector<32xf32>
    %420 = vector.shape_cast %419 : vector<32xf32> to vector<32x1xf32>
    %421 = arith.truncf %418 : vector<32x32xf32> to vector<32x32xbf16>
    %cst_198 = arith.constant dense<0.000000e+00> : vector<32x32xf32>
    %422 = tpu.matmul %421, %412, %cst_198 {dimension_numbers = #tpu.dot_dimension_numbers<[1], [0], [0], [1], [0, 0, 1, 1], [], []>} : vector<32x32xbf16>, vector<32x32xbf16>, vector<32x32xf32> -> vector<32x32xf32>
    %423 = tpu.reciprocal %420 {approx = true} : vector<32x1xf32> -> vector<32x1xf32>
    %424 = vector.broadcast %423 : vector<32x1xf32> to vector<32x32xf32>
    %425 = arith.mulf %422, %424 : vector<32x32xf32>
    %426 = arith.truncf %425 : vector<32x32xf32> to vector<32x32xbf16>
    %c1_199 = arith.constant 1 : index
    %c0_200 = arith.constant 0 : index
    %c0_201 = arith.constant 0 : index
    %427 = vector.load %arg9[%c1_199, %c0_200, %c0_201] : memref<2x128x128xbf16, #tpu.memory_space<vmem>>, vector<1x32x128xbf16>
    %428 = vector.shape_cast %427 : vector<1x32x128xbf16> to vector<32x128xbf16>
    %cst_202 = arith.constant dense<0.000000e+00> : vector<32x128xf32>
    %429 = tpu.matmul %426, %428, %cst_202 {dimension_numbers = #tpu.dot_dimension_numbers<[1], [0], [0], [1], [0, 0, 1, 1], [], []>} : vector<32x32xbf16>, vector<32x128xbf16>, vector<32x128xf32> -> vector<32x128xf32>
    %430 = vector.extract_strided_slice %322 {offsets = [32, 32], sizes = [32, 32], strides = [1, 1]} : vector<64x128xbf16> to vector<32x32xbf16>
    %431 = vector.extract_strided_slice %324 {offsets = [32, 32], sizes = [32, 32], strides = [1, 1]} : vector<64x128xbf16> to vector<32x32xbf16>
    %432 = vector.extract_strided_slice %326 {offsets = [32, 32], sizes = [32, 32], strides = [1, 1]} : vector<64x128xbf16> to vector<32x32xbf16>
    %cst_203 = arith.constant dense<0.000000e+00> : vector<32x32xf32>
    %433 = tpu.matmul %430, %431, %cst_203 {dimension_numbers = #tpu.dot_dimension_numbers<[1], [1], [0], [0], [0, 0, 1, 0], [], []>} : vector<32x32xbf16>, vector<32x32xbf16>, vector<32x32xf32> -> vector<32x32xf32>
    %cst_204 = arith.constant dense<0xFF800000> : vector<32xf32>
    %434 = vector.multi_reduction <maximumf>, %433, %cst_204 [1] : vector<32x32xf32> to vector<32xf32>
    %435 = vector.shape_cast %434 : vector<32xf32> to vector<32x1xf32>
    %436 = vector.broadcast %435 : vector<32x1xf32> to vector<32x32xf32>
    %437 = arith.subf %433, %436 : vector<32x32xf32>
    %438 = math.exp %437 : vector<32x32xf32>
    %cst_205 = arith.constant dense<0.000000e+00> : vector<32xf32>
    %439 = vector.multi_reduction <add>, %438, %cst_205 [1] : vector<32x32xf32> to vector<32xf32>
    %440 = vector.shape_cast %439 : vector<32xf32> to vector<32x1xf32>
    %441 = arith.truncf %438 : vector<32x32xf32> to vector<32x32xbf16>
    %cst_206 = arith.constant dense<0.000000e+00> : vector<32x32xf32>
    %442 = tpu.matmul %441, %432, %cst_206 {dimension_numbers = #tpu.dot_dimension_numbers<[1], [0], [0], [1], [0, 0, 1, 1], [], []>} : vector<32x32xbf16>, vector<32x32xbf16>, vector<32x32xf32> -> vector<32x32xf32>
    %443 = tpu.reciprocal %440 {approx = true} : vector<32x1xf32> -> vector<32x1xf32>
    %444 = vector.broadcast %443 : vector<32x1xf32> to vector<32x32xf32>
    %445 = arith.mulf %442, %444 : vector<32x32xf32>
    %446 = arith.truncf %445 : vector<32x32xf32> to vector<32x32xbf16>
    %c1_207 = arith.constant 1 : index
    %c32_208 = arith.constant 32 : index
    %c0_209 = arith.constant 0 : index
    %447 = vector.load %arg9[%c1_207, %c32_208, %c0_209] : memref<2x128x128xbf16, #tpu.memory_space<vmem>>, vector<1x32x128xbf16>
    %448 = vector.shape_cast %447 : vector<1x32x128xbf16> to vector<32x128xbf16>
    %cst_210 = arith.constant dense<0.000000e+00> : vector<32x128xf32>
    %449 = tpu.matmul %446, %448, %cst_210 {dimension_numbers = #tpu.dot_dimension_numbers<[1], [0], [0], [1], [0, 0, 1, 1], [], []>} : vector<32x32xbf16>, vector<32x128xbf16>, vector<32x128xf32> -> vector<32x128xf32>
    %450 = arith.addf %429, %449 : vector<32x128xf32>
    %451 = vector.extract_strided_slice %322 {offsets = [32, 64], sizes = [32, 32], strides = [1, 1]} : vector<64x128xbf16> to vector<32x32xbf16>
    %452 = vector.extract_strided_slice %324 {offsets = [32, 64], sizes = [32, 32], strides = [1, 1]} : vector<64x128xbf16> to vector<32x32xbf16>
    %453 = vector.extract_strided_slice %326 {offsets = [32, 64], sizes = [32, 32], strides = [1, 1]} : vector<64x128xbf16> to vector<32x32xbf16>
    %cst_211 = arith.constant dense<0.000000e+00> : vector<32x32xf32>
    %454 = tpu.matmul %451, %452, %cst_211 {dimension_numbers = #tpu.dot_dimension_numbers<[1], [1], [0], [0], [0, 0, 1, 0], [], []>} : vector<32x32xbf16>, vector<32x32xbf16>, vector<32x32xf32> -> vector<32x32xf32>
    %cst_212 = arith.constant dense<0xFF800000> : vector<32xf32>
    %455 = vector.multi_reduction <maximumf>, %454, %cst_212 [1] : vector<32x32xf32> to vector<32xf32>
    %456 = vector.shape_cast %455 : vector<32xf32> to vector<32x1xf32>
    %457 = vector.broadcast %456 : vector<32x1xf32> to vector<32x32xf32>
    %458 = arith.subf %454, %457 : vector<32x32xf32>
    %459 = math.exp %458 : vector<32x32xf32>
    %cst_213 = arith.constant dense<0.000000e+00> : vector<32xf32>
    %460 = vector.multi_reduction <add>, %459, %cst_213 [1] : vector<32x32xf32> to vector<32xf32>
    %461 = vector.shape_cast %460 : vector<32xf32> to vector<32x1xf32>
    %462 = arith.truncf %459 : vector<32x32xf32> to vector<32x32xbf16>
    %cst_214 = arith.constant dense<0.000000e+00> : vector<32x32xf32>
    %463 = tpu.matmul %462, %453, %cst_214 {dimension_numbers = #tpu.dot_dimension_numbers<[1], [0], [0], [1], [0, 0, 1, 1], [], []>} : vector<32x32xbf16>, vector<32x32xbf16>, vector<32x32xf32> -> vector<32x32xf32>
    %464 = tpu.reciprocal %461 {approx = true} : vector<32x1xf32> -> vector<32x1xf32>
    %465 = vector.broadcast %464 : vector<32x1xf32> to vector<32x32xf32>
    %466 = arith.mulf %463, %465 : vector<32x32xf32>
    %467 = arith.truncf %466 : vector<32x32xf32> to vector<32x32xbf16>
    %c1_215 = arith.constant 1 : index
    %c64_216 = arith.constant 64 : index
    %c0_217 = arith.constant 0 : index
    %468 = vector.load %arg9[%c1_215, %c64_216, %c0_217] : memref<2x128x128xbf16, #tpu.memory_space<vmem>>, vector<1x32x128xbf16>
    %469 = vector.shape_cast %468 : vector<1x32x128xbf16> to vector<32x128xbf16>
    %cst_218 = arith.constant dense<0.000000e+00> : vector<32x128xf32>
    %470 = tpu.matmul %467, %469, %cst_218 {dimension_numbers = #tpu.dot_dimension_numbers<[1], [0], [0], [1], [0, 0, 1, 1], [], []>} : vector<32x32xbf16>, vector<32x128xbf16>, vector<32x128xf32> -> vector<32x128xf32>
    %471 = arith.addf %450, %470 : vector<32x128xf32>
    %472 = vector.extract_strided_slice %322 {offsets = [32, 96], sizes = [32, 32], strides = [1, 1]} : vector<64x128xbf16> to vector<32x32xbf16>
    %473 = vector.extract_strided_slice %324 {offsets = [32, 96], sizes = [32, 32], strides = [1, 1]} : vector<64x128xbf16> to vector<32x32xbf16>
    %474 = vector.extract_strided_slice %326 {offsets = [32, 96], sizes = [32, 32], strides = [1, 1]} : vector<64x128xbf16> to vector<32x32xbf16>
    %cst_219 = arith.constant dense<0.000000e+00> : vector<32x32xf32>
    %475 = tpu.matmul %472, %473, %cst_219 {dimension_numbers = #tpu.dot_dimension_numbers<[1], [1], [0], [0], [0, 0, 1, 0], [], []>} : vector<32x32xbf16>, vector<32x32xbf16>, vector<32x32xf32> -> vector<32x32xf32>
    %cst_220 = arith.constant dense<0xFF800000> : vector<32xf32>
    %476 = vector.multi_reduction <maximumf>, %475, %cst_220 [1] : vector<32x32xf32> to vector<32xf32>
    %477 = vector.shape_cast %476 : vector<32xf32> to vector<32x1xf32>
    %478 = vector.broadcast %477 : vector<32x1xf32> to vector<32x32xf32>
    %479 = arith.subf %475, %478 : vector<32x32xf32>
    %480 = math.exp %479 : vector<32x32xf32>
    %cst_221 = arith.constant dense<0.000000e+00> : vector<32xf32>
    %481 = vector.multi_reduction <add>, %480, %cst_221 [1] : vector<32x32xf32> to vector<32xf32>
    %482 = vector.shape_cast %481 : vector<32xf32> to vector<32x1xf32>
    %483 = arith.truncf %480 : vector<32x32xf32> to vector<32x32xbf16>
    %cst_222 = arith.constant dense<0.000000e+00> : vector<32x32xf32>
    %484 = tpu.matmul %483, %474, %cst_222 {dimension_numbers = #tpu.dot_dimension_numbers<[1], [0], [0], [1], [0, 0, 1, 1], [], []>} : vector<32x32xbf16>, vector<32x32xbf16>, vector<32x32xf32> -> vector<32x32xf32>
    %485 = tpu.reciprocal %482 {approx = true} : vector<32x1xf32> -> vector<32x1xf32>
    %486 = vector.broadcast %485 : vector<32x1xf32> to vector<32x32xf32>
    %487 = arith.mulf %484, %486 : vector<32x32xf32>
    %488 = arith.truncf %487 : vector<32x32xf32> to vector<32x32xbf16>
    %c1_223 = arith.constant 1 : index
    %c96_224 = arith.constant 96 : index
    %c0_225 = arith.constant 0 : index
    %489 = vector.load %arg9[%c1_223, %c96_224, %c0_225] : memref<2x128x128xbf16, #tpu.memory_space<vmem>>, vector<1x32x128xbf16>
    %490 = vector.shape_cast %489 : vector<1x32x128xbf16> to vector<32x128xbf16>
    %cst_226 = arith.constant dense<0.000000e+00> : vector<32x128xf32>
    %491 = tpu.matmul %488, %490, %cst_226 {dimension_numbers = #tpu.dot_dimension_numbers<[1], [0], [0], [1], [0, 0, 1, 1], [], []>} : vector<32x32xbf16>, vector<32x128xbf16>, vector<32x128xf32> -> vector<32x128xf32>
    %492 = arith.addf %471, %491 : vector<32x128xf32>
    %493 = tpu.concatenate %409, %492 in 0 : vector<32x128xf32>, vector<32x128xf32> -> vector<64x128xf32>
    %494 = arith.addf %289, %493 : vector<64x128xf32>
    %c9 = arith.constant 9 : index
    %c0_227 = arith.constant 0 : index
    %495 = vector.load %arg12[%c9, %c0_227] : memref<18x512xf32, #tpu.memory_space<vmem>>, vector<1x128xf32>
    %496 = vector.broadcast %495 : vector<1x128xf32> to vector<64x128xf32>
    %497 = arith.addf %494, %496 : vector<64x128xf32>
    %cst_228 = arith.constant dense<0.000000e+00> : vector<64xf32>
    %498 = vector.multi_reduction <add>, %497, %cst_228 [1] : vector<64x128xf32> to vector<64xf32>
    %499 = vector.shape_cast %498 : vector<64xf32> to vector<64x1xf32>
    %cst_229 = arith.constant 1.280000e+02 : f32
    %500 = vector.broadcast %cst_229 : f32 to vector<64x1xf32>
    %501 = arith.divf %499, %500 : vector<64x1xf32>
    %502 = vector.broadcast %501 : vector<64x1xf32> to vector<64x128xf32>
    %503 = arith.subf %497, %502 : vector<64x128xf32>
    %504 = arith.mulf %503, %503 : vector<64x128xf32>
    %cst_230 = arith.constant dense<0.000000e+00> : vector<64xf32>
    %505 = vector.multi_reduction <add>, %504, %cst_230 [1] : vector<64x128xf32> to vector<64xf32>
    %506 = vector.shape_cast %505 : vector<64xf32> to vector<64x1xf32>
    %cst_231 = arith.constant 1.280000e+02 : f32
    %507 = vector.broadcast %cst_231 : f32 to vector<64x1xf32>
    %508 = arith.divf %506, %507 : vector<64x1xf32>
    %cst_232 = arith.constant 9.99999974E-6 : f32
    %509 = vector.broadcast %cst_232 : f32 to vector<64x1xf32>
    %510 = arith.addf %508, %509 : vector<64x1xf32>
    %511 = math.rsqrt %510 : vector<64x1xf32>
    %512 = vector.broadcast %511 : vector<64x1xf32> to vector<64x128xf32>
    %513 = arith.mulf %503, %512 : vector<64x128xf32>
    %c14 = arith.constant 14 : index
    %c0_233 = arith.constant 0 : index
    %514 = vector.load %arg12[%c14, %c0_233] : memref<18x512xf32, #tpu.memory_space<vmem>>, vector<1x128xf32>
    %515 = vector.broadcast %514 : vector<1x128xf32> to vector<64x128xf32>
    %516 = arith.mulf %513, %515 : vector<64x128xf32>
    %c15 = arith.constant 15 : index
    %c0_234 = arith.constant 0 : index
    %517 = vector.load %arg12[%c15, %c0_234] : memref<18x512xf32, #tpu.memory_space<vmem>>, vector<1x128xf32>
    %518 = vector.broadcast %517 : vector<1x128xf32> to vector<64x128xf32>
    %519 = arith.addf %516, %518 : vector<64x128xf32>
    %520 = arith.truncf %519 : vector<64x128xf32> to vector<64x128xbf16>
    %c1_235 = arith.constant 1 : index
    %c0_236 = arith.constant 0 : index
    %c0_237 = arith.constant 0 : index
    %521 = vector.load %arg10[%c1_235, %c0_236, %c0_237] : memref<2x128x512xbf16, #tpu.memory_space<vmem>>, vector<1x128x512xbf16>
    %522 = vector.shape_cast %521 : vector<1x128x512xbf16> to vector<128x512xbf16>
    %cst_238 = arith.constant dense<0.000000e+00> : vector<64x512xf32>
    %523 = tpu.matmul %520, %522, %cst_238 {dimension_numbers = #tpu.dot_dimension_numbers<[1], [0], [0], [1], [0, 0, 1, 1], [], []>} : vector<64x128xbf16>, vector<128x512xbf16>, vector<64x512xf32> -> vector<64x512xf32>
    %c10 = arith.constant 10 : index
    %c0_239 = arith.constant 0 : index
    %524 = vector.load %arg12[%c10, %c0_239] : memref<18x512xf32, #tpu.memory_space<vmem>>, vector<1x512xf32>
    %525 = vector.broadcast %524 : vector<1x512xf32> to vector<64x512xf32>
    %526 = arith.addf %523, %525 : vector<64x512xf32>
    %cst_240 = arith.constant 0.000000e+00 : f32
    %527 = vector.broadcast %cst_240 : f32 to vector<64x512xf32>
    %528 = arith.maximumf %526, %527 : vector<64x512xf32>
    %529 = arith.truncf %528 : vector<64x512xf32> to vector<64x512xbf16>
    %c1_241 = arith.constant 1 : index
    %c0_242 = arith.constant 0 : index
    %c0_243 = arith.constant 0 : index
    %530 = vector.load %arg11[%c1_241, %c0_242, %c0_243] : memref<2x512x128xbf16, #tpu.memory_space<vmem>>, vector<1x512x128xbf16>
    %531 = vector.shape_cast %530 : vector<1x512x128xbf16> to vector<512x128xbf16>
    %cst_244 = arith.constant dense<0.000000e+00> : vector<64x128xf32>
    %532 = tpu.matmul %529, %531, %cst_244 {dimension_numbers = #tpu.dot_dimension_numbers<[1], [0], [0], [1], [0, 0, 1, 1], [], []>} : vector<64x512xbf16>, vector<512x128xbf16>, vector<64x128xf32> -> vector<64x128xf32>
    %533 = arith.addf %497, %532 : vector<64x128xf32>
    %c11 = arith.constant 11 : index
    %c0_245 = arith.constant 0 : index
    %534 = vector.load %arg12[%c11, %c0_245] : memref<18x512xf32, #tpu.memory_space<vmem>>, vector<1x128xf32>
    %535 = vector.broadcast %534 : vector<1x128xf32> to vector<64x128xf32>
    %536 = arith.addf %533, %535 : vector<64x128xf32>
    %cst_246 = arith.constant dense<0.000000e+00> : vector<64xf32>
    %537 = vector.multi_reduction <add>, %536, %cst_246 [1] : vector<64x128xf32> to vector<64xf32>
    %538 = vector.shape_cast %537 : vector<64xf32> to vector<64x1xf32>
    %cst_247 = arith.constant 1.280000e+02 : f32
    %539 = vector.broadcast %cst_247 : f32 to vector<64x1xf32>
    %540 = arith.divf %538, %539 : vector<64x1xf32>
    %541 = vector.broadcast %540 : vector<64x1xf32> to vector<64x128xf32>
    %542 = arith.subf %536, %541 : vector<64x128xf32>
    %543 = arith.mulf %542, %542 : vector<64x128xf32>
    %cst_248 = arith.constant dense<0.000000e+00> : vector<64xf32>
    %544 = vector.multi_reduction <add>, %543, %cst_248 [1] : vector<64x128xf32> to vector<64xf32>
    %545 = vector.shape_cast %544 : vector<64xf32> to vector<64x1xf32>
    %cst_249 = arith.constant 1.280000e+02 : f32
    %546 = vector.broadcast %cst_249 : f32 to vector<64x1xf32>
    %547 = arith.divf %545, %546 : vector<64x1xf32>
    %cst_250 = arith.constant 9.99999974E-6 : f32
    %548 = vector.broadcast %cst_250 : f32 to vector<64x1xf32>
    %549 = arith.addf %547, %548 : vector<64x1xf32>
    %550 = math.rsqrt %549 : vector<64x1xf32>
    %551 = vector.broadcast %550 : vector<64x1xf32> to vector<64x128xf32>
    %552 = arith.mulf %542, %551 : vector<64x128xf32>
    %c16 = arith.constant 16 : index
    %c0_251 = arith.constant 0 : index
    %553 = vector.load %arg12[%c16, %c0_251] : memref<18x512xf32, #tpu.memory_space<vmem>>, vector<1x128xf32>
    %554 = vector.broadcast %553 : vector<1x128xf32> to vector<64x128xf32>
    %555 = arith.mulf %552, %554 : vector<64x128xf32>
    %c17 = arith.constant 17 : index
    %c0_252 = arith.constant 0 : index
    %556 = vector.load %arg12[%c17, %c0_252] : memref<18x512xf32, #tpu.memory_space<vmem>>, vector<1x128xf32>
    %557 = vector.broadcast %556 : vector<1x128xf32> to vector<64x128xf32>
    %558 = arith.addf %555, %557 : vector<64x128xf32>
    %559 = vector.extract_strided_slice %558 {offsets = [0, 0], sizes = [1, 128], strides = [1, 1]} : vector<64x128xf32> to vector<1x128xf32>
    %c0_253 = arith.constant 0 : index
    %c0_254 = arith.constant 0 : index
    %c0_255 = arith.constant 0 : index
    %560 = vector.load %arg13[%c0_253, %c0_254, %c0_255] : memref<1x2x128xf32, #tpu.memory_space<vmem>>, vector<1x1x128xf32>
    %561 = vector.shape_cast %560 : vector<1x1x128xf32> to vector<1x128xf32>
    %562 = vector.shape_cast %559 : vector<1x128xf32> to vector<1x1x128xf32>
    tpu.vector_store %arg13[%c0_253, %c0_254, %c0_255], %562 {strides = array<i32>} : memref<1x2x128xf32, #tpu.memory_space<vmem>>, vector<1x1x128xf32>,
    %563 = vector.extract_strided_slice %558 {offsets = [32, 0], sizes = [1, 128], strides = [1, 1]} : vector<64x128xf32> to vector<1x128xf32>
    %c0_256 = arith.constant 0 : index
    %c1_257 = arith.constant 1 : index
    %c0_258 = arith.constant 0 : index
    %564 = vector.load %arg13[%c0_256, %c1_257, %c0_258] : memref<1x2x128xf32, #tpu.memory_space<vmem>>, vector<1x1x128xf32>
    %565 = vector.shape_cast %564 : vector<1x1x128xf32> to vector<1x128xf32>
    %566 = vector.shape_cast %563 : vector<1x128xf32> to vector<1x1x128xf32>
    tpu.vector_store %arg13[%c0_256, %c1_257, %c0_258], %566 {strides = array<i32>} : memref<1x2x128xf32, #tpu.memory_space<vmem>>, vector<1x1x128xf32>,
    return
  }
  func.func @transform_0(%arg0: i32) -> (i32, i32, i32, i32) {
    %c0_i32 = arith.constant 0 : i32
    %c0_i32_0 = arith.constant 0 : i32
    %c0_i32_1 = arith.constant 0 : i32
    %c0_i32_2 = arith.constant 0 : i32
    return %arg0, %c0_i32, %c0_i32_0, %c0_i32_1 : i32, i32, i32, i32
  }
  func.func @transform_1(%arg0: i32) -> (i32, i32, i32, i32) {
    %c0_i32 = arith.constant 0 : i32
    %c0_i32_0 = arith.constant 0 : i32
    %c0_i32_1 = arith.constant 0 : i32
    %c0_i32_2 = arith.constant 0 : i32
    return %arg0, %c0_i32, %c0_i32_0, %c0_i32_1 : i32, i32, i32, i32
  }
  func.func @transform_2(%arg0: i32) -> (i32, i32, i32, i32) {
    %c0_i32 = arith.constant 0 : i32
    %c0_i32_0 = arith.constant 0 : i32
    %c0_i32_1 = arith.constant 0 : i32
    %c0_i32_2 = arith.constant 0 : i32
    return %arg0, %c0_i32, %c0_i32_0, %c0_i32_1 : i32, i32, i32, i32
  }
  func.func @transform_3(%arg0: i32) -> (i32, i32, i32) {
    %c0_i32 = arith.constant 0 : i32
    %c0_i32_0 = arith.constant 0 : i32
    %c0_i32_1 = arith.constant 0 : i32
    %c0_i32_2 = arith.constant 0 : i32
    return %c0_i32, %c0_i32_0, %c0_i32_1 : i32, i32, i32
  }
  func.func @transform_4(%arg0: i32) -> (i32, i32, i32) {
    %c0_i32 = arith.constant 0 : i32
    %c0_i32_0 = arith.constant 0 : i32
    %c0_i32_1 = arith.constant 0 : i32
    %c0_i32_2 = arith.constant 0 : i32
    return %c0_i32, %c0_i32_0, %c0_i32_1 : i32, i32, i32
  }
  func.func @transform_5(%arg0: i32) -> (i32, i32, i32) {
    %c0_i32 = arith.constant 0 : i32
    %c0_i32_0 = arith.constant 0 : i32
    %c0_i32_1 = arith.constant 0 : i32
    %c0_i32_2 = arith.constant 0 : i32
    return %c0_i32, %c0_i32_0, %c0_i32_1 : i32, i32, i32
  }
  func.func @transform_6(%arg0: i32) -> (i32, i32) {
    %c0_i32 = arith.constant 0 : i32
    %c0_i32_0 = arith.constant 0 : i32
    %c0_i32_1 = arith.constant 0 : i32
    return %c0_i32, %c0_i32_0 : i32, i32
  }
  func.func @transform_7(%arg0: i32) -> (i32, i32, i32) {
    %c0_i32 = arith.constant 0 : i32
    %c0_i32_0 = arith.constant 0 : i32
    %c0_i32_1 = arith.constant 0 : i32
    %c0_i32_2 = arith.constant 0 : i32
    return %c0_i32, %c0_i32_0, %c0_i32_1 : i32, i32, i32
  }
  func.func @transform_8(%arg0: i32) -> (i32, i32, i32) {
    %c0_i32 = arith.constant 0 : i32
    %c0_i32_0 = arith.constant 0 : i32
    %c0_i32_1 = arith.constant 0 : i32
    %c0_i32_2 = arith.constant 0 : i32
    return %c0_i32, %c0_i32_0, %c0_i32_1 : i32, i32, i32
  }
  func.func @transform_9(%arg0: i32) -> (i32, i32, i32) {
    %c0_i32 = arith.constant 0 : i32
    %c0_i32_0 = arith.constant 0 : i32
    %c0_i32_1 = arith.constant 0 : i32
    %c0_i32_2 = arith.constant 0 : i32
    return %c0_i32, %c0_i32_0, %c0_i32_1 : i32, i32, i32
  }
  func.func @transform_10(%arg0: i32) -> (i32, i32, i32) {
    %c0_i32 = arith.constant 0 : i32
    %c0_i32_0 = arith.constant 0 : i32
    %c0_i32_1 = arith.constant 0 : i32
    %c0_i32_2 = arith.constant 0 : i32
    return %c0_i32, %c0_i32_0, %c0_i32_1 : i32, i32, i32
  }
  func.func @transform_11(%arg0: i32) -> (i32, i32) {
    %c0_i32 = arith.constant 0 : i32
    %c0_i32_0 = arith.constant 0 : i32
    %c0_i32_1 = arith.constant 0 : i32
    return %c0_i32, %c0_i32_0 : i32, i32
  }
  func.func @transform_12(%arg0: i32) -> (i32, i32, i32) {
    %c0_i32 = arith.constant 0 : i32
    %c0_i32_0 = arith.constant 0 : i32
    %c0_i32_1 = arith.constant 0 : i32
    return %arg0, %c0_i32, %c0_i32_0 : i32, i32, i32
  }
}

</mosaic_0001>

<llo_original>
// kernel: tpu_custom_call.1
$region0: #{tpu_custom_call.1}
  #allocation0 [shape = 'u32[]', space=smem, size = 0x4, offset = 0x4, fixed_abs, tag = 'smem constant byte address 0x4 - core index']
  #allocation1 [shape = 'u32[144,128]{1,0:T(1,128)}', space=vmem, size = 0x12000, scoped, tag = 'internal scratch']
  %s0 = inlined_call_operand.hbm [shape: bf16[2,1,64,64], index: 0, kind: input, shape index: {}]
  %s1 = inlined_call_operand.vmem [shape: bf16[2,3,64,16], index: 1, kind: input, shape index: {}]
  %s2 = inlined_call_operand.vmem [shape: bf16[2,3,64,32], index: 2, kind: input, shape index: {}]
  %s3 = inlined_call_operand.hbm [shape: bf16[1,64,128], index: 3, kind: input, shape index: {}]
  %s4 = inlined_call_operand.hbm [shape: bf16[3,16,128], index: 4, kind: input, shape index: {}]
  %s5 = inlined_call_operand.vmem [shape: bf16[3,32,128], index: 5, kind: input, shape index: {}]
  %s6 = inlined_call_operand.hbm [shape: f32[64,128], index: 6, kind: input, shape index: {}]
  %s7 = inlined_call_operand.hbm [shape: bf16[2,128,384], index: 7, kind: input, shape index: {}]
  %s8 = inlined_call_operand.hbm [shape: bf16[2,128,128], index: 8, kind: input, shape index: {}]
  %s9 = inlined_call_operand.vmem [shape: bf16[2,128,512], index: 9, kind: input, shape index: {}]
  %s10 = inlined_call_operand.hbm [shape: bf16[2,512,128], index: 10, kind: input, shape index: {}]
  %s11 = inlined_call_operand.hbm [shape: f32[18,512], index: 11, kind: input, shape index: {}]
  %s12 = inlined_call_operand.hbm [shape: f32[2,2,128], index: 12, kind: output, shape index: {}]
  %s13 = sld [smem:[#allocation0]]
  $region113: #{tpu_custom_call.1} parent=0
    _
  %s15 = ssub.s32 1, %s13
  %s16 = scalar_select 0, %s15, %s13
  $region1: #{tpu_custom_call.1} parent=0
    #allocation2 [shape = 'u8[32768]{0}', space=vmem, size = 0x8000, scoped, tag = 'input window, operand 0']
    #allocation3 [shape = 's32[2]{0}', space=sflag, size = 0x8, scoped, tag = 'scoped memory for tpu_custom_call.1']
    #allocation4 [shape = 's32[2]{0}', space=sflag, size = 0x8, scoped, tag = 'scoped memory for tpu_custom_call.1']
    #allocation5 [shape = 'u8[16384]{0}', space=vmem, size = 0x4000, scoped, tag = 'input window, operand 3, single buffered']
    #allocation6 [shape = 's32[1]{0}', space=sflag, size = 0x4, scoped, tag = 'scoped memory for tpu_custom_call.1']
    #allocation7 [shape = 'u8[12288]{0}', space=vmem, size = 0x3000, scoped, tag = 'input window, operand 4, single buffered']
    #allocation8 [shape = 'u8[32768]{0}', space=vmem, size = 0x8000, scoped, tag = 'input window, operand 6, single buffered']
    #allocation9 [shape = 's32[1]{0}', space=sflag, size = 0x4, scoped, tag = 'scoped memory for tpu_custom_call.1']
    #allocation10 [shape = 'u8[196608]{0}', space=vmem, size = 0x30000, scoped, tag = 'input window, operand 7, single buffered']
    #allocation11 [shape = 'u8[65536]{0}', space=vmem, size = 0x10000, scoped, tag = 'input window, operand 8, single buffered']
    #allocation12 [shape = 's32[1]{0}', space=sflag, size = 0x4, scoped, tag = 'scoped memory for tpu_custom_call.1']
    #allocation13 [shape = 'u8[262144]{0}', space=vmem, size = 0x40000, scoped, tag = 'input window, operand 10, single buffered']
    #allocation14 [shape = 'u8[49152]{0}', space=vmem, size = 0xc000, scoped, tag = 'input window, operand 11, single buffered']
    #allocation15 [shape = 's32[1]{0}', space=sflag, size = 0x4, scoped, tag = 'scoped memory for tpu_custom_call.1']
    #allocation16 [shape = 'u8[2048]{0}', space=vmem, size = 0x800, scoped, tag = 'output window, operand 0']
    %17 = vsyncpa [#allocation3], 0
    %s18 = scalar_lea.sflag [#allocation3], 1
    %19 = vsyncpa %s18, 0
    %20 = vsyncpa [#allocation6], 0
    %21 = vsyncpa [#allocation9], 0
    %22 = vsyncpa [#allocation12], 0
    %23 = vsyncpa [#allocation15], 0
    %24 = vsyncpa [#allocation4], 0
    %s25 = scalar_lea.sflag [#allocation4], 1
    %26 = vsyncpa %s25, 0
    loop: start=0, step=1, limit=4
    $region2: #{tpu_custom_call.1} parent=1 // loop_pre_header
      _
    $region3: #{tpu_custom_call.1} parent=1 // loop_header
      %s28 = sphi 0, %s32
      %p29 = scmp.ge.s32.totalorder %s28, 4
      %s38 = sphi 0, %s40
      %s41 = sphi 0, %s38
      %s42 = sphi 0, %s41
      %s58 = sphi 0, %s42
      %s64 = sphi 0, %s66
      %s67 = sphi 0, %s64
      %s68 = sphi 0, %s67
      %s84 = sphi 0, %s68
      %s90 = sphi 0, %s92
      %s93 = sphi 0, %s90
      %s94 = sphi 0, %s93
      %s110 = sphi 0, %s94
      %s114 = sphi 0, %s114
      %s116 = sphi 0, %s114
      %s117 = sphi 0, %s116
      %s131 = sphi 0, %s117
      %s135 = sphi 0, %s135
      %s137 = sphi 0, %s135
      %s138 = sphi 0, %s137
      %s152 = sphi 0, %s138
      %s156 = sphi 0, %s156
      %s158 = sphi 0, %s156
      %s159 = sphi 0, %s158
      %s173 = sphi 0, %s159
      %s177 = sphi 0, %s177
      %s179 = sphi 0, %s177
      %s180 = sphi 0, %s179
      %s194 = sphi 0, %s180
      %s198 = sphi 0, %s198
      %s200 = sphi 0, %s198
      %s201 = sphi 0, %s200
      %s215 = sphi 0, %s201
      %s219 = sphi 0, %s219
      %s221 = sphi 0, %s219
      %s222 = sphi 0, %s221
      %s236 = sphi 0, %s222
      %s240 = sphi 0, %s240
      %s242 = sphi 0, %s240
      %s243 = sphi 0, %s242
      %s257 = sphi 0, %s243
      %s261 = sphi 0, %s261
      %s263 = sphi 0, %s261
      %s264 = sphi 0, %s263
      %s278 = sphi 0, %s264
      %s282 = sphi 0, %s282
      %s284 = sphi 0, %s282
      %s285 = sphi 0, %s284
      %s299 = sphi 0, %s285
      %s305 = sphi 0, %s307
      %s308 = sphi 0, %s305
      %s309 = sphi 0, %s308
      %s325 = sphi 0, %s309
    $region4: #{tpu_custom_call.1} parent=1 // loop_header_branch
      %31 = sbr.rel (%p29) target = $region8
    $region5: #{tpu_custom_call.1} parent=1 // loop_body
      %s33 = ssub.s32 %s28, 1
      %s34 = ssub.s32 %s28, 2
      %s35 = sadd.s32 %s28, 1
      %s36 = ssub.s32 %s28, %s35
      %p37 = scmp.eq.s32.totalorder %s36, 0
      %s39 = sadd.s32 %s38, 1
      %s40 = scalar_select %p37, %s38, %s39
      %p43 = pneg %p37
      %p44 = scmp.eq.s32.totalorder %s28, 1
      %p45 = por %p43, %p44
      %p46 = scmp.ne.s32.totalorder %s38, %s41
      %p47 = scmp.eq.s32.totalorder %s28, 0
      %p48 = por %p46, %p47
      %p49 = scmp.ne.s32.totalorder %s38, %s41
      %p50 = scmp.eq.s32.totalorder %s33, 1
      %p51 = por %p49, %p50
      %p52 = scmp.ne.s32.totalorder %s41, %s42
      %p53 = scmp.eq.s32.totalorder %s33, 0
      %p54 = por %p52, %p53
      %p55 = scmp.ne.s32.totalorder %s41, %s42
      %p56 = scmp.eq.s32.totalorder %s34, 1
      %p57 = por %p55, %p56
      %p59 = scmp.ne.s32.totalorder %s42, %s58
      %p60 = scmp.eq.s32.totalorder %s34, 0
      %p61 = por %p59, %p60
      %s62 = ssub.s32 %s28, %s35
      %p63 = scmp.eq.s32.totalorder %s62, 0
      %s65 = sadd.s32 %s64, 1
      %s66 = scalar_select %p63, %s64, %s65
      %p69 = pneg %p63
      %p70 = scmp.eq.s32.totalorder %s28, 1
      %p71 = por %p69, %p70
      %p72 = scmp.ne.s32.totalorder %s64, %s67
      %p73 = scmp.eq.s32.totalorder %s28, 0
      %p74 = por %p72, %p73
      %p75 = scmp.ne.s32.totalorder %s64, %s67
      %p76 = scmp.eq.s32.totalorder %s33, 1
      %p77 = por %p75, %p76
      %p78 = scmp.ne.s32.totalorder %s67, %s68
      %p79 = scmp.eq.s32.totalorder %s33, 0
      %p80 = por %p78, %p79
      %p81 = scmp.ne.s32.totalorder %s67, %s68
      %p82 = scmp.eq.s32.totalorder %s34, 1
      %p83 = por %p81, %p82
      %p85 = scmp.ne.s32.totalorder %s68, %s84
      %p86 = scmp.eq.s32.totalorder %s34, 0
      %p87 = por %p85, %p86
      %s88 = ssub.s32 %s28, %s35
      %p89 = scmp.eq.s32.totalorder %s88, 0
      %s91 = sadd.s32 %s90, 1
      %s92 = scalar_select %p89, %s90, %s91
      %p95 = pneg %p89
      %p96 = scmp.eq.s32.totalorder %s28, 1
      %p97 = por %p95, %p96
      %p98 = scmp.ne.s32.totalorder %s90, %s93
      %p99 = scmp.eq.s32.totalorder %s28, 0
      %p100 = por %p98, %p99
      %p101 = scmp.ne.s32.totalorder %s90, %s93
      %p102 = scmp.eq.s32.totalorder %s33, 1
      %p103 = por %p101, %p102
      %p104 = scmp.ne.s32.totalorder %s93, %s94
      %p105 = scmp.eq.s32.totalorder %s33, 0
      %p106 = por %p104, %p105
      %p107 = scmp.ne.s32.totalorder %s93, %s94
      %p108 = scmp.eq.s32.totalorder %s34, 1
      %p109 = por %p107, %p108
      %p111 = scmp.ne.s32.totalorder %s94, %s110
      %p112 = scmp.eq.s32.totalorder %s34, 0
      %p113 = por %p111, %p112
      %s115 = sadd.s32 %s114, 1
      %p118 = scmp.eq.s32.totalorder %s28, 1
      %p119 = scmp.ne.s32.totalorder %s114, %s116
      %p120 = scmp.eq.s32.totalorder %s28, 0
      %p121 = por %p119, %p120
      %p122 = scmp.ne.s32.totalorder %s114, %s116
      %p123 = scmp.eq.s32.totalorder %s33, 1
      %p124 = por %p122, %p123
      %p125 = scmp.ne.s32.totalorder %s116, %s117
      %p126 = scmp.eq.s32.totalorder %s33, 0
      %p127 = por %p125, %p126
      %p128 = scmp.ne.s32.totalorder %s116, %s117
      %p129 = scmp.eq.s32.totalorder %s34, 1
      %p130 = por %p128, %p129
      %p132 = scmp.ne.s32.totalorder %s117, %s131
      %p133 = scmp.eq.s32.totalorder %s34, 0
      %p134 = por %p132, %p133
      %s136 = sadd.s32 %s135, 1
      %p139 = scmp.eq.s32.totalorder %s28, 1
      %p140 = scmp.ne.s32.totalorder %s135, %s137
      %p141 = scmp.eq.s32.totalorder %s28, 0
      %p142 = por %p140, %p141
      %p143 = scmp.ne.s32.totalorder %s135, %s137
      %p144 = scmp.eq.s32.totalorder %s33, 1
      %p145 = por %p143, %p144
      %p146 = scmp.ne.s32.totalorder %s137, %s138
      %p147 = scmp.eq.s32.totalorder %s33, 0
      %p148 = por %p146, %p147
      %p149 = scmp.ne.s32.totalorder %s137, %s138
      %p150 = scmp.eq.s32.totalorder %s34, 1
      %p151 = por %p149, %p150
      %p153 = scmp.ne.s32.totalorder %s138, %s152
      %p154 = scmp.eq.s32.totalorder %s34, 0
      %p155 = por %p153, %p154
      %s157 = sadd.s32 %s156, 1
      %p160 = scmp.eq.s32.totalorder %s28, 1
      %p161 = scmp.ne.s32.totalorder %s156, %s158
      %p162 = scmp.eq.s32.totalorder %s28, 0
      %p163 = por %p161, %p162
      %p164 = scmp.ne.s32.totalorder %s156, %s158
      %p165 = scmp.eq.s32.totalorder %s33, 1
      %p166 = por %p164, %p165
      %p167 = scmp.ne.s32.totalorder %s158, %s159
      %p168 = scmp.eq.s32.totalorder %s33, 0
      %p169 = por %p167, %p168
      %p170 = scmp.ne.s32.totalorder %s158, %s159
      %p171 = scmp.eq.s32.totalorder %s34, 1
      %p172 = por %p170, %p171
      %p174 = scmp.ne.s32.totalorder %s159, %s173
      %p175 = scmp.eq.s32.totalorder %s34, 0
      %p176 = por %p174, %p175
      %s178 = sadd.s32 %s177, 1
      %p181 = scmp.eq.s32.totalorder %s28, 1
      %p182 = scmp.ne.s32.totalorder %s177, %s179
      %p183 = scmp.eq.s32.totalorder %s28, 0
      %p184 = por %p182, %p183
      %p185 = scmp.ne.s32.totalorder %s177, %s179
      %p186 = scmp.eq.s32.totalorder %s33, 1
      %p187 = por %p185, %p186
      %p188 = scmp.ne.s32.totalorder %s179, %s180
      %p189 = scmp.eq.s32.totalorder %s33, 0
      %p190 = por %p188, %p189
      %p191 = scmp.ne.s32.totalorder %s179, %s180
      %p192 = scmp.eq.s32.totalorder %s34, 1
      %p193 = por %p191, %p192
      %p195 = scmp.ne.s32.totalorder %s180, %s194
      %p196 = scmp.eq.s32.totalorder %s34, 0
      %p197 = por %p195, %p196
      %s199 = sadd.s32 %s198, 1
      %p202 = scmp.eq.s32.totalorder %s28, 1
      %p203 = scmp.ne.s32.totalorder %s198, %s200
      %p204 = scmp.eq.s32.totalorder %s28, 0
      %p205 = por %p203, %p204
      %p206 = scmp.ne.s32.totalorder %s198, %s200
      %p207 = scmp.eq.s32.totalorder %s33, 1
      %p208 = por %p206, %p207
      %p209 = scmp.ne.s32.totalorder %s200, %s201
      %p210 = scmp.eq.s32.totalorder %s33, 0
      %p211 = por %p209, %p210
      %p212 = scmp.ne.s32.totalorder %s200, %s201
      %p213 = scmp.eq.s32.totalorder %s34, 1
      %p214 = por %p212, %p213
      %p216 = scmp.ne.s32.totalorder %s201, %s215
      %p217 = scmp.eq.s32.totalorder %s34, 0
      %p218 = por %p216, %p217
      %s220 = sadd.s32 %s219, 1
      %p223 = scmp.eq.s32.totalorder %s28, 1
      %p224 = scmp.ne.s32.totalorder %s219, %s221
      %p225 = scmp.eq.s32.totalorder %s28, 0
      %p226 = por %p224, %p225
      %p227 = scmp.ne.s32.totalorder %s219, %s221
      %p228 = scmp.eq.s32.totalorder %s33, 1
      %p229 = por %p227, %p228
      %p230 = scmp.ne.s32.totalorder %s221, %s222
      %p231 = scmp.eq.s32.totalorder %s33, 0
      %p232 = por %p230, %p231
      %p233 = scmp.ne.s32.totalorder %s221, %s222
      %p234 = scmp.eq.s32.totalorder %s34, 1
      %p235 = por %p233, %p234
      %p237 = scmp.ne.s32.totalorder %s222, %s236
      %p238 = scmp.eq.s32.totalorder %s34, 0
      %p239 = por %p237, %p238
      %s241 = sadd.s32 %s240, 1
      %p244 = scmp.eq.s32.totalorder %s28, 1
      %p245 = scmp.ne.s32.totalorder %s240, %s242
      %p246 = scmp.eq.s32.totalorder %s28, 0
      %p247 = por %p245, %p246
      %p248 = scmp.ne.s32.totalorder %s240, %s242
      %p249 = scmp.eq.s32.totalorder %s33, 1
      %p250 = por %p248, %p249
      %p251 = scmp.ne.s32.totalorder %s242, %s243
      %p252 = scmp.eq.s32.totalorder %s33, 0
      %p253 = por %p251, %p252
      %p254 = scmp.ne.s32.totalorder %s242, %s243
      %p255 = scmp.eq.s32.totalorder %s34, 1
      %p256 = por %p254, %p255
      %p258 = scmp.ne.s32.totalorder %s243, %s257
      %p259 = scmp.eq.s32.totalorder %s34, 0
      %p260 = por %p258, %p259
      %s262 = sadd.s32 %s261, 1
      %p265 = scmp.eq.s32.totalorder %s28, 1
      %p266 = scmp.ne.s32.totalorder %s261, %s263
      %p267 = scmp.eq.s32.totalorder %s28, 0
      %p268 = por %p266, %p267
      %p269 = scmp.ne.s32.totalorder %s261, %s263
      %p270 = scmp.eq.s32.totalorder %s33, 1
      %p271 = por %p269, %p270
      %p272 = scmp.ne.s32.totalorder %s263, %s264
      %p273 = scmp.eq.s32.totalorder %s33, 0
      %p274 = por %p272, %p273
      %p275 = scmp.ne.s32.totalorder %s263, %s264
      %p276 = scmp.eq.s32.totalorder %s34, 1
      %p277 = por %p275, %p276
      %p279 = scmp.ne.s32.totalorder %s264, %s278
      %p280 = scmp.eq.s32.totalorder %s34, 0
      %p281 = por %p279, %p280
      %s283 = sadd.s32 %s282, 1
      %p286 = scmp.eq.s32.totalorder %s28, 1
      %p287 = scmp.ne.s32.totalorder %s282, %s284
      %p288 = scmp.eq.s32.totalorder %s28, 0
      %p289 = por %p287, %p288
      %p290 = scmp.ne.s32.totalorder %s282, %s284
      %p291 = scmp.eq.s32.totalorder %s33, 1
      %p292 = por %p290, %p291
      %p293 = scmp.ne.s32.totalorder %s284, %s285
      %p294 = scmp.eq.s32.totalorder %s33, 0
      %p295 = por %p293, %p294
      %p296 = scmp.ne.s32.totalorder %s284, %s285
      %p297 = scmp.eq.s32.totalorder %s34, 1
      %p298 = por %p296, %p297
      %p300 = scmp.ne.s32.totalorder %s285, %s299
      %p301 = scmp.eq.s32.totalorder %s34, 0
      %p302 = por %p300, %p301
      %s303 = ssub.s32 %s28, %s35
      %p304 = scmp.eq.s32.totalorder %s303, 0
      %s306 = sadd.s32 %s305, 1
      %s307 = scalar_select %p304, %s305, %s306
      %p310 = pneg %p304
      %p311 = scmp.eq.s32.totalorder %s28, 1
      %p312 = por %p310, %p311
      %p313 = scmp.ne.s32.totalorder %s305, %s308
      %p314 = scmp.eq.s32.totalorder %s28, 0
      %p315 = por %p313, %p314
      %p316 = scmp.ne.s32.totalorder %s305, %s308
      %p317 = scmp.eq.s32.totalorder %s33, 1
      %p318 = por %p316, %p317
      %p319 = scmp.ne.s32.totalorder %s308, %s309
      %p320 = scmp.eq.s32.totalorder %s33, 0
      %p321 = por %p319, %p320
      %p322 = scmp.ne.s32.totalorder %s308, %s309
      %p323 = scmp.eq.s32.totalorder %s34, 1
      %p324 = por %p322, %p323
      %p326 = scmp.ne.s32.totalorder %s309, %s325
      %p327 = scmp.eq.s32.totalorder %s34, 0
      %p328 = por %p326, %p327
      %p329 = scmp.le.s32.totalorder 1, %s28
      %p330 = scmp.lt.s32.totalorder %s28, 3
      %p331 = pnand %p329, %p330
      %p332 = pneg %p331
      // Predicated region
      $region9: #{tpu_custom_call.1} parent=5 // pred_check
        _
      $region10: #{tpu_custom_call.1} parent=5 // pred_check_branch
        %334 = sbr.rel (%p331) target = $region12
      $region11: #{tpu_custom_call.1} parent=5 // pred_region
        %s335 = ssub.s32 %s28, 1
        // Predicated region
        $region13: #{tpu_custom_call.1} parent=11 // pred_check
          %p336 = pneg %p127
        $region14: #{tpu_custom_call.1} parent=11 // pred_check_branch
          %338 = sbr.rel (%p336) target = $region16
        $region15: #{tpu_custom_call.1} parent=11 // pred_region
          %s340 = ssub.s32 512, 512
          %341 = vsyncadd [#allocation6], %s340
          %s342 = sshll.u32 [#allocation5], 4
          %s343 = int_to_ptr.vmem [resolvable:$true] %s342
          %348 = dma.hbm_to_vmem [thread:$0]  %s3, 512, %s343, [#allocation6], 64, 64, 4
        $region16: #{tpu_custom_call.1} parent=11 // pred_fallthru
          _
        // Predicated region
        $region17: #{tpu_custom_call.1} parent=11 // pred_check
          %p349 = pneg %p148
        $region18: #{tpu_custom_call.1} parent=11 // pred_check_branch
          %351 = sbr.rel (%p349) target = $region20
        $region19: #{tpu_custom_call.1} parent=11 // pred_region
          %s353 = ssub.s32 384, 384
          %354 = vsyncadd [#allocation6], %s353
          %s355 = sshll.u32 [#allocation7], 4
          %s356 = int_to_ptr.vmem [resolvable:$true] %s355
          %361 = dma.hbm_to_vmem [thread:$0]  %s4, 384, %s356, [#allocation6], 64, 64, 4
        $region20: #{tpu_custom_call.1} parent=11 // pred_fallthru
          _
        // Predicated region
        $region21: #{tpu_custom_call.1} parent=11 // pred_check
          %p362 = pneg %p169
        $region22: #{tpu_custom_call.1} parent=11 // pred_check_branch
          %364 = sbr.rel (%p362) target = $region24
        $region23: #{tpu_custom_call.1} parent=11 // pred_region
          _
        $region24: #{tpu_custom_call.1} parent=11 // pred_fallthru
          _
        // Predicated region
        $region25: #{tpu_custom_call.1} parent=11 // pred_check
          %p365 = pneg %p190
        $region26: #{tpu_custom_call.1} parent=11 // pred_check_branch
          %367 = sbr.rel (%p365) target = $region28
        $region27: #{tpu_custom_call.1} parent=11 // pred_region
          %s369 = ssub.s32 1024, 1024
          %370 = vsyncadd [#allocation9], %s369
          %s371 = sshll.u32 [#allocation8], 4
          %s372 = int_to_ptr.vmem [resolvable:$true] %s371
          %377 = dma.hbm_to_vmem [thread:$0]  %s6, 1024, %s372, [#allocation9], 128, 128, 8
        $region28: #{tpu_custom_call.1} parent=11 // pred_fallthru
          _
        // Predicated region
        $region29: #{tpu_custom_call.1} parent=11 // pred_check
          %p378 = pneg %p211
        $region30: #{tpu_custom_call.1} parent=11 // pred_check_branch
          %380 = sbr.rel (%p378) target = $region32
        $region31: #{tpu_custom_call.1} parent=11 // pred_region
          %s382 = ssub.s32 6144, 6144
          %383 = vsyncadd [#allocation9], %s382
          %s384 = sshll.u32 [#allocation10], 4
          %s385 = int_to_ptr.vmem [resolvable:$true] %s384
          %390 = dma.hbm_to_vmem [thread:$0]  %s7, 6144, %s385, [#allocation9], 192, 192, 12
        $region32: #{tpu_custom_call.1} parent=11 // pred_fallthru
          _
        // Predicated region
        $region33: #{tpu_custom_call.1} parent=11 // pred_check
          %p391 = pneg %p232
        $region34: #{tpu_custom_call.1} parent=11 // pred_check_branch
          %393 = sbr.rel (%p391) target = $region36
        $region35: #{tpu_custom_call.1} parent=11 // pred_region
          %s395 = ssub.s32 2048, 2048
          %396 = vsyncadd [#allocation12], %s395
          %s397 = sshll.u32 [#allocation11], 4
          %s398 = int_to_ptr.vmem [resolvable:$true] %s397
          %403 = dma.hbm_to_vmem [thread:$0]  %s8, 2048, %s398, [#allocation12], 64, 64, 4
        $region36: #{tpu_custom_call.1} parent=11 // pred_fallthru
          _
        // Predicated region
        $region37: #{tpu_custom_call.1} parent=11 // pred_check
          %p404 = pneg %p253
        $region38: #{tpu_custom_call.1} parent=11 // pred_check_branch
          %406 = sbr.rel (%p404) target = $region40
        $region39: #{tpu_custom_call.1} parent=11 // pred_region
          _
        $region40: #{tpu_custom_call.1} parent=11 // pred_fallthru
          _
        // Predicated region
        $region41: #{tpu_custom_call.1} parent=11 // pred_check
          %p407 = pneg %p274
        $region42: #{tpu_custom_call.1} parent=11 // pred_check_branch
          %409 = sbr.rel (%p407) target = $region44
        $region43: #{tpu_custom_call.1} parent=11 // pred_region
          %s411 = ssub.s32 8192, 8192
          %412 = vsyncadd [#allocation12], %s411
          %s413 = sshll.u32 [#allocation13], 4
          %s414 = int_to_ptr.vmem [resolvable:$true] %s413
          %419 = dma.hbm_to_vmem [thread:$0]  %s10, 8192, %s414, [#allocation12], 64, 64, 4
        $region44: #{tpu_custom_call.1} parent=11 // pred_fallthru
          _
        // Predicated region
        $region45: #{tpu_custom_call.1} parent=11 // pred_check
          %p420 = pneg %p295
        $region46: #{tpu_custom_call.1} parent=11 // pred_check_branch
          %422 = sbr.rel (%p420) target = $region48
        $region47: #{tpu_custom_call.1} parent=11 // pred_region
          %s424 = ssub.s32 1536, 1536
          %425 = vsyncadd [#allocation15], %s424
          %s426 = sshll.u32 [#allocation14], 4
          %s427 = int_to_ptr.vmem [resolvable:$true] %s426
          %432 = dma.hbm_to_vmem [thread:$0]  %s11, 1536, %s427, [#allocation15], 512, 512, 32
        $region48: #{tpu_custom_call.1} parent=11 // pred_fallthru
          _
      $region12: #{tpu_custom_call.1} parent=5 // pred_fallthru
        _
      %p433 = scmp.lt.s32.totalorder %s28, 2
      // Predicated region
      $region49: #{tpu_custom_call.1} parent=5 // pred_check
        %p434 = pneg %p433
      $region50: #{tpu_custom_call.1} parent=5 // pred_check_branch
        %436 = sbr.rel (%p434) target = $region52
      $region51: #{tpu_custom_call.1} parent=5 // pred_region
        // Predicated region
        $region53: #{tpu_custom_call.1} parent=51 // pred_check
          %p437 = pneg %p48
        $region54: #{tpu_custom_call.1} parent=51 // pred_check_branch
          %439 = sbr.rel (%p437) target = $region56
        $region55: #{tpu_custom_call.1} parent=51 // pred_region
          %s440 = sand.u32 %s38, 1
          %s441 = scalar_lea.sflag [#allocation3], %s440
          %s442 = sand.u32 %s38, 1
          %s443 = smul.addr %s442, 32
          %s444 = scalar_lea.vmem [#allocation2], %s443
          %s446 = ssub.s32 512, 512
          %447 = vsyncadd %s441, %s446
          %s448 = smul.addr %s28, 8
          %s449 = smul.addr %s448, 64
          %s450 = scalar_lea.hbm %s0, %s449
          %s451 = sshll.u32 %s444, 4
          %s452 = int_to_ptr.vmem [resolvable:$true] %s451
          %457 = dma.hbm_to_vmem [thread:$0]  %s450, 512, %s452, %s441, 64, 64, 4
        $region56: #{tpu_custom_call.1} parent=51 // pred_fallthru
          _
        // Predicated region
        $region57: #{tpu_custom_call.1} parent=51 // pred_check
          %p458 = pneg %p74
        $region58: #{tpu_custom_call.1} parent=51 // pred_check_branch
          %460 = sbr.rel (%p458) target = $region60
        $region59: #{tpu_custom_call.1} parent=51 // pred_region
          %p461 = scmp.lt.s32.totalorder %s28, 1
          %s462 = scalar_select %p461, %s28, 1
          %s463 = smul.addr %s462, 24
          %s464 = smul.addr %s463, 4
          %s465 = scalar_lea.vmem %s1, %s464
        $region60: #{tpu_custom_call.1} parent=51 // pred_fallthru
          _
        // Predicated region
        $region61: #{tpu_custom_call.1} parent=51 // pred_check
          %p466 = pneg %p100
        $region62: #{tpu_custom_call.1} parent=51 // pred_check_branch
          %468 = sbr.rel (%p466) target = $region64
        $region63: #{tpu_custom_call.1} parent=51 // pred_region
          %p469 = scmp.lt.s32.totalorder %s28, 1
          %s470 = scalar_select %p469, %s28, 1
          %s471 = smul.addr %s470, 24
          %s472 = smul.addr %s471, 4
          %s473 = scalar_lea.vmem %s2, %s472
        $region64: #{tpu_custom_call.1} parent=51 // pred_fallthru
          _
      $region52: #{tpu_custom_call.1} parent=5 // pred_fallthru
        _
      %p474 = scmp.le.s32.totalorder 1, %s28
      %p475 = scmp.lt.s32.totalorder %s28, 3
      %p476 = pnand %p474, %p475
      %p477 = pneg %p476
      // Predicated region
      $region65: #{tpu_custom_call.1} parent=5 // pred_check
        _
      $region66: #{tpu_custom_call.1} parent=5 // pred_check_branch
        %479 = sbr.rel (%p476) target = $region68
      $region67: #{tpu_custom_call.1} parent=5 // pred_region
        %s480 = ssub.s32 %s28, 1
        %s481 = sand.u32 %s41, 1
        %s482 = scalar_lea.sflag [#allocation3], %s481
        %s483 = sand.u32 %s41, 1
        %s484 = smul.addr %s483, 32
        %s485 = scalar_lea.vmem [#allocation2], %s484
        // Predicated region
        $region69: #{tpu_custom_call.1} parent=67 // pred_check
          %p486 = pneg %p54
        $region70: #{tpu_custom_call.1} parent=67 // pred_check_branch
          %488 = sbr.rel (%p486) target = $region72
        $region71: #{tpu_custom_call.1} parent=67 // pred_region
          %489 = dma.done %s482, 512
        $region72: #{tpu_custom_call.1} parent=67 // pred_fallthru
          _
        // Predicated region
        $region73: #{tpu_custom_call.1} parent=67 // pred_check
          %p490 = pneg %p127
        $region74: #{tpu_custom_call.1} parent=67 // pred_check_branch
          %492 = sbr.rel (%p490) target = $region76
        $region75: #{tpu_custom_call.1} parent=67 // pred_region
          %493 = dma.done [#allocation6], 512
        $region76: #{tpu_custom_call.1} parent=67 // pred_fallthru
          _
        // Predicated region
        $region77: #{tpu_custom_call.1} parent=67 // pred_check
          %p494 = pneg %p148
        $region78: #{tpu_custom_call.1} parent=67 // pred_check_branch
          %496 = sbr.rel (%p494) target = $region80
        $region79: #{tpu_custom_call.1} parent=67 // pred_region
          %497 = dma.done [#allocation6], 384
        $region80: #{tpu_custom_call.1} parent=67 // pred_fallthru
          _
        // Predicated region
        $region81: #{tpu_custom_call.1} parent=67 // pred_check
          %p498 = pneg %p190
        $region82: #{tpu_custom_call.1} parent=67 // pred_check_branch
          %500 = sbr.rel (%p498) target = $region84
        $region83: #{tpu_custom_call.1} parent=67 // pred_region
          %501 = dma.done [#allocation9], 1024
        $region84: #{tpu_custom_call.1} parent=67 // pred_fallthru
          _
        // Predicated region
        $region85: #{tpu_custom_call.1} parent=67 // pred_check
          %p502 = pneg %p211
        $region86: #{tpu_custom_call.1} parent=67 // pred_check_branch
          %504 = sbr.rel (%p502) target = $region88
        $region87: #{tpu_custom_call.1} parent=67 // pred_region
          %505 = dma.done [#allocation9], 6144
        $region88: #{tpu_custom_call.1} parent=67 // pred_fallthru
          _
        // Predicated region
        $region89: #{tpu_custom_call.1} parent=67 // pred_check
          %p506 = pneg %p232
        $region90: #{tpu_custom_call.1} parent=67 // pred_check_branch
          %508 = sbr.rel (%p506) target = $region92
        $region91: #{tpu_custom_call.1} parent=67 // pred_region
          %509 = dma.done [#allocation12], 2048
        $region92: #{tpu_custom_call.1} parent=67 // pred_fallthru
          _
        // Predicated region
        $region93: #{tpu_custom_call.1} parent=67 // pred_check
          %p510 = pneg %p274
        $region94: #{tpu_custom_call.1} parent=67 // pred_check_branch
          %512 = sbr.rel (%p510) target = $region96
        $region95: #{tpu_custom_call.1} parent=67 // pred_region
          %513 = dma.done [#allocation12], 8192
        $region96: #{tpu_custom_call.1} parent=67 // pred_fallthru
          _
        // Predicated region
        $region97: #{tpu_custom_call.1} parent=67 // pred_check
          %p514 = pneg %p295
        $region98: #{tpu_custom_call.1} parent=67 // pred_check_branch
          %516 = sbr.rel (%p514) target = $region100
        $region99: #{tpu_custom_call.1} parent=67 // pred_region
          %517 = dma.done [#allocation15], 1536
        $region100: #{tpu_custom_call.1} parent=67 // pred_fallthru
          _
        %s518 = sand.u32 %s41, 1
        %s519 = scalar_lea.sflag [#allocation3], %s518
        %s520 = sand.u32 %s41, 1
        %s521 = smul.addr %s520, 32
        %s522 = scalar_lea.vmem [#allocation2], %s521
        %p523 = pneg %p54
        %p524 = pneg %p51
        %p525 = scmp.lt.s32.totalorder %s33, 1
        %s526 = scalar_select %p525, %s33, 1
        %s527 = smul.addr %s526, 24
        %s528 = smul.addr %s527, 4
        %s529 = scalar_lea.vmem %s1, %s528
        %p530 = pneg %p80
        %p531 = pneg %p77
        %p532 = scmp.lt.s32.totalorder %s33, 1
        %s533 = scalar_select %p532, %s33, 1
        %s534 = smul.addr %s533, 24
        %s535 = smul.addr %s534, 4
        %s536 = scalar_lea.vmem %s2, %s535
        %p537 = pneg %p106
        %p538 = pneg %p103
        %p539 = pneg %p127
        %p540 = pneg %p124
        %p541 = pneg %p148
        %p542 = pneg %p145
        %p543 = pneg %p169
        %p544 = pneg %p166
        %p545 = pneg %p190
        %p546 = pneg %p187
        %p547 = pneg %p211
        %p548 = pneg %p208
        %p549 = pneg %p232
        %p550 = pneg %p229
        %p551 = pneg %p253
        %p552 = pneg %p250
        %p553 = pneg %p274
        %p554 = pneg %p271
        %p555 = pneg %p295
        %p556 = pneg %p292
        %p557 = pneg %p321
        %p558 = pneg %p318
        %s559 = sand.u32 %s308, 1
        %s560 = scalar_lea.sflag [#allocation4], %s559
        %s561 = sand.u32 %s308, 1
        %s562 = smul.addr %s561, 2
        %s563 = scalar_lea.vmem [#allocation16], %s562
        %p564 = scmp.lt.s32.totalorder %s33, 1
        %s565 = scalar_select %p564, %s33, 1
        %s566 = smul.addr %s565, 24
        %s567 = smul.addr %s566, 4
        %s568 = scalar_lea.vmem %s1, %s567
        %p569 = scmp.lt.s32.totalorder %s33, 1
        %s570 = scalar_select %p569, %s33, 1
        %s571 = smul.addr %s570, 24
        %s572 = smul.addr %s571, 4
        %s573 = scalar_lea.vmem %s2, %s572
        %v575 = vld [vmem:[%s485] sm:$0xf]
        %v576 = vld [vmem:[%s485 + $0x4] sm:$0xf]
        %v577 = vld [vmem:[%s485 + $0x8] sm:$0xf]
        %v578 = vld [vmem:[%s485 + $0xc] sm:$0xf]
        %v579 = vld [vmem:[%s485 + $0x10] sm:$0xf]
        %v580 = vld [vmem:[%s485 + $0x14] sm:$0xf]
        %v581 = vld [vmem:[%s485 + $0x18] sm:$0xf]
        %v582 = vld [vmem:[%s485 + $0x1c] sm:$0xf]
        %v583 = vld [vmem:[#allocation5] sm:$0xf]
        %v584 = vld [vmem:[#allocation5 + $0x4] sm:$0xf]
        %v585 = vld [vmem:[#allocation5 + $0x8] sm:$0xf]
        %v586 = vld [vmem:[#allocation5 + $0xc] sm:$0xf]
        %v587 = vld [vmem:[#allocation5 + $0x10] sm:$0xf]
        %v588 = vld [vmem:[#allocation5 + $0x14] sm:$0xf]
        %v589 = vld [vmem:[#allocation5 + $0x18] sm:$0xf]
        %v590 = vld [vmem:[#allocation5 + $0x1c] sm:$0xf]
        %v591 = vld [vmem:[%s568] sm:$0xf]
        %v592 = vld [vmem:[%s568 + $0x4] sm:$0xf]
        %v593 = vld [vmem:[%s568 + $0x8] sm:$0xf]
        %v594 = vld [vmem:[%s568 + $0xc] sm:$0xf]
        %v595 = vld [vmem:[%s568 + $0x10] sm:$0xf]
        %v596 = vld [vmem:[%s568 + $0x14] sm:$0xf]
        %v597 = vld [vmem:[%s568 + $0x18] sm:$0xf]
        %v598 = vld [vmem:[%s568 + $0x1c] sm:$0xf]
        %v599 = vld [vmem:[#allocation7] sm:$0xf]
        %v600 = vld [vmem:[#allocation7 + $0x4] sm:$0xf]
        %s601 = scalar_lea.vmem %s568, 32
        %v602 = vld [vmem:[%s601] sm:$0xf]
        %v603 = vld [vmem:[%s601 + $0x4] sm:$0xf]
        %v604 = vld [vmem:[%s601 + $0x8] sm:$0xf]
        %v605 = vld [vmem:[%s601 + $0xc] sm:$0xf]
        %v606 = vld [vmem:[%s601 + $0x10] sm:$0xf]
        %v607 = vld [vmem:[%s601 + $0x14] sm:$0xf]
        %v608 = vld [vmem:[%s601 + $0x18] sm:$0xf]
        %v609 = vld [vmem:[%s601 + $0x1c] sm:$0xf]
        %s610 = scalar_lea.vmem [#allocation7], 8
        %v611 = vld [vmem:[%s610] sm:$0xf]
        %v612 = vld [vmem:[%s610 + $0x4] sm:$0xf]
        %v621 = vunpack.c.l.b16 %v602
        %v622 = vunpack.c.l.b16 %v603
        %v623 = vunpack.c.l.b16 %v604
        %v624 = vunpack.c.l.b16 %v605
        %v625 = vunpack.c.l.b16 %v606
        %v626 = vunpack.c.l.b16 %v607
        %v627 = vunpack.c.l.b16 %v608
        %v628 = vunpack.c.l.b16 %v609
        %v629 = vpack.c.b16 %v622, %v621
        %v630 = vpack.c.b16 %v624, %v623
        %v631 = vpack.c.b16 %v626, %v625
        %v632 = vpack.c.b16 %v628, %v627
        %v635 = vunpack.c.l.b16 %v611
        %v636 = vunpack.c.l.b16 %v612
        %v637 = vpack.c.b16 %v636, %v635
        %vm639 = vcmask 130048
        %v641 = vsel %vm639, %v629, 0
        %v644 = vsel %vm639, %v630, 0
        %v647 = vsel %vm639, %v631, 0
        %v650 = vsel %vm639, %v632, 0
        %652 = vmatprep.subr.bf16.mxu0 0
        %653 = vmatpush1.bf16.msra.mxu0 %v637
        %654 = vmatprep.subr.bf16.mxu0 0
        %655 = vmatpush1.bf16.msra.mxu0 0
        %656 = vmatprep.subr.bf16.mxu0 0
        %657 = vmatpush1.bf16.msra.mxu0 0
        %658 = vmatprep.subr.bf16.mxu0 0
        %659 = vmatpush1.bf16.msra.mxu0 0
        %660 = vmatprep.subr.bf16.mxu0 0
        %661 = vmatpush1.bf16.msra.mxu0 0
        %662 = vmatprep.subr.bf16.mxu0 0
        %663 = vmatpush1.bf16.msra.mxu0 0
        %664 = vmatprep.subr.bf16.mxu0 0
        %665 = vmatpush1.bf16.msra.mxu0 0
        %666 = vmatprep.subr.bf16.mxu0 0
        %667 = vmatpush1.bf16.msra.mxu0 0
        %668 = vmatprep.subr.bf16.mxu0 0
        %669 = vmatpush1.bf16.msra.mxu0 0
        %670 = vmatprep.subr.bf16.mxu0 0
        %671 = vmatpush1.bf16.msra.mxu0 0
        %672 = vmatprep.subr.bf16.mxu0 0
        %673 = vmatpush1.bf16.msra.mxu0 0
        %674 = vmatprep.subr.bf16.mxu0 0
        %675 = vmatpush1.bf16.msra.mxu0 0
        %676 = vmatprep.subr.bf16.mxu0 0
        %677 = vmatpush1.bf16.msra.mxu0 0
        %678 = vmatprep.subr.bf16.mxu0 0
        %679 = vmatpush1.bf16.msra.mxu0 0
        %680 = vmatprep.subr.bf16.mxu0 0
        %681 = vmatpush1.bf16.msra.mxu0 0
        %682 = vmatprep.subr.bf16.mxu0 0
        %683 = vmatpush1.bf16.msra.mxu0 0
        %684 = vmatprep.mubr.bf16.mxu0 0
        %685 = vmatmul.mubr.bf16.gmra.mrb[0].mxu0 %v641
        %v686 = vpop.f32.mrb[0].mxu0
        %v687 = vadd.f32 0.0, %v686
        %v688 = vpop.f32.mrb[0].mxu0
        %v689 = vpop.f32.mrb[0].mxu0
        %v690 = vadd.f32 0.0, %v689
        %v691 = vpop.f32.mrb[0].mxu0
        %692 = vmatprep.mubr.bf16.mxu0 0
        %693 = vmatmul.mubr.bf16.gmra.mrb[0].mxu0 %v644
        %v694 = vpop.f32.mrb[0].mxu0
        %v695 = vadd.f32 0.0, %v694
        %v696 = vpop.f32.mrb[0].mxu0
        %v697 = vpop.f32.mrb[0].mxu0
        %v698 = vadd.f32 0.0, %v697
        %v699 = vpop.f32.mrb[0].mxu0
        %700 = vmatprep.mubr.bf16.mxu0 0
        %701 = vmatmul.mubr.bf16.gmra.mrb[0].mxu0 %v647
        %v702 = vpop.f32.mrb[0].mxu0
        %v703 = vadd.f32 0.0, %v702
        %v704 = vpop.f32.mrb[0].mxu0
        %v705 = vpop.f32.mrb[0].mxu0
        %v706 = vadd.f32 0.0, %v705
        %v707 = vpop.f32.mrb[0].mxu0
        %708 = vmatprep.mubr.bf16.mxu0 0
        %709 = vmatmul.mubr.bf16.gmra.mrb[0].mxu0 %v650
        %v710 = vpop.f32.mrb[0].mxu0
        %v711 = vadd.f32 0.0, %v710
        %v712 = vpop.f32.mrb[0].mxu0
        %v713 = vpop.f32.mrb[0].mxu0
        %v714 = vadd.f32 0.0, %v713
        %v715 = vpop.f32.mrb[0].mxu0
        %716 = vdwg.mxu0
        %v725 = vunpack.c.l.b16 %v591
        %v726 = vunpack.c.l.b16 %v592
        %v727 = vunpack.c.l.b16 %v593
        %v728 = vunpack.c.l.b16 %v594
        %v729 = vunpack.c.l.b16 %v595
        %v730 = vunpack.c.l.b16 %v596
        %v731 = vunpack.c.l.b16 %v597
        %v732 = vunpack.c.l.b16 %v598
        %v733 = vpack.c.b16 %v726, %v725
        %v734 = vpack.c.b16 %v728, %v727
        %v735 = vpack.c.b16 %v730, %v729
        %v736 = vpack.c.b16 %v732, %v731
        %v739 = vunpack.c.l.b16 %v599
        %v740 = vunpack.c.l.b16 %v600
        %v741 = vpack.c.b16 %v740, %v739
        %v744 = vsel %vm639, %v733, 0
        %v747 = vsel %vm639, %v734, 0
        %v750 = vsel %vm639, %v735, 0
        %v753 = vsel %vm639, %v736, 0
        %755 = vmatprep.subr.bf16.mxu0 0
        %756 = vmatpush1.bf16.msra.mxu0 %v741
        %757 = vmatprep.subr.bf16.mxu0 0
        %758 = vmatpush1.bf16.msra.mxu0 0
        %759 = vmatprep.subr.bf16.mxu0 0
        %760 = vmatpush1.bf16.msra.mxu0 0
        %761 = vmatprep.subr.bf16.mxu0 0
        %762 = vmatpush1.bf16.msra.mxu0 0
        %763 = vmatprep.subr.bf16.mxu0 0
        %764 = vmatpush1.bf16.msra.mxu0 0
        %765 = vmatprep.subr.bf16.mxu0 0
        %766 = vmatpush1.bf16.msra.mxu0 0
        %767 = vmatprep.subr.bf16.mxu0 0
        %768 = vmatpush1.bf16.msra.mxu0 0
        %769 = vmatprep.subr.bf16.mxu0 0
        %770 = vmatpush1.bf16.msra.mxu0 0
        %771 = vmatprep.subr.bf16.mxu0 0
        %772 = vmatpush1.bf16.msra.mxu0 0
        %773 = vmatprep.subr.bf16.mxu0 0
        %774 = vmatpush1.bf16.msra.mxu0 0
        %775 = vmatprep.subr.bf16.mxu0 0
        %776 = vmatpush1.bf16.msra.mxu0 0
        %777 = vmatprep.subr.bf16.mxu0 0
        %778 = vmatpush1.bf16.msra.mxu0 0
        %779 = vmatprep.subr.bf16.mxu0 0
        %780 = vmatpush1.bf16.msra.mxu0 0
        %781 = vmatprep.subr.bf16.mxu0 0
        %782 = vmatpush1.bf16.msra.mxu0 0
        %783 = vmatprep.subr.bf16.mxu0 0
        %784 = vmatpush1.bf16.msra.mxu0 0
        %785 = vmatprep.subr.bf16.mxu0 0
        %786 = vmatpush1.bf16.msra.mxu0 0
        %787 = vmatprep.mubr.bf16.mxu0 0
        %788 = vmatmul.mubr.bf16.gmra.mrb[0].mxu0 %v744
        %v789 = vpop.f32.mrb[0].mxu0
        %v790 = vadd.f32 %v687, %v789
        %v791 = vpop.f32.mrb[0].mxu0
        %v792 = vpop.f32.mrb[0].mxu0
        %v793 = vadd.f32 %v690, %v792
        %v794 = vpop.f32.mrb[0].mxu0
        %795 = vmatprep.mubr.bf16.mxu0 0
        %796 = vmatmul.mubr.bf16.gmra.mrb[0].mxu0 %v747
        %v797 = vpop.f32.mrb[0].mxu0
        %v798 = vadd.f32 %v695, %v797
        %v799 = vpop.f32.mrb[0].mxu0
        %v800 = vpop.f32.mrb[0].mxu0
        %v801 = vadd.f32 %v698, %v800
        %v802 = vpop.f32.mrb[0].mxu0
        %803 = vmatprep.mubr.bf16.mxu0 0
        %804 = vmatmul.mubr.bf16.gmra.mrb[0].mxu0 %v750
        %v805 = vpop.f32.mrb[0].mxu0
        %v806 = vadd.f32 %v703, %v805
        %v807 = vpop.f32.mrb[0].mxu0
        %v808 = vpop.f32.mrb[0].mxu0
        %v809 = vadd.f32 %v706, %v808
        %v810 = vpop.f32.mrb[0].mxu0
        %811 = vmatprep.mubr.bf16.mxu0 0
        %812 = vmatmul.mubr.bf16.gmra.mrb[0].mxu0 %v753
        %v813 = vpop.f32.mrb[0].mxu0
        %v814 = vadd.f32 %v711, %v813
        %v815 = vpop.f32.mrb[0].mxu0
        %v816 = vpop.f32.mrb[0].mxu0
        %v817 = vadd.f32 %v714, %v816
        %v818 = vpop.f32.mrb[0].mxu0
        %819 = vdwg.mxu0
        %s820 = scalar_lea.vmem %s568, 64
        %v821 = vld [vmem:[%s820] sm:$0xf]
        %v822 = vld [vmem:[%s820 + $0x4] sm:$0xf]
        %v823 = vld [vmem:[%s820 + $0x8] sm:$0xf]
        %v824 = vld [vmem:[%s820 + $0xc] sm:$0xf]
        %v825 = vld [vmem:[%s820 + $0x10] sm:$0xf]
        %v826 = vld [vmem:[%s820 + $0x14] sm:$0xf]
        %v827 = vld [vmem:[%s820 + $0x18] sm:$0xf]
        %v828 = vld [vmem:[%s820 + $0x1c] sm:$0xf]
        %s829 = scalar_lea.vmem [#allocation7], 16
        %v830 = vld [vmem:[%s829] sm:$0xf]
        %v831 = vld [vmem:[%s829 + $0x4] sm:$0xf]
        %v840 = vunpack.c.l.b16 %v821
        %v841 = vunpack.c.l.b16 %v822
        %v842 = vunpack.c.l.b16 %v823
        %v843 = vunpack.c.l.b16 %v824
        %v844 = vunpack.c.l.b16 %v825
        %v845 = vunpack.c.l.b16 %v826
        %v846 = vunpack.c.l.b16 %v827
        %v847 = vunpack.c.l.b16 %v828
        %v848 = vpack.c.b16 %v841, %v840
        %v849 = vpack.c.b16 %v843, %v842
        %v850 = vpack.c.b16 %v845, %v844
        %v851 = vpack.c.b16 %v847, %v846
        %v854 = vunpack.c.l.b16 %v830
        %v855 = vunpack.c.l.b16 %v831
        %v856 = vpack.c.b16 %v855, %v854
        %v859 = vsel %vm639, %v848, 0
        %v862 = vsel %vm639, %v849, 0
        %v865 = vsel %vm639, %v850, 0
        %v868 = vsel %vm639, %v851, 0
        %870 = vmatprep.subr.bf16.mxu0 0
        %871 = vmatpush1.bf16.msra.mxu0 %v856
        %872 = vmatprep.subr.bf16.mxu0 0
        %873 = vmatpush1.bf16.msra.mxu0 0
        %874 = vmatprep.subr.bf16.mxu0 0
        %875 = vmatpush1.bf16.msra.mxu0 0
        %876 = vmatprep.subr.bf16.mxu0 0
        %877 = vmatpush1.bf16.msra.mxu0 0
        %878 = vmatprep.subr.bf16.mxu0 0
        %879 = vmatpush1.bf16.msra.mxu0 0
        %880 = vmatprep.subr.bf16.mxu0 0
        %881 = vmatpush1.bf16.msra.mxu0 0
        %882 = vmatprep.subr.bf16.mxu0 0
        %883 = vmatpush1.bf16.msra.mxu0 0
        %884 = vmatprep.subr.bf16.mxu0 0
        %885 = vmatpush1.bf16.msra.mxu0 0
        %886 = vmatprep.subr.bf16.mxu0 0
        %887 = vmatpush1.bf16.msra.mxu0 0
        %888 = vmatprep.subr.bf16.mxu0 0
        %889 = vmatpush1.bf16.msra.mxu0 0
        %890 = vmatprep.subr.bf16.mxu0 0
        %891 = vmatpush1.bf16.msra.mxu0 0
        %892 = vmatprep.subr.bf16.mxu0 0
        %893 = vmatpush1.bf16.msra.mxu0 0
        %894 = vmatprep.subr.bf16.mxu0 0
        %895 = vmatpush1.bf16.msra.mxu0 0
        %896 = vmatprep.subr.bf16.mxu0 0
        %897 = vmatpush1.bf16.msra.mxu0 0
        %898 = vmatprep.subr.bf16.mxu0 0
        %899 = vmatpush1.bf16.msra.mxu0 0
        %900 = vmatprep.subr.bf16.mxu0 0
        %901 = vmatpush1.bf16.msra.mxu0 0
        %902 = vmatprep.mubr.bf16.mxu0 0
        %903 = vmatmul.mubr.bf16.gmra.mrb[0].mxu0 %v859
        %v904 = vpop.f32.mrb[0].mxu0
        %v905 = vadd.f32 0.0, %v904
        %v906 = vpop.f32.mrb[0].mxu0
        %v907 = vpop.f32.mrb[0].mxu0
        %v908 = vadd.f32 0.0, %v907
        %v909 = vpop.f32.mrb[0].mxu0
        %910 = vmatprep.mubr.bf16.mxu0 0
        %911 = vmatmul.mubr.bf16.gmra.mrb[0].mxu0 %v862
        %v912 = vpop.f32.mrb[0].mxu0
        %v913 = vadd.f32 0.0, %v912
        %v914 = vpop.f32.mrb[0].mxu0
        %v915 = vpop.f32.mrb[0].mxu0
        %v916 = vadd.f32 0.0, %v915
        %v917 = vpop.f32.mrb[0].mxu0
        %918 = vmatprep.mubr.bf16.mxu0 0
        %919 = vmatmul.mubr.bf16.gmra.mrb[0].mxu0 %v865
        %v920 = vpop.f32.mrb[0].mxu0
        %v921 = vadd.f32 0.0, %v920
        %v922 = vpop.f32.mrb[0].mxu0
        %v923 = vpop.f32.mrb[0].mxu0
        %v924 = vadd.f32 0.0, %v923
        %v925 = vpop.f32.mrb[0].mxu0
        %926 = vmatprep.mubr.bf16.mxu0 0
        %927 = vmatmul.mubr.bf16.gmra.mrb[0].mxu0 %v868
        %v928 = vpop.f32.mrb[0].mxu0
        %v929 = vadd.f32 0.0, %v928
        %v930 = vpop.f32.mrb[0].mxu0
        %v931 = vpop.f32.mrb[0].mxu0
        %v932 = vadd.f32 0.0, %v931
        %v933 = vpop.f32.mrb[0].mxu0
        %934 = vdwg.mxu0
        %v935 = vadd.f32 %v790, %v905
        %v936 = vadd.f32 %v793, %v908
        %v937 = vadd.f32 %v798, %v913
        %v938 = vadd.f32 %v801, %v916
        %v939 = vadd.f32 %v806, %v921
        %v940 = vadd.f32 %v809, %v924
        %v941 = vadd.f32 %v814, %v929
        %v942 = vadd.f32 %v817, %v932
        %v951 = vunpack.c.l.b16 %v575
        %v952 = vunpack.c.l.b16 %v576
        %v953 = vunpack.c.l.b16 %v577
        %v954 = vunpack.c.l.b16 %v578
        %v955 = vunpack.c.l.b16 %v579
        %v956 = vunpack.c.l.b16 %v580
        %v957 = vunpack.c.l.b16 %v581
        %v958 = vunpack.c.l.b16 %v582
        %v959 = vpack.c.b16 %v952, %v951
        %v960 = vpack.c.b16 %v954, %v953
        %v961 = vpack.c.b16 %v956, %v955
        %v962 = vpack.c.b16 %v958, %v957
        %v971 = vunpack.c.l.b16 %v583
        %v972 = vunpack.c.l.b16 %v584
        %v973 = vunpack.c.l.b16 %v585
        %v974 = vunpack.c.l.b16 %v586
        %v975 = vunpack.c.l.b16 %v587
        %v976 = vunpack.c.l.b16 %v588
        %v977 = vunpack.c.l.b16 %v589
        %v978 = vunpack.c.l.b16 %v590
        %v979 = vpack.c.b16 %v972, %v971
        %v980 = vpack.c.b16 %v974, %v973
        %v981 = vpack.c.b16 %v976, %v975
        %v982 = vpack.c.b16 %v978, %v977
        %vm987 = vcmask 523264
        %v989 = vsel %vm987, %v959, 0
        %v992 = vsel %vm987, %v960, 0
        %v995 = vsel %vm987, %v961, 0
        %v998 = vsel %vm987, %v962, 0
        %1000 = vmatprep.subr.bf16.mxu0 0
        %1001 = vmatpush1.bf16.msra.mxu0 %v979
        %1002 = vmatprep.subr.bf16.mxu0 0
        %1003 = vmatpush1.bf16.msra.mxu0 %v980
        %1004 = vmatprep.subr.bf16.mxu0 0
        %1005 = vmatpush1.bf16.msra.mxu0 %v981
        %1006 = vmatprep.subr.bf16.mxu0 0
        %1007 = vmatpush1.bf16.msra.mxu0 %v982
        %1008 = vmatprep.subr.bf16.mxu0 0
        %1009 = vmatpush1.bf16.msra.mxu0 0
        %1010 = vmatprep.subr.bf16.mxu0 0
        %1011 = vmatpush1.bf16.msra.mxu0 0
        %1012 = vmatprep.subr.bf16.mxu0 0
        %1013 = vmatpush1.bf16.msra.mxu0 0
        %1014 = vmatprep.subr.bf16.mxu0 0
        %1015 = vmatpush1.bf16.msra.mxu0 0
        %1016 = vmatprep.subr.bf16.mxu0 0
        %1017 = vmatpush1.bf16.msra.mxu0 0
        %1018 = vmatprep.subr.bf16.mxu0 0
        %1019 = vmatpush1.bf16.msra.mxu0 0
        %1020 = vmatprep.subr.bf16.mxu0 0
        %1021 = vmatpush1.bf16.msra.mxu0 0
        %1022 = vmatprep.subr.bf16.mxu0 0
        %1023 = vmatpush1.bf16.msra.mxu0 0
        %1024 = vmatprep.subr.bf16.mxu0 0
        %1025 = vmatpush1.bf16.msra.mxu0 0
        %1026 = vmatprep.subr.bf16.mxu0 0
        %1027 = vmatpush1.bf16.msra.mxu0 0
        %1028 = vmatprep.subr.bf16.mxu0 0
        %1029 = vmatpush1.bf16.msra.mxu0 0
        %1030 = vmatprep.subr.bf16.mxu0 0
        %1031 = vmatpush1.bf16.msra.mxu0 0
        %1032 = vmatprep.mubr.bf16.mxu0 0
        %1033 = vmatmul.mubr.bf16.gmra.mrb[0].mxu0 %v989
        %v1034 = vpop.f32.mrb[0].mxu0
        %v1035 = vadd.f32 %v935, %v1034
        %v1036 = vpop.f32.mrb[0].mxu0
        %v1037 = vpop.f32.mrb[0].mxu0
        %v1038 = vadd.f32 %v936, %v1037
        %v1039 = vpop.f32.mrb[0].mxu0
        %1040 = vmatprep.mubr.bf16.mxu0 0
        %1041 = vmatmul.mubr.bf16.gmra.mrb[0].mxu0 %v992
        %v1042 = vpop.f32.mrb[0].mxu0
        %v1043 = vadd.f32 %v937, %v1042
        %v1044 = vpop.f32.mrb[0].mxu0
        %v1045 = vpop.f32.mrb[0].mxu0
        %v1046 = vadd.f32 %v938, %v1045
        %v1047 = vpop.f32.mrb[0].mxu0
        %1048 = vmatprep.mubr.bf16.mxu0 0
        %1049 = vmatmul.mubr.bf16.gmra.mrb[0].mxu0 %v995
        %v1050 = vpop.f32.mrb[0].mxu0
        %v1051 = vadd.f32 %v939, %v1050
        %v1052 = vpop.f32.mrb[0].mxu0
        %v1053 = vpop.f32.mrb[0].mxu0
        %v1054 = vadd.f32 %v940, %v1053
        %v1055 = vpop.f32.mrb[0].mxu0
        %1056 = vmatprep.mubr.bf16.mxu0 0
        %1057 = vmatmul.mubr.bf16.gmra.mrb[0].mxu0 %v998
        %v1058 = vpop.f32.mrb[0].mxu0
        %v1059 = vadd.f32 %v941, %v1058
        %v1060 = vpop.f32.mrb[0].mxu0
        %v1061 = vpop.f32.mrb[0].mxu0
        %v1062 = vadd.f32 %v942, %v1061
        %v1063 = vpop.f32.mrb[0].mxu0
        %1064 = vdwg.mxu0
        %v1065 = vld [vmem:[%s573] sm:$0xf]
        %v1066 = vld [vmem:[%s573 + $0x4] sm:$0xf]
        %v1067 = vld [vmem:[%s573 + $0x8] sm:$0xf]
        %v1068 = vld [vmem:[%s573 + $0xc] sm:$0xf]
        %v1069 = vld [vmem:[%s573 + $0x10] sm:$0xf]
        %v1070 = vld [vmem:[%s573 + $0x14] sm:$0xf]
        %v1071 = vld [vmem:[%s573 + $0x18] sm:$0xf]
        %v1072 = vld [vmem:[%s573 + $0x1c] sm:$0xf]
        %v1073 = vld [vmem:[%s5] sm:$0xf]
        %v1074 = vld [vmem:[%s5 + $0x4] sm:$0xf]
        %v1075 = vld [vmem:[%s5 + $0x8] sm:$0xf]
        %v1076 = vld [vmem:[%s5 + $0xc] sm:$0xf]
        %s1077 = scalar_lea.vmem %s573, 32
        %v1078 = vld [vmem:[%s1077] sm:$0xf]
        %v1079 = vld [vmem:[%s1077 + $0x4] sm:$0xf]
        %v1080 = vld [vmem:[%s1077 + $0x8] sm:$0xf]
        %v1081 = vld [vmem:[%s1077 + $0xc] sm:$0xf]
        %v1082 = vld [vmem:[%s1077 + $0x10] sm:$0xf]
        %v1083 = vld [vmem:[%s1077 + $0x14] sm:$0xf]
        %v1084 = vld [vmem:[%s1077 + $0x18] sm:$0xf]
        %v1085 = vld [vmem:[%s1077 + $0x1c] sm:$0xf]
        %s1086 = scalar_lea.vmem %s5, 16
        %v1087 = vld [vmem:[%s1086] sm:$0xf]
        %v1088 = vld [vmem:[%s1086 + $0x4] sm:$0xf]
        %v1089 = vld [vmem:[%s1086 + $0x8] sm:$0xf]
        %v1090 = vld [vmem:[%s1086 + $0xc] sm:$0xf]
        %v1099 = vunpack.c.l.b16 %v1078
        %v1100 = vunpack.c.l.b16 %v1079
        %v1101 = vunpack.c.l.b16 %v1080
        %v1102 = vunpack.c.l.b16 %v1081
        %v1103 = vunpack.c.l.b16 %v1082
        %v1104 = vunpack.c.l.b16 %v1083
        %v1105 = vunpack.c.l.b16 %v1084
        %v1106 = vunpack.c.l.b16 %v1085
        %v1107 = vpack.c.b16 %v1100, %v1099
        %v1108 = vpack.c.b16 %v1102, %v1101
        %v1109 = vpack.c.b16 %v1104, %v1103
        %v1110 = vpack.c.b16 %v1106, %v1105
        %v1115 = vunpack.c.l.b16 %v1087
        %v1116 = vunpack.c.l.b16 %v1088
        %v1117 = vunpack.c.l.b16 %v1089
        %v1118 = vunpack.c.l.b16 %v1090
        %v1119 = vpack.c.b16 %v1116, %v1115
        %v1120 = vpack.c.b16 %v1118, %v1117
        %vm1123 = vcmask 261120
        %v1125 = vsel %vm1123, %v1107, 0
        %v1128 = vsel %vm1123, %v1108, 0
        %v1131 = vsel %vm1123, %v1109, 0
        %v1134 = vsel %vm1123, %v1110, 0
        %1136 = vmatprep.subr.bf16.mxu0 0
        %1137 = vmatpush1.bf16.msra.mxu0 %v1119
        %1138 = vmatprep.subr.bf16.mxu0 0
        %1139 = vmatpush1.bf16.msra.mxu0 %v1120
        %1140 = vmatprep.subr.bf16.mxu0 0
        %1141 = vmatpush1.bf16.msra.mxu0 0
        %1142 = vmatprep.subr.bf16.mxu0 0
        %1143 = vmatpush1.bf16.msra.mxu0 0
        %1144 = vmatprep.subr.bf16.mxu0 0
        %1145 = vmatpush1.bf16.msra.mxu0 0
        %1146 = vmatprep.subr.bf16.mxu0 0
        %1147 = vmatpush1.bf16.msra.mxu0 0
        %1148 = vmatprep.subr.bf16.mxu0 0
        %1149 = vmatpush1.bf16.msra.mxu0 0
        %1150 = vmatprep.subr.bf16.mxu0 0
        %1151 = vmatpush1.bf16.msra.mxu0 0
        %1152 = vmatprep.subr.bf16.mxu0 0
        %1153 = vmatpush1.bf16.msra.mxu0 0
        %1154 = vmatprep.subr.bf16.mxu0 0
        %1155 = vmatpush1.bf16.msra.mxu0 0
        %1156 = vmatprep.subr.bf16.mxu0 0
        %1157 = vmatpush1.bf16.msra.mxu0 0
        %1158 = vmatprep.subr.bf16.mxu0 0
        %1159 = vmatpush1.bf16.msra.mxu0 0
        %1160 = vmatprep.subr.bf16.mxu0 0
        %1161 = vmatpush1.bf16.msra.mxu0 0
        %1162 = vmatprep.subr.bf16.mxu0 0
        %1163 = vmatpush1.bf16.msra.mxu0 0
        %1164 = vmatprep.subr.bf16.mxu0 0
        %1165 = vmatpush1.bf16.msra.mxu0 0
        %1166 = vmatprep.subr.bf16.mxu0 0
        %1167 = vmatpush1.bf16.msra.mxu0 0
        %1168 = vmatprep.mubr.bf16.mxu0 0
        %1169 = vmatmul.mubr.bf16.gmra.mrb[0].mxu0 %v1125
        %v1170 = vpop.f32.mrb[0].mxu0
        %v1171 = vadd.f32 0.0, %v1170
        %v1172 = vpop.f32.mrb[0].mxu0
        %v1173 = vpop.f32.mrb[0].mxu0
        %v1174 = vadd.f32 0.0, %v1173
        %v1175 = vpop.f32.mrb[0].mxu0
        %1176 = vmatprep.mubr.bf16.mxu0 0
        %1177 = vmatmul.mubr.bf16.gmra.mrb[0].mxu0 %v1128
        %v1178 = vpop.f32.mrb[0].mxu0
        %v1179 = vadd.f32 0.0, %v1178
        %v1180 = vpop.f32.mrb[0].mxu0
        %v1181 = vpop.f32.mrb[0].mxu0
        %v1182 = vadd.f32 0.0, %v1181
        %v1183 = vpop.f32.mrb[0].mxu0
        %1184 = vmatprep.mubr.bf16.mxu0 0
        %1185 = vmatmul.mubr.bf16.gmra.mrb[0].mxu0 %v1131
        %v1186 = vpop.f32.mrb[0].mxu0
        %v1187 = vadd.f32 0.0, %v1186
        %v1188 = vpop.f32.mrb[0].mxu0
        %v1189 = vpop.f32.mrb[0].mxu0
        %v1190 = vadd.f32 0.0, %v1189
        %v1191 = vpop.f32.mrb[0].mxu0
        %1192 = vmatprep.mubr.bf16.mxu0 0
        %1193 = vmatmul.mubr.bf16.gmra.mrb[0].mxu0 %v1134
        %v1194 = vpop.f32.mrb[0].mxu0
        %v1195 = vadd.f32 0.0, %v1194
        %v1196 = vpop.f32.mrb[0].mxu0
        %v1197 = vpop.f32.mrb[0].mxu0
        %v1198 = vadd.f32 0.0, %v1197
        %v1199 = vpop.f32.mrb[0].mxu0
        %1200 = vdwg.mxu0
        %v1209 = vunpack.c.l.b16 %v1065
        %v1210 = vunpack.c.l.b16 %v1066
        %v1211 = vunpack.c.l.b16 %v1067
        %v1212 = vunpack.c.l.b16 %v1068
        %v1213 = vunpack.c.l.b16 %v1069
        %v1214 = vunpack.c.l.b16 %v1070
        %v1215 = vunpack.c.l.b16 %v1071
        %v1216 = vunpack.c.l.b16 %v1072
        %v1217 = vpack.c.b16 %v1210, %v1209
        %v1218 = vpack.c.b16 %v1212, %v1211
        %v1219 = vpack.c.b16 %v1214, %v1213
        %v1220 = vpack.c.b16 %v1216, %v1215
        %v1225 = vunpack.c.l.b16 %v1073
        %v1226 = vunpack.c.l.b16 %v1074
        %v1227 = vunpack.c.l.b16 %v1075
        %v1228 = vunpack.c.l.b16 %v1076
        %v1229 = vpack.c.b16 %v1226, %v1225
        %v1230 = vpack.c.b16 %v1228, %v1227
        %v1234 = vsel %vm1123, %v1217, 0
        %v1237 = vsel %vm1123, %v1218, 0
        %v1240 = vsel %vm1123, %v1219, 0
        %v1243 = vsel %vm1123, %v1220, 0
        %1245 = vmatprep.subr.bf16.mxu0 0
        %1246 = vmatpush1.bf16.msra.mxu0 %v1229
        %1247 = vmatprep.subr.bf16.mxu0 0
        %1248 = vmatpush1.bf16.msra.mxu0 %v1230
        %1249 = vmatprep.subr.bf16.mxu0 0
        %1250 = vmatpush1.bf16.msra.mxu0 0
        %1251 = vmatprep.subr.bf16.mxu0 0
        %1252 = vmatpush1.bf16.msra.mxu0 0
        %1253 = vmatprep.subr.bf16.mxu0 0
        %1254 = vmatpush1.bf16.msra.mxu0 0
        %1255 = vmatprep.subr.bf16.mxu0 0
        %1256 = vmatpush1.bf16.msra.mxu0 0
        %1257 = vmatprep.subr.bf16.mxu0 0
        %1258 = vmatpush1.bf16.msra.mxu0 0
        %1259 = vmatprep.subr.bf16.mxu0 0
        %1260 = vmatpush1.bf16.msra.mxu0 0
        %1261 = vmatprep.subr.bf16.mxu0 0
        %1262 = vmatpush1.bf16.msra.mxu0 0
        %1263 = vmatprep.subr.bf16.mxu0 0
        %1264 = vmatpush1.bf16.msra.mxu0 0
        %1265 = vmatprep.subr.bf16.mxu0 0
        %1266 = vmatpush1.bf16.msra.mxu0 0
        %1267 = vmatprep.subr.bf16.mxu0 0
        %1268 = vmatpush1.bf16.msra.mxu0 0
        %1269 = vmatprep.subr.bf16.mxu0 0
        %1270 = vmatpush1.bf16.msra.mxu0 0
        %1271 = vmatprep.subr.bf16.mxu0 0
        %1272 = vmatpush1.bf16.msra.mxu0 0
        %1273 = vmatprep.subr.bf16.mxu0 0
        %1274 = vmatpush1.bf16.msra.mxu0 0
        %1275 = vmatprep.subr.bf16.mxu0 0
        %1276 = vmatpush1.bf16.msra.mxu0 0
        %1277 = vmatprep.mubr.bf16.mxu0 0
        %1278 = vmatmul.mubr.bf16.gmra.mrb[0].mxu0 %v1234
        %v1279 = vpop.f32.mrb[0].mxu0
        %v1280 = vadd.f32 %v1171, %v1279
        %v1281 = vpop.f32.mrb[0].mxu0
        %v1282 = vpop.f32.mrb[0].mxu0
        %v1283 = vadd.f32 %v1174, %v1282
        %v1284 = vpop.f32.mrb[0].mxu0
        %1285 = vmatprep.mubr.bf16.mxu0 0
        %1286 = vmatmul.mubr.bf16.gmra.mrb[0].mxu0 %v1237
        %v1287 = vpop.f32.mrb[0].mxu0
        %v1288 = vadd.f32 %v1179, %v1287
        %v1289 = vpop.f32.mrb[0].mxu0
        %v1290 = vpop.f32.mrb[0].mxu0
        %v1291 = vadd.f32 %v1182, %v1290
        %v1292 = vpop.f32.mrb[0].mxu0
        %1293 = vmatprep.mubr.bf16.mxu0 0
        %1294 = vmatmul.mubr.bf16.gmra.mrb[0].mxu0 %v1240
        %v1295 = vpop.f32.mrb[0].mxu0
        %v1296 = vadd.f32 %v1187, %v1295
        %v1297 = vpop.f32.mrb[0].mxu0
        %v1298 = vpop.f32.mrb[0].mxu0
        %v1299 = vadd.f32 %v1190, %v1298
        %v1300 = vpop.f32.mrb[0].mxu0
        %1301 = vmatprep.mubr.bf16.mxu0 0
        %1302 = vmatmul.mubr.bf16.gmra.mrb[0].mxu0 %v1243
        %v1303 = vpop.f32.mrb[0].mxu0
        %v1304 = vadd.f32 %v1195, %v1303
        %v1305 = vpop.f32.mrb[0].mxu0
        %v1306 = vpop.f32.mrb[0].mxu0
        %v1307 = vadd.f32 %v1198, %v1306
        %v1308 = vpop.f32.mrb[0].mxu0
        %1309 = vdwg.mxu0
        %s1310 = scalar_lea.vmem %s573, 64
        %v1311 = vld [vmem:[%s1310] sm:$0xf]
        %v1312 = vld [vmem:[%s1310 + $0x4] sm:$0xf]
        %v1313 = vld [vmem:[%s1310 + $0x8] sm:$0xf]
        %v1314 = vld [vmem:[%s1310 + $0xc] sm:$0xf]
        %v1315 = vld [vmem:[%s1310 + $0x10] sm:$0xf]
        %v1316 = vld [vmem:[%s1310 + $0x14] sm:$0xf]
        %v1317 = vld [vmem:[%s1310 + $0x18] sm:$0xf]
        %v1318 = vld [vmem:[%s1310 + $0x1c] sm:$0xf]
        %s1319 = scalar_lea.vmem %s5, 32
        %v1320 = vld [vmem:[%s1319] sm:$0xf]
        %v1321 = vld [vmem:[%s1319 + $0x4] sm:$0xf]
        %v1322 = vld [vmem:[%s1319 + $0x8] sm:$0xf]
        %v1323 = vld [vmem:[%s1319 + $0xc] sm:$0xf]
        %v1332 = vunpack.c.l.b16 %v1311
        %v1333 = vunpack.c.l.b16 %v1312
        %v1334 = vunpack.c.l.b16 %v1313
        %v1335 = vunpack.c.l.b16 %v1314
        %v1336 = vunpack.c.l.b16 %v1315
        %v1337 = vunpack.c.l.b16 %v1316
        %v1338 = vunpack.c.l.b16 %v1317
        %v1339 = vunpack.c.l.b16 %v1318
        %v1340 = vpack.c.b16 %v1333, %v1332
        %v1341 = vpack.c.b16 %v1335, %v1334
        %v1342 = vpack.c.b16 %v1337, %v1336
        %v1343 = vpack.c.b16 %v1339, %v1338
        %v1348 = vunpack.c.l.b16 %v1320
        %v1349 = vunpack.c.l.b16 %v1321
        %v1350 = vunpack.c.l.b16 %v1322
        %v1351 = vunpack.c.l.b16 %v1323
        %v1352 = vpack.c.b16 %v1349, %v1348
        %v1353 = vpack.c.b16 %v1351, %v1350
        %v1357 = vsel %vm1123, %v1340, 0
        %v1360 = vsel %vm1123, %v1341, 0
        %v1363 = vsel %vm1123, %v1342, 0
        %v1366 = vsel %vm1123, %v1343, 0
        %1368 = vmatprep.subr.bf16.mxu0 0
        %1369 = vmatpush1.bf16.msra.mxu0 %v1352
        %1370 = vmatprep.subr.bf16.mxu0 0
        %1371 = vmatpush1.bf16.msra.mxu0 %v1353
        %1372 = vmatprep.subr.bf16.mxu0 0
        %1373 = vmatpush1.bf16.msra.mxu0 0
        %1374 = vmatprep.subr.bf16.mxu0 0
        %1375 = vmatpush1.bf16.msra.mxu0 0
        %1376 = vmatprep.subr.bf16.mxu0 0
        %1377 = vmatpush1.bf16.msra.mxu0 0
        %1378 = vmatprep.subr.bf16.mxu0 0
        %1379 = vmatpush1.bf16.msra.mxu0 0
        %1380 = vmatprep.subr.bf16.mxu0 0
        %1381 = vmatpush1.bf16.msra.mxu0 0
        %1382 = vmatprep.subr.bf16.mxu0 0
        %1383 = vmatpush1.bf16.msra.mxu0 0
        %1384 = vmatprep.subr.bf16.mxu0 0
        %1385 = vmatpush1.bf16.msra.mxu0 0
        %1386 = vmatprep.subr.bf16.mxu0 0
        %1387 = vmatpush1.bf16.msra.mxu0 0
        %1388 = vmatprep.subr.bf16.mxu0 0
        %1389 = vmatpush1.bf16.msra.mxu0 0
        %1390 = vmatprep.subr.bf16.mxu0 0
        %1391 = vmatpush1.bf16.msra.mxu0 0
        %1392 = vmatprep.subr.bf16.mxu0 0
        %1393 = vmatpush1.bf16.msra.mxu0 0
        %1394 = vmatprep.subr.bf16.mxu0 0
        %1395 = vmatpush1.bf16.msra.mxu0 0
        %1396 = vmatprep.subr.bf16.mxu0 0
        %1397 = vmatpush1.bf16.msra.mxu0 0
        %1398 = vmatprep.subr.bf16.mxu0 0
        %1399 = vmatpush1.bf16.msra.mxu0 0
        %1400 = vmatprep.mubr.bf16.mxu0 0
        %1401 = vmatmul.mubr.bf16.gmra.mrb[0].mxu0 %v1357
        %v1402 = vpop.f32.mrb[0].mxu0
        %v1403 = vadd.f32 0.0, %v1402
        %v1404 = vpop.f32.mrb[0].mxu0
        %v1405 = vpop.f32.mrb[0].mxu0
        %v1406 = vadd.f32 0.0, %v1405
        %v1407 = vpop.f32.mrb[0].mxu0
        %1408 = vmatprep.mubr.bf16.mxu0 0
        %1409 = vmatmul.mubr.bf16.gmra.mrb[0].mxu0 %v1360
        %v1410 = vpop.f32.mrb[0].mxu0
        %v1411 = vadd.f32 0.0, %v1410
        %v1412 = vpop.f32.mrb[0].mxu0
        %v1413 = vpop.f32.mrb[0].mxu0
        %v1414 = vadd.f32 0.0, %v1413
        %v1415 = vpop.f32.mrb[0].mxu0
        %1416 = vmatprep.mubr.bf16.mxu0 0
        %1417 = vmatmul.mubr.bf16.gmra.mrb[0].mxu0 %v1363
        %v1418 = vpop.f32.mrb[0].mxu0
        %v1419 = vadd.f32 0.0, %v1418
        %v1420 = vpop.f32.mrb[0].mxu0
        %v1421 = vpop.f32.mrb[0].mxu0
        %v1422 = vadd.f32 0.0, %v1421
        %v1423 = vpop.f32.mrb[0].mxu0
        %1424 = vmatprep.mubr.bf16.mxu0 0
        %1425 = vmatmul.mubr.bf16.gmra.mrb[0].mxu0 %v1366
        %v1426 = vpop.f32.mrb[0].mxu0
        %v1427 = vadd.f32 0.0, %v1426
        %v1428 = vpop.f32.mrb[0].mxu0
        %v1429 = vpop.f32.mrb[0].mxu0
        %v1430 = vadd.f32 0.0, %v1429
        %v1431 = vpop.f32.mrb[0].mxu0
        %1432 = vdwg.mxu0
        %v1433 = vadd.f32 %v1280, %v1403
        %v1434 = vadd.f32 %v1283, %v1406
        %v1435 = vadd.f32 %v1288, %v1411
        %v1436 = vadd.f32 %v1291, %v1414
        %v1437 = vadd.f32 %v1296, %v1419
        %v1438 = vadd.f32 %v1299, %v1422
        %v1439 = vadd.f32 %v1304, %v1427
        %v1440 = vadd.f32 %v1307, %v1430
        %v1441 = vadd.f32 %v1035, %v1433
        %v1442 = vadd.f32 %v1038, %v1434
        %v1443 = vadd.f32 %v1043, %v1435
        %v1444 = vadd.f32 %v1046, %v1436
        %v1445 = vadd.f32 %v1051, %v1437
        %v1446 = vadd.f32 %v1054, %v1438
        %v1447 = vadd.f32 %v1059, %v1439
        %v1448 = vadd.f32 %v1062, %v1440
        %v1449 = vld [vmem:[#allocation8] sm:$0xff]
        %v1450 = vld [vmem:[#allocation8 + $0x8] sm:$0xff]
        %v1451 = vld [vmem:[#allocation8 + $0x10] sm:$0xff]
        %v1452 = vld [vmem:[#allocation8 + $0x18] sm:$0xff]
        %v1453 = vld [vmem:[#allocation8 + $0x20] sm:$0xff]
        %v1454 = vld [vmem:[#allocation8 + $0x28] sm:$0xff]
        %v1455 = vld [vmem:[#allocation8 + $0x30] sm:$0xff]
        %v1456 = vld [vmem:[#allocation8 + $0x38] sm:$0xff]
        %v1457 = vadd.f32 %v1441, %v1449
        %v1458 = vadd.f32 %v1442, %v1450
        %v1459 = vadd.f32 %v1443, %v1451
        %v1460 = vadd.f32 %v1444, %v1452
        %v1461 = vadd.f32 %v1445, %v1453
        %v1462 = vadd.f32 %v1446, %v1454
        %v1463 = vadd.f32 %v1447, %v1455
        %v1464 = vadd.f32 %v1448, %v1456
        %1465 = vadd.xlane.f32.xlu0 %v1457
        %v1466 = vpop.xlane.xlu0 %1465
        %1467 = vadd.xlane.f32.xlu0 %v1458
        %v1468 = vpop.xlane.xlu0 %1467
        %1469 = vadd.xlane.f32.xlu0 %v1459
        %v1470 = vpop.xlane.xlu0 %1469
        %1471 = vadd.xlane.f32.xlu0 %v1460
        %v1472 = vpop.xlane.xlu0 %1471
        %1473 = vadd.xlane.f32.xlu0 %v1461
        %v1474 = vpop.xlane.xlu0 %1473
        %1475 = vadd.xlane.f32.xlu0 %v1462
        %v1476 = vpop.xlane.xlu0 %1475
        %1477 = vadd.xlane.f32.xlu0 %v1463
        %v1478 = vpop.xlane.xlu0 %1477
        %1479 = vadd.xlane.f32.xlu0 %v1464
        %v1480 = vpop.xlane.xlu0 %1479
        %v1481 = vrcp.pop 128.0
        %v1482 = vmul.f32 %v1466, %v1481
        %v1483 = vmul.f32 %v1468, %v1481
        %v1484 = vmul.f32 %v1470, %v1481
        %v1485 = vmul.f32 %v1472, %v1481
        %v1486 = vmul.f32 %v1474, %v1481
        %v1487 = vmul.f32 %v1476, %v1481
        %v1488 = vmul.f32 %v1478, %v1481
        %v1489 = vmul.f32 %v1480, %v1481
        %v1490 = vsub.f32 %v1457, %v1482
        %v1491 = vsub.f32 %v1458, %v1483
        %v1492 = vsub.f32 %v1459, %v1484
        %v1493 = vsub.f32 %v1460, %v1485
        %v1494 = vsub.f32 %v1461, %v1486
        %v1495 = vsub.f32 %v1462, %v1487
        %v1496 = vsub.f32 %v1463, %v1488
        %v1497 = vsub.f32 %v1464, %v1489
        %v1498 = vmul.f32 %v1490, %v1490
        %v1499 = vmul.f32 %v1491, %v1491
        %v1500 = vmul.f32 %v1492, %v1492
        %v1501 = vmul.f32 %v1493, %v1493
        %v1502 = vmul.f32 %v1494, %v1494
        %v1503 = vmul.f32 %v1495, %v1495
        %v1504 = vmul.f32 %v1496, %v1496
        %v1505 = vmul.f32 %v1497, %v1497
        %1506 = vadd.xlane.f32.xlu0 %v1498
        %v1507 = vpop.xlane.xlu0 %1506
        %1508 = vadd.xlane.f32.xlu0 %v1499
        %v1509 = vpop.xlane.xlu0 %1508
        %1510 = vadd.xlane.f32.xlu0 %v1500
        %v1511 = vpop.xlane.xlu0 %1510
        %1512 = vadd.xlane.f32.xlu0 %v1501
        %v1513 = vpop.xlane.xlu0 %1512
        %1514 = vadd.xlane.f32.xlu0 %v1502
        %v1515 = vpop.xlane.xlu0 %1514
        %1516 = vadd.xlane.f32.xlu0 %v1503
        %v1517 = vpop.xlane.xlu0 %1516
        %1518 = vadd.xlane.f32.xlu0 %v1504
        %v1519 = vpop.xlane.xlu0 %1518
        %1520 = vadd.xlane.f32.xlu0 %v1505
        %v1521 = vpop.xlane.xlu0 %1520
        %v1522 = vmul.f32 %v1507, %v1481
        %v1523 = vmul.f32 %v1509, %v1481
        %v1524 = vmul.f32 %v1511, %v1481
        %v1525 = vmul.f32 %v1513, %v1481
        %v1526 = vmul.f32 %v1515, %v1481
        %v1527 = vmul.f32 %v1517, %v1481
        %v1528 = vmul.f32 %v1519, %v1481
        %v1529 = vmul.f32 %v1521, %v1481
        %v1530 = vadd.f32 %v1522, 1e-05
        %v1531 = vadd.f32 %v1523, 1e-05
        %v1532 = vadd.f32 %v1524, 1e-05
        %v1533 = vadd.f32 %v1525, 1e-05
        %v1534 = vadd.f32 %v1526, 1e-05
        %v1535 = vadd.f32 %v1527, 1e-05
        %v1536 = vadd.f32 %v1528, 1e-05
        %v1537 = vadd.f32 %v1529, 1e-05
        %v1538 = vrsqrt.pop %v1530
        %v1539 = vrsqrt.pop %v1531
        %v1540 = vrsqrt.pop %v1532
        %v1541 = vrsqrt.pop %v1533
        %v1542 = vrsqrt.pop %v1534
        %v1543 = vrsqrt.pop %v1535
        %v1544 = vrsqrt.pop %v1536
        %v1545 = vrsqrt.pop %v1537
        %v1546 = vmul.f32 %v1490, %v1538
        %v1547 = vmul.f32 %v1491, %v1539
        %v1548 = vmul.f32 %v1492, %v1540
        %v1549 = vmul.f32 %v1493, %v1541
        %v1550 = vmul.f32 %v1494, %v1542
        %v1551 = vmul.f32 %v1495, %v1543
        %v1552 = vmul.f32 %v1496, %v1544
        %v1553 = vmul.f32 %v1497, %v1545
        %v1554 = vld [vmem:[#allocation14 + $0x4] ss:$0 sm:$0xff]
        %v1555 = vmul.f32 %v1546, %v1554
        %v1556 = vmul.f32 %v1547, %v1554
        %v1557 = vmul.f32 %v1548, %v1554
        %v1558 = vmul.f32 %v1549, %v1554
        %v1559 = vmul.f32 %v1550, %v1554
        %v1560 = vmul.f32 %v1551, %v1554
        %v1561 = vmul.f32 %v1552, %v1554
        %v1562 = vmul.f32 %v1553, %v1554
        %v1563 = vld [vmem:[#allocation14 + $0x5] ss:$0 sm:$0xff]
        %v1564 = vadd.f32 %v1555, %v1563
        %v1565 = vadd.f32 %v1556, %v1563
        %v1566 = vadd.f32 %v1557, %v1563
        %v1567 = vadd.f32 %v1558, %v1563
        %v1568 = vadd.f32 %v1559, %v1563
        %v1569 = vadd.f32 %v1560, %v1563
        %v1570 = vadd.f32 %v1561, %v1563
        %v1571 = vadd.f32 %v1562, %v1563
        %v1572 = vpack.c.bf16 %v1565, %v1564
        %v1573 = vpack.c.bf16 %v1567, %v1566
        %v1574 = vpack.c.bf16 %v1569, %v1568
        %v1575 = vpack.c.bf16 %v1571, %v1570
        %v1576 = vld [vmem:[#allocation10] sm:$0xff]
        %v1577 = vld [vmem:[#allocation10 + $0x8] sm:$0xf]
        %v1578 = vld [vmem:[#allocation10 + $0xc] sm:$0xff]
        %v1579 = vld [vmem:[#allocation10 + $0x14] sm:$0xf]
        %v1580 = vld [vmem:[#allocation10 + $0x18] sm:$0xff]
        %v1581 = vld [vmem:[#allocation10 + $0x20] sm:$0xf]
        %v1582 = vld [vmem:[#allocation10 + $0x24] sm:$0xff]
        %v1583 = vld [vmem:[#allocation10 + $0x2c] sm:$0xf]
        %v1584 = vld [vmem:[#allocation10 + $0x30] sm:$0xff]
        %v1585 = vld [vmem:[#allocation10 + $0x38] sm:$0xf]
        %v1586 = vld [vmem:[#allocation10 + $0x3c] sm:$0xff]
        %v1587 = vld [vmem:[#allocation10 + $0x44] sm:$0xf]
        %v1588 = vld [vmem:[#allocation10 + $0x48] sm:$0xff]
        %v1589 = vld [vmem:[#allocation10 + $0x50] sm:$0xf]
        %v1590 = vld [vmem:[#allocation10 + $0x54] sm:$0xff]
        %v1591 = vld [vmem:[#allocation10 + $0x5c] sm:$0xf]
        %v1592 = vld [vmem:[#allocation10 + $0x60] sm:$0xff]
        %v1593 = vld [vmem:[#allocation10 + $0x68] sm:$0xf]
        %v1594 = vld [vmem:[#allocation10 + $0x6c] sm:$0xff]
        %v1595 = vld [vmem:[#allocation10 + $0x74] sm:$0xf]
        %v1596 = vld [vmem:[#allocation10 + $0x78] sm:$0xff]
        %v1597 = vld [vmem:[#allocation10 + $0x80] sm:$0xf]
        %v1598 = vld [vmem:[#allocation10 + $0x84] sm:$0xff]
        %v1599 = vld [vmem:[#allocation10 + $0x8c] sm:$0xf]
        %v1600 = vld [vmem:[#allocation10 + $0x90] sm:$0xff]
        %v1601 = vld [vmem:[#allocation10 + $0x98] sm:$0xf]
        %v1602 = vld [vmem:[#allocation10 + $0x9c] sm:$0xff]
        %v1603 = vld [vmem:[#allocation10 + $0xa4] sm:$0xf]
        %v1604 = vld [vmem:[#allocation10 + $0xa8] sm:$0xff]
        %v1605 = vld [vmem:[#allocation10 + $0xb0] sm:$0xf]
        %v1606 = vld [vmem:[#allocation10 + $0xb4] sm:$0xff]
        %v1607 = vld [vmem:[#allocation10 + $0xbc] sm:$0xf]
        %v1608 = vld [vmem:[#allocation14] ss:$8 sm:$0x7]
        %v1610 = vlaneseq
        %v1611 = vshrl.u32 %v1610, 7
        %v1612 = vsub.s32 0, %v1611
        %v1613 = vrot.slane %v1608, %v1612
        %v1614 = vlaneseq
        %v1615 = vshrl.u32 %v1614, 7
        %v1616 = vsub.s32 1, %v1615
        %v1617 = vrot.slane %v1608, %v1616
        %v1618 = vlaneseq
        %v1619 = vshrl.u32 %v1618, 7
        %v1620 = vsub.s32 2, %v1619
        %v1621 = vrot.slane %v1608, %v1620
        %v1657 = vunpack.c.l.b16 %v1576
        %v1658 = vunpack.c.h.b16 %v1576
        %v1659 = vunpack.c.l.b16 %v1577
        %v1660 = vunpack.c.l.b16 %v1578
        %v1661 = vunpack.c.h.b16 %v1578
        %v1662 = vunpack.c.l.b16 %v1579
        %v1663 = vunpack.c.l.b16 %v1580
        %v1664 = vunpack.c.h.b16 %v1580
        %v1665 = vunpack.c.l.b16 %v1581
        %v1666 = vunpack.c.l.b16 %v1582
        %v1667 = vunpack.c.h.b16 %v1582
        %v1668 = vunpack.c.l.b16 %v1583
        %v1669 = vunpack.c.l.b16 %v1584
        %v1670 = vunpack.c.h.b16 %v1584
        %v1671 = vunpack.c.l.b16 %v1585
        %v1672 = vunpack.c.l.b16 %v1586
        %v1673 = vunpack.c.h.b16 %v1586
        %v1674 = vunpack.c.l.b16 %v1587
        %v1675 = vunpack.c.l.b16 %v1588
        %v1676 = vunpack.c.h.b16 %v1588
        %v1677 = vunpack.c.l.b16 %v1589
        %v1678 = vunpack.c.l.b16 %v1590
        %v1679 = vunpack.c.h.b16 %v1590
        %v1680 = vunpack.c.l.b16 %v1591
        %v1681 = vunpack.c.l.b16 %v1592
        %v1682 = vunpack.c.h.b16 %v1592
        %v1683 = vunpack.c.l.b16 %v1593
        %v1684 = vunpack.c.l.b16 %v1594
        %v1685 = vunpack.c.h.b16 %v1594
        %v1686 = vunpack.c.l.b16 %v1595
        %v1687 = vunpack.c.l.b16 %v1596
        %v1688 = vunpack.c.h.b16 %v1596
        %v1689 = vunpack.c.l.b16 %v1597
        %v1690 = vunpack.c.l.b16 %v1598
        %v1691 = vunpack.c.h.b16 %v1598
        %v1692 = vunpack.c.l.b16 %v1599
        %v1693 = vunpack.c.l.b16 %v1600
        %v1694 = vunpack.c.h.b16 %v1600
        %v1695 = vunpack.c.l.b16 %v1601
        %v1696 = vunpack.c.l.b16 %v1602
        %v1697 = vunpack.c.h.b16 %v1602
        %v1698 = vunpack.c.l.b16 %v1603
        %v1699 = vunpack.c.l.b16 %v1604
        %v1700 = vunpack.c.h.b16 %v1604
        %v1701 = vunpack.c.l.b16 %v1605
        %v1702 = vunpack.c.l.b16 %v1606
        %v1703 = vunpack.c.h.b16 %v1606
        %v1704 = vunpack.c.l.b16 %v1607
        %v1705 = vpack.c.b16 %v1660, %v1657
        %v1706 = vpack.c.b16 %v1661, %v1658
        %v1707 = vpack.c.b16 %v1662, %v1659
        %v1708 = vpack.c.b16 %v1666, %v1663
        %v1709 = vpack.c.b16 %v1667, %v1664
        %v1710 = vpack.c.b16 %v1668, %v1665
        %v1711 = vpack.c.b16 %v1672, %v1669
        %v1712 = vpack.c.b16 %v1673, %v1670
        %v1713 = vpack.c.b16 %v1674, %v1671
        %v1714 = vpack.c.b16 %v1678, %v1675
        %v1715 = vpack.c.b16 %v1679, %v1676
        %v1716 = vpack.c.b16 %v1680, %v1677
        %v1717 = vpack.c.b16 %v1684, %v1681
        %v1718 = vpack.c.b16 %v1685, %v1682
        %v1719 = vpack.c.b16 %v1686, %v1683
        %v1720 = vpack.c.b16 %v1690, %v1687
        %v1721 = vpack.c.b16 %v1691, %v1688
        %v1722 = vpack.c.b16 %v1692, %v1689
        %v1723 = vpack.c.b16 %v1696, %v1693
        %v1724 = vpack.c.b16 %v1697, %v1694
        %v1725 = vpack.c.b16 %v1698, %v1695
        %v1726 = vpack.c.b16 %v1702, %v1699
        %v1727 = vpack.c.b16 %v1703, %v1700
        %v1728 = vpack.c.b16 %v1704, %v1701
        %1753 = vmatprep.subr.bf16.mxu0 %v1706
        %1754 = vmatpush1.bf16.msra.mxu0 %v1705
        %1755 = vmatprep.subr.bf16.mxu0 %v1709
        %1756 = vmatpush1.bf16.msra.mxu0 %v1708
        %1757 = vmatprep.subr.bf16.mxu0 %v1712
        %1758 = vmatpush1.bf16.msra.mxu0 %v1711
        %1759 = vmatprep.subr.bf16.mxu0 %v1715
        %1760 = vmatpush1.bf16.msra.mxu0 %v1714
        %1761 = vmatprep.subr.bf16.mxu0 %v1718
        %1762 = vmatpush1.bf16.msra.mxu0 %v1717
        %1763 = vmatprep.subr.bf16.mxu0 %v1721
        %1764 = vmatpush1.bf16.msra.mxu0 %v1720
        %1765 = vmatprep.subr.bf16.mxu0 %v1724
        %1766 = vmatpush1.bf16.msra.mxu0 %v1723
        %1767 = vmatprep.subr.bf16.mxu0 %v1727
        %1768 = vmatpush1.bf16.msra.mxu0 %v1726
        %1769 = vmatprep.subr.bf16.mxu0 0
        %1770 = vmatpush1.bf16.msra.mxu0 0
        %1771 = vmatprep.subr.bf16.mxu0 0
        %1772 = vmatpush1.bf16.msra.mxu0 0
        %1773 = vmatprep.subr.bf16.mxu0 0
        %1774 = vmatpush1.bf16.msra.mxu0 0
        %1775 = vmatprep.subr.bf16.mxu0 0
        %1776 = vmatpush1.bf16.msra.mxu0 0
        %1777 = vmatprep.subr.bf16.mxu0 0
        %1778 = vmatpush1.bf16.msra.mxu0 0
        %1779 = vmatprep.subr.bf16.mxu0 0
        %1780 = vmatpush1.bf16.msra.mxu0 0
        %1781 = vmatprep.subr.bf16.mxu0 0
        %1782 = vmatpush1.bf16.msra.mxu0 0
        %1783 = vmatprep.subr.bf16.mxu0 0
        %1784 = vmatpush1.bf16.msra.mxu0 0
        %1785 = vmatprep.mubr.bf16.mxu0 0
        %1786 = vmatmul.mubr.bf16.gmra.mrb[0].mxu0 %v1572
        %v1787 = vpop.f32.mrb[0].mxu0
        %v1788 = vadd.f32 %v1613, %v1787
        %v1789 = vpop.f32.mrb[0].mxu0
        %v1790 = vadd.f32 %v1617, %v1789
        %v1791 = vpop.f32.mrb[0].mxu0
        %v1792 = vadd.f32 %v1613, %v1791
        %v1793 = vpop.f32.mrb[0].mxu0
        %v1794 = vadd.f32 %v1617, %v1793
        %1795 = vmatprep.mubr.bf16.mxu0 0
        %1796 = vmatmul.mubr.bf16.gmra.mrb[0].mxu0 %v1573
        %v1797 = vpop.f32.mrb[0].mxu0
        %v1798 = vadd.f32 %v1613, %v1797
        %v1799 = vpop.f32.mrb[0].mxu0
        %v1800 = vadd.f32 %v1617, %v1799
        %v1801 = vpop.f32.mrb[0].mxu0
        %v1802 = vadd.f32 %v1613, %v1801
        %v1803 = vpop.f32.mrb[0].mxu0
        %v1804 = vadd.f32 %v1617, %v1803
        %1805 = vmatprep.mubr.bf16.mxu0 0
        %1806 = vmatmul.mubr.bf16.gmra.mrb[0].mxu0 %v1574
        %v1807 = vpop.f32.mrb[0].mxu0
        %v1808 = vadd.f32 %v1613, %v1807
        %v1809 = vpop.f32.mrb[0].mxu0
        %v1810 = vadd.f32 %v1617, %v1809
        %v1811 = vpop.f32.mrb[0].mxu0
        %v1812 = vadd.f32 %v1613, %v1811
        %v1813 = vpop.f32.mrb[0].mxu0
        %v1814 = vadd.f32 %v1617, %v1813
        %1815 = vmatprep.mubr.bf16.mxu0 0
        %1816 = vmatmul.mubr.bf16.gmra.mrb[0].mxu0 %v1575
        %v1817 = vpop.f32.mrb[0].mxu0
        %v1818 = vadd.f32 %v1613, %v1817
        %v1819 = vpop.f32.mrb[0].mxu0
        %v1820 = vadd.f32 %v1617, %v1819
        %v1821 = vpop.f32.mrb[0].mxu0
        %v1822 = vadd.f32 %v1613, %v1821
        %v1823 = vpop.f32.mrb[0].mxu0
        %v1824 = vadd.f32 %v1617, %v1823
        %1825 = vdwg.mxu0
        %1826 = vmatprep.subr.bf16.mxu0 0
        %1827 = vmatpush1.bf16.msra.mxu0 %v1707
        %1828 = vmatprep.subr.bf16.mxu0 0
        %1829 = vmatpush1.bf16.msra.mxu0 %v1710
        %1830 = vmatprep.subr.bf16.mxu0 0
        %1831 = vmatpush1.bf16.msra.mxu0 %v1713
        %1832 = vmatprep.subr.bf16.mxu0 0
        %1833 = vmatpush1.bf16.msra.mxu0 %v1716
        %1834 = vmatprep.subr.bf16.mxu0 0
        %1835 = vmatpush1.bf16.msra.mxu0 %v1719
        %1836 = vmatprep.subr.bf16.mxu0 0
        %1837 = vmatpush1.bf16.msra.mxu0 %v1722
        %1838 = vmatprep.subr.bf16.mxu0 0
        %1839 = vmatpush1.bf16.msra.mxu0 %v1725
        %1840 = vmatprep.subr.bf16.mxu0 0
        %1841 = vmatpush1.bf16.msra.mxu0 %v1728
        %1842 = vmatprep.subr.bf16.mxu0 0
        %1843 = vmatpush1.bf16.msra.mxu0 0
        %1844 = vmatprep.subr.bf16.mxu0 0
        %1845 = vmatpush1.bf16.msra.mxu0 0
        %1846 = vmatprep.subr.bf16.mxu0 0
        %1847 = vmatpush1.bf16.msra.mxu0 0
        %1848 = vmatprep.subr.bf16.mxu0 0
        %1849 = vmatpush1.bf16.msra.mxu0 0
        %1850 = vmatprep.subr.bf16.mxu0 0
        %1851 = vmatpush1.bf16.msra.mxu0 0
        %1852 = vmatprep.subr.bf16.mxu0 0
        %1853 = vmatpush1.bf16.msra.mxu0 0
        %1854 = vmatprep.subr.bf16.mxu0 0
        %1855 = vmatpush1.bf16.msra.mxu0 0
        %1856 = vmatprep.subr.bf16.mxu0 0
        %1857 = vmatpush1.bf16.msra.mxu0 0
        %1858 = vmatprep.mubr.bf16.mxu0 0
        %1859 = vmatmul.mubr.bf16.gmra.mrb[0].mxu0 %v1572
        %v1860 = vpop.f32.mrb[0].mxu0
        %v1861 = vadd.f32 %v1621, %v1860
        %v1862 = vpop.f32.mrb[0].mxu0
        %v1863 = vpop.f32.mrb[0].mxu0
        %v1864 = vadd.f32 %v1621, %v1863
        %v1865 = vpop.f32.mrb[0].mxu0
        %1866 = vmatprep.mubr.bf16.mxu0 0
        %1867 = vmatmul.mubr.bf16.gmra.mrb[0].mxu0 %v1573
        %v1868 = vpop.f32.mrb[0].mxu0
        %v1869 = vadd.f32 %v1621, %v1868
        %v1870 = vpop.f32.mrb[0].mxu0
        %v1871 = vpop.f32.mrb[0].mxu0
        %v1872 = vadd.f32 %v1621, %v1871
        %v1873 = vpop.f32.mrb[0].mxu0
        %1874 = vmatprep.mubr.bf16.mxu0 0
        %1875 = vmatmul.mubr.bf16.gmra.mrb[0].mxu0 %v1574
        %v1876 = vpop.f32.mrb[0].mxu0
        %v1877 = vadd.f32 %v1621, %v1876
        %v1878 = vpop.f32.mrb[0].mxu0
        %v1879 = vpop.f32.mrb[0].mxu0
        %v1880 = vadd.f32 %v1621, %v1879
        %v1881 = vpop.f32.mrb[0].mxu0
        %1882 = vmatprep.mubr.bf16.mxu0 0
        %1883 = vmatmul.mubr.bf16.gmra.mrb[0].mxu0 %v1575
        %v1884 = vpop.f32.mrb[0].mxu0
        %v1885 = vadd.f32 %v1621, %v1884
        %v1886 = vpop.f32.mrb[0].mxu0
        %v1887 = vpop.f32.mrb[0].mxu0
        %v1888 = vadd.f32 %v1621, %v1887
        %v1889 = vpop.f32.mrb[0].mxu0
        %1890 = vdwg.mxu0
        %v1891 = vmul.f32 %v1788, 0.17677669
        %v1892 = vmul.f32 %v1792, 0.17677669
        %v1893 = vmul.f32 %v1798, 0.17677669
        %v1894 = vmul.f32 %v1802, 0.17677669
        %v1895 = vmul.f32 %v1808, 0.17677669
        %v1896 = vmul.f32 %v1812, 0.17677669
        %v1897 = vmul.f32 %v1818, 0.17677669
        %v1898 = vmul.f32 %v1822, 0.17677669
        %v1899 = vpack.c.bf16 %v1892, %v1891
        %v1900 = vpack.c.bf16 %v1894, %v1893
        %v1901 = vpack.c.bf16 %v1896, %v1895
        %v1902 = vpack.c.bf16 %v1898, %v1897
        %v1903 = vpack.c.bf16 %v1794, %v1790
        %v1904 = vpack.c.bf16 %v1804, %v1800
        %v1905 = vpack.c.bf16 %v1814, %v1810
        %v1906 = vpack.c.bf16 %v1824, %v1820
        %v1907 = vpack.c.bf16 %v1864, %v1861
        %v1908 = vpack.c.bf16 %v1872, %v1869
        %v1909 = vpack.c.bf16 %v1880, %v1877
        %v1910 = vpack.c.bf16 %v1888, %v1885
        %v1912 = vsel %vm1123, %v1899, 0
        %v1915 = vsel %vm1123, %v1900, 0
        %v1918 = vsel %vm1123, %v1903, 0
        %v1921 = vsel %vm1123, %v1904, 0
        %1923 = vmatprep.subr.bf16.mxu0 0
        %1924 = vmatpush1.bf16.xpose.msra.mxu0 %v1918
        %1925 = vmatprep.subr.bf16.mxu0 0
        %1926 = vmatpush1.bf16.xpose.msra.mxu0 %v1921
        %1927 = vmatprep.subr.bf16.mxu0 0
        %1928 = vmatpush1.bf16.xpose.msra.mxu0 0
        %1929 = vmatprep.subr.bf16.mxu0 0
        %1930 = vmatpush1.bf16.xpose.msra.mxu0 0
        %1931 = vmatprep.subr.bf16.mxu0 0
        %1932 = vmatpush1.bf16.xpose.msra.mxu0 0
        %1933 = vmatprep.subr.bf16.mxu0 0
        %1934 = vmatpush1.bf16.xpose.msra.mxu0 0
        %1935 = vmatprep.subr.bf16.mxu0 0
        %1936 = vmatpush1.bf16.xpose.msra.mxu0 0
        %1937 = vmatprep.subr.bf16.mxu0 0
        %1938 = vmatpush1.bf16.xpose.msra.mxu0 0
        %1939 = vmatprep.subr.bf16.mxu0 0
        %1940 = vmatpush1.bf16.xpose.msra.mxu0 0
        %1941 = vmatprep.subr.bf16.mxu0 0
        %1942 = vmatpush1.bf16.xpose.msra.mxu0 0
        %1943 = vmatprep.subr.bf16.mxu0 0
        %1944 = vmatpush1.bf16.xpose.msra.mxu0 0
        %1945 = vmatprep.subr.bf16.mxu0 0
        %1946 = vmatpush1.bf16.xpose.msra.mxu0 0
        %1947 = vmatprep.subr.bf16.mxu0 0
        %1948 = vmatpush1.bf16.xpose.msra.mxu0 0
        %1949 = vmatprep.subr.bf16.mxu0 0
        %1950 = vmatpush1.bf16.xpose.msra.mxu0 0
        %1951 = vmatprep.subr.bf16.mxu0 0
        %1952 = vmatpush1.bf16.xpose.msra.mxu0 0
        %1953 = vmatprep.subr.bf16.mxu0 0
        %1954 = vmatpush1.bf16.xpose.msra.mxu0 0
        %1955 = vmatprep.mubr.bf16.mxu0 0
        %1956 = vmatmul.mubr.bf16.gmra.mrb[0].mxu0 %v1912
        %v1957 = vpop.f32.mrb[0].mxu0
        %v1958 = vadd.f32 0.0, %v1957
        %v1959 = vpop.f32.mrb[0].mxu0
        %v1960 = vpop.f32.mrb[0].mxu0
        %v1961 = vadd.f32 0.0, %v1960
        %v1962 = vpop.f32.mrb[0].mxu0
        %1963 = vmatprep.mubr.bf16.mxu0 0
        %1964 = vmatmul.mubr.bf16.gmra.mrb[0].mxu0 %v1915
        %v1965 = vpop.f32.mrb[0].mxu0
        %v1966 = vadd.f32 0.0, %v1965
        %v1967 = vpop.f32.mrb[0].mxu0
        %v1968 = vpop.f32.mrb[0].mxu0
        %v1969 = vadd.f32 0.0, %v1968
        %v1970 = vpop.f32.mrb[0].mxu0
        %1971 = vdwg.mxu0
        %v1972 = vsel %vm1123, %v1958, -inf
        %1973 = vmax.xlane.f32.xlu0 %v1972
        %v1974 = vpop.xlane.xlu0 %1973
        %v1975 = vsel %vm1123, %v1961, -inf
        %1976 = vmax.xlane.f32.xlu0 %v1975
        %v1977 = vpop.xlane.xlu0 %1976
        %v1978 = vsel %vm1123, %v1966, -inf
        %1979 = vmax.xlane.f32.xlu0 %v1978
        %v1980 = vpop.xlane.xlu0 %1979
        %v1981 = vsel %vm1123, %v1969, -inf
        %1982 = vmax.xlane.f32.xlu0 %v1981
        %v1983 = vpop.xlane.xlu0 %1982
        %v1984 = vsub.f32 %v1958, %v1974
        %v1985 = vsub.f32 %v1961, %v1977
        %v1986 = vsub.f32 %v1966, %v1980
        %v1987 = vsub.f32 %v1969, %v1983
        %v1988 = vmul.f32 %v1984, 1.442695
        %v1989 = vpow.pop %v1988
        %v1990 = vmul.f32 %v1985, 1.442695
        %v1991 = vpow.pop %v1990
        %v1992 = vmul.f32 %v1986, 1.442695
        %v1993 = vpow.pop %v1992
        %v1994 = vmul.f32 %v1987, 1.442695
        %v1995 = vpow.pop %v1994
        %v1996 = vsel %vm1123, %v1989, 0.0
        %1997 = vadd.xlane.f32.xlu0 %v1996
        %v1998 = vpop.xlane.xlu0 %1997
        %v1999 = vsel %vm1123, %v1991, 0.0
        %2000 = vadd.xlane.f32.xlu0 %v1999
        %v2001 = vpop.xlane.xlu0 %2000
        %v2002 = vsel %vm1123, %v1993, 0.0
        %2003 = vadd.xlane.f32.xlu0 %v2002
        %v2004 = vpop.xlane.xlu0 %2003
        %v2005 = vsel %vm1123, %v1995, 0.0
        %2006 = vadd.xlane.f32.xlu0 %v2005
        %v2007 = vpop.xlane.xlu0 %2006
        %v2008 = vpack.c.bf16 %v1991, %v1989
        %v2009 = vpack.c.bf16 %v1995, %v1993
        %v2011 = vsel %vm1123, %v2008, 0
        %v2014 = vsel %vm1123, %v2009, 0
        %2016 = vmatprep.subr.bf16.mxu0 0
        %2017 = vmatpush1.bf16.msra.mxu0 %v1907
        %2018 = vmatprep.subr.bf16.mxu0 0
        %2019 = vmatpush1.bf16.msra.mxu0 %v1908
        %2020 = vmatprep.subr.bf16.mxu0 0
        %2021 = vmatpush1.bf16.msra.mxu0 0
        %2022 = vmatprep.subr.bf16.mxu0 0
        %2023 = vmatpush1.bf16.msra.mxu0 0
        %2024 = vmatprep.subr.bf16.mxu0 0
        %2025 = vmatpush1.bf16.msra.mxu0 0
        %2026 = vmatprep.subr.bf16.mxu0 0
        %2027 = vmatpush1.bf16.msra.mxu0 0
        %2028 = vmatprep.subr.bf16.mxu0 0
        %2029 = vmatpush1.bf16.msra.mxu0 0
        %2030 = vmatprep.subr.bf16.mxu0 0
        %2031 = vmatpush1.bf16.msra.mxu0 0
        %2032 = vmatprep.subr.bf16.mxu0 0
        %2033 = vmatpush1.bf16.msra.mxu0 0
        %2034 = vmatprep.subr.bf16.mxu0 0
        %2035 = vmatpush1.bf16.msra.mxu0 0
        %2036 = vmatprep.subr.bf16.mxu0 0
        %2037 = vmatpush1.bf16.msra.mxu0 0
        %2038 = vmatprep.subr.bf16.mxu0 0
        %2039 = vmatpush1.bf16.msra.mxu0 0
        %2040 = vmatprep.subr.bf16.mxu0 0
        %2041 = vmatpush1.bf16.msra.mxu0 0
        %2042 = vmatprep.subr.bf16.mxu0 0
        %2043 = vmatpush1.bf16.msra.mxu0 0
        %2044 = vmatprep.subr.bf16.mxu0 0
        %2045 = vmatpush1.bf16.msra.mxu0 0
        %2046 = vmatprep.subr.bf16.mxu0 0
        %2047 = vmatpush1.bf16.msra.mxu0 0
        %2048 = vmatprep.mubr.bf16.mxu0 0
        %2049 = vmatmul.mubr.bf16.gmra.mrb[0].mxu0 %v2011
        %v2050 = vpop.f32.mrb[0].mxu0
        %v2051 = vadd.f32 0.0, %v2050
        %v2052 = vpop.f32.mrb[0].mxu0
        %v2053 = vpop.f32.mrb[0].mxu0
        %v2054 = vadd.f32 0.0, %v2053
        %v2055 = vpop.f32.mrb[0].mxu0
        %2056 = vmatprep.mubr.bf16.mxu0 0
        %2057 = vmatmul.mubr.bf16.gmra.mrb[0].mxu0 %v2014
        %v2058 = vpop.f32.mrb[0].mxu0
        %v2059 = vadd.f32 0.0, %v2058
        %v2060 = vpop.f32.mrb[0].mxu0
        %v2061 = vpop.f32.mrb[0].mxu0
        %v2062 = vadd.f32 0.0, %v2061
        %v2063 = vpop.f32.mrb[0].mxu0
        %2064 = vdwg.mxu0
        %v2065 = vrcp.pop %v1998
        %v2066 = vrcp.pop %v2001
        %v2067 = vrcp.pop %v2004
        %v2068 = vrcp.pop %v2007
        %v2069 = vmul.f32 %v2051, %v2065
        %v2070 = vmul.f32 %v2054, %v2066
        %v2071 = vmul.f32 %v2059, %v2067
        %v2072 = vmul.f32 %v2062, %v2068
        %v2073 = vpack.c.bf16 %v2070, %v2069
        %v2074 = vpack.c.bf16 %v2072, %v2071
        %v2075 = vld [vmem:[#allocation11] sm:$0xf]
        %v2076 = vld [vmem:[#allocation11 + $0x4] sm:$0xf]
        %v2077 = vld [vmem:[#allocation11 + $0x8] sm:$0xf]
        %v2078 = vld [vmem:[#allocation11 + $0xc] sm:$0xf]
        %2081 = vrot.lane.b32.xlu0 %v1899, 96
        %v2082 = vpop.permute.xlu0 %2081
        %2083 = vrot.lane.b32.xlu0 %v1900, 96
        %v2084 = vpop.permute.xlu0 %2083
        %2087 = vrot.lane.b32.xlu0 %v1903, 96
        %v2088 = vpop.permute.xlu0 %2087
        %2089 = vrot.lane.b32.xlu0 %v1904, 96
        %v2090 = vpop.permute.xlu0 %2089
        %v2092 = vsel %vm1123, %v2082, 0
        %v2095 = vsel %vm1123, %v2084, 0
        %v2098 = vsel %vm1123, %v2088, 0
        %v2101 = vsel %vm1123, %v2090, 0
        %2103 = vmatprep.subr.bf16.mxu0 0
        %2104 = vmatpush1.bf16.xpose.msra.mxu0 %v2098
        %2105 = vmatprep.subr.bf16.mxu0 0
        %2106 = vmatpush1.bf16.xpose.msra.mxu0 %v2101
        %2107 = vmatprep.subr.bf16.mxu0 0
        %2108 = vmatpush1.bf16.xpose.msra.mxu0 0
        %2109 = vmatprep.subr.bf16.mxu0 0
        %2110 = vmatpush1.bf16.xpose.msra.mxu0 0
        %2111 = vmatprep.subr.bf16.mxu0 0
        %2112 = vmatpush1.bf16.xpose.msra.mxu0 0
        %2113 = vmatprep.subr.bf16.mxu0 0
        %2114 = vmatpush1.bf16.xpose.msra.mxu0 0
        %2115 = vmatprep.subr.bf16.mxu0 0
        %2116 = vmatpush1.bf16.xpose.msra.mxu0 0
        %2117 = vmatprep.subr.bf16.mxu0 0
        %2118 = vmatpush1.bf16.xpose.msra.mxu0 0
        %2119 = vmatprep.subr.bf16.mxu0 0
        %2120 = vmatpush1.bf16.xpose.msra.mxu0 0
        %2121 = vmatprep.subr.bf16.mxu0 0
        %2122 = vmatpush1.bf16.xpose.msra.mxu0 0
        %2123 = vmatprep.subr.bf16.mxu0 0
        %2124 = vmatpush1.bf16.xpose.msra.mxu0 0
        %2125 = vmatprep.subr.bf16.mxu0 0
        %2126 = vmatpush1.bf16.xpose.msra.mxu0 0
        %2127 = vmatprep.subr.bf16.mxu0 0
        %2128 = vmatpush1.bf16.xpose.msra.mxu0 0
        %2129 = vmatprep.subr.bf16.mxu0 0
        %2130 = vmatpush1.bf16.xpose.msra.mxu0 0
        %2131 = vmatprep.subr.bf16.mxu0 0
        %2132 = vmatpush1.bf16.xpose.msra.mxu0 0
        %2133 = vmatprep.subr.bf16.mxu0 0
        %2134 = vmatpush1.bf16.xpose.msra.mxu0 0
        %2135 = vmatprep.mubr.bf16.mxu0 0
        %2136 = vmatmul.mubr.bf16.gmra.mrb[0].mxu0 %v2092
        %v2137 = vpop.f32.mrb[0].mxu0
        %v2138 = vadd.f32 0.0, %v2137
        %v2139 = vpop.f32.mrb[0].mxu0
        %v2140 = vpop.f32.mrb[0].mxu0
        %v2141 = vadd.f32 0.0, %v2140
        %v2142 = vpop.f32.mrb[0].mxu0
        %2143 = vmatprep.mubr.bf16.mxu0 0
        %2144 = vmatmul.mubr.bf16.gmra.mrb[0].mxu0 %v2095
        %v2145 = vpop.f32.mrb[0].mxu0
        %v2146 = vadd.f32 0.0, %v2145
        %v2147 = vpop.f32.mrb[0].mxu0
        %v2148 = vpop.f32.mrb[0].mxu0
        %v2149 = vadd.f32 0.0, %v2148
        %v2150 = vpop.f32.mrb[0].mxu0
        %2151 = vdwg.mxu0
        %v2152 = vsel %vm1123, %v2138, -inf
        %2153 = vmax.xlane.f32.xlu0 %v2152
        %v2154 = vpop.xlane.xlu0 %2153
        %v2155 = vsel %vm1123, %v2141, -inf
        %2156 = vmax.xlane.f32.xlu0 %v2155
        %v2157 = vpop.xlane.xlu0 %2156
        %v2158 = vsel %vm1123, %v2146, -inf
        %2159 = vmax.xlane.f32.xlu0 %v2158
        %v2160 = vpop.xlane.xlu0 %2159
        %v2161 = vsel %vm1123, %v2149, -inf
        %2162 = vmax.xlane.f32.xlu0 %v2161
        %v2163 = vpop.xlane.xlu0 %2162
        %v2164 = vsub.f32 %v2138, %v2154
        %v2165 = vsub.f32 %v2141, %v2157
        %v2166 = vsub.f32 %v2146, %v2160
        %v2167 = vsub.f32 %v2149, %v2163
        %v2168 = vmul.f32 %v2164, 1.442695
        %v2169 = vpow.pop %v2168
        %v2170 = vmul.f32 %v2165, 1.442695
        %v2171 = vpow.pop %v2170
        %v2172 = vmul.f32 %v2166, 1.442695
        %v2173 = vpow.pop %v2172
        %v2174 = vmul.f32 %v2167, 1.442695
        %v2175 = vpow.pop %v2174
        %v2176 = vsel %vm1123, %v2169, 0.0
        %2177 = vadd.xlane.f32.xlu0 %v2176
        %v2178 = vpop.xlane.xlu0 %2177
        %v2179 = vsel %vm1123, %v2171, 0.0
        %2180 = vadd.xlane.f32.xlu0 %v2179
        %v2181 = vpop.xlane.xlu0 %2180
        %v2182 = vsel %vm1123, %v2173, 0.0
        %2183 = vadd.xlane.f32.xlu0 %v2182
        %v2184 = vpop.xlane.xlu0 %2183
        %v2185 = vsel %vm1123, %v2175, 0.0
        %2186 = vadd.xlane.f32.xlu0 %v2185
        %v2187 = vpop.xlane.xlu0 %2186
        %v2188 = vpack.c.bf16 %v2171, %v2169
        %v2189 = vpack.c.bf16 %v2175, %v2173
        %2192 = vrot.lane.b32.xlu0 %v1907, 96
        %v2193 = vpop.permute.xlu0 %2192
        %2194 = vrot.lane.b32.xlu0 %v1908, 96
        %v2195 = vpop.permute.xlu0 %2194
        %v2199 = vsel %vm1123, %v2188, 0
        %v2202 = vsel %vm1123, %v2189, 0
        %2204 = vmatprep.subr.bf16.mxu0 0
        %2205 = vmatpush1.bf16.msra.mxu0 %v2193
        %2206 = vmatprep.subr.bf16.mxu0 0
        %2207 = vmatpush1.bf16.msra.mxu0 %v2195
        %2208 = vmatprep.subr.bf16.mxu0 0
        %2209 = vmatpush1.bf16.msra.mxu0 0
        %2210 = vmatprep.subr.bf16.mxu0 0
        %2211 = vmatpush1.bf16.msra.mxu0 0
        %2212 = vmatprep.subr.bf16.mxu0 0
        %2213 = vmatpush1.bf16.msra.mxu0 0
        %2214 = vmatprep.subr.bf16.mxu0 0
        %2215 = vmatpush1.bf16.msra.mxu0 0
        %2216 = vmatprep.subr.bf16.mxu0 0
        %2217 = vmatpush1.bf16.msra.mxu0 0
        %2218 = vmatprep.subr.bf16.mxu0 0
        %2219 = vmatpush1.bf16.msra.mxu0 0
        %2220 = vmatprep.subr.bf16.mxu0 0
        %2221 = vmatpush1.bf16.msra.mxu0 0
        %2222 = vmatprep.subr.bf16.mxu0 0
        %2223 = vmatpush1.bf16.msra.mxu0 0
        %2224 = vmatprep.subr.bf16.mxu0 0
        %2225 = vmatpush1.bf16.msra.mxu0 0
        %2226 = vmatprep.subr.bf16.mxu0 0
        %2227 = vmatpush1.bf16.msra.mxu0 0
        %2228 = vmatprep.subr.bf16.mxu0 0
        %2229 = vmatpush1.bf16.msra.mxu0 0
        %2230 = vmatprep.subr.bf16.mxu0 0
        %2231 = vmatpush1.bf16.msra.mxu0 0
        %2232 = vmatprep.subr.bf16.mxu0 0
        %2233 = vmatpush1.bf16.msra.mxu0 0
        %2234 = vmatprep.subr.bf16.mxu0 0
        %2235 = vmatpush1.bf16.msra.mxu0 0
        %2236 = vmatprep.mubr.bf16.mxu0 0
        %2237 = vmatmul.mubr.bf16.gmra.mrb[0].mxu0 %v2199
        %v2238 = vpop.f32.mrb[0].mxu0
        %v2239 = vadd.f32 0.0, %v2238
        %v2240 = vpop.f32.mrb[0].mxu0
        %v2241 = vpop.f32.mrb[0].mxu0
        %v2242 = vadd.f32 0.0, %v2241
        %v2243 = vpop.f32.mrb[0].mxu0
        %2244 = vmatprep.mubr.bf16.mxu0 0
        %2245 = vmatmul.mubr.bf16.gmra.mrb[0].mxu0 %v2202
        %v2246 = vpop.f32.mrb[0].mxu0
        %v2247 = vadd.f32 0.0, %v2246
        %v2248 = vpop.f32.mrb[0].mxu0
        %v2249 = vpop.f32.mrb[0].mxu0
        %v2250 = vadd.f32 0.0, %v2249
        %v2251 = vpop.f32.mrb[0].mxu0
        %2252 = vdwg.mxu0
        %v2253 = vrcp.pop %v2178
        %v2254 = vrcp.pop %v2181
        %v2255 = vrcp.pop %v2184
        %v2256 = vrcp.pop %v2187
        %v2257 = vmul.f32 %v2239, %v2253
        %v2258 = vmul.f32 %v2242, %v2254
        %v2259 = vmul.f32 %v2247, %v2255
        %v2260 = vmul.f32 %v2250, %v2256
        %v2261 = vpack.c.bf16 %v2258, %v2257
        %v2262 = vpack.c.bf16 %v2260, %v2259
        %v2263 = vld [vmem:[#allocation11 + $0x10] sm:$0xf]
        %v2264 = vld [vmem:[#allocation11 + $0x14] sm:$0xf]
        %v2265 = vld [vmem:[#allocation11 + $0x18] sm:$0xf]
        %v2266 = vld [vmem:[#allocation11 + $0x1c] sm:$0xf]
        %v2271 = vunpack.c.l.b16 %v2263
        %v2272 = vunpack.c.l.b16 %v2264
        %v2273 = vunpack.c.l.b16 %v2265
        %v2274 = vunpack.c.l.b16 %v2266
        %v2275 = vpack.c.b16 %v2272, %v2271
        %v2276 = vpack.c.b16 %v2274, %v2273
        %v2280 = vsel %vm1123, %v2261, 0
        %v2283 = vsel %vm1123, %v2262, 0
        %2285 = vmatprep.subr.bf16.mxu0 0
        %2286 = vmatpush1.bf16.msra.mxu0 %v2275
        %2287 = vmatprep.subr.bf16.mxu0 0
        %2288 = vmatpush1.bf16.msra.mxu0 %v2276
        %2289 = vmatprep.subr.bf16.mxu0 0
        %2290 = vmatpush1.bf16.msra.mxu0 0
        %2291 = vmatprep.subr.bf16.mxu0 0
        %2292 = vmatpush1.bf16.msra.mxu0 0
        %2293 = vmatprep.subr.bf16.mxu0 0
        %2294 = vmatpush1.bf16.msra.mxu0 0
        %2295 = vmatprep.subr.bf16.mxu0 0
        %2296 = vmatpush1.bf16.msra.mxu0 0
        %2297 = vmatprep.subr.bf16.mxu0 0
        %2298 = vmatpush1.bf16.msra.mxu0 0
        %2299 = vmatprep.subr.bf16.mxu0 0
        %2300 = vmatpush1.bf16.msra.mxu0 0
        %2301 = vmatprep.subr.bf16.mxu0 0
        %2302 = vmatpush1.bf16.msra.mxu0 0
        %2303 = vmatprep.subr.bf16.mxu0 0
        %2304 = vmatpush1.bf16.msra.mxu0 0
        %2305 = vmatprep.subr.bf16.mxu0 0
        %2306 = vmatpush1.bf16.msra.mxu0 0
        %2307 = vmatprep.subr.bf16.mxu0 0
        %2308 = vmatpush1.bf16.msra.mxu0 0
        %2309 = vmatprep.subr.bf16.mxu0 0
        %2310 = vmatpush1.bf16.msra.mxu0 0
        %2311 = vmatprep.subr.bf16.mxu0 0
        %2312 = vmatpush1.bf16.msra.mxu0 0
        %2313 = vmatprep.subr.bf16.mxu0 0
        %2314 = vmatpush1.bf16.msra.mxu0 0
        %2315 = vmatprep.subr.bf16.mxu0 0
        %2316 = vmatpush1.bf16.msra.mxu0 0
        %2317 = vmatprep.mubr.bf16.mxu0 0
        %2318 = vmatmul.mubr.bf16.gmra.mrb[0].mxu0 %v2280
        %v2319 = vpop.f32.mrb[0].mxu0
        %v2320 = vadd.f32 0.0, %v2319
        %v2321 = vpop.f32.mrb[0].mxu0
        %v2322 = vpop.f32.mrb[0].mxu0
        %v2323 = vadd.f32 0.0, %v2322
        %v2324 = vpop.f32.mrb[0].mxu0
        %2325 = vmatprep.mubr.bf16.mxu0 0
        %2326 = vmatmul.mubr.bf16.gmra.mrb[0].mxu0 %v2283
        %v2327 = vpop.f32.mrb[0].mxu0
        %v2328 = vadd.f32 0.0, %v2327
        %v2329 = vpop.f32.mrb[0].mxu0
        %v2330 = vpop.f32.mrb[0].mxu0
        %v2331 = vadd.f32 0.0, %v2330
        %v2332 = vpop.f32.mrb[0].mxu0
        %2333 = vdwg.mxu0
        %v2338 = vunpack.c.l.b16 %v2075
        %v2339 = vunpack.c.l.b16 %v2076
        %v2340 = vunpack.c.l.b16 %v2077
        %v2341 = vunpack.c.l.b16 %v2078
        %v2342 = vpack.c.b16 %v2339, %v2338
        %v2343 = vpack.c.b16 %v2341, %v2340
        %v2347 = vsel %vm1123, %v2073, 0
        %v2350 = vsel %vm1123, %v2074, 0
        %2352 = vmatprep.subr.bf16.mxu0 0
        %2353 = vmatpush1.bf16.msra.mxu0 %v2342
        %2354 = vmatprep.subr.bf16.mxu0 0
        %2355 = vmatpush1.bf16.msra.mxu0 %v2343
        %2356 = vmatprep.subr.bf16.mxu0 0
        %2357 = vmatpush1.bf16.msra.mxu0 0
        %2358 = vmatprep.subr.bf16.mxu0 0
        %2359 = vmatpush1.bf16.msra.mxu0 0
        %2360 = vmatprep.subr.bf16.mxu0 0
        %2361 = vmatpush1.bf16.msra.mxu0 0
        %2362 = vmatprep.subr.bf16.mxu0 0
        %2363 = vmatpush1.bf16.msra.mxu0 0
        %2364 = vmatprep.subr.bf16.mxu0 0
        %2365 = vmatpush1.bf16.msra.mxu0 0
        %2366 = vmatprep.subr.bf16.mxu0 0
        %2367 = vmatpush1.bf16.msra.mxu0 0
        %2368 = vmatprep.subr.bf16.mxu0 0
        %2369 = vmatpush1.bf16.msra.mxu0 0
        %2370 = vmatprep.subr.bf16.mxu0 0
        %2371 = vmatpush1.bf16.msra.mxu0 0
        %2372 = vmatprep.subr.bf16.mxu0 0
        %2373 = vmatpush1.bf16.msra.mxu0 0
        %2374 = vmatprep.subr.bf16.mxu0 0
        %2375 = vmatpush1.bf16.msra.mxu0 0
        %2376 = vmatprep.subr.bf16.mxu0 0
        %2377 = vmatpush1.bf16.msra.mxu0 0
        %2378 = vmatprep.subr.bf16.mxu0 0
        %2379 = vmatpush1.bf16.msra.mxu0 0
        %2380 = vmatprep.subr.bf16.mxu0 0
        %2381 = vmatpush1.bf16.msra.mxu0 0
        %2382 = vmatprep.subr.bf16.mxu0 0
        %2383 = vmatpush1.bf16.msra.mxu0 0
        %2384 = vmatprep.mubr.bf16.mxu0 0
        %2385 = vmatmul.mubr.bf16.gmra.mrb[0].mxu0 %v2347
        %v2386 = vpop.f32.mrb[0].mxu0
        %v2387 = vadd.f32 %v2320, %v2386
        %v2388 = vpop.f32.mrb[0].mxu0
        %v2389 = vpop.f32.mrb[0].mxu0
        %v2390 = vadd.f32 %v2323, %v2389
        %v2391 = vpop.f32.mrb[0].mxu0
        %2392 = vmatprep.mubr.bf16.mxu0 0
        %2393 = vmatmul.mubr.bf16.gmra.mrb[0].mxu0 %v2350
        %v2394 = vpop.f32.mrb[0].mxu0
        %v2395 = vadd.f32 %v2328, %v2394
        %v2396 = vpop.f32.mrb[0].mxu0
        %v2397 = vpop.f32.mrb[0].mxu0
        %v2398 = vadd.f32 %v2331, %v2397
        %v2399 = vpop.f32.mrb[0].mxu0
        %2400 = vdwg.mxu0
        %2401 = vrot.lane.b32.xlu0 %v1899, 64
        %v2402 = vpop.permute.xlu0 %2401
        %2403 = vrot.lane.b32.xlu0 %v1900, 64
        %v2404 = vpop.permute.xlu0 %2403
        %2405 = vrot.lane.b32.xlu0 %v1903, 64
        %v2406 = vpop.permute.xlu0 %2405
        %2407 = vrot.lane.b32.xlu0 %v1904, 64
        %v2408 = vpop.permute.xlu0 %2407
        %v2410 = vsel %vm1123, %v2402, 0
        %v2413 = vsel %vm1123, %v2404, 0
        %v2416 = vsel %vm1123, %v2406, 0
        %v2419 = vsel %vm1123, %v2408, 0
        %2421 = vmatprep.subr.bf16.mxu0 0
        %2422 = vmatpush1.bf16.xpose.msra.mxu0 %v2416
        %2423 = vmatprep.subr.bf16.mxu0 0
        %2424 = vmatpush1.bf16.xpose.msra.mxu0 %v2419
        %2425 = vmatprep.subr.bf16.mxu0 0
        %2426 = vmatpush1.bf16.xpose.msra.mxu0 0
        %2427 = vmatprep.subr.bf16.mxu0 0
        %2428 = vmatpush1.bf16.xpose.msra.mxu0 0
        %2429 = vmatprep.subr.bf16.mxu0 0
        %2430 = vmatpush1.bf16.xpose.msra.mxu0 0
        %2431 = vmatprep.subr.bf16.mxu0 0
        %2432 = vmatpush1.bf16.xpose.msra.mxu0 0
        %2433 = vmatprep.subr.bf16.mxu0 0
        %2434 = vmatpush1.bf16.xpose.msra.mxu0 0
        %2435 = vmatprep.subr.bf16.mxu0 0
        %2436 = vmatpush1.bf16.xpose.msra.mxu0 0
        %2437 = vmatprep.subr.bf16.mxu0 0
        %2438 = vmatpush1.bf16.xpose.msra.mxu0 0
        %2439 = vmatprep.subr.bf16.mxu0 0
        %2440 = vmatpush1.bf16.xpose.msra.mxu0 0
        %2441 = vmatprep.subr.bf16.mxu0 0
        %2442 = vmatpush1.bf16.xpose.msra.mxu0 0
        %2443 = vmatprep.subr.bf16.mxu0 0
        %2444 = vmatpush1.bf16.xpose.msra.mxu0 0
        %2445 = vmatprep.subr.bf16.mxu0 0
        %2446 = vmatpush1.bf16.xpose.msra.mxu0 0
        %2447 = vmatprep.subr.bf16.mxu0 0
        %2448 = vmatpush1.bf16.xpose.msra.mxu0 0
        %2449 = vmatprep.subr.bf16.mxu0 0
        %2450 = vmatpush1.bf16.xpose.msra.mxu0 0
        %2451 = vmatprep.subr.bf16.mxu0 0
        %2452 = vmatpush1.bf16.xpose.msra.mxu0 0
        %2453 = vmatprep.mubr.bf16.mxu0 0
        %2454 = vmatmul.mubr.bf16.gmra.mrb[0].mxu0 %v2410
        %v2455 = vpop.f32.mrb[0].mxu0
        %v2456 = vadd.f32 0.0, %v2455
        %v2457 = vpop.f32.mrb[0].mxu0
        %v2458 = vpop.f32.mrb[0].mxu0
        %v2459 = vadd.f32 0.0, %v2458
        %v2460 = vpop.f32.mrb[0].mxu0
        %2461 = vmatprep.mubr.bf16.mxu0 0
        %2462 = vmatmul.mubr.bf16.gmra.mrb[0].mxu0 %v2413
        %v2463 = vpop.f32.mrb[0].mxu0
        %v2464 = vadd.f32 0.0, %v2463
        %v2465 = vpop.f32.mrb[0].mxu0
        %v2466 = vpop.f32.mrb[0].mxu0
        %v2467 = vadd.f32 0.0, %v2466
        %v2468 = vpop.f32.mrb[0].mxu0
        %2469 = vdwg.mxu0
        %v2470 = vsel %vm1123, %v2456, -inf
        %2471 = vmax.xlane.f32.xlu0 %v2470
        %v2472 = vpop.xlane.xlu0 %2471
        %v2473 = vsel %vm1123, %v2459, -inf
        %2474 = vmax.xlane.f32.xlu0 %v2473
        %v2475 = vpop.xlane.xlu0 %2474
        %v2476 = vsel %vm1123, %v2464, -inf
        %2477 = vmax.xlane.f32.xlu0 %v2476
        %v2478 = vpop.xlane.xlu0 %2477
        %v2479 = vsel %vm1123, %v2467, -inf
        %2480 = vmax.xlane.f32.xlu0 %v2479
        %v2481 = vpop.xlane.xlu0 %2480
        %v2482 = vsub.f32 %v2456, %v2472
        %v2483 = vsub.f32 %v2459, %v2475
        %v2484 = vsub.f32 %v2464, %v2478
        %v2485 = vsub.f32 %v2467, %v2481
        %v2486 = vmul.f32 %v2482, 1.442695
        %v2487 = vpow.pop %v2486
        %v2488 = vmul.f32 %v2483, 1.442695
        %v2489 = vpow.pop %v2488
        %v2490 = vmul.f32 %v2484, 1.442695
        %v2491 = vpow.pop %v2490
        %v2492 = vmul.f32 %v2485, 1.442695
        %v2493 = vpow.pop %v2492
        %v2494 = vsel %vm1123, %v2487, 0.0
        %2495 = vadd.xlane.f32.xlu0 %v2494
        %v2496 = vpop.xlane.xlu0 %2495
        %v2497 = vsel %vm1123, %v2489, 0.0
        %2498 = vadd.xlane.f32.xlu0 %v2497
        %v2499 = vpop.xlane.xlu0 %2498
        %v2500 = vsel %vm1123, %v2491, 0.0
        %2501 = vadd.xlane.f32.xlu0 %v2500
        %v2502 = vpop.xlane.xlu0 %2501
        %v2503 = vsel %vm1123, %v2493, 0.0
        %2504 = vadd.xlane.f32.xlu0 %v2503
        %v2505 = vpop.xlane.xlu0 %2504
        %v2506 = vpack.c.bf16 %v2489, %v2487
        %v2507 = vpack.c.bf16 %v2493, %v2491
        %2508 = vrot.lane.b32.xlu0 %v1907, 64
        %v2509 = vpop.permute.xlu0 %2508
        %2510 = vrot.lane.b32.xlu0 %v1908, 64
        %v2511 = vpop.permute.xlu0 %2510
        %v2515 = vsel %vm1123, %v2506, 0
        %v2518 = vsel %vm1123, %v2507, 0
        %2520 = vmatprep.subr.bf16.mxu0 0
        %2521 = vmatpush1.bf16.msra.mxu0 %v2509
        %2522 = vmatprep.subr.bf16.mxu0 0
        %2523 = vmatpush1.bf16.msra.mxu0 %v2511
        %2524 = vmatprep.subr.bf16.mxu0 0
        %2525 = vmatpush1.bf16.msra.mxu0 0
        %2526 = vmatprep.subr.bf16.mxu0 0
        %2527 = vmatpush1.bf16.msra.mxu0 0
        %2528 = vmatprep.subr.bf16.mxu0 0
        %2529 = vmatpush1.bf16.msra.mxu0 0
        %2530 = vmatprep.subr.bf16.mxu0 0
        %2531 = vmatpush1.bf16.msra.mxu0 0
        %2532 = vmatprep.subr.bf16.mxu0 0
        %2533 = vmatpush1.bf16.msra.mxu0 0
        %2534 = vmatprep.subr.bf16.mxu0 0
        %2535 = vmatpush1.bf16.msra.mxu0 0
        %2536 = vmatprep.subr.bf16.mxu0 0
        %2537 = vmatpush1.bf16.msra.mxu0 0
        %2538 = vmatprep.subr.bf16.mxu0 0
        %2539 = vmatpush1.bf16.msra.mxu0 0
        %2540 = vmatprep.subr.bf16.mxu0 0
        %2541 = vmatpush1.bf16.msra.mxu0 0
        %2542 = vmatprep.subr.bf16.mxu0 0
        %2543 = vmatpush1.bf16.msra.mxu0 0
        %2544 = vmatprep.subr.bf16.mxu0 0
        %2545 = vmatpush1.bf16.msra.mxu0 0
        %2546 = vmatprep.subr.bf16.mxu0 0
        %2547 = vmatpush1.bf16.msra.mxu0 0
        %2548 = vmatprep.subr.bf16.mxu0 0
        %2549 = vmatpush1.bf16.msra.mxu0 0
        %2550 = vmatprep.subr.bf16.mxu0 0
        %2551 = vmatpush1.bf16.msra.mxu0 0
        %2552 = vmatprep.mubr.bf16.mxu0 0
        %2553 = vmatmul.mubr.bf16.gmra.mrb[0].mxu0 %v2515
        %v2554 = vpop.f32.mrb[0].mxu0
        %v2555 = vadd.f32 0.0, %v2554
        %v2556 = vpop.f32.mrb[0].mxu0
        %v2557 = vpop.f32.mrb[0].mxu0
        %v2558 = vadd.f32 0.0, %v2557
        %v2559 = vpop.f32.mrb[0].mxu0
        %2560 = vmatprep.mubr.bf16.mxu0 0
        %2561 = vmatmul.mubr.bf16.gmra.mrb[0].mxu0 %v2518
        %v2562 = vpop.f32.mrb[0].mxu0
        %v2563 = vadd.f32 0.0, %v2562
        %v2564 = vpop.f32.mrb[0].mxu0
        %v2565 = vpop.f32.mrb[0].mxu0
        %v2566 = vadd.f32 0.0, %v2565
        %v2567 = vpop.f32.mrb[0].mxu0
        %2568 = vdwg.mxu0
        %v2569 = vrcp.pop %v2496
        %v2570 = vrcp.pop %v2499
        %v2571 = vrcp.pop %v2502
        %v2572 = vrcp.pop %v2505
        %v2573 = vmul.f32 %v2555, %v2569
        %v2574 = vmul.f32 %v2558, %v2570
        %v2575 = vmul.f32 %v2563, %v2571
        %v2576 = vmul.f32 %v2566, %v2572
        %v2577 = vpack.c.bf16 %v2574, %v2573
        %v2578 = vpack.c.bf16 %v2576, %v2575
        %v2579 = vld [vmem:[#allocation11 + $0x20] sm:$0xf]
        %v2580 = vld [vmem:[#allocation11 + $0x24] sm:$0xf]
        %v2581 = vld [vmem:[#allocation11 + $0x28] sm:$0xf]
        %v2582 = vld [vmem:[#allocation11 + $0x2c] sm:$0xf]
        %v2587 = vunpack.c.l.b16 %v2579
        %v2588 = vunpack.c.l.b16 %v2580
        %v2589 = vunpack.c.l.b16 %v2581
        %v2590 = vunpack.c.l.b16 %v2582
        %v2591 = vpack.c.b16 %v2588, %v2587
        %v2592 = vpack.c.b16 %v2590, %v2589
        %v2596 = vsel %vm1123, %v2577, 0
        %v2599 = vsel %vm1123, %v2578, 0
        %2601 = vmatprep.subr.bf16.mxu0 0
        %2602 = vmatpush1.bf16.msra.mxu0 %v2591
        %2603 = vmatprep.subr.bf16.mxu0 0
        %2604 = vmatpush1.bf16.msra.mxu0 %v2592
        %2605 = vmatprep.subr.bf16.mxu0 0
        %2606 = vmatpush1.bf16.msra.mxu0 0
        %2607 = vmatprep.subr.bf16.mxu0 0
        %2608 = vmatpush1.bf16.msra.mxu0 0
        %2609 = vmatprep.subr.bf16.mxu0 0
        %2610 = vmatpush1.bf16.msra.mxu0 0
        %2611 = vmatprep.subr.bf16.mxu0 0
        %2612 = vmatpush1.bf16.msra.mxu0 0
        %2613 = vmatprep.subr.bf16.mxu0 0
        %2614 = vmatpush1.bf16.msra.mxu0 0
        %2615 = vmatprep.subr.bf16.mxu0 0
        %2616 = vmatpush1.bf16.msra.mxu0 0
        %2617 = vmatprep.subr.bf16.mxu0 0
        %2618 = vmatpush1.bf16.msra.mxu0 0
        %2619 = vmatprep.subr.bf16.mxu0 0
        %2620 = vmatpush1.bf16.msra.mxu0 0
        %2621 = vmatprep.subr.bf16.mxu0 0
        %2622 = vmatpush1.bf16.msra.mxu0 0
        %2623 = vmatprep.subr.bf16.mxu0 0
        %2624 = vmatpush1.bf16.msra.mxu0 0
        %2625 = vmatprep.subr.bf16.mxu0 0
        %2626 = vmatpush1.bf16.msra.mxu0 0
        %2627 = vmatprep.subr.bf16.mxu0 0
        %2628 = vmatpush1.bf16.msra.mxu0 0
        %2629 = vmatprep.subr.bf16.mxu0 0
        %2630 = vmatpush1.bf16.msra.mxu0 0
        %2631 = vmatprep.subr.bf16.mxu0 0
        %2632 = vmatpush1.bf16.msra.mxu0 0
        %2633 = vmatprep.mubr.bf16.mxu0 0
        %2634 = vmatmul.mubr.bf16.gmra.mrb[0].mxu0 %v2596
        %v2635 = vpop.f32.mrb[0].mxu0
        %v2636 = vadd.f32 0.0, %v2635
        %v2637 = vpop.f32.mrb[0].mxu0
        %v2638 = vpop.f32.mrb[0].mxu0
        %v2639 = vadd.f32 0.0, %v2638
        %v2640 = vpop.f32.mrb[0].mxu0
        %2641 = vmatprep.mubr.bf16.mxu0 0
        %2642 = vmatmul.mubr.bf16.gmra.mrb[0].mxu0 %v2599
        %v2643 = vpop.f32.mrb[0].mxu0
        %v2644 = vadd.f32 0.0, %v2643
        %v2645 = vpop.f32.mrb[0].mxu0
        %v2646 = vpop.f32.mrb[0].mxu0
        %v2647 = vadd.f32 0.0, %v2646
        %v2648 = vpop.f32.mrb[0].mxu0
        %2649 = vdwg.mxu0
        %v2650 = vadd.f32 %v2387, %v2636
        %v2651 = vadd.f32 %v2390, %v2639
        %v2652 = vadd.f32 %v2395, %v2644
        %v2653 = vadd.f32 %v2398, %v2647
        %2654 = vrot.lane.b32.xlu0 %v1899, 32
        %v2655 = vpop.permute.xlu0 %2654
        %2656 = vrot.lane.b32.xlu0 %v1900, 32
        %v2657 = vpop.permute.xlu0 %2656
        %2658 = vrot.lane.b32.xlu0 %v1903, 32
        %v2659 = vpop.permute.xlu0 %2658
        %2660 = vrot.lane.b32.xlu0 %v1904, 32
        %v2661 = vpop.permute.xlu0 %2660
        %v2663 = vsel %vm1123, %v2655, 0
        %v2666 = vsel %vm1123, %v2657, 0
        %v2669 = vsel %vm1123, %v2659, 0
        %v2672 = vsel %vm1123, %v2661, 0
        %2674 = vmatprep.subr.bf16.mxu0 0
        %2675 = vmatpush1.bf16.xpose.msra.mxu0 %v2669
        %2676 = vmatprep.subr.bf16.mxu0 0
        %2677 = vmatpush1.bf16.xpose.msra.mxu0 %v2672
        %2678 = vmatprep.subr.bf16.mxu0 0
        %2679 = vmatpush1.bf16.xpose.msra.mxu0 0
        %2680 = vmatprep.subr.bf16.mxu0 0
        %2681 = vmatpush1.bf16.xpose.msra.mxu0 0
        %2682 = vmatprep.subr.bf16.mxu0 0
        %2683 = vmatpush1.bf16.xpose.msra.mxu0 0
        %2684 = vmatprep.subr.bf16.mxu0 0
        %2685 = vmatpush1.bf16.xpose.msra.mxu0 0
        %2686 = vmatprep.subr.bf16.mxu0 0
        %2687 = vmatpush1.bf16.xpose.msra.mxu0 0
        %2688 = vmatprep.subr.bf16.mxu0 0
        %2689 = vmatpush1.bf16.xpose.msra.mxu0 0
        %2690 = vmatprep.subr.bf16.mxu0 0
        %2691 = vmatpush1.bf16.xpose.msra.mxu0 0
        %2692 = vmatprep.subr.bf16.mxu0 0
        %2693 = vmatpush1.bf16.xpose.msra.mxu0 0
        %2694 = vmatprep.subr.bf16.mxu0 0
        %2695 = vmatpush1.bf16.xpose.msra.mxu0 0
        %2696 = vmatprep.subr.bf16.mxu0 0
        %2697 = vmatpush1.bf16.xpose.msra.mxu0 0
        %2698 = vmatprep.subr.bf16.mxu0 0
        %2699 = vmatpush1.bf16.xpose.msra.mxu0 0
        %2700 = vmatprep.subr.bf16.mxu0 0
        %2701 = vmatpush1.bf16.xpose.msra.mxu0 0
        %2702 = vmatprep.subr.bf16.mxu0 0
        %2703 = vmatpush1.bf16.xpose.msra.mxu0 0
        %2704 = vmatprep.subr.bf16.mxu0 0
        %2705 = vmatpush1.bf16.xpose.msra.mxu0 0
        %2706 = vmatprep.mubr.bf16.mxu0 0
        %2707 = vmatmul.mubr.bf16.gmra.mrb[0].mxu0 %v2663
        %v2708 = vpop.f32.mrb[0].mxu0
        %v2709 = vadd.f32 0.0, %v2708
        %v2710 = vpop.f32.mrb[0].mxu0
        %v2711 = vpop.f32.mrb[0].mxu0
        %v2712 = vadd.f32 0.0, %v2711
        %v2713 = vpop.f32.mrb[0].mxu0
        %2714 = vmatprep.mubr.bf16.mxu0 0
        %2715 = vmatmul.mubr.bf16.gmra.mrb[0].mxu0 %v2666
        %v2716 = vpop.f32.mrb[0].mxu0
        %v2717 = vadd.f32 0.0, %v2716
        %v2718 = vpop.f32.mrb[0].mxu0
        %v2719 = vpop.f32.mrb[0].mxu0
        %v2720 = vadd.f32 0.0, %v2719
        %v2721 = vpop.f32.mrb[0].mxu0
        %2722 = vdwg.mxu0
        %v2723 = vsel %vm1123, %v2709, -inf
        %2724 = vmax.xlane.f32.xlu0 %v2723
        %v2725 = vpop.xlane.xlu0 %2724
        %v2726 = vsel %vm1123, %v2712, -inf
        %2727 = vmax.xlane.f32.xlu0 %v2726
        %v2728 = vpop.xlane.xlu0 %2727
        %v2729 = vsel %vm1123, %v2717, -inf
        %2730 = vmax.xlane.f32.xlu0 %v2729
        %v2731 = vpop.xlane.xlu0 %2730
        %v2732 = vsel %vm1123, %v2720, -inf
        %2733 = vmax.xlane.f32.xlu0 %v2732
        %v2734 = vpop.xlane.xlu0 %2733
        %v2735 = vsub.f32 %v2709, %v2725
        %v2736 = vsub.f32 %v2712, %v2728
        %v2737 = vsub.f32 %v2717, %v2731
        %v2738 = vsub.f32 %v2720, %v2734
        %v2739 = vmul.f32 %v2735, 1.442695
        %v2740 = vpow.pop %v2739
        %v2741 = vmul.f32 %v2736, 1.442695
        %v2742 = vpow.pop %v2741
        %v2743 = vmul.f32 %v2737, 1.442695
        %v2744 = vpow.pop %v2743
        %v2745 = vmul.f32 %v2738, 1.442695
        %v2746 = vpow.pop %v2745
        %v2747 = vsel %vm1123, %v2740, 0.0
        %2748 = vadd.xlane.f32.xlu0 %v2747
        %v2749 = vpop.xlane.xlu0 %2748
        %v2750 = vsel %vm1123, %v2742, 0.0
        %2751 = vadd.xlane.f32.xlu0 %v2750
        %v2752 = vpop.xlane.xlu0 %2751
        %v2753 = vsel %vm1123, %v2744, 0.0
        %2754 = vadd.xlane.f32.xlu0 %v2753
        %v2755 = vpop.xlane.xlu0 %2754
        %v2756 = vsel %vm1123, %v2746, 0.0
        %2757 = vadd.xlane.f32.xlu0 %v2756
        %v2758 = vpop.xlane.xlu0 %2757
        %v2759 = vpack.c.bf16 %v2742, %v2740
        %v2760 = vpack.c.bf16 %v2746, %v2744
        %2761 = vrot.lane.b32.xlu0 %v1907, 32
        %v2762 = vpop.permute.xlu0 %2761
        %2763 = vrot.lane.b32.xlu0 %v1908, 32
        %v2764 = vpop.permute.xlu0 %2763
        %v2768 = vsel %vm1123, %v2759, 0
        %v2771 = vsel %vm1123, %v2760, 0
        %2773 = vmatprep.subr.bf16.mxu0 0
        %2774 = vmatpush1.bf16.msra.mxu0 %v2762
        %2775 = vmatprep.subr.bf16.mxu0 0
        %2776 = vmatpush1.bf16.msra.mxu0 %v2764
        %2777 = vmatprep.subr.bf16.mxu0 0
        %2778 = vmatpush1.bf16.msra.mxu0 0
        %2779 = vmatprep.subr.bf16.mxu0 0
        %2780 = vmatpush1.bf16.msra.mxu0 0
        %2781 = vmatprep.subr.bf16.mxu0 0
        %2782 = vmatpush1.bf16.msra.mxu0 0
        %2783 = vmatprep.subr.bf16.mxu0 0
        %2784 = vmatpush1.bf16.msra.mxu0 0
        %2785 = vmatprep.subr.bf16.mxu0 0
        %2786 = vmatpush1.bf16.msra.mxu0 0
        %2787 = vmatprep.subr.bf16.mxu0 0
        %2788 = vmatpush1.bf16.msra.mxu0 0
        %2789 = vmatprep.subr.bf16.mxu0 0
        %2790 = vmatpush1.bf16.msra.mxu0 0
        %2791 = vmatprep.subr.bf16.mxu0 0
        %2792 = vmatpush1.bf16.msra.mxu0 0
        %2793 = vmatprep.subr.bf16.mxu0 0
        %2794 = vmatpush1.bf16.msra.mxu0 0
        %2795 = vmatprep.subr.bf16.mxu0 0
        %2796 = vmatpush1.bf16.msra.mxu0 0
        %2797 = vmatprep.subr.bf16.mxu0 0
        %2798 = vmatpush1.bf16.msra.mxu0 0
        %2799 = vmatprep.subr.bf16.mxu0 0
        %2800 = vmatpush1.bf16.msra.mxu0 0
        %2801 = vmatprep.subr.bf16.mxu0 0
        %2802 = vmatpush1.bf16.msra.mxu0 0
        %2803 = vmatprep.subr.bf16.mxu0 0
        %2804 = vmatpush1.bf16.msra.mxu0 0
        %2805 = vmatprep.mubr.bf16.mxu0 0
        %2806 = vmatmul.mubr.bf16.gmra.mrb[0].mxu0 %v2768
        %v2807 = vpop.f32.mrb[0].mxu0
        %v2808 = vadd.f32 0.0, %v2807
        %v2809 = vpop.f32.mrb[0].mxu0
        %v2810 = vpop.f32.mrb[0].mxu0
        %v2811 = vadd.f32 0.0, %v2810
        %v2812 = vpop.f32.mrb[0].mxu0
        %2813 = vmatprep.mubr.bf16.mxu0 0
        %2814 = vmatmul.mubr.bf16.gmra.mrb[0].mxu0 %v2771
        %v2815 = vpop.f32.mrb[0].mxu0
        %v2816 = vadd.f32 0.0, %v2815
        %v2817 = vpop.f32.mrb[0].mxu0
        %v2818 = vpop.f32.mrb[0].mxu0
        %v2819 = vadd.f32 0.0, %v2818
        %v2820 = vpop.f32.mrb[0].mxu0
        %2821 = vdwg.mxu0
        %v2822 = vrcp.pop %v2749
        %v2823 = vrcp.pop %v2752
        %v2824 = vrcp.pop %v2755
        %v2825 = vrcp.pop %v2758
        %v2826 = vmul.f32 %v2808, %v2822
        %v2827 = vmul.f32 %v2811, %v2823
        %v2828 = vmul.f32 %v2816, %v2824
        %v2829 = vmul.f32 %v2819, %v2825
        %v2830 = vpack.c.bf16 %v2827, %v2826
        %v2831 = vpack.c.bf16 %v2829, %v2828
        %v2832 = vld [vmem:[#allocation11 + $0x30] sm:$0xf]
        %v2833 = vld [vmem:[#allocation11 + $0x34] sm:$0xf]
        %v2834 = vld [vmem:[#allocation11 + $0x38] sm:$0xf]
        %v2835 = vld [vmem:[#allocation11 + $0x3c] sm:$0xf]
        %v2840 = vunpack.c.l.b16 %v2832
        %v2841 = vunpack.c.l.b16 %v2833
        %v2842 = vunpack.c.l.b16 %v2834
        %v2843 = vunpack.c.l.b16 %v2835
        %v2844 = vpack.c.b16 %v2841, %v2840
        %v2845 = vpack.c.b16 %v2843, %v2842
        %v2849 = vsel %vm1123, %v2830, 0
        %v2852 = vsel %vm1123, %v2831, 0
        %2854 = vmatprep.subr.bf16.mxu0 0
        %2855 = vmatpush1.bf16.msra.mxu0 %v2844
        %2856 = vmatprep.subr.bf16.mxu0 0
        %2857 = vmatpush1.bf16.msra.mxu0 %v2845
        %2858 = vmatprep.subr.bf16.mxu0 0
        %2859 = vmatpush1.bf16.msra.mxu0 0
        %2860 = vmatprep.subr.bf16.mxu0 0
        %2861 = vmatpush1.bf16.msra.mxu0 0
        %2862 = vmatprep.subr.bf16.mxu0 0
        %2863 = vmatpush1.bf16.msra.mxu0 0
        %2864 = vmatprep.subr.bf16.mxu0 0
        %2865 = vmatpush1.bf16.msra.mxu0 0
        %2866 = vmatprep.subr.bf16.mxu0 0
        %2867 = vmatpush1.bf16.msra.mxu0 0
        %2868 = vmatprep.subr.bf16.mxu0 0
        %2869 = vmatpush1.bf16.msra.mxu0 0
        %2870 = vmatprep.subr.bf16.mxu0 0
        %2871 = vmatpush1.bf16.msra.mxu0 0
        %2872 = vmatprep.subr.bf16.mxu0 0
        %2873 = vmatpush1.bf16.msra.mxu0 0
        %2874 = vmatprep.subr.bf16.mxu0 0
        %2875 = vmatpush1.bf16.msra.mxu0 0
        %2876 = vmatprep.subr.bf16.mxu0 0
        %2877 = vmatpush1.bf16.msra.mxu0 0
        %2878 = vmatprep.subr.bf16.mxu0 0
        %2879 = vmatpush1.bf16.msra.mxu0 0
        %2880 = vmatprep.subr.bf16.mxu0 0
        %2881 = vmatpush1.bf16.msra.mxu0 0
        %2882 = vmatprep.subr.bf16.mxu0 0
        %2883 = vmatpush1.bf16.msra.mxu0 0
        %2884 = vmatprep.subr.bf16.mxu0 0
        %2885 = vmatpush1.bf16.msra.mxu0 0
        %2886 = vmatprep.mubr.bf16.mxu0 0
        %2887 = vmatmul.mubr.bf16.gmra.mrb[0].mxu0 %v2849
        %v2888 = vpop.f32.mrb[0].mxu0
        %v2889 = vadd.f32 0.0, %v2888
        %v2890 = vpop.f32.mrb[0].mxu0
        %v2891 = vpop.f32.mrb[0].mxu0
        %v2892 = vadd.f32 0.0, %v2891
        %v2893 = vpop.f32.mrb[0].mxu0
        %2894 = vmatprep.mubr.bf16.mxu0 0
        %2895 = vmatmul.mubr.bf16.gmra.mrb[0].mxu0 %v2852
        %v2896 = vpop.f32.mrb[0].mxu0
        %v2897 = vadd.f32 0.0, %v2896
        %v2898 = vpop.f32.mrb[0].mxu0
        %v2899 = vpop.f32.mrb[0].mxu0
        %v2900 = vadd.f32 0.0, %v2899
        %v2901 = vpop.f32.mrb[0].mxu0
        %2902 = vdwg.mxu0
        %v2903 = vadd.f32 %v2650, %v2889
        %v2904 = vadd.f32 %v2651, %v2892
        %v2905 = vadd.f32 %v2652, %v2897
        %v2906 = vadd.f32 %v2653, %v2900
        %v2908 = vsel %vm1123, %v1901, 0
        %v2911 = vsel %vm1123, %v1902, 0
        %v2914 = vsel %vm1123, %v1905, 0
        %v2917 = vsel %vm1123, %v1906, 0
        %2919 = vmatprep.subr.bf16.mxu0 0
        %2920 = vmatpush1.bf16.xpose.msra.mxu0 %v2914
        %2921 = vmatprep.subr.bf16.mxu0 0
        %2922 = vmatpush1.bf16.xpose.msra.mxu0 %v2917
        %2923 = vmatprep.subr.bf16.mxu0 0
        %2924 = vmatpush1.bf16.xpose.msra.mxu0 0
        %2925 = vmatprep.subr.bf16.mxu0 0
        %2926 = vmatpush1.bf16.xpose.msra.mxu0 0
        %2927 = vmatprep.subr.bf16.mxu0 0
        %2928 = vmatpush1.bf16.xpose.msra.mxu0 0
        %2929 = vmatprep.subr.bf16.mxu0 0
        %2930 = vmatpush1.bf16.xpose.msra.mxu0 0
        %2931 = vmatprep.subr.bf16.mxu0 0
        %2932 = vmatpush1.bf16.xpose.msra.mxu0 0
        %2933 = vmatprep.subr.bf16.mxu0 0
        %2934 = vmatpush1.bf16.xpose.msra.mxu0 0
        %2935 = vmatprep.subr.bf16.mxu0 0
        %2936 = vmatpush1.bf16.xpose.msra.mxu0 0
        %2937 = vmatprep.subr.bf16.mxu0 0
        %2938 = vmatpush1.bf16.xpose.msra.mxu0 0
        %2939 = vmatprep.subr.bf16.mxu0 0
        %2940 = vmatpush1.bf16.xpose.msra.mxu0 0
        %2941 = vmatprep.subr.bf16.mxu0 0
        %2942 = vmatpush1.bf16.xpose.msra.mxu0 0
        %2943 = vmatprep.subr.bf16.mxu0 0
        %2944 = vmatpush1.bf16.xpose.msra.mxu0 0
        %2945 = vmatprep.subr.bf16.mxu0 0
        %2946 = vmatpush1.bf16.xpose.msra.mxu0 0
        %2947 = vmatprep.subr.bf16.mxu0 0
        %2948 = vmatpush1.bf16.xpose.msra.mxu0 0
        %2949 = vmatprep.subr.bf16.mxu0 0
        %2950 = vmatpush1.bf16.xpose.msra.mxu0 0
        %2951 = vmatprep.mubr.bf16.mxu0 0
        %2952 = vmatmul.mubr.bf16.gmra.mrb[0].mxu0 %v2908
        %v2953 = vpop.f32.mrb[0].mxu0
        %v2954 = vadd.f32 0.0, %v2953
        %v2955 = vpop.f32.mrb[0].mxu0
        %v2956 = vpop.f32.mrb[0].mxu0
        %v2957 = vadd.f32 0.0, %v2956
        %v2958 = vpop.f32.mrb[0].mxu0
        %2959 = vmatprep.mubr.bf16.mxu0 0
        %2960 = vmatmul.mubr.bf16.gmra.mrb[0].mxu0 %v2911
        %v2961 = vpop.f32.mrb[0].mxu0
        %v2962 = vadd.f32 0.0, %v2961
        %v2963 = vpop.f32.mrb[0].mxu0
        %v2964 = vpop.f32.mrb[0].mxu0
        %v2965 = vadd.f32 0.0, %v2964
        %v2966 = vpop.f32.mrb[0].mxu0
        %2967 = vdwg.mxu0
        %v2968 = vsel %vm1123, %v2954, -inf
        %2969 = vmax.xlane.f32.xlu0 %v2968
        %v2970 = vpop.xlane.xlu0 %2969
        %v2971 = vsel %vm1123, %v2957, -inf
        %2972 = vmax.xlane.f32.xlu0 %v2971
        %v2973 = vpop.xlane.xlu0 %2972
        %v2974 = vsel %vm1123, %v2962, -inf
        %2975 = vmax.xlane.f32.xlu0 %v2974
        %v2976 = vpop.xlane.xlu0 %2975
        %v2977 = vsel %vm1123, %v2965, -inf
        %2978 = vmax.xlane.f32.xlu0 %v2977
        %v2979 = vpop.xlane.xlu0 %2978
        %v2980 = vsub.f32 %v2954, %v2970
        %v2981 = vsub.f32 %v2957, %v2973
        %v2982 = vsub.f32 %v2962, %v2976
        %v2983 = vsub.f32 %v2965, %v2979
        %v2984 = vmul.f32 %v2980, 1.442695
        %v2985 = vpow.pop %v2984
        %v2986 = vmul.f32 %v2981, 1.442695
        %v2987 = vpow.pop %v2986
        %v2988 = vmul.f32 %v2982, 1.442695
        %v2989 = vpow.pop %v2988
        %v2990 = vmul.f32 %v2983, 1.442695
        %v2991 = vpow.pop %v2990
        %v2992 = vsel %vm1123, %v2985, 0.0
        %2993 = vadd.xlane.f32.xlu0 %v2992
        %v2994 = vpop.xlane.xlu0 %2993
        %v2995 = vsel %vm1123, %v2987, 0.0
        %2996 = vadd.xlane.f32.xlu0 %v2995
        %v2997 = vpop.xlane.xlu0 %2996
        %v2998 = vsel %vm1123, %v2989, 0.0
        %2999 = vadd.xlane.f32.xlu0 %v2998
        %v3000 = vpop.xlane.xlu0 %2999
        %v3001 = vsel %vm1123, %v2991, 0.0
        %3002 = vadd.xlane.f32.xlu0 %v3001
        %v3003 = vpop.xlane.xlu0 %3002
        %v3004 = vpack.c.bf16 %v2987, %v2985
        %v3005 = vpack.c.bf16 %v2991, %v2989
        %v3007 = vsel %vm1123, %v3004, 0
        %v3010 = vsel %vm1123, %v3005, 0
        %3012 = vmatprep.subr.bf16.mxu0 0
        %3013 = vmatpush1.bf16.msra.mxu0 %v1909
        %3014 = vmatprep.subr.bf16.mxu0 0
        %3015 = vmatpush1.bf16.msra.mxu0 %v1910
        %3016 = vmatprep.subr.bf16.mxu0 0
        %3017 = vmatpush1.bf16.msra.mxu0 0
        %3018 = vmatprep.subr.bf16.mxu0 0
        %3019 = vmatpush1.bf16.msra.mxu0 0
        %3020 = vmatprep.subr.bf16.mxu0 0
        %3021 = vmatpush1.bf16.msra.mxu0 0
        %3022 = vmatprep.subr.bf16.mxu0 0
        %3023 = vmatpush1.bf16.msra.mxu0 0
        %3024 = vmatprep.subr.bf16.mxu0 0
        %3025 = vmatpush1.bf16.msra.mxu0 0
        %3026 = vmatprep.subr.bf16.mxu0 0
        %3027 = vmatpush1.bf16.msra.mxu0 0
        %3028 = vmatprep.subr.bf16.mxu0 0
        %3029 = vmatpush1.bf16.msra.mxu0 0
        %3030 = vmatprep.subr.bf16.mxu0 0
        %3031 = vmatpush1.bf16.msra.mxu0 0
        %3032 = vmatprep.subr.bf16.mxu0 0
        %3033 = vmatpush1.bf16.msra.mxu0 0
        %3034 = vmatprep.subr.bf16.mxu0 0
        %3035 = vmatpush1.bf16.msra.mxu0 0
        %3036 = vmatprep.subr.bf16.mxu0 0
        %3037 = vmatpush1.bf16.msra.mxu0 0
        %3038 = vmatprep.subr.bf16.mxu0 0
        %3039 = vmatpush1.bf16.msra.mxu0 0
        %3040 = vmatprep.subr.bf16.mxu0 0
        %3041 = vmatpush1.bf16.msra.mxu0 0
        %3042 = vmatprep.subr.bf16.mxu0 0
        %3043 = vmatpush1.bf16.msra.mxu0 0
        %3044 = vmatprep.mubr.bf16.mxu0 0
        %3045 = vmatmul.mubr.bf16.gmra.mrb[0].mxu0 %v3007
        %v3046 = vpop.f32.mrb[0].mxu0
        %v3047 = vadd.f32 0.0, %v3046
        %v3048 = vpop.f32.mrb[0].mxu0
        %v3049 = vpop.f32.mrb[0].mxu0
        %v3050 = vadd.f32 0.0, %v3049
        %v3051 = vpop.f32.mrb[0].mxu0
        %3052 = vmatprep.mubr.bf16.mxu0 0
        %3053 = vmatmul.mubr.bf16.gmra.mrb[0].mxu0 %v3010
        %v3054 = vpop.f32.mrb[0].mxu0
        %v3055 = vadd.f32 0.0, %v3054
        %v3056 = vpop.f32.mrb[0].mxu0
        %v3057 = vpop.f32.mrb[0].mxu0
        %v3058 = vadd.f32 0.0, %v3057
        %v3059 = vpop.f32.mrb[0].mxu0
        %3060 = vdwg.mxu0
        %v3061 = vrcp.pop %v2994
        %v3062 = vrcp.pop %v2997
        %v3063 = vrcp.pop %v3000
        %v3064 = vrcp.pop %v3003
        %v3065 = vmul.f32 %v3047, %v3061
        %v3066 = vmul.f32 %v3050, %v3062
        %v3067 = vmul.f32 %v3055, %v3063
        %v3068 = vmul.f32 %v3058, %v3064
        %v3069 = vpack.c.bf16 %v3066, %v3065
        %v3070 = vpack.c.bf16 %v3068, %v3067
        %3073 = vrot.lane.b32.xlu0 %v1901, 96
        %v3074 = vpop.permute.xlu0 %3073
        %3075 = vrot.lane.b32.xlu0 %v1902, 96
        %v3076 = vpop.permute.xlu0 %3075
        %3079 = vrot.lane.b32.xlu0 %v1905, 96
        %v3080 = vpop.permute.xlu0 %3079
        %3081 = vrot.lane.b32.xlu0 %v1906, 96
        %v3082 = vpop.permute.xlu0 %3081
        %v3084 = vsel %vm1123, %v3074, 0
        %v3087 = vsel %vm1123, %v3076, 0
        %v3090 = vsel %vm1123, %v3080, 0
        %v3093 = vsel %vm1123, %v3082, 0
        %3095 = vmatprep.subr.bf16.mxu0 0
        %3096 = vmatpush1.bf16.xpose.msra.mxu0 %v3090
        %3097 = vmatprep.subr.bf16.mxu0 0
        %3098 = vmatpush1.bf16.xpose.msra.mxu0 %v3093
        %3099 = vmatprep.subr.bf16.mxu0 0
        %3100 = vmatpush1.bf16.xpose.msra.mxu0 0
        %3101 = vmatprep.subr.bf16.mxu0 0
        %3102 = vmatpush1.bf16.xpose.msra.mxu0 0
        %3103 = vmatprep.subr.bf16.mxu0 0
        %3104 = vmatpush1.bf16.xpose.msra.mxu0 0
        %3105 = vmatprep.subr.bf16.mxu0 0
        %3106 = vmatpush1.bf16.xpose.msra.mxu0 0
        %3107 = vmatprep.subr.bf16.mxu0 0
        %3108 = vmatpush1.bf16.xpose.msra.mxu0 0
        %3109 = vmatprep.subr.bf16.mxu0 0
        %3110 = vmatpush1.bf16.xpose.msra.mxu0 0
        %3111 = vmatprep.subr.bf16.mxu0 0
        %3112 = vmatpush1.bf16.xpose.msra.mxu0 0
        %3113 = vmatprep.subr.bf16.mxu0 0
        %3114 = vmatpush1.bf16.xpose.msra.mxu0 0
        %3115 = vmatprep.subr.bf16.mxu0 0
        %3116 = vmatpush1.bf16.xpose.msra.mxu0 0
        %3117 = vmatprep.subr.bf16.mxu0 0
        %3118 = vmatpush1.bf16.xpose.msra.mxu0 0
        %3119 = vmatprep.subr.bf16.mxu0 0
        %3120 = vmatpush1.bf16.xpose.msra.mxu0 0
        %3121 = vmatprep.subr.bf16.mxu0 0
        %3122 = vmatpush1.bf16.xpose.msra.mxu0 0
        %3123 = vmatprep.subr.bf16.mxu0 0
        %3124 = vmatpush1.bf16.xpose.msra.mxu0 0
        %3125 = vmatprep.subr.bf16.mxu0 0
        %3126 = vmatpush1.bf16.xpose.msra.mxu0 0
        %3127 = vmatprep.mubr.bf16.mxu0 0
        %3128 = vmatmul.mubr.bf16.gmra.mrb[0].mxu0 %v3084
        %v3129 = vpop.f32.mrb[0].mxu0
        %v3130 = vadd.f32 0.0, %v3129
        %v3131 = vpop.f32.mrb[0].mxu0
        %v3132 = vpop.f32.mrb[0].mxu0
        %v3133 = vadd.f32 0.0, %v3132
        %v3134 = vpop.f32.mrb[0].mxu0
        %3135 = vmatprep.mubr.bf16.mxu0 0
        %3136 = vmatmul.mubr.bf16.gmra.mrb[0].mxu0 %v3087
        %v3137 = vpop.f32.mrb[0].mxu0
        %v3138 = vadd.f32 0.0, %v3137
        %v3139 = vpop.f32.mrb[0].mxu0
        %v3140 = vpop.f32.mrb[0].mxu0
        %v3141 = vadd.f32 0.0, %v3140
        %v3142 = vpop.f32.mrb[0].mxu0
        %3143 = vdwg.mxu0
        %v3144 = vsel %vm1123, %v3130, -inf
        %3145 = vmax.xlane.f32.xlu0 %v3144
        %v3146 = vpop.xlane.xlu0 %3145
        %v3147 = vsel %vm1123, %v3133, -inf
        %3148 = vmax.xlane.f32.xlu0 %v3147
        %v3149 = vpop.xlane.xlu0 %3148
        %v3150 = vsel %vm1123, %v3138, -inf
        %3151 = vmax.xlane.f32.xlu0 %v3150
        %v3152 = vpop.xlane.xlu0 %3151
        %v3153 = vsel %vm1123, %v3141, -inf
        %3154 = vmax.xlane.f32.xlu0 %v3153
        %v3155 = vpop.xlane.xlu0 %3154
        %v3156 = vsub.f32 %v3130, %v3146
        %v3157 = vsub.f32 %v3133, %v3149
        %v3158 = vsub.f32 %v3138, %v3152
        %v3159 = vsub.f32 %v3141, %v3155
        %v3160 = vmul.f32 %v3156, 1.442695
        %v3161 = vpow.pop %v3160
        %v3162 = vmul.f32 %v3157, 1.442695
        %v3163 = vpow.pop %v3162
        %v3164 = vmul.f32 %v3158, 1.442695
        %v3165 = vpow.pop %v3164
        %v3166 = vmul.f32 %v3159, 1.442695
        %v3167 = vpow.pop %v3166
        %v3168 = vsel %vm1123, %v3161, 0.0
        %3169 = vadd.xlane.f32.xlu0 %v3168
        %v3170 = vpop.xlane.xlu0 %3169
        %v3171 = vsel %vm1123, %v3163, 0.0
        %3172 = vadd.xlane.f32.xlu0 %v3171
        %v3173 = vpop.xlane.xlu0 %3172
        %v3174 = vsel %vm1123, %v3165, 0.0
        %3175 = vadd.xlane.f32.xlu0 %v3174
        %v3176 = vpop.xlane.xlu0 %3175
        %v3177 = vsel %vm1123, %v3167, 0.0
        %3178 = vadd.xlane.f32.xlu0 %v3177
        %v3179 = vpop.xlane.xlu0 %3178
        %v3180 = vpack.c.bf16 %v3163, %v3161
        %v3181 = vpack.c.bf16 %v3167, %v3165
        %3184 = vrot.lane.b32.xlu0 %v1909, 96
        %v3185 = vpop.permute.xlu0 %3184
        %3186 = vrot.lane.b32.xlu0 %v1910, 96
        %v3187 = vpop.permute.xlu0 %3186
        %v3191 = vsel %vm1123, %v3180, 0
        %v3194 = vsel %vm1123, %v3181, 0
        %3196 = vmatprep.subr.bf16.mxu0 0
        %3197 = vmatpush1.bf16.msra.mxu0 %v3185
        %3198 = vmatprep.subr.bf16.mxu0 0
        %3199 = vmatpush1.bf16.msra.mxu0 %v3187
        %3200 = vmatprep.subr.bf16.mxu0 0
        %3201 = vmatpush1.bf16.msra.mxu0 0
        %3202 = vmatprep.subr.bf16.mxu0 0
        %3203 = vmatpush1.bf16.msra.mxu0 0
        %3204 = vmatprep.subr.bf16.mxu0 0
        %3205 = vmatpush1.bf16.msra.mxu0 0
        %3206 = vmatprep.subr.bf16.mxu0 0
        %3207 = vmatpush1.bf16.msra.mxu0 0
        %3208 = vmatprep.subr.bf16.mxu0 0
        %3209 = vmatpush1.bf16.msra.mxu0 0
        %3210 = vmatprep.subr.bf16.mxu0 0
        %3211 = vmatpush1.bf16.msra.mxu0 0
        %3212 = vmatprep.subr.bf16.mxu0 0
        %3213 = vmatpush1.bf16.msra.mxu0 0
        %3214 = vmatprep.subr.bf16.mxu0 0
        %3215 = vmatpush1.bf16.msra.mxu0 0
        %3216 = vmatprep.subr.bf16.mxu0 0
        %3217 = vmatpush1.bf16.msra.mxu0 0
        %3218 = vmatprep.subr.bf16.mxu0 0
        %3219 = vmatpush1.bf16.msra.mxu0 0
        %3220 = vmatprep.subr.bf16.mxu0 0
        %3221 = vmatpush1.bf16.msra.mxu0 0
        %3222 = vmatprep.subr.bf16.mxu0 0
        %3223 = vmatpush1.bf16.msra.mxu0 0
        %3224 = vmatprep.subr.bf16.mxu0 0
        %3225 = vmatpush1.bf16.msra.mxu0 0
        %3226 = vmatprep.subr.bf16.mxu0 0
        %3227 = vmatpush1.bf16.msra.mxu0 0
        %3228 = vmatprep.mubr.bf16.mxu0 0
        %3229 = vmatmul.mubr.bf16.gmra.mrb[0].mxu0 %v3191
        %v3230 = vpop.f32.mrb[0].mxu0
        %v3231 = vadd.f32 0.0, %v3230
        %v3232 = vpop.f32.mrb[0].mxu0
        %v3233 = vpop.f32.mrb[0].mxu0
        %v3234 = vadd.f32 0.0, %v3233
        %v3235 = vpop.f32.mrb[0].mxu0
        %3236 = vmatprep.mubr.bf16.mxu0 0
        %3237 = vmatmul.mubr.bf16.gmra.mrb[0].mxu0 %v3194
        %v3238 = vpop.f32.mrb[0].mxu0
        %v3239 = vadd.f32 0.0, %v3238
        %v3240 = vpop.f32.mrb[0].mxu0
        %v3241 = vpop.f32.mrb[0].mxu0
        %v3242 = vadd.f32 0.0, %v3241
        %v3243 = vpop.f32.mrb[0].mxu0
        %3244 = vdwg.mxu0
        %v3245 = vrcp.pop %v3170
        %v3246 = vrcp.pop %v3173
        %v3247 = vrcp.pop %v3176
        %v3248 = vrcp.pop %v3179
        %v3249 = vmul.f32 %v3231, %v3245
        %v3250 = vmul.f32 %v3234, %v3246
        %v3251 = vmul.f32 %v3239, %v3247
        %v3252 = vmul.f32 %v3242, %v3248
        %v3253 = vpack.c.bf16 %v3250, %v3249
        %v3254 = vpack.c.bf16 %v3252, %v3251
        %v3256 = vsel %vm1123, %v3253, 0
        %v3259 = vsel %vm1123, %v3254, 0
        %3261 = vmatprep.subr.bf16.mxu0 0
        %3262 = vmatpush1.bf16.msra.mxu0 %v2275
        %3263 = vmatprep.subr.bf16.mxu0 0
        %3264 = vmatpush1.bf16.msra.mxu0 %v2276
        %3265 = vmatprep.subr.bf16.mxu0 0
        %3266 = vmatpush1.bf16.msra.mxu0 0
        %3267 = vmatprep.subr.bf16.mxu0 0
        %3268 = vmatpush1.bf16.msra.mxu0 0
        %3269 = vmatprep.subr.bf16.mxu0 0
        %3270 = vmatpush1.bf16.msra.mxu0 0
        %3271 = vmatprep.subr.bf16.mxu0 0
        %3272 = vmatpush1.bf16.msra.mxu0 0
        %3273 = vmatprep.subr.bf16.mxu0 0
        %3274 = vmatpush1.bf16.msra.mxu0 0
        %3275 = vmatprep.subr.bf16.mxu0 0
        %3276 = vmatpush1.bf16.msra.mxu0 0
        %3277 = vmatprep.subr.bf16.mxu0 0
        %3278 = vmatpush1.bf16.msra.mxu0 0
        %3279 = vmatprep.subr.bf16.mxu0 0
        %3280 = vmatpush1.bf16.msra.mxu0 0
        %3281 = vmatprep.subr.bf16.mxu0 0
        %3282 = vmatpush1.bf16.msra.mxu0 0
        %3283 = vmatprep.subr.bf16.mxu0 0
        %3284 = vmatpush1.bf16.msra.mxu0 0
        %3285 = vmatprep.subr.bf16.mxu0 0
        %3286 = vmatpush1.bf16.msra.mxu0 0
        %3287 = vmatprep.subr.bf16.mxu0 0
        %3288 = vmatpush1.bf16.msra.mxu0 0
        %3289 = vmatprep.subr.bf16.mxu0 0
        %3290 = vmatpush1.bf16.msra.mxu0 0
        %3291 = vmatprep.subr.bf16.mxu0 0
        %3292 = vmatpush1.bf16.msra.mxu0 0
        %3293 = vmatprep.mubr.bf16.mxu0 0
        %3294 = vmatmul.mubr.bf16.gmra.mrb[0].mxu0 %v3256
        %v3295 = vpop.f32.mrb[0].mxu0
        %v3296 = vadd.f32 0.0, %v3295
        %v3297 = vpop.f32.mrb[0].mxu0
        %v3298 = vpop.f32.mrb[0].mxu0
        %v3299 = vadd.f32 0.0, %v3298
        %v3300 = vpop.f32.mrb[0].mxu0
        %3301 = vmatprep.mubr.bf16.mxu0 0
        %3302 = vmatmul.mubr.bf16.gmra.mrb[0].mxu0 %v3259
        %v3303 = vpop.f32.mrb[0].mxu0
        %v3304 = vadd.f32 0.0, %v3303
        %v3305 = vpop.f32.mrb[0].mxu0
        %v3306 = vpop.f32.mrb[0].mxu0
        %v3307 = vadd.f32 0.0, %v3306
        %v3308 = vpop.f32.mrb[0].mxu0
        %3309 = vdwg.mxu0
        %v3311 = vsel %vm1123, %v3069, 0
        %v3314 = vsel %vm1123, %v3070, 0
        %3316 = vmatprep.subr.bf16.mxu0 0
        %3317 = vmatpush1.bf16.msra.mxu0 %v2342
        %3318 = vmatprep.subr.bf16.mxu0 0
        %3319 = vmatpush1.bf16.msra.mxu0 %v2343
        %3320 = vmatprep.subr.bf16.mxu0 0
        %3321 = vmatpush1.bf16.msra.mxu0 0
        %3322 = vmatprep.subr.bf16.mxu0 0
        %3323 = vmatpush1.bf16.msra.mxu0 0
        %3324 = vmatprep.subr.bf16.mxu0 0
        %3325 = vmatpush1.bf16.msra.mxu0 0
        %3326 = vmatprep.subr.bf16.mxu0 0
        %3327 = vmatpush1.bf16.msra.mxu0 0
        %3328 = vmatprep.subr.bf16.mxu0 0
        %3329 = vmatpush1.bf16.msra.mxu0 0
        %3330 = vmatprep.subr.bf16.mxu0 0
        %3331 = vmatpush1.bf16.msra.mxu0 0
        %3332 = vmatprep.subr.bf16.mxu0 0
        %3333 = vmatpush1.bf16.msra.mxu0 0
        %3334 = vmatprep.subr.bf16.mxu0 0
        %3335 = vmatpush1.bf16.msra.mxu0 0
        %3336 = vmatprep.subr.bf16.mxu0 0
        %3337 = vmatpush1.bf16.msra.mxu0 0
        %3338 = vmatprep.subr.bf16.mxu0 0
        %3339 = vmatpush1.bf16.msra.mxu0 0
        %3340 = vmatprep.subr.bf16.mxu0 0
        %3341 = vmatpush1.bf16.msra.mxu0 0
        %3342 = vmatprep.subr.bf16.mxu0 0
        %3343 = vmatpush1.bf16.msra.mxu0 0
        %3344 = vmatprep.subr.bf16.mxu0 0
        %3345 = vmatpush1.bf16.msra.mxu0 0
        %3346 = vmatprep.subr.bf16.mxu0 0
        %3347 = vmatpush1.bf16.msra.mxu0 0
        %3348 = vmatprep.mubr.bf16.mxu0 0
        %3349 = vmatmul.mubr.bf16.gmra.mrb[0].mxu0 %v3311
        %v3350 = vpop.f32.mrb[0].mxu0
        %v3351 = vadd.f32 %v3296, %v3350
        %v3352 = vpop.f32.mrb[0].mxu0
        %v3353 = vpop.f32.mrb[0].mxu0
        %v3354 = vadd.f32 %v3299, %v3353
        %v3355 = vpop.f32.mrb[0].mxu0
        %3356 = vmatprep.mubr.bf16.mxu0 0
        %3357 = vmatmul.mubr.bf16.gmra.mrb[0].mxu0 %v3314
        %v3358 = vpop.f32.mrb[0].mxu0
        %v3359 = vadd.f32 %v3304, %v3358
        %v3360 = vpop.f32.mrb[0].mxu0
        %v3361 = vpop.f32.mrb[0].mxu0
        %v3362 = vadd.f32 %v3307, %v3361
        %v3363 = vpop.f32.mrb[0].mxu0
        %3364 = vdwg.mxu0
        %3365 = vrot.lane.b32.xlu0 %v1901, 64
        %v3366 = vpop.permute.xlu0 %3365
        %3367 = vrot.lane.b32.xlu0 %v1902, 64
        %v3368 = vpop.permute.xlu0 %3367
        %3369 = vrot.lane.b32.xlu0 %v1905, 64
        %v3370 = vpop.permute.xlu0 %3369
        %3371 = vrot.lane.b32.xlu0 %v1906, 64
        %v3372 = vpop.permute.xlu0 %3371
        %v3374 = vsel %vm1123, %v3366, 0
        %v3377 = vsel %vm1123, %v3368, 0
        %v3380 = vsel %vm1123, %v3370, 0
        %v3383 = vsel %vm1123, %v3372, 0
        %3385 = vmatprep.subr.bf16.mxu0 0
        %3386 = vmatpush1.bf16.xpose.msra.mxu0 %v3380
        %3387 = vmatprep.subr.bf16.mxu0 0
        %3388 = vmatpush1.bf16.xpose.msra.mxu0 %v3383
        %3389 = vmatprep.subr.bf16.mxu0 0
        %3390 = vmatpush1.bf16.xpose.msra.mxu0 0
        %3391 = vmatprep.subr.bf16.mxu0 0
        %3392 = vmatpush1.bf16.xpose.msra.mxu0 0
        %3393 = vmatprep.subr.bf16.mxu0 0
        %3394 = vmatpush1.bf16.xpose.msra.mxu0 0
        %3395 = vmatprep.subr.bf16.mxu0 0
        %3396 = vmatpush1.bf16.xpose.msra.mxu0 0
        %3397 = vmatprep.subr.bf16.mxu0 0
        %3398 = vmatpush1.bf16.xpose.msra.mxu0 0
        %3399 = vmatprep.subr.bf16.mxu0 0
        %3400 = vmatpush1.bf16.xpose.msra.mxu0 0
        %3401 = vmatprep.subr.bf16.mxu0 0
        %3402 = vmatpush1.bf16.xpose.msra.mxu0 0
        %3403 = vmatprep.subr.bf16.mxu0 0
        %3404 = vmatpush1.bf16.xpose.msra.mxu0 0
        %3405 = vmatprep.subr.bf16.mxu0 0
        %3406 = vmatpush1.bf16.xpose.msra.mxu0 0
        %3407 = vmatprep.subr.bf16.mxu0 0
        %3408 = vmatpush1.bf16.xpose.msra.mxu0 0
        %3409 = vmatprep.subr.bf16.mxu0 0
        %3410 = vmatpush1.bf16.xpose.msra.mxu0 0
        %3411 = vmatprep.subr.bf16.mxu0 0
        %3412 = vmatpush1.bf16.xpose.msra.mxu0 0
        %3413 = vmatprep.subr.bf16.mxu0 0
        %3414 = vmatpush1.bf16.xpose.msra.mxu0 0
        %3415 = vmatprep.subr.bf16.mxu0 0
        %3416 = vmatpush1.bf16.xpose.msra.mxu0 0
        %3417 = vmatprep.mubr.bf16.mxu0 0
        %3418 = vmatmul.mubr.bf16.gmra.mrb[0].mxu0 %v3374
        %v3419 = vpop.f32.mrb[0].mxu0
        %v3420 = vadd.f32 0.0, %v3419
        %v3421 = vpop.f32.mrb[0].mxu0
        %v3422 = vpop.f32.mrb[0].mxu0
        %v3423 = vadd.f32 0.0, %v3422
        %v3424 = vpop.f32.mrb[0].mxu0
        %3425 = vmatprep.mubr.bf16.mxu0 0
        %3426 = vmatmul.mubr.bf16.gmra.mrb[0].mxu0 %v3377
        %v3427 = vpop.f32.mrb[0].mxu0
        %v3428 = vadd.f32 0.0, %v3427
        %v3429 = vpop.f32.mrb[0].mxu0
        %v3430 = vpop.f32.mrb[0].mxu0
        %v3431 = vadd.f32 0.0, %v3430
        %v3432 = vpop.f32.mrb[0].mxu0
        %3433 = vdwg.mxu0
        %v3434 = vsel %vm1123, %v3420, -inf
        %3435 = vmax.xlane.f32.xlu0 %v3434
        %v3436 = vpop.xlane.xlu0 %3435
        %v3437 = vsel %vm1123, %v3423, -inf
        %3438 = vmax.xlane.f32.xlu0 %v3437
        %v3439 = vpop.xlane.xlu0 %3438
        %v3440 = vsel %vm1123, %v3428, -inf
        %3441 = vmax.xlane.f32.xlu0 %v3440
        %v3442 = vpop.xlane.xlu0 %3441
        %v3443 = vsel %vm1123, %v3431, -inf
        %3444 = vmax.xlane.f32.xlu0 %v3443
        %v3445 = vpop.xlane.xlu0 %3444
        %v3446 = vsub.f32 %v3420, %v3436
        %v3447 = vsub.f32 %v3423, %v3439
        %v3448 = vsub.f32 %v3428, %v3442
        %v3449 = vsub.f32 %v3431, %v3445
        %v3450 = vmul.f32 %v3446, 1.442695
        %v3451 = vpow.pop %v3450
        %v3452 = vmul.f32 %v3447, 1.442695
        %v3453 = vpow.pop %v3452
        %v3454 = vmul.f32 %v3448, 1.442695
        %v3455 = vpow.pop %v3454
        %v3456 = vmul.f32 %v3449, 1.442695
        %v3457 = vpow.pop %v3456
        %v3458 = vsel %vm1123, %v3451, 0.0
        %3459 = vadd.xlane.f32.xlu0 %v3458
        %v3460 = vpop.xlane.xlu0 %3459
        %v3461 = vsel %vm1123, %v3453, 0.0
        %3462 = vadd.xlane.f32.xlu0 %v3461
        %v3463 = vpop.xlane.xlu0 %3462
        %v3464 = vsel %vm1123, %v3455, 0.0
        %3465 = vadd.xlane.f32.xlu0 %v3464
        %v3466 = vpop.xlane.xlu0 %3465
        %v3467 = vsel %vm1123, %v3457, 0.0
        %3468 = vadd.xlane.f32.xlu0 %v3467
        %v3469 = vpop.xlane.xlu0 %3468
        %v3470 = vpack.c.bf16 %v3453, %v3451
        %v3471 = vpack.c.bf16 %v3457, %v3455
        %3472 = vrot.lane.b32.xlu0 %v1909, 64
        %v3473 = vpop.permute.xlu0 %3472
        %3474 = vrot.lane.b32.xlu0 %v1910, 64
        %v3475 = vpop.permute.xlu0 %3474
        %v3479 = vsel %vm1123, %v3470, 0
        %v3482 = vsel %vm1123, %v3471, 0
        %3484 = vmatprep.subr.bf16.mxu0 0
        %3485 = vmatpush1.bf16.msra.mxu0 %v3473
        %3486 = vmatprep.subr.bf16.mxu0 0
        %3487 = vmatpush1.bf16.msra.mxu0 %v3475
        %3488 = vmatprep.subr.bf16.mxu0 0
        %3489 = vmatpush1.bf16.msra.mxu0 0
        %3490 = vmatprep.subr.bf16.mxu0 0
        %3491 = vmatpush1.bf16.msra.mxu0 0
        %3492 = vmatprep.subr.bf16.mxu0 0
        %3493 = vmatpush1.bf16.msra.mxu0 0
        %3494 = vmatprep.subr.bf16.mxu0 0
        %3495 = vmatpush1.bf16.msra.mxu0 0
        %3496 = vmatprep.subr.bf16.mxu0 0
        %3497 = vmatpush1.bf16.msra.mxu0 0
        %3498 = vmatprep.subr.bf16.mxu0 0
        %3499 = vmatpush1.bf16.msra.mxu0 0
        %3500 = vmatprep.subr.bf16.mxu0 0
        %3501 = vmatpush1.bf16.msra.mxu0 0
        %3502 = vmatprep.subr.bf16.mxu0 0
        %3503 = vmatpush1.bf16.msra.mxu0 0
        %3504 = vmatprep.subr.bf16.mxu0 0
        %3505 = vmatpush1.bf16.msra.mxu0 0
        %3506 = vmatprep.subr.bf16.mxu0 0
        %3507 = vmatpush1.bf16.msra.mxu0 0
        %3508 = vmatprep.subr.bf16.mxu0 0
        %3509 = vmatpush1.bf16.msra.mxu0 0
        %3510 = vmatprep.subr.bf16.mxu0 0
        %3511 = vmatpush1.bf16.msra.mxu0 0
        %3512 = vmatprep.subr.bf16.mxu0 0
        %3513 = vmatpush1.bf16.msra.mxu0 0
        %3514 = vmatprep.subr.bf16.mxu0 0
        %3515 = vmatpush1.bf16.msra.mxu0 0
        %3516 = vmatprep.mubr.bf16.mxu0 0
        %3517 = vmatmul.mubr.bf16.gmra.mrb[0].mxu0 %v3479
        %v3518 = vpop.f32.mrb[0].mxu0
        %v3519 = vadd.f32 0.0, %v3518
        %v3520 = vpop.f32.mrb[0].mxu0
        %v3521 = vpop.f32.mrb[0].mxu0
        %v3522 = vadd.f32 0.0, %v3521
        %v3523 = vpop.f32.mrb[0].mxu0
        %3524 = vmatprep.mubr.bf16.mxu0 0
        %3525 = vmatmul.mubr.bf16.gmra.mrb[0].mxu0 %v3482
        %v3526 = vpop.f32.mrb[0].mxu0
        %v3527 = vadd.f32 0.0, %v3526
        %v3528 = vpop.f32.mrb[0].mxu0
        %v3529 = vpop.f32.mrb[0].mxu0
        %v3530 = vadd.f32 0.0, %v3529
        %v3531 = vpop.f32.mrb[0].mxu0
        %3532 = vdwg.mxu0
        %v3533 = vrcp.pop %v3460
        %v3534 = vrcp.pop %v3463
        %v3535 = vrcp.pop %v3466
        %v3536 = vrcp.pop %v3469
        %v3537 = vmul.f32 %v3519, %v3533
        %v3538 = vmul.f32 %v3522, %v3534
        %v3539 = vmul.f32 %v3527, %v3535
        %v3540 = vmul.f32 %v3530, %v3536
        %v3541 = vpack.c.bf16 %v3538, %v3537
        %v3542 = vpack.c.bf16 %v3540, %v3539
        %v3544 = vsel %vm1123, %v3541, 0
        %v3547 = vsel %vm1123, %v3542, 0
        %3549 = vmatprep.subr.bf16.mxu0 0
        %3550 = vmatpush1.bf16.msra.mxu0 %v2591
        %3551 = vmatprep.subr.bf16.mxu0 0
        %3552 = vmatpush1.bf16.msra.mxu0 %v2592
        %3553 = vmatprep.subr.bf16.mxu0 0
        %3554 = vmatpush1.bf16.msra.mxu0 0
        %3555 = vmatprep.subr.bf16.mxu0 0
        %3556 = vmatpush1.bf16.msra.mxu0 0
        %3557 = vmatprep.subr.bf16.mxu0 0
        %3558 = vmatpush1.bf16.msra.mxu0 0
        %3559 = vmatprep.subr.bf16.mxu0 0
        %3560 = vmatpush1.bf16.msra.mxu0 0
        %3561 = vmatprep.subr.bf16.mxu0 0
        %3562 = vmatpush1.bf16.msra.mxu0 0
        %3563 = vmatprep.subr.bf16.mxu0 0
        %3564 = vmatpush1.bf16.msra.mxu0 0
        %3565 = vmatprep.subr.bf16.mxu0 0
        %3566 = vmatpush1.bf16.msra.mxu0 0
        %3567 = vmatprep.subr.bf16.mxu0 0
        %3568 = vmatpush1.bf16.msra.mxu0 0
        %3569 = vmatprep.subr.bf16.mxu0 0
        %3570 = vmatpush1.bf16.msra.mxu0 0
        %3571 = vmatprep.subr.bf16.mxu0 0
        %3572 = vmatpush1.bf16.msra.mxu0 0
        %3573 = vmatprep.subr.bf16.mxu0 0
        %3574 = vmatpush1.bf16.msra.mxu0 0
        %3575 = vmatprep.subr.bf16.mxu0 0
        %3576 = vmatpush1.bf16.msra.mxu0 0
        %3577 = vmatprep.subr.bf16.mxu0 0
        %3578 = vmatpush1.bf16.msra.mxu0 0
        %3579 = vmatprep.subr.bf16.mxu0 0
        %3580 = vmatpush1.bf16.msra.mxu0 0
        %3581 = vmatprep.mubr.bf16.mxu0 0
        %3582 = vmatmul.mubr.bf16.gmra.mrb[0].mxu0 %v3544
        %v3583 = vpop.f32.mrb[0].mxu0
        %v3584 = vadd.f32 0.0, %v3583
        %v3585 = vpop.f32.mrb[0].mxu0
        %v3586 = vpop.f32.mrb[0].mxu0
        %v3587 = vadd.f32 0.0, %v3586
        %v3588 = vpop.f32.mrb[0].mxu0
        %3589 = vmatprep.mubr.bf16.mxu0 0
        %3590 = vmatmul.mubr.bf16.gmra.mrb[0].mxu0 %v3547
        %v3591 = vpop.f32.mrb[0].mxu0
        %v3592 = vadd.f32 0.0, %v3591
        %v3593 = vpop.f32.mrb[0].mxu0
        %v3594 = vpop.f32.mrb[0].mxu0
        %v3595 = vadd.f32 0.0, %v3594
        %v3596 = vpop.f32.mrb[0].mxu0
        %3597 = vdwg.mxu0
        %v3598 = vadd.f32 %v3351, %v3584
        %v3599 = vadd.f32 %v3354, %v3587
        %v3600 = vadd.f32 %v3359, %v3592
        %v3601 = vadd.f32 %v3362, %v3595
        %3602 = vrot.lane.b32.xlu0 %v1901, 32
        %v3603 = vpop.permute.xlu0 %3602
        %3604 = vrot.lane.b32.xlu0 %v1902, 32
        %v3605 = vpop.permute.xlu0 %3604
        %3606 = vrot.lane.b32.xlu0 %v1905, 32
        %v3607 = vpop.permute.xlu0 %3606
        %3608 = vrot.lane.b32.xlu0 %v1906, 32
        %v3609 = vpop.permute.xlu0 %3608
        %v3611 = vsel %vm1123, %v3603, 0
        %v3614 = vsel %vm1123, %v3605, 0
        %v3617 = vsel %vm1123, %v3607, 0
        %v3620 = vsel %vm1123, %v3609, 0
        %3622 = vmatprep.subr.bf16.mxu0 0
        %3623 = vmatpush1.bf16.xpose.msra.mxu0 %v3617
        %3624 = vmatprep.subr.bf16.mxu0 0
        %3625 = vmatpush1.bf16.xpose.msra.mxu0 %v3620
        %3626 = vmatprep.subr.bf16.mxu0 0
        %3627 = vmatpush1.bf16.xpose.msra.mxu0 0
        %3628 = vmatprep.subr.bf16.mxu0 0
        %3629 = vmatpush1.bf16.xpose.msra.mxu0 0
        %3630 = vmatprep.subr.bf16.mxu0 0
        %3631 = vmatpush1.bf16.xpose.msra.mxu0 0
        %3632 = vmatprep.subr.bf16.mxu0 0
        %3633 = vmatpush1.bf16.xpose.msra.mxu0 0
        %3634 = vmatprep.subr.bf16.mxu0 0
        %3635 = vmatpush1.bf16.xpose.msra.mxu0 0
        %3636 = vmatprep.subr.bf16.mxu0 0
        %3637 = vmatpush1.bf16.xpose.msra.mxu0 0
        %3638 = vmatprep.subr.bf16.mxu0 0
        %3639 = vmatpush1.bf16.xpose.msra.mxu0 0
        %3640 = vmatprep.subr.bf16.mxu0 0
        %3641 = vmatpush1.bf16.xpose.msra.mxu0 0
        %3642 = vmatprep.subr.bf16.mxu0 0
        %3643 = vmatpush1.bf16.xpose.msra.mxu0 0
        %3644 = vmatprep.subr.bf16.mxu0 0
        %3645 = vmatpush1.bf16.xpose.msra.mxu0 0
        %3646 = vmatprep.subr.bf16.mxu0 0
        %3647 = vmatpush1.bf16.xpose.msra.mxu0 0
        %3648 = vmatprep.subr.bf16.mxu0 0
        %3649 = vmatpush1.bf16.xpose.msra.mxu0 0
        %3650 = vmatprep.subr.bf16.mxu0 0
        %3651 = vmatpush1.bf16.xpose.msra.mxu0 0
        %3652 = vmatprep.subr.bf16.mxu0 0
        %3653 = vmatpush1.bf16.xpose.msra.mxu0 0
        %3654 = vmatprep.mubr.bf16.mxu0 0
        %3655 = vmatmul.mubr.bf16.gmra.mrb[0].mxu0 %v3611
        %v3656 = vpop.f32.mrb[0].mxu0
        %v3657 = vadd.f32 0.0, %v3656
        %v3658 = vpop.f32.mrb[0].mxu0
        %v3659 = vpop.f32.mrb[0].mxu0
        %v3660 = vadd.f32 0.0, %v3659
        %v3661 = vpop.f32.mrb[0].mxu0
        %3662 = vmatprep.mubr.bf16.mxu0 0
        %3663 = vmatmul.mubr.bf16.gmra.mrb[0].mxu0 %v3614
        %v3664 = vpop.f32.mrb[0].mxu0
        %v3665 = vadd.f32 0.0, %v3664
        %v3666 = vpop.f32.mrb[0].mxu0
        %v3667 = vpop.f32.mrb[0].mxu0
        %v3668 = vadd.f32 0.0, %v3667
        %v3669 = vpop.f32.mrb[0].mxu0
        %3670 = vdwg.mxu0
        %v3671 = vsel %vm1123, %v3657, -inf
        %3672 = vmax.xlane.f32.xlu0 %v3671
        %v3673 = vpop.xlane.xlu0 %3672
        %v3674 = vsel %vm1123, %v3660, -inf
        %3675 = vmax.xlane.f32.xlu0 %v3674
        %v3676 = vpop.xlane.xlu0 %3675
        %v3677 = vsel %vm1123, %v3665, -inf
        %3678 = vmax.xlane.f32.xlu0 %v3677
        %v3679 = vpop.xlane.xlu0 %3678
        %v3680 = vsel %vm1123, %v3668, -inf
        %3681 = vmax.xlane.f32.xlu0 %v3680
        %v3682 = vpop.xlane.xlu0 %3681
        %v3683 = vsub.f32 %v3657, %v3673
        %v3684 = vsub.f32 %v3660, %v3676
        %v3685 = vsub.f32 %v3665, %v3679
        %v3686 = vsub.f32 %v3668, %v3682
        %v3687 = vmul.f32 %v3683, 1.442695
        %v3688 = vpow.pop %v3687
        %v3689 = vmul.f32 %v3684, 1.442695
        %v3690 = vpow.pop %v3689
        %v3691 = vmul.f32 %v3685, 1.442695
        %v3692 = vpow.pop %v3691
        %v3693 = vmul.f32 %v3686, 1.442695
        %v3694 = vpow.pop %v3693
        %v3695 = vsel %vm1123, %v3688, 0.0
        %3696 = vadd.xlane.f32.xlu0 %v3695
        %v3697 = vpop.xlane.xlu0 %3696
        %v3698 = vsel %vm1123, %v3690, 0.0
        %3699 = vadd.xlane.f32.xlu0 %v3698
        %v3700 = vpop.xlane.xlu0 %3699
        %v3701 = vsel %vm1123, %v3692, 0.0
        %3702 = vadd.xlane.f32.xlu0 %v3701
        %v3703 = vpop.xlane.xlu0 %3702
        %v3704 = vsel %vm1123, %v3694, 0.0
        %3705 = vadd.xlane.f32.xlu0 %v3704
        %v3706 = vpop.xlane.xlu0 %3705
        %v3707 = vpack.c.bf16 %v3690, %v3688
        %v3708 = vpack.c.bf16 %v3694, %v3692
        %3709 = vrot.lane.b32.xlu0 %v1909, 32
        %v3710 = vpop.permute.xlu0 %3709
        %3711 = vrot.lane.b32.xlu0 %v1910, 32
        %v3712 = vpop.permute.xlu0 %3711
        %v3716 = vsel %vm1123, %v3707, 0
        %v3719 = vsel %vm1123, %v3708, 0
        %3721 = vmatprep.subr.bf16.mxu0 0
        %3722 = vmatpush1.bf16.msra.mxu0 %v3710
        %3723 = vmatprep.subr.bf16.mxu0 0
        %3724 = vmatpush1.bf16.msra.mxu0 %v3712
        %3725 = vmatprep.subr.bf16.mxu0 0
        %3726 = vmatpush1.bf16.msra.mxu0 0
        %3727 = vmatprep.subr.bf16.mxu0 0
        %3728 = vmatpush1.bf16.msra.mxu0 0
        %3729 = vmatprep.subr.bf16.mxu0 0
        %3730 = vmatpush1.bf16.msra.mxu0 0
        %3731 = vmatprep.subr.bf16.mxu0 0
        %3732 = vmatpush1.bf16.msra.mxu0 0
        %3733 = vmatprep.subr.bf16.mxu0 0
        %3734 = vmatpush1.bf16.msra.mxu0 0
        %3735 = vmatprep.subr.bf16.mxu0 0
        %3736 = vmatpush1.bf16.msra.mxu0 0
        %3737 = vmatprep.subr.bf16.mxu0 0
        %3738 = vmatpush1.bf16.msra.mxu0 0
        %3739 = vmatprep.subr.bf16.mxu0 0
        %3740 = vmatpush1.bf16.msra.mxu0 0
        %3741 = vmatprep.subr.bf16.mxu0 0
        %3742 = vmatpush1.bf16.msra.mxu0 0
        %3743 = vmatprep.subr.bf16.mxu0 0
        %3744 = vmatpush1.bf16.msra.mxu0 0
        %3745 = vmatprep.subr.bf16.mxu0 0
        %3746 = vmatpush1.bf16.msra.mxu0 0
        %3747 = vmatprep.subr.bf16.mxu0 0
        %3748 = vmatpush1.bf16.msra.mxu0 0
        %3749 = vmatprep.subr.bf16.mxu0 0
        %3750 = vmatpush1.bf16.msra.mxu0 0
        %3751 = vmatprep.subr.bf16.mxu0 0
        %3752 = vmatpush1.bf16.msra.mxu0 0
        %3753 = vmatprep.mubr.bf16.mxu0 0
        %3754 = vmatmul.mubr.bf16.gmra.mrb[0].mxu0 %v3716
        %v3755 = vpop.f32.mrb[0].mxu0
        %v3756 = vadd.f32 0.0, %v3755
        %v3757 = vpop.f32.mrb[0].mxu0
        %v3758 = vpop.f32.mrb[0].mxu0
        %v3759 = vadd.f32 0.0, %v3758
        %v3760 = vpop.f32.mrb[0].mxu0
        %3761 = vmatprep.mubr.bf16.mxu0 0
        %3762 = vmatmul.mubr.bf16.gmra.mrb[0].mxu0 %v3719
        %v3763 = vpop.f32.mrb[0].mxu0
        %v3764 = vadd.f32 0.0, %v3763
        %v3765 = vpop.f32.mrb[0].mxu0
        %v3766 = vpop.f32.mrb[0].mxu0
        %v3767 = vadd.f32 0.0, %v3766
        %v3768 = vpop.f32.mrb[0].mxu0
        %3769 = vdwg.mxu0
        %v3770 = vrcp.pop %v3697
        %v3771 = vrcp.pop %v3700
        %v3772 = vrcp.pop %v3703
        %v3773 = vrcp.pop %v3706
        %v3774 = vmul.f32 %v3756, %v3770
        %v3775 = vmul.f32 %v3759, %v3771
        %v3776 = vmul.f32 %v3764, %v3772
        %v3777 = vmul.f32 %v3767, %v3773
        %v3778 = vpack.c.bf16 %v3775, %v3774
        %v3779 = vpack.c.bf16 %v3777, %v3776
        %v3781 = vsel %vm1123, %v3778, 0
        %v3784 = vsel %vm1123, %v3779, 0
        %3786 = vmatprep.subr.bf16.mxu0 0
        %3787 = vmatpush1.bf16.msra.mxu0 %v2844
        %3788 = vmatprep.subr.bf16.mxu0 0
        %3789 = vmatpush1.bf16.msra.mxu0 %v2845
        %3790 = vmatprep.subr.bf16.mxu0 0
        %3791 = vmatpush1.bf16.msra.mxu0 0
        %3792 = vmatprep.subr.bf16.mxu0 0
        %3793 = vmatpush1.bf16.msra.mxu0 0
        %3794 = vmatprep.subr.bf16.mxu0 0
        %3795 = vmatpush1.bf16.msra.mxu0 0
        %3796 = vmatprep.subr.bf16.mxu0 0
        %3797 = vmatpush1.bf16.msra.mxu0 0
        %3798 = vmatprep.subr.bf16.mxu0 0
        %3799 = vmatpush1.bf16.msra.mxu0 0
        %3800 = vmatprep.subr.bf16.mxu0 0
        %3801 = vmatpush1.bf16.msra.mxu0 0
        %3802 = vmatprep.subr.bf16.mxu0 0
        %3803 = vmatpush1.bf16.msra.mxu0 0
        %3804 = vmatprep.subr.bf16.mxu0 0
        %3805 = vmatpush1.bf16.msra.mxu0 0
        %3806 = vmatprep.subr.bf16.mxu0 0
        %3807 = vmatpush1.bf16.msra.mxu0 0
        %3808 = vmatprep.subr.bf16.mxu0 0
        %3809 = vmatpush1.bf16.msra.mxu0 0
        %3810 = vmatprep.subr.bf16.mxu0 0
        %3811 = vmatpush1.bf16.msra.mxu0 0
        %3812 = vmatprep.subr.bf16.mxu0 0
        %3813 = vmatpush1.bf16.msra.mxu0 0
        %3814 = vmatprep.subr.bf16.mxu0 0
        %3815 = vmatpush1.bf16.msra.mxu0 0
        %3816 = vmatprep.subr.bf16.mxu0 0
        %3817 = vmatpush1.bf16.msra.mxu0 0
        %3818 = vmatprep.mubr.bf16.mxu0 0
        %3819 = vmatmul.mubr.bf16.gmra.mrb[0].mxu0 %v3781
        %v3820 = vpop.f32.mrb[0].mxu0
        %v3821 = vadd.f32 0.0, %v3820
        %v3822 = vpop.f32.mrb[0].mxu0
        %v3823 = vpop.f32.mrb[0].mxu0
        %v3824 = vadd.f32 0.0, %v3823
        %v3825 = vpop.f32.mrb[0].mxu0
        %3826 = vmatprep.mubr.bf16.mxu0 0
        %3827 = vmatmul.mubr.bf16.gmra.mrb[0].mxu0 %v3784
        %v3828 = vpop.f32.mrb[0].mxu0
        %v3829 = vadd.f32 0.0, %v3828
        %v3830 = vpop.f32.mrb[0].mxu0
        %v3831 = vpop.f32.mrb[0].mxu0
        %v3832 = vadd.f32 0.0, %v3831
        %v3833 = vpop.f32.mrb[0].mxu0
        %3834 = vdwg.mxu0
        %v3835 = vadd.f32 %v3598, %v3821
        %v3836 = vadd.f32 %v3599, %v3824
        %v3837 = vadd.f32 %v3600, %v3829
        %v3838 = vadd.f32 %v3601, %v3832
        %v3839 = vadd.f32 %v1457, %v2903
        %v3840 = vadd.f32 %v1458, %v2904
        %v3841 = vadd.f32 %v1459, %v2905
        %v3842 = vadd.f32 %v1460, %v2906
        %v3843 = vadd.f32 %v1461, %v3835
        %v3844 = vadd.f32 %v1462, %v3836
        %v3845 = vadd.f32 %v1463, %v3837
        %v3846 = vadd.f32 %v1464, %v3838
        %v3847 = vld [vmem:[#allocation14 + $0x1] ss:$0 sm:$0xff]
        %v3848 = vadd.f32 %v3839, %v3847
        %v3849 = vadd.f32 %v3840, %v3847
        %v3850 = vadd.f32 %v3841, %v3847
        %v3851 = vadd.f32 %v3842, %v3847
        %v3852 = vadd.f32 %v3843, %v3847
        %v3853 = vadd.f32 %v3844, %v3847
        %v3854 = vadd.f32 %v3845, %v3847
        %v3855 = vadd.f32 %v3846, %v3847
        %3856 = vadd.xlane.f32.xlu0 %v3848
        %v3857 = vpop.xlane.xlu0 %3856
        %3858 = vadd.xlane.f32.xlu0 %v3849
        %v3859 = vpop.xlane.xlu0 %3858
        %3860 = vadd.xlane.f32.xlu0 %v3850
        %v3861 = vpop.xlane.xlu0 %3860
        %3862 = vadd.xlane.f32.xlu0 %v3851
        %v3863 = vpop.xlane.xlu0 %3862
        %3864 = vadd.xlane.f32.xlu0 %v3852
        %v3865 = vpop.xlane.xlu0 %3864
        %3866 = vadd.xlane.f32.xlu0 %v3853
        %v3867 = vpop.xlane.xlu0 %3866
        %3868 = vadd.xlane.f32.xlu0 %v3854
        %v3869 = vpop.xlane.xlu0 %3868
        %3870 = vadd.xlane.f32.xlu0 %v3855
        %v3871 = vpop.xlane.xlu0 %3870
        %v3872 = vmul.f32 %v3857, %v1481
        %v3873 = vmul.f32 %v3859, %v1481
        %v3874 = vmul.f32 %v3861, %v1481
        %v3875 = vmul.f32 %v3863, %v1481
        %v3876 = vmul.f32 %v3865, %v1481
        %v3877 = vmul.f32 %v3867, %v1481
        %v3878 = vmul.f32 %v3869, %v1481
        %v3879 = vmul.f32 %v3871, %v1481
        %v3880 = vsub.f32 %v3848, %v3872
        %v3881 = vsub.f32 %v3849, %v3873
        %v3882 = vsub.f32 %v3850, %v3874
        %v3883 = vsub.f32 %v3851, %v3875
        %v3884 = vsub.f32 %v3852, %v3876
        %v3885 = vsub.f32 %v3853, %v3877
        %v3886 = vsub.f32 %v3854, %v3878
        %v3887 = vsub.f32 %v3855, %v3879
        %v3888 = vmul.f32 %v3880, %v3880
        %v3889 = vmul.f32 %v3881, %v3881
        %v3890 = vmul.f32 %v3882, %v3882
        %v3891 = vmul.f32 %v3883, %v3883
        %v3892 = vmul.f32 %v3884, %v3884
        %v3893 = vmul.f32 %v3885, %v3885
        %v3894 = vmul.f32 %v3886, %v3886
        %v3895 = vmul.f32 %v3887, %v3887
        %3896 = vadd.xlane.f32.xlu0 %v3888
        %v3897 = vpop.xlane.xlu0 %3896
        %3898 = vadd.xlane.f32.xlu0 %v3889
        %v3899 = vpop.xlane.xlu0 %3898
        %3900 = vadd.xlane.f32.xlu0 %v3890
        %v3901 = vpop.xlane.xlu0 %3900
        %3902 = vadd.xlane.f32.xlu0 %v3891
        %v3903 = vpop.xlane.xlu0 %3902
        %3904 = vadd.xlane.f32.xlu0 %v3892
        %v3905 = vpop.xlane.xlu0 %3904
        %3906 = vadd.xlane.f32.xlu0 %v3893
        %v3907 = vpop.xlane.xlu0 %3906
        %3908 = vadd.xlane.f32.xlu0 %v3894
        %v3909 = vpop.xlane.xlu0 %3908
        %3910 = vadd.xlane.f32.xlu0 %v3895
        %v3911 = vpop.xlane.xlu0 %3910
        %v3912 = vmul.f32 %v3897, %v1481
        %v3913 = vmul.f32 %v3899, %v1481
        %v3914 = vmul.f32 %v3901, %v1481
        %v3915 = vmul.f32 %v3903, %v1481
        %v3916 = vmul.f32 %v3905, %v1481
        %v3917 = vmul.f32 %v3907, %v1481
        %v3918 = vmul.f32 %v3909, %v1481
        %v3919 = vmul.f32 %v3911, %v1481
        %v3920 = vadd.f32 %v3912, 1e-05
        %v3921 = vadd.f32 %v3913, 1e-05
        %v3922 = vadd.f32 %v3914, 1e-05
        %v3923 = vadd.f32 %v3915, 1e-05
        %v3924 = vadd.f32 %v3916, 1e-05
        %v3925 = vadd.f32 %v3917, 1e-05
        %v3926 = vadd.f32 %v3918, 1e-05
        %v3927 = vadd.f32 %v3919, 1e-05
        %v3928 = vrsqrt.pop %v3920
        %v3929 = vrsqrt.pop %v3921
        %v3930 = vrsqrt.pop %v3922
        %v3931 = vrsqrt.pop %v3923
        %v3932 = vrsqrt.pop %v3924
        %v3933 = vrsqrt.pop %v3925
        %v3934 = vrsqrt.pop %v3926
        %v3935 = vrsqrt.pop %v3927
        %v3936 = vmul.f32 %v3880, %v3928
        %v3937 = vmul.f32 %v3881, %v3929
        %v3938 = vmul.f32 %v3882, %v3930
        %v3939 = vmul.f32 %v3883, %v3931
        %v3940 = vmul.f32 %v3884, %v3932
        %v3941 = vmul.f32 %v3885, %v3933
        %v3942 = vmul.f32 %v3886, %v3934
        %v3943 = vmul.f32 %v3887, %v3935
        %v3944 = vld [vmem:[#allocation14 + $0x6] ss:$0 sm:$0xff]
        %v3945 = vmul.f32 %v3936, %v3944
        %v3946 = vmul.f32 %v3937, %v3944
        %v3947 = vmul.f32 %v3938, %v3944
        %v3948 = vmul.f32 %v3939, %v3944
        %v3949 = vmul.f32 %v3940, %v3944
        %v3950 = vmul.f32 %v3941, %v3944
        %v3951 = vmul.f32 %v3942, %v3944
        %v3952 = vmul.f32 %v3943, %v3944
        %v3953 = vld [vmem:[#allocation14 + $0x7] ss:$0 sm:$0xff]
        %v3954 = vadd.f32 %v3945, %v3953
        %v3955 = vadd.f32 %v3946, %v3953
        %v3956 = vadd.f32 %v3947, %v3953
        %v3957 = vadd.f32 %v3948, %v3953
        %v3958 = vadd.f32 %v3949, %v3953
        %v3959 = vadd.f32 %v3950, %v3953
        %v3960 = vadd.f32 %v3951, %v3953
        %v3961 = vadd.f32 %v3952, %v3953
        %v3962 = vpack.c.bf16 %v3955, %v3954
        %v3963 = vpack.c.bf16 %v3957, %v3956
        %v3964 = vpack.c.bf16 %v3959, %v3958
        %v3965 = vpack.c.bf16 %v3961, %v3960
        %v3966 = vld [vmem:[%s9] sm:$0xff]
        %v3967 = vld [vmem:[%s9 + $0x8] sm:$0xff]
        %v3968 = vld [vmem:[%s9 + $0x10] sm:$0xff]
        %v3969 = vld [vmem:[%s9 + $0x18] sm:$0xff]
        %v3970 = vld [vmem:[%s9 + $0x20] sm:$0xff]
        %v3971 = vld [vmem:[%s9 + $0x28] sm:$0xff]
        %v3972 = vld [vmem:[%s9 + $0x30] sm:$0xff]
        %v3973 = vld [vmem:[%s9 + $0x38] sm:$0xff]
        %v3974 = vld [vmem:[%s9 + $0x40] sm:$0xff]
        %v3975 = vld [vmem:[%s9 + $0x48] sm:$0xff]
        %v3976 = vld [vmem:[%s9 + $0x50] sm:$0xff]
        %v3977 = vld [vmem:[%s9 + $0x58] sm:$0xff]
        %v3978 = vld [vmem:[%s9 + $0x60] sm:$0xff]
        %v3979 = vld [vmem:[%s9 + $0x68] sm:$0xff]
        %v3980 = vld [vmem:[%s9 + $0x70] sm:$0xff]
        %v3981 = vld [vmem:[%s9 + $0x78] sm:$0xff]
        %v3982 = vld [vmem:[%s9 + $0x80] sm:$0xff]
        %v3983 = vld [vmem:[%s9 + $0x88] sm:$0xff]
        %v3984 = vld [vmem:[%s9 + $0x90] sm:$0xff]
        %v3985 = vld [vmem:[%s9 + $0x98] sm:$0xff]
        %v3986 = vld [vmem:[%s9 + $0xa0] sm:$0xff]
        %v3987 = vld [vmem:[%s9 + $0xa8] sm:$0xff]
        %v3988 = vld [vmem:[%s9 + $0xb0] sm:$0xff]
        %v3989 = vld [vmem:[%s9 + $0xb8] sm:$0xff]
        %v3990 = vld [vmem:[%s9 + $0xc0] sm:$0xff]
        %v3991 = vld [vmem:[%s9 + $0xc8] sm:$0xff]
        %v3992 = vld [vmem:[%s9 + $0xd0] sm:$0xff]
        %v3993 = vld [vmem:[%s9 + $0xd8] sm:$0xff]
        %v3994 = vld [vmem:[%s9 + $0xe0] sm:$0xff]
        %v3995 = vld [vmem:[%s9 + $0xe8] sm:$0xff]
        %v3996 = vld [vmem:[%s9 + $0xf0] sm:$0xff]
        %v3997 = vld [vmem:[%s9 + $0xf8] sm:$0xff]
        %s3998 = scalar_lea.vmem [#allocation14], 2
        %v3999 = vld [vmem:[%s3998] ss:$8 sm:$0xf]
        %v4001 = vlaneseq
        %v4002 = vshrl.u32 %v4001, 7
        %v4003 = vsub.s32 0, %v4002
        %v4004 = vrot.slane %v3999, %v4003
        %v4005 = vlaneseq
        %v4006 = vshrl.u32 %v4005, 7
        %v4007 = vsub.s32 1, %v4006
        %v4008 = vrot.slane %v3999, %v4007
        %v4009 = vlaneseq
        %v4010 = vshrl.u32 %v4009, 7
        %v4011 = vsub.s32 2, %v4010
        %v4012 = vrot.slane %v3999, %v4011
        %v4013 = vlaneseq
        %v4014 = vshrl.u32 %v4013, 7
        %v4015 = vsub.s32 3, %v4014
        %v4016 = vrot.slane %v3999, %v4015
        %v4053 = vunpack.c.l.b16 %v3966
        %v4054 = vunpack.c.h.b16 %v3966
        %v4055 = vunpack.c.l.b16 %v3967
        %v4056 = vunpack.c.h.b16 %v3967
        %v4057 = vunpack.c.l.b16 %v3968
        %v4058 = vunpack.c.h.b16 %v3968
        %v4059 = vunpack.c.l.b16 %v3969
        %v4060 = vunpack.c.h.b16 %v3969
        %v4061 = vunpack.c.l.b16 %v3970
        %v4062 = vunpack.c.h.b16 %v3970
        %v4063 = vunpack.c.l.b16 %v3971
        %v4064 = vunpack.c.h.b16 %v3971
        %v4065 = vunpack.c.l.b16 %v3972
        %v4066 = vunpack.c.h.b16 %v3972
        %v4067 = vunpack.c.l.b16 %v3973
        %v4068 = vunpack.c.h.b16 %v3973
        %v4069 = vunpack.c.l.b16 %v3974
        %v4070 = vunpack.c.h.b16 %v3974
        %v4071 = vunpack.c.l.b16 %v3975
        %v4072 = vunpack.c.h.b16 %v3975
        %v4073 = vunpack.c.l.b16 %v3976
        %v4074 = vunpack.c.h.b16 %v3976
        %v4075 = vunpack.c.l.b16 %v3977
        %v4076 = vunpack.c.h.b16 %v3977
        %v4077 = vunpack.c.l.b16 %v3978
        %v4078 = vunpack.c.h.b16 %v3978
        %v4079 = vunpack.c.l.b16 %v3979
        %v4080 = vunpack.c.h.b16 %v3979
        %v4081 = vunpack.c.l.b16 %v3980
        %v4082 = vunpack.c.h.b16 %v3980
        %v4083 = vunpack.c.l.b16 %v3981
        %v4084 = vunpack.c.h.b16 %v3981
        %v4085 = vunpack.c.l.b16 %v3982
        %v4086 = vunpack.c.h.b16 %v3982
        %v4087 = vunpack.c.l.b16 %v3983
        %v4088 = vunpack.c.h.b16 %v3983
        %v4089 = vunpack.c.l.b16 %v3984
        %v4090 = vunpack.c.h.b16 %v3984
        %v4091 = vunpack.c.l.b16 %v3985
        %v4092 = vunpack.c.h.b16 %v3985
        %v4093 = vunpack.c.l.b16 %v3986
        %v4094 = vunpack.c.h.b16 %v3986
        %v4095 = vunpack.c.l.b16 %v3987
        %v4096 = vunpack.c.h.b16 %v3987
        %v4097 = vunpack.c.l.b16 %v3988
        %v4098 = vunpack.c.h.b16 %v3988
        %v4099 = vunpack.c.l.b16 %v3989
        %v4100 = vunpack.c.h.b16 %v3989
        %v4101 = vunpack.c.l.b16 %v3990
        %v4102 = vunpack.c.h.b16 %v3990
        %v4103 = vunpack.c.l.b16 %v3991
        %v4104 = vunpack.c.h.b16 %v3991
        %v4105 = vunpack.c.l.b16 %v3992
        %v4106 = vunpack.c.h.b16 %v3992
        %v4107 = vunpack.c.l.b16 %v3993
        %v4108 = vunpack.c.h.b16 %v3993
        %v4109 = vunpack.c.l.b16 %v3994
        %v4110 = vunpack.c.h.b16 %v3994
        %v4111 = vunpack.c.l.b16 %v3995
        %v4112 = vunpack.c.h.b16 %v3995
        %v4113 = vunpack.c.l.b16 %v3996
        %v4114 = vunpack.c.h.b16 %v3996
        %v4115 = vunpack.c.l.b16 %v3997
        %v4116 = vunpack.c.h.b16 %v3997
        %v4117 = vpack.c.b16 %v4057, %v4053
        %v4118 = vpack.c.b16 %v4058, %v4054
        %v4119 = vpack.c.b16 %v4059, %v4055
        %v4120 = vpack.c.b16 %v4060, %v4056
        %v4121 = vpack.c.b16 %v4065, %v4061
        %v4122 = vpack.c.b16 %v4066, %v4062
        %v4123 = vpack.c.b16 %v4067, %v4063
        %v4124 = vpack.c.b16 %v4068, %v4064
        %v4125 = vpack.c.b16 %v4073, %v4069
        %v4126 = vpack.c.b16 %v4074, %v4070
        %v4127 = vpack.c.b16 %v4075, %v4071
        %v4128 = vpack.c.b16 %v4076, %v4072
        %v4129 = vpack.c.b16 %v4081, %v4077
        %v4130 = vpack.c.b16 %v4082, %v4078
        %v4131 = vpack.c.b16 %v4083, %v4079
        %v4132 = vpack.c.b16 %v4084, %v4080
        %v4133 = vpack.c.b16 %v4089, %v4085
        %v4134 = vpack.c.b16 %v4090, %v4086
        %v4135 = vpack.c.b16 %v4091, %v4087
        %v4136 = vpack.c.b16 %v4092, %v4088
        %v4137 = vpack.c.b16 %v4097, %v4093
        %v4138 = vpack.c.b16 %v4098, %v4094
        %v4139 = vpack.c.b16 %v4099, %v4095
        %v4140 = vpack.c.b16 %v4100, %v4096
        %v4141 = vpack.c.b16 %v4105, %v4101
        %v4142 = vpack.c.b16 %v4106, %v4102
        %v4143 = vpack.c.b16 %v4107, %v4103
        %v4144 = vpack.c.b16 %v4108, %v4104
        %v4145 = vpack.c.b16 %v4113, %v4109
        %v4146 = vpack.c.b16 %v4114, %v4110
        %v4147 = vpack.c.b16 %v4115, %v4111
        %v4148 = vpack.c.b16 %v4116, %v4112
        %4181 = vmatprep.subr.bf16.mxu0 %v4118
        %4182 = vmatpush1.bf16.msra.mxu0 %v4117
        %4183 = vmatprep.subr.bf16.mxu0 %v4122
        %4184 = vmatpush1.bf16.msra.mxu0 %v4121
        %4185 = vmatprep.subr.bf16.mxu0 %v4126
        %4186 = vmatpush1.bf16.msra.mxu0 %v4125
        %4187 = vmatprep.subr.bf16.mxu0 %v4130
        %4188 = vmatpush1.bf16.msra.mxu0 %v4129
        %4189 = vmatprep.subr.bf16.mxu0 %v4134
        %4190 = vmatpush1.bf16.msra.mxu0 %v4133
        %4191 = vmatprep.subr.bf16.mxu0 %v4138
        %4192 = vmatpush1.bf16.msra.mxu0 %v4137
        %4193 = vmatprep.subr.bf16.mxu0 %v4142
        %4194 = vmatpush1.bf16.msra.mxu0 %v4141
        %4195 = vmatprep.subr.bf16.mxu0 %v4146
        %4196 = vmatpush1.bf16.msra.mxu0 %v4145
        %4197 = vmatprep.subr.bf16.mxu0 0
        %4198 = vmatpush1.bf16.msra.mxu0 0
        %4199 = vmatprep.subr.bf16.mxu0 0
        %4200 = vmatpush1.bf16.msra.mxu0 0
        %4201 = vmatprep.subr.bf16.mxu0 0
        %4202 = vmatpush1.bf16.msra.mxu0 0
        %4203 = vmatprep.subr.bf16.mxu0 0
        %4204 = vmatpush1.bf16.msra.mxu0 0
        %4205 = vmatprep.subr.bf16.mxu0 0
        %4206 = vmatpush1.bf16.msra.mxu0 0
        %4207 = vmatprep.subr.bf16.mxu0 0
        %4208 = vmatpush1.bf16.msra.mxu0 0
        %4209 = vmatprep.subr.bf16.mxu0 0
        %4210 = vmatpush1.bf16.msra.mxu0 0
        %4211 = vmatprep.subr.bf16.mxu0 0
        %4212 = vmatpush1.bf16.msra.mxu0 0
        %4213 = vmatprep.mubr.bf16.mxu0 0
        %4214 = vmatmul.mubr.bf16.gmra.mrb[0].mxu0 %v3962
        %v4215 = vpop.f32.mrb[0].mxu0
        %v4216 = vadd.f32 %v4004, %v4215
        %v4217 = vpop.f32.mrb[0].mxu0
        %v4218 = vadd.f32 %v4008, %v4217
        %v4219 = vpop.f32.mrb[0].mxu0
        %v4220 = vadd.f32 %v4004, %v4219
        %v4221 = vpop.f32.mrb[0].mxu0
        %v4222 = vadd.f32 %v4008, %v4221
        %4223 = vmatprep.mubr.bf16.mxu0 0
        %4224 = vmatmul.mubr.bf16.gmra.mrb[0].mxu0 %v3963
        %v4225 = vpop.f32.mrb[0].mxu0
        %v4226 = vadd.f32 %v4004, %v4225
        %v4227 = vpop.f32.mrb[0].mxu0
        %v4228 = vadd.f32 %v4008, %v4227
        %v4229 = vpop.f32.mrb[0].mxu0
        %v4230 = vadd.f32 %v4004, %v4229
        %v4231 = vpop.f32.mrb[0].mxu0
        %v4232 = vadd.f32 %v4008, %v4231
        %4233 = vmatprep.mubr.bf16.mxu0 0
        %4234 = vmatmul.mubr.bf16.gmra.mrb[0].mxu0 %v3964
        %v4235 = vpop.f32.mrb[0].mxu0
        %v4236 = vadd.f32 %v4004, %v4235
        %v4237 = vpop.f32.mrb[0].mxu0
        %v4238 = vadd.f32 %v4008, %v4237
        %v4239 = vpop.f32.mrb[0].mxu0
        %v4240 = vadd.f32 %v4004, %v4239
        %v4241 = vpop.f32.mrb[0].mxu0
        %v4242 = vadd.f32 %v4008, %v4241
        %4243 = vmatprep.mubr.bf16.mxu0 0
        %4244 = vmatmul.mubr.bf16.gmra.mrb[0].mxu0 %v3965
        %v4245 = vpop.f32.mrb[0].mxu0
        %v4246 = vadd.f32 %v4004, %v4245
        %v4247 = vpop.f32.mrb[0].mxu0
        %v4248 = vadd.f32 %v4008, %v4247
        %v4249 = vpop.f32.mrb[0].mxu0
        %v4250 = vadd.f32 %v4004, %v4249
        %v4251 = vpop.f32.mrb[0].mxu0
        %v4252 = vadd.f32 %v4008, %v4251
        %4253 = vdwg.mxu0
        %4254 = vmatprep.subr.bf16.mxu0 %v4120
        %4255 = vmatpush1.bf16.msra.mxu0 %v4119
        %4256 = vmatprep.subr.bf16.mxu0 %v4124
        %4257 = vmatpush1.bf16.msra.mxu0 %v4123
        %4258 = vmatprep.subr.bf16.mxu0 %v4128
        %4259 = vmatpush1.bf16.msra.mxu0 %v4127
        %4260 = vmatprep.subr.bf16.mxu0 %v4132
        %4261 = vmatpush1.bf16.msra.mxu0 %v4131
        %4262 = vmatprep.subr.bf16.mxu0 %v4136
        %4263 = vmatpush1.bf16.msra.mxu0 %v4135
        %4264 = vmatprep.subr.bf16.mxu0 %v4140
        %4265 = vmatpush1.bf16.msra.mxu0 %v4139
        %4266 = vmatprep.subr.bf16.mxu0 %v4144
        %4267 = vmatpush1.bf16.msra.mxu0 %v4143
        %4268 = vmatprep.subr.bf16.mxu0 %v4148
        %4269 = vmatpush1.bf16.msra.mxu0 %v4147
        %4270 = vmatprep.subr.bf16.mxu0 0
        %4271 = vmatpush1.bf16.msra.mxu0 0
        %4272 = vmatprep.subr.bf16.mxu0 0
        %4273 = vmatpush1.bf16.msra.mxu0 0
        %4274 = vmatprep.subr.bf16.mxu0 0
        %4275 = vmatpush1.bf16.msra.mxu0 0
        %4276 = vmatprep.subr.bf16.mxu0 0
        %4277 = vmatpush1.bf16.msra.mxu0 0
        %4278 = vmatprep.subr.bf16.mxu0 0
        %4279 = vmatpush1.bf16.msra.mxu0 0
        %4280 = vmatprep.subr.bf16.mxu0 0
        %4281 = vmatpush1.bf16.msra.mxu0 0
        %4282 = vmatprep.subr.bf16.mxu0 0
        %4283 = vmatpush1.bf16.msra.mxu0 0
        %4284 = vmatprep.subr.bf16.mxu0 0
        %4285 = vmatpush1.bf16.msra.mxu0 0
        %4286 = vmatprep.mubr.bf16.mxu0 0
        %4287 = vmatmul.mubr.bf16.gmra.mrb[0].mxu0 %v3962
        %v4288 = vpop.f32.mrb[0].mxu0
        %v4289 = vadd.f32 %v4012, %v4288
        %v4290 = vpop.f32.mrb[0].mxu0
        %v4291 = vadd.f32 %v4016, %v4290
        %v4292 = vpop.f32.mrb[0].mxu0
        %v4293 = vadd.f32 %v4012, %v4292
        %v4294 = vpop.f32.mrb[0].mxu0
        %v4295 = vadd.f32 %v4016, %v4294
        %4296 = vmatprep.mubr.bf16.mxu0 0
        %4297 = vmatmul.mubr.bf16.gmra.mrb[0].mxu0 %v3963
        %v4298 = vpop.f32.mrb[0].mxu0
        %v4299 = vadd.f32 %v4012, %v4298
        %v4300 = vpop.f32.mrb[0].mxu0
        %v4301 = vadd.f32 %v4016, %v4300
        %v4302 = vpop.f32.mrb[0].mxu0
        %v4303 = vadd.f32 %v4012, %v4302
        %v4304 = vpop.f32.mrb[0].mxu0
        %v4305 = vadd.f32 %v4016, %v4304
        %4306 = vmatprep.mubr.bf16.mxu0 0
        %4307 = vmatmul.mubr.bf16.gmra.mrb[0].mxu0 %v3964
        %v4308 = vpop.f32.mrb[0].mxu0
        %v4309 = vadd.f32 %v4012, %v4308
        %v4310 = vpop.f32.mrb[0].mxu0
        %v4311 = vadd.f32 %v4016, %v4310
        %v4312 = vpop.f32.mrb[0].mxu0
        %v4313 = vadd.f32 %v4012, %v4312
        %v4314 = vpop.f32.mrb[0].mxu0
        %v4315 = vadd.f32 %v4016, %v4314
        %4316 = vmatprep.mubr.bf16.mxu0 0
        %4317 = vmatmul.mubr.bf16.gmra.mrb[0].mxu0 %v3965
        %v4318 = vpop.f32.mrb[0].mxu0
        %v4319 = vadd.f32 %v4012, %v4318
        %v4320 = vpop.f32.mrb[0].mxu0
        %v4321 = vadd.f32 %v4016, %v4320
        %v4322 = vpop.f32.mrb[0].mxu0
        %v4323 = vadd.f32 %v4012, %v4322
        %v4324 = vpop.f32.mrb[0].mxu0
        %v4325 = vadd.f32 %v4016, %v4324
        %4326 = vdwg.mxu0
        %v4327 = vmax.f32 %v4216, 0.0
        %v4328 = vmax.f32 %v4218, 0.0
        %v4329 = vmax.f32 %v4289, 0.0
        %v4330 = vmax.f32 %v4291, 0.0
        %v4331 = vmax.f32 %v4220, 0.0
        %v4332 = vmax.f32 %v4222, 0.0
        %v4333 = vmax.f32 %v4293, 0.0
        %v4334 = vmax.f32 %v4295, 0.0
        %v4335 = vmax.f32 %v4226, 0.0
        %v4336 = vmax.f32 %v4228, 0.0
        %v4337 = vmax.f32 %v4299, 0.0
        %v4338 = vmax.f32 %v4301, 0.0
        %v4339 = vmax.f32 %v4230, 0.0
        %v4340 = vmax.f32 %v4232, 0.0
        %v4341 = vmax.f32 %v4303, 0.0
        %v4342 = vmax.f32 %v4305, 0.0
        %v4343 = vmax.f32 %v4236, 0.0
        %v4344 = vmax.f32 %v4238, 0.0
        %v4345 = vmax.f32 %v4309, 0.0
        %v4346 = vmax.f32 %v4311, 0.0
        %v4347 = vmax.f32 %v4240, 0.0
        %v4348 = vmax.f32 %v4242, 0.0
        %v4349 = vmax.f32 %v4313, 0.0
        %v4350 = vmax.f32 %v4315, 0.0
        %v4351 = vmax.f32 %v4246, 0.0
        %v4352 = vmax.f32 %v4248, 0.0
        %v4353 = vmax.f32 %v4319, 0.0
        %v4354 = vmax.f32 %v4321, 0.0
        %v4355 = vmax.f32 %v4250, 0.0
        %v4356 = vmax.f32 %v4252, 0.0
        %v4357 = vmax.f32 %v4323, 0.0
        %v4358 = vmax.f32 %v4325, 0.0
        %v4359 = vpack.c.bf16 %v4331, %v4327
        %v4360 = vpack.c.bf16 %v4332, %v4328
        %v4361 = vpack.c.bf16 %v4333, %v4329
        %v4362 = vpack.c.bf16 %v4334, %v4330
        %v4363 = vpack.c.bf16 %v4339, %v4335
        %v4364 = vpack.c.bf16 %v4340, %v4336
        %v4365 = vpack.c.bf16 %v4341, %v4337
        %v4366 = vpack.c.bf16 %v4342, %v4338
        %v4367 = vpack.c.bf16 %v4347, %v4343
        %v4368 = vpack.c.bf16 %v4348, %v4344
        %v4369 = vpack.c.bf16 %v4349, %v4345
        %v4370 = vpack.c.bf16 %v4350, %v4346
        %v4371 = vpack.c.bf16 %v4355, %v4351
        %v4372 = vpack.c.bf16 %v4356, %v4352
        %v4373 = vpack.c.bf16 %v4357, %v4353
        %v4374 = vpack.c.bf16 %v4358, %v4354
        %v4375 = vld [vmem:[#allocation13] sm:$0xf]
        %v4376 = vld [vmem:[#allocation13 + $0x4] sm:$0xf]
        %v4377 = vld [vmem:[#allocation13 + $0x8] sm:$0xf]
        %v4378 = vld [vmem:[#allocation13 + $0xc] sm:$0xf]
        %v4379 = vld [vmem:[#allocation13 + $0x10] sm:$0xf]
        %v4380 = vld [vmem:[#allocation13 + $0x14] sm:$0xf]
        %v4381 = vld [vmem:[#allocation13 + $0x18] sm:$0xf]
        %v4382 = vld [vmem:[#allocation13 + $0x1c] sm:$0xf]
        %v4383 = vld [vmem:[#allocation13 + $0x20] sm:$0xf]
        %v4384 = vld [vmem:[#allocation13 + $0x24] sm:$0xf]
        %v4385 = vld [vmem:[#allocation13 + $0x28] sm:$0xf]
        %v4386 = vld [vmem:[#allocation13 + $0x2c] sm:$0xf]
        %v4387 = vld [vmem:[#allocation13 + $0x30] sm:$0xf]
        %v4388 = vld [vmem:[#allocation13 + $0x34] sm:$0xf]
        %v4389 = vld [vmem:[#allocation13 + $0x38] sm:$0xf]
        %v4390 = vld [vmem:[#allocation13 + $0x3c] sm:$0xf]
        %v4391 = vld [vmem:[#allocation13 + $0x40] sm:$0xf]
        %v4392 = vld [vmem:[#allocation13 + $0x44] sm:$0xf]
        %v4393 = vld [vmem:[#allocation13 + $0x48] sm:$0xf]
        %v4394 = vld [vmem:[#allocation13 + $0x4c] sm:$0xf]
        %v4395 = vld [vmem:[#allocation13 + $0x50] sm:$0xf]
        %v4396 = vld [vmem:[#allocation13 + $0x54] sm:$0xf]
        %v4397 = vld [vmem:[#allocation13 + $0x58] sm:$0xf]
        %v4398 = vld [vmem:[#allocation13 + $0x5c] sm:$0xf]
        %v4399 = vld [vmem:[#allocation13 + $0x60] sm:$0xf]
        %v4400 = vld [vmem:[#allocation13 + $0x64] sm:$0xf]
        %v4401 = vld [vmem:[#allocation13 + $0x68] sm:$0xf]
        %v4402 = vld [vmem:[#allocation13 + $0x6c] sm:$0xf]
        %v4403 = vld [vmem:[#allocation13 + $0x70] sm:$0xf]
        %v4404 = vld [vmem:[#allocation13 + $0x74] sm:$0xf]
        %v4405 = vld [vmem:[#allocation13 + $0x78] sm:$0xf]
        %v4406 = vld [vmem:[#allocation13 + $0x7c] sm:$0xf]
        %v4407 = vld [vmem:[#allocation13 + $0x80] sm:$0xf]
        %v4408 = vld [vmem:[#allocation13 + $0x84] sm:$0xf]
        %v4409 = vld [vmem:[#allocation13 + $0x88] sm:$0xf]
        %v4410 = vld [vmem:[#allocation13 + $0x8c] sm:$0xf]
        %v4411 = vld [vmem:[#allocation13 + $0x90] sm:$0xf]
        %v4412 = vld [vmem:[#allocation13 + $0x94] sm:$0xf]
        %v4413 = vld [vmem:[#allocation13 + $0x98] sm:$0xf]
        %v4414 = vld [vmem:[#allocation13 + $0x9c] sm:$0xf]
        %v4415 = vld [vmem:[#allocation13 + $0xa0] sm:$0xf]
        %v4416 = vld [vmem:[#allocation13 + $0xa4] sm:$0xf]
        %v4417 = vld [vmem:[#allocation13 + $0xa8] sm:$0xf]
        %v4418 = vld [vmem:[#allocation13 + $0xac] sm:$0xf]
        %v4419 = vld [vmem:[#allocation13 + $0xb0] sm:$0xf]
        %v4420 = vld [vmem:[#allocation13 + $0xb4] sm:$0xf]
        %v4421 = vld [vmem:[#allocation13 + $0xb8] sm:$0xf]
        %v4422 = vld [vmem:[#allocation13 + $0xbc] sm:$0xf]
        %v4423 = vld [vmem:[#allocation13 + $0xc0] sm:$0xf]
        %v4424 = vld [vmem:[#allocation13 + $0xc4] sm:$0xf]
        %v4425 = vld [vmem:[#allocation13 + $0xc8] sm:$0xf]
        %v4426 = vld [vmem:[#allocation13 + $0xcc] sm:$0xf]
        %v4427 = vld [vmem:[#allocation13 + $0xd0] sm:$0xf]
        %v4428 = vld [vmem:[#allocation13 + $0xd4] sm:$0xf]
        %v4429 = vld [vmem:[#allocation13 + $0xd8] sm:$0xf]
        %v4430 = vld [vmem:[#allocation13 + $0xdc] sm:$0xf]
        %v4431 = vld [vmem:[#allocation13 + $0xe0] sm:$0xf]
        %v4432 = vld [vmem:[#allocation13 + $0xe4] sm:$0xf]
        %v4433 = vld [vmem:[#allocation13 + $0xe8] sm:$0xf]
        %v4434 = vld [vmem:[#allocation13 + $0xec] sm:$0xf]
        %v4435 = vld [vmem:[#allocation13 + $0xf0] sm:$0xf]
        %v4436 = vld [vmem:[#allocation13 + $0xf4] sm:$0xf]
        %v4437 = vld [vmem:[#allocation13 + $0xf8] sm:$0xf]
        %v4438 = vld [vmem:[#allocation13 + $0xfc] sm:$0xf]
        %v4503 = vunpack.c.l.b16 %v4375
        %v4504 = vunpack.c.l.b16 %v4376
        %v4505 = vunpack.c.l.b16 %v4377
        %v4506 = vunpack.c.l.b16 %v4378
        %v4507 = vunpack.c.l.b16 %v4379
        %v4508 = vunpack.c.l.b16 %v4380
        %v4509 = vunpack.c.l.b16 %v4381
        %v4510 = vunpack.c.l.b16 %v4382
        %v4511 = vunpack.c.l.b16 %v4383
        %v4512 = vunpack.c.l.b16 %v4384
        %v4513 = vunpack.c.l.b16 %v4385
        %v4514 = vunpack.c.l.b16 %v4386
        %v4515 = vunpack.c.l.b16 %v4387
        %v4516 = vunpack.c.l.b16 %v4388
        %v4517 = vunpack.c.l.b16 %v4389
        %v4518 = vunpack.c.l.b16 %v4390
        %v4519 = vunpack.c.l.b16 %v4391
        %v4520 = vunpack.c.l.b16 %v4392
        %v4521 = vunpack.c.l.b16 %v4393
        %v4522 = vunpack.c.l.b16 %v4394
        %v4523 = vunpack.c.l.b16 %v4395
        %v4524 = vunpack.c.l.b16 %v4396
        %v4525 = vunpack.c.l.b16 %v4397
        %v4526 = vunpack.c.l.b16 %v4398
        %v4527 = vunpack.c.l.b16 %v4399
        %v4528 = vunpack.c.l.b16 %v4400
        %v4529 = vunpack.c.l.b16 %v4401
        %v4530 = vunpack.c.l.b16 %v4402
        %v4531 = vunpack.c.l.b16 %v4403
        %v4532 = vunpack.c.l.b16 %v4404
        %v4533 = vunpack.c.l.b16 %v4405
        %v4534 = vunpack.c.l.b16 %v4406
        %v4535 = vunpack.c.l.b16 %v4407
        %v4536 = vunpack.c.l.b16 %v4408
        %v4537 = vunpack.c.l.b16 %v4409
        %v4538 = vunpack.c.l.b16 %v4410
        %v4539 = vunpack.c.l.b16 %v4411
        %v4540 = vunpack.c.l.b16 %v4412
        %v4541 = vunpack.c.l.b16 %v4413
        %v4542 = vunpack.c.l.b16 %v4414
        %v4543 = vunpack.c.l.b16 %v4415
        %v4544 = vunpack.c.l.b16 %v4416
        %v4545 = vunpack.c.l.b16 %v4417
        %v4546 = vunpack.c.l.b16 %v4418
        %v4547 = vunpack.c.l.b16 %v4419
        %v4548 = vunpack.c.l.b16 %v4420
        %v4549 = vunpack.c.l.b16 %v4421
        %v4550 = vunpack.c.l.b16 %v4422
        %v4551 = vunpack.c.l.b16 %v4423
        %v4552 = vunpack.c.l.b16 %v4424
        %v4553 = vunpack.c.l.b16 %v4425
        %v4554 = vunpack.c.l.b16 %v4426
        %v4555 = vunpack.c.l.b16 %v4427
        %v4556 = vunpack.c.l.b16 %v4428
        %v4557 = vunpack.c.l.b16 %v4429
        %v4558 = vunpack.c.l.b16 %v4430
        %v4559 = vunpack.c.l.b16 %v4431
        %v4560 = vunpack.c.l.b16 %v4432
        %v4561 = vunpack.c.l.b16 %v4433
        %v4562 = vunpack.c.l.b16 %v4434
        %v4563 = vunpack.c.l.b16 %v4435
        %v4564 = vunpack.c.l.b16 %v4436
        %v4565 = vunpack.c.l.b16 %v4437
        %v4566 = vunpack.c.l.b16 %v4438
        %v4567 = vpack.c.b16 %v4504, %v4503
        %v4568 = vpack.c.b16 %v4506, %v4505
        %v4569 = vpack.c.b16 %v4508, %v4507
        %v4570 = vpack.c.b16 %v4510, %v4509
        %v4571 = vpack.c.b16 %v4512, %v4511
        %v4572 = vpack.c.b16 %v4514, %v4513
        %v4573 = vpack.c.b16 %v4516, %v4515
        %v4574 = vpack.c.b16 %v4518, %v4517
        %v4575 = vpack.c.b16 %v4520, %v4519
        %v4576 = vpack.c.b16 %v4522, %v4521
        %v4577 = vpack.c.b16 %v4524, %v4523
        %v4578 = vpack.c.b16 %v4526, %v4525
        %v4579 = vpack.c.b16 %v4528, %v4527
        %v4580 = vpack.c.b16 %v4530, %v4529
        %v4581 = vpack.c.b16 %v4532, %v4531
        %v4582 = vpack.c.b16 %v4534, %v4533
        %v4583 = vpack.c.b16 %v4536, %v4535
        %v4584 = vpack.c.b16 %v4538, %v4537
        %v4585 = vpack.c.b16 %v4540, %v4539
        %v4586 = vpack.c.b16 %v4542, %v4541
        %v4587 = vpack.c.b16 %v4544, %v4543
        %v4588 = vpack.c.b16 %v4546, %v4545
        %v4589 = vpack.c.b16 %v4548, %v4547
        %v4590 = vpack.c.b16 %v4550, %v4549
        %v4591 = vpack.c.b16 %v4552, %v4551
        %v4592 = vpack.c.b16 %v4554, %v4553
        %v4593 = vpack.c.b16 %v4556, %v4555
        %v4594 = vpack.c.b16 %v4558, %v4557
        %v4595 = vpack.c.b16 %v4560, %v4559
        %v4596 = vpack.c.b16 %v4562, %v4561
        %v4597 = vpack.c.b16 %v4564, %v4563
        %v4598 = vpack.c.b16 %v4566, %v4565
        %4631 = vmatprep.subr.bf16.mxu0 0
        %4632 = vmatpush1.bf16.msra.mxu0 %v4567
        %4633 = vmatprep.subr.bf16.mxu0 0
        %4634 = vmatpush1.bf16.msra.mxu0 %v4568
        %4635 = vmatprep.subr.bf16.mxu0 0
        %4636 = vmatpush1.bf16.msra.mxu0 %v4569
        %4637 = vmatprep.subr.bf16.mxu0 0
        %4638 = vmatpush1.bf16.msra.mxu0 %v4570
        %4639 = vmatprep.subr.bf16.mxu0 0
        %4640 = vmatpush1.bf16.msra.mxu0 %v4571
        %4641 = vmatprep.subr.bf16.mxu0 0
        %4642 = vmatpush1.bf16.msra.mxu0 %v4572
        %4643 = vmatprep.subr.bf16.mxu0 0
        %4644 = vmatpush1.bf16.msra.mxu0 %v4573
        %4645 = vmatprep.subr.bf16.mxu0 0
        %4646 = vmatpush1.bf16.msra.mxu0 %v4574
        %4647 = vmatprep.subr.bf16.mxu0 0
        %4648 = vmatpush1.bf16.msra.mxu0 %v4575
        %4649 = vmatprep.subr.bf16.mxu0 0
        %4650 = vmatpush1.bf16.msra.mxu0 %v4576
        %4651 = vmatprep.subr.bf16.mxu0 0
        %4652 = vmatpush1.bf16.msra.mxu0 %v4577
        %4653 = vmatprep.subr.bf16.mxu0 0
        %4654 = vmatpush1.bf16.msra.mxu0 %v4578
        %4655 = vmatprep.subr.bf16.mxu0 0
        %4656 = vmatpush1.bf16.msra.mxu0 %v4579
        %4657 = vmatprep.subr.bf16.mxu0 0
        %4658 = vmatpush1.bf16.msra.mxu0 %v4580
        %4659 = vmatprep.subr.bf16.mxu0 0
        %4660 = vmatpush1.bf16.msra.mxu0 %v4581
        %4661 = vmatprep.subr.bf16.mxu0 0
        %4662 = vmatpush1.bf16.msra.mxu0 %v4582
        %4663 = vmatprep.mubr.bf16.mxu0 %v4360
        %4664 = vmatmul.mubr.bf16.gmra.mrb[0].mxu0 %v4359
        %v4665 = vpop.f32.mrb[0].mxu0
        %v4666 = vadd.f32 0.0, %v4665
        %v4667 = vpop.f32.mrb[0].mxu0
        %v4668 = vpop.f32.mrb[0].mxu0
        %v4669 = vadd.f32 0.0, %v4668
        %v4670 = vpop.f32.mrb[0].mxu0
        %4671 = vmatprep.mubr.bf16.mxu0 %v4364
        %4672 = vmatmul.mubr.bf16.gmra.mrb[0].mxu0 %v4363
        %v4673 = vpop.f32.mrb[0].mxu0
        %v4674 = vadd.f32 0.0, %v4673
        %v4675 = vpop.f32.mrb[0].mxu0
        %v4676 = vpop.f32.mrb[0].mxu0
        %v4677 = vadd.f32 0.0, %v4676
        %v4678 = vpop.f32.mrb[0].mxu0
        %4679 = vmatprep.mubr.bf16.mxu0 %v4368
        %4680 = vmatmul.mubr.bf16.gmra.mrb[0].mxu0 %v4367
        %v4681 = vpop.f32.mrb[0].mxu0
        %v4682 = vadd.f32 0.0, %v4681
        %v4683 = vpop.f32.mrb[0].mxu0
        %v4684 = vpop.f32.mrb[0].mxu0
        %v4685 = vadd.f32 0.0, %v4684
        %v4686 = vpop.f32.mrb[0].mxu0
        %4687 = vmatprep.mubr.bf16.mxu0 %v4372
        %4688 = vmatmul.mubr.bf16.gmra.mrb[0].mxu0 %v4371
        %v4689 = vpop.f32.mrb[0].mxu0
        %v4690 = vadd.f32 0.0, %v4689
        %v4691 = vpop.f32.mrb[0].mxu0
        %v4692 = vpop.f32.mrb[0].mxu0
        %v4693 = vadd.f32 0.0, %v4692
        %v4694 = vpop.f32.mrb[0].mxu0
        %4695 = vdwg.mxu0
        %4696 = vmatprep.subr.bf16.mxu0 0
        %4697 = vmatpush1.bf16.msra.mxu0 %v4583
        %4698 = vmatprep.subr.bf16.mxu0 0
        %4699 = vmatpush1.bf16.msra.mxu0 %v4584
        %4700 = vmatprep.subr.bf16.mxu0 0
        %4701 = vmatpush1.bf16.msra.mxu0 %v4585
        %4702 = vmatprep.subr.bf16.mxu0 0
        %4703 = vmatpush1.bf16.msra.mxu0 %v4586
        %4704 = vmatprep.subr.bf16.mxu0 0
        %4705 = vmatpush1.bf16.msra.mxu0 %v4587
        %4706 = vmatprep.subr.bf16.mxu0 0
        %4707 = vmatpush1.bf16.msra.mxu0 %v4588
        %4708 = vmatprep.subr.bf16.mxu0 0
        %4709 = vmatpush1.bf16.msra.mxu0 %v4589
        %4710 = vmatprep.subr.bf16.mxu0 0
        %4711 = vmatpush1.bf16.msra.mxu0 %v4590
        %4712 = vmatprep.subr.bf16.mxu0 0
        %4713 = vmatpush1.bf16.msra.mxu0 %v4591
        %4714 = vmatprep.subr.bf16.mxu0 0
        %4715 = vmatpush1.bf16.msra.mxu0 %v4592
        %4716 = vmatprep.subr.bf16.mxu0 0
        %4717 = vmatpush1.bf16.msra.mxu0 %v4593
        %4718 = vmatprep.subr.bf16.mxu0 0
        %4719 = vmatpush1.bf16.msra.mxu0 %v4594
        %4720 = vmatprep.subr.bf16.mxu0 0
        %4721 = vmatpush1.bf16.msra.mxu0 %v4595
        %4722 = vmatprep.subr.bf16.mxu0 0
        %4723 = vmatpush1.bf16.msra.mxu0 %v4596
        %4724 = vmatprep.subr.bf16.mxu0 0
        %4725 = vmatpush1.bf16.msra.mxu0 %v4597
        %4726 = vmatprep.subr.bf16.mxu0 0
        %4727 = vmatpush1.bf16.msra.mxu0 %v4598
        %4728 = vmatprep.mubr.bf16.mxu0 %v4362
        %4729 = vmatmul.mubr.bf16.gmra.mrb[0].mxu0 %v4361
        %v4730 = vpop.f32.mrb[0].mxu0
        %v4731 = vadd.f32 %v4666, %v4730
        %v4732 = vpop.f32.mrb[0].mxu0
        %v4733 = vpop.f32.mrb[0].mxu0
        %v4734 = vadd.f32 %v4669, %v4733
        %v4735 = vpop.f32.mrb[0].mxu0
        %4736 = vmatprep.mubr.bf16.mxu0 %v4366
        %4737 = vmatmul.mubr.bf16.gmra.mrb[0].mxu0 %v4365
        %v4738 = vpop.f32.mrb[0].mxu0
        %v4739 = vadd.f32 %v4674, %v4738
        %v4740 = vpop.f32.mrb[0].mxu0
        %v4741 = vpop.f32.mrb[0].mxu0
        %v4742 = vadd.f32 %v4677, %v4741
        %v4743 = vpop.f32.mrb[0].mxu0
        %4744 = vmatprep.mubr.bf16.mxu0 %v4370
        %4745 = vmatmul.mubr.bf16.gmra.mrb[0].mxu0 %v4369
        %v4746 = vpop.f32.mrb[0].mxu0
        %v4747 = vadd.f32 %v4682, %v4746
        %v4748 = vpop.f32.mrb[0].mxu0
        %v4749 = vpop.f32.mrb[0].mxu0
        %v4750 = vadd.f32 %v4685, %v4749
        %v4751 = vpop.f32.mrb[0].mxu0
        %4752 = vmatprep.mubr.bf16.mxu0 %v4374
        %4753 = vmatmul.mubr.bf16.gmra.mrb[0].mxu0 %v4373
        %v4754 = vpop.f32.mrb[0].mxu0
        %v4755 = vadd.f32 %v4690, %v4754
        %v4756 = vpop.f32.mrb[0].mxu0
        %v4757 = vpop.f32.mrb[0].mxu0
        %v4758 = vadd.f32 %v4693, %v4757
        %v4759 = vpop.f32.mrb[0].mxu0
        %4760 = vdwg.mxu0
        %v4761 = vadd.f32 %v3848, %v4731
        %v4762 = vadd.f32 %v3849, %v4734
        %v4763 = vadd.f32 %v3850, %v4739
        %v4764 = vadd.f32 %v3851, %v4742
        %v4765 = vadd.f32 %v3852, %v4747
        %v4766 = vadd.f32 %v3853, %v4750
        %v4767 = vadd.f32 %v3854, %v4755
        %v4768 = vadd.f32 %v3855, %v4758
        %v4769 = vld [vmem:[#allocation14 + $0x3] ss:$0 sm:$0xff]
        %v4770 = vadd.f32 %v4761, %v4769
        %v4771 = vadd.f32 %v4762, %v4769
        %v4772 = vadd.f32 %v4763, %v4769
        %v4773 = vadd.f32 %v4764, %v4769
        %v4774 = vadd.f32 %v4765, %v4769
        %v4775 = vadd.f32 %v4766, %v4769
        %v4776 = vadd.f32 %v4767, %v4769
        %v4777 = vadd.f32 %v4768, %v4769
        %4778 = vadd.xlane.f32.xlu0 %v4770
        %v4779 = vpop.xlane.xlu0 %4778
        %4780 = vadd.xlane.f32.xlu0 %v4771
        %v4781 = vpop.xlane.xlu0 %4780
        %4782 = vadd.xlane.f32.xlu0 %v4772
        %v4783 = vpop.xlane.xlu0 %4782
        %4784 = vadd.xlane.f32.xlu0 %v4773
        %v4785 = vpop.xlane.xlu0 %4784
        %4786 = vadd.xlane.f32.xlu0 %v4774
        %v4787 = vpop.xlane.xlu0 %4786
        %4788 = vadd.xlane.f32.xlu0 %v4775
        %v4789 = vpop.xlane.xlu0 %4788
        %4790 = vadd.xlane.f32.xlu0 %v4776
        %v4791 = vpop.xlane.xlu0 %4790
        %4792 = vadd.xlane.f32.xlu0 %v4777
        %v4793 = vpop.xlane.xlu0 %4792
        %v4794 = vmul.f32 %v4779, %v1481
        %v4795 = vmul.f32 %v4781, %v1481
        %v4796 = vmul.f32 %v4783, %v1481
        %v4797 = vmul.f32 %v4785, %v1481
        %v4798 = vmul.f32 %v4787, %v1481
        %v4799 = vmul.f32 %v4789, %v1481
        %v4800 = vmul.f32 %v4791, %v1481
        %v4801 = vmul.f32 %v4793, %v1481
        %v4802 = vsub.f32 %v4770, %v4794
        %v4803 = vsub.f32 %v4771, %v4795
        %v4804 = vsub.f32 %v4772, %v4796
        %v4805 = vsub.f32 %v4773, %v4797
        %v4806 = vsub.f32 %v4774, %v4798
        %v4807 = vsub.f32 %v4775, %v4799
        %v4808 = vsub.f32 %v4776, %v4800
        %v4809 = vsub.f32 %v4777, %v4801
        %v4810 = vmul.f32 %v4802, %v4802
        %v4811 = vmul.f32 %v4803, %v4803
        %v4812 = vmul.f32 %v4804, %v4804
        %v4813 = vmul.f32 %v4805, %v4805
        %v4814 = vmul.f32 %v4806, %v4806
        %v4815 = vmul.f32 %v4807, %v4807
        %v4816 = vmul.f32 %v4808, %v4808
        %v4817 = vmul.f32 %v4809, %v4809
        %4818 = vadd.xlane.f32.xlu0 %v4810
        %v4819 = vpop.xlane.xlu0 %4818
        %4820 = vadd.xlane.f32.xlu0 %v4811
        %v4821 = vpop.xlane.xlu0 %4820
        %4822 = vadd.xlane.f32.xlu0 %v4812
        %v4823 = vpop.xlane.xlu0 %4822
        %4824 = vadd.xlane.f32.xlu0 %v4813
        %v4825 = vpop.xlane.xlu0 %4824
        %4826 = vadd.xlane.f32.xlu0 %v4814
        %v4827 = vpop.xlane.xlu0 %4826
        %4828 = vadd.xlane.f32.xlu0 %v4815
        %v4829 = vpop.xlane.xlu0 %4828
        %4830 = vadd.xlane.f32.xlu0 %v4816
        %v4831 = vpop.xlane.xlu0 %4830
        %4832 = vadd.xlane.f32.xlu0 %v4817
        %v4833 = vpop.xlane.xlu0 %4832
        %v4834 = vmul.f32 %v4819, %v1481
        %v4835 = vmul.f32 %v4821, %v1481
        %v4836 = vmul.f32 %v4823, %v1481
        %v4837 = vmul.f32 %v4825, %v1481
        %v4838 = vmul.f32 %v4827, %v1481
        %v4839 = vmul.f32 %v4829, %v1481
        %v4840 = vmul.f32 %v4831, %v1481
        %v4841 = vmul.f32 %v4833, %v1481
        %v4842 = vadd.f32 %v4834, 1e-05
        %v4843 = vadd.f32 %v4835, 1e-05
        %v4844 = vadd.f32 %v4836, 1e-05
        %v4845 = vadd.f32 %v4837, 1e-05
        %v4846 = vadd.f32 %v4838, 1e-05
        %v4847 = vadd.f32 %v4839, 1e-05
        %v4848 = vadd.f32 %v4840, 1e-05
        %v4849 = vadd.f32 %v4841, 1e-05
        %v4850 = vrsqrt.pop %v4842
        %v4851 = vrsqrt.pop %v4843
        %v4852 = vrsqrt.pop %v4844
        %v4853 = vrsqrt.pop %v4845
        %v4854 = vrsqrt.pop %v4846
        %v4855 = vrsqrt.pop %v4847
        %v4856 = vrsqrt.pop %v4848
        %v4857 = vrsqrt.pop %v4849
        %v4858 = vmul.f32 %v4802, %v4850
        %v4859 = vmul.f32 %v4803, %v4851
        %v4860 = vmul.f32 %v4804, %v4852
        %v4861 = vmul.f32 %v4805, %v4853
        %v4862 = vmul.f32 %v4806, %v4854
        %v4863 = vmul.f32 %v4807, %v4855
        %v4864 = vmul.f32 %v4808, %v4856
        %v4865 = vmul.f32 %v4809, %v4857
        %v4866 = vld [vmem:[#allocation14 + $0x24] ss:$0 sm:$0xff]
        %v4867 = vmul.f32 %v4858, %v4866
        %v4868 = vmul.f32 %v4859, %v4866
        %v4869 = vmul.f32 %v4860, %v4866
        %v4870 = vmul.f32 %v4861, %v4866
        %v4871 = vmul.f32 %v4862, %v4866
        %v4872 = vmul.f32 %v4863, %v4866
        %v4873 = vmul.f32 %v4864, %v4866
        %v4874 = vmul.f32 %v4865, %v4866
        %v4875 = vld [vmem:[#allocation14 + $0x25] ss:$0 sm:$0xff]
        %v4876 = vadd.f32 %v4867, %v4875
        %v4877 = vadd.f32 %v4868, %v4875
        %v4878 = vadd.f32 %v4869, %v4875
        %v4879 = vadd.f32 %v4870, %v4875
        %v4880 = vadd.f32 %v4871, %v4875
        %v4881 = vadd.f32 %v4872, %v4875
        %v4882 = vadd.f32 %v4873, %v4875
        %v4883 = vadd.f32 %v4874, %v4875
        %v4884 = vpack.c.bf16 %v4877, %v4876
        %v4885 = vpack.c.bf16 %v4879, %v4878
        %v4886 = vpack.c.bf16 %v4881, %v4880
        %v4887 = vpack.c.bf16 %v4883, %v4882
        %s4888 = scalar_lea.vmem [#allocation10], 192
        %v4889 = vld [vmem:[%s4888] sm:$0xff]
        %v4890 = vld [vmem:[%s4888 + $0x8] sm:$0xf]
        %v4891 = vld [vmem:[%s4888 + $0xc] sm:$0xff]
        %v4892 = vld [vmem:[%s4888 + $0x14] sm:$0xf]
        %v4893 = vld [vmem:[%s4888 + $0x18] sm:$0xff]
        %v4894 = vld [vmem:[%s4888 + $0x20] sm:$0xf]
        %v4895 = vld [vmem:[%s4888 + $0x24] sm:$0xff]
        %v4896 = vld [vmem:[%s4888 + $0x2c] sm:$0xf]
        %v4897 = vld [vmem:[%s4888 + $0x30] sm:$0xff]
        %v4898 = vld [vmem:[%s4888 + $0x38] sm:$0xf]
        %v4899 = vld [vmem:[%s4888 + $0x3c] sm:$0xff]
        %v4900 = vld [vmem:[%s4888 + $0x44] sm:$0xf]
        %v4901 = vld [vmem:[%s4888 + $0x48] sm:$0xff]
        %v4902 = vld [vmem:[%s4888 + $0x50] sm:$0xf]
        %v4903 = vld [vmem:[%s4888 + $0x54] sm:$0xff]
        %v4904 = vld [vmem:[%s4888 + $0x5c] sm:$0xf]
        %v4905 = vld [vmem:[%s4888 + $0x60] sm:$0xff]
        %v4906 = vld [vmem:[%s4888 + $0x68] sm:$0xf]
        %v4907 = vld [vmem:[%s4888 + $0x6c] sm:$0xff]
        %v4908 = vld [vmem:[%s4888 + $0x74] sm:$0xf]
        %v4909 = vld [vmem:[%s4888 + $0x78] sm:$0xff]
        %v4910 = vld [vmem:[%s4888 + $0x80] sm:$0xf]
        %v4911 = vld [vmem:[%s4888 + $0x84] sm:$0xff]
        %v4912 = vld [vmem:[%s4888 + $0x8c] sm:$0xf]
        %v4913 = vld [vmem:[%s4888 + $0x90] sm:$0xff]
        %v4914 = vld [vmem:[%s4888 + $0x98] sm:$0xf]
        %v4915 = vld [vmem:[%s4888 + $0x9c] sm:$0xff]
        %v4916 = vld [vmem:[%s4888 + $0xa4] sm:$0xf]
        %v4917 = vld [vmem:[%s4888 + $0xa8] sm:$0xff]
        %v4918 = vld [vmem:[%s4888 + $0xb0] sm:$0xf]
        %v4919 = vld [vmem:[%s4888 + $0xb4] sm:$0xff]
        %v4920 = vld [vmem:[%s4888 + $0xbc] sm:$0xf]
        %s4921 = scalar_lea.vmem [#allocation14], 32
        %v4922 = vld [vmem:[%s4921] ss:$8 sm:$0x7]
        %v4924 = vlaneseq
        %v4925 = vshrl.u32 %v4924, 7
        %v4926 = vsub.s32 0, %v4925
        %v4927 = vrot.slane %v4922, %v4926
        %v4928 = vlaneseq
        %v4929 = vshrl.u32 %v4928, 7
        %v4930 = vsub.s32 1, %v4929
        %v4931 = vrot.slane %v4922, %v4930
        %v4932 = vlaneseq
        %v4933 = vshrl.u32 %v4932, 7
        %v4934 = vsub.s32 2, %v4933
        %v4935 = vrot.slane %v4922, %v4934
        %v4971 = vunpack.c.l.b16 %v4889
        %v4972 = vunpack.c.h.b16 %v4889
        %v4973 = vunpack.c.l.b16 %v4890
        %v4974 = vunpack.c.l.b16 %v4891
        %v4975 = vunpack.c.h.b16 %v4891
        %v4976 = vunpack.c.l.b16 %v4892
        %v4977 = vunpack.c.l.b16 %v4893
        %v4978 = vunpack.c.h.b16 %v4893
        %v4979 = vunpack.c.l.b16 %v4894
        %v4980 = vunpack.c.l.b16 %v4895
        %v4981 = vunpack.c.h.b16 %v4895
        %v4982 = vunpack.c.l.b16 %v4896
        %v4983 = vunpack.c.l.b16 %v4897
        %v4984 = vunpack.c.h.b16 %v4897
        %v4985 = vunpack.c.l.b16 %v4898
        %v4986 = vunpack.c.l.b16 %v4899
        %v4987 = vunpack.c.h.b16 %v4899
        %v4988 = vunpack.c.l.b16 %v4900
        %v4989 = vunpack.c.l.b16 %v4901
        %v4990 = vunpack.c.h.b16 %v4901
        %v4991 = vunpack.c.l.b16 %v4902
        %v4992 = vunpack.c.l.b16 %v4903
        %v4993 = vunpack.c.h.b16 %v4903
        %v4994 = vunpack.c.l.b16 %v4904
        %v4995 = vunpack.c.l.b16 %v4905
        %v4996 = vunpack.c.h.b16 %v4905
        %v4997 = vunpack.c.l.b16 %v4906
        %v4998 = vunpack.c.l.b16 %v4907
        %v4999 = vunpack.c.h.b16 %v4907
        %v5000 = vunpack.c.l.b16 %v4908
        %v5001 = vunpack.c.l.b16 %v4909
        %v5002 = vunpack.c.h.b16 %v4909
        %v5003 = vunpack.c.l.b16 %v4910
        %v5004 = vunpack.c.l.b16 %v4911
        %v5005 = vunpack.c.h.b16 %v4911
        %v5006 = vunpack.c.l.b16 %v4912
        %v5007 = vunpack.c.l.b16 %v4913
        %v5008 = vunpack.c.h.b16 %v4913
        %v5009 = vunpack.c.l.b16 %v4914
        %v5010 = vunpack.c.l.b16 %v4915
        %v5011 = vunpack.c.h.b16 %v4915
        %v5012 = vunpack.c.l.b16 %v4916
        %v5013 = vunpack.c.l.b16 %v4917
        %v5014 = vunpack.c.h.b16 %v4917
        %v5015 = vunpack.c.l.b16 %v4918
        %v5016 = vunpack.c.l.b16 %v4919
        %v5017 = vunpack.c.h.b16 %v4919
        %v5018 = vunpack.c.l.b16 %v4920
        %v5019 = vpack.c.b16 %v4974, %v4971
        %v5020 = vpack.c.b16 %v4975, %v4972
        %v5021 = vpack.c.b16 %v4976, %v4973
        %v5022 = vpack.c.b16 %v4980, %v4977
        %v5023 = vpack.c.b16 %v4981, %v4978
        %v5024 = vpack.c.b16 %v4982, %v4979
        %v5025 = vpack.c.b16 %v4986, %v4983
        %v5026 = vpack.c.b16 %v4987, %v4984
        %v5027 = vpack.c.b16 %v4988, %v4985
        %v5028 = vpack.c.b16 %v4992, %v4989
        %v5029 = vpack.c.b16 %v4993, %v4990
        %v5030 = vpack.c.b16 %v4994, %v4991
        %v5031 = vpack.c.b16 %v4998, %v4995
        %v5032 = vpack.c.b16 %v4999, %v4996
        %v5033 = vpack.c.b16 %v5000, %v4997
        %v5034 = vpack.c.b16 %v5004, %v5001
        %v5035 = vpack.c.b16 %v5005, %v5002
        %v5036 = vpack.c.b16 %v5006, %v5003
        %v5037 = vpack.c.b16 %v5010, %v5007
        %v5038 = vpack.c.b16 %v5011, %v5008
        %v5039 = vpack.c.b16 %v5012, %v5009
        %v5040 = vpack.c.b16 %v5016, %v5013
        %v5041 = vpack.c.b16 %v5017, %v5014
        %v5042 = vpack.c.b16 %v5018, %v5015
        %5067 = vmatprep.subr.bf16.mxu0 %v5020
        %5068 = vmatpush1.bf16.msra.mxu0 %v5019
        %5069 = vmatprep.subr.bf16.mxu0 %v5023
        %5070 = vmatpush1.bf16.msra.mxu0 %v5022
        %5071 = vmatprep.subr.bf16.mxu0 %v5026
        %5072 = vmatpush1.bf16.msra.mxu0 %v5025
        %5073 = vmatprep.subr.bf16.mxu0 %v5029
        %5074 = vmatpush1.bf16.msra.mxu0 %v5028
        %5075 = vmatprep.subr.bf16.mxu0 %v5032
        %5076 = vmatpush1.bf16.msra.mxu0 %v5031
        %5077 = vmatprep.subr.bf16.mxu0 %v5035
        %5078 = vmatpush1.bf16.msra.mxu0 %v5034
        %5079 = vmatprep.subr.bf16.mxu0 %v5038
        %5080 = vmatpush1.bf16.msra.mxu0 %v5037
        %5081 = vmatprep.subr.bf16.mxu0 %v5041
        %5082 = vmatpush1.bf16.msra.mxu0 %v5040
        %5083 = vmatprep.subr.bf16.mxu0 0
        %5084 = vmatpush1.bf16.msra.mxu0 0
        %5085 = vmatprep.subr.bf16.mxu0 0
        %5086 = vmatpush1.bf16.msra.mxu0 0
        %5087 = vmatprep.subr.bf16.mxu0 0
        %5088 = vmatpush1.bf16.msra.mxu0 0
        %5089 = vmatprep.subr.bf16.mxu0 0
        %5090 = vmatpush1.bf16.msra.mxu0 0
        %5091 = vmatprep.subr.bf16.mxu0 0
        %5092 = vmatpush1.bf16.msra.mxu0 0
        %5093 = vmatprep.subr.bf16.mxu0 0
        %5094 = vmatpush1.bf16.msra.mxu0 0
        %5095 = vmatprep.subr.bf16.mxu0 0
        %5096 = vmatpush1.bf16.msra.mxu0 0
        %5097 = vmatprep.subr.bf16.mxu0 0
        %5098 = vmatpush1.bf16.msra.mxu0 0
        %5099 = vmatprep.mubr.bf16.mxu0 0
        %5100 = vmatmul.mubr.bf16.gmra.mrb[0].mxu0 %v4884
        %v5101 = vpop.f32.mrb[0].mxu0
        %v5102 = vadd.f32 %v4927, %v5101
        %v5103 = vpop.f32.mrb[0].mxu0
        %v5104 = vadd.f32 %v4931, %v5103
        %v5105 = vpop.f32.mrb[0].mxu0
        %v5106 = vadd.f32 %v4927, %v5105
        %v5107 = vpop.f32.mrb[0].mxu0
        %v5108 = vadd.f32 %v4931, %v5107
        %5109 = vmatprep.mubr.bf16.mxu0 0
        %5110 = vmatmul.mubr.bf16.gmra.mrb[0].mxu0 %v4885
        %v5111 = vpop.f32.mrb[0].mxu0
        %v5112 = vadd.f32 %v4927, %v5111
        %v5113 = vpop.f32.mrb[0].mxu0
        %v5114 = vadd.f32 %v4931, %v5113
        %v5115 = vpop.f32.mrb[0].mxu0
        %v5116 = vadd.f32 %v4927, %v5115
        %v5117 = vpop.f32.mrb[0].mxu0
        %v5118 = vadd.f32 %v4931, %v5117
        %5119 = vmatprep.mubr.bf16.mxu0 0
        %5120 = vmatmul.mubr.bf16.gmra.mrb[0].mxu0 %v4886
        %v5121 = vpop.f32.mrb[0].mxu0
        %v5122 = vadd.f32 %v4927, %v5121
        %v5123 = vpop.f32.mrb[0].mxu0
        %v5124 = vadd.f32 %v4931, %v5123
        %v5125 = vpop.f32.mrb[0].mxu0
        %v5126 = vadd.f32 %v4927, %v5125
        %v5127 = vpop.f32.mrb[0].mxu0
        %v5128 = vadd.f32 %v4931, %v5127
        %5129 = vmatprep.mubr.bf16.mxu0 0
        %5130 = vmatmul.mubr.bf16.gmra.mrb[0].mxu0 %v4887
        %v5131 = vpop.f32.mrb[0].mxu0
        %v5132 = vadd.f32 %v4927, %v5131
        %v5133 = vpop.f32.mrb[0].mxu0
        %v5134 = vadd.f32 %v4931, %v5133
        %v5135 = vpop.f32.mrb[0].mxu0
        %v5136 = vadd.f32 %v4927, %v5135
        %v5137 = vpop.f32.mrb[0].mxu0
        %v5138 = vadd.f32 %v4931, %v5137
        %5139 = vdwg.mxu0
        %5140 = vmatprep.subr.bf16.mxu0 0
        %5141 = vmatpush1.bf16.msra.mxu0 %v5021
        %5142 = vmatprep.subr.bf16.mxu0 0
        %5143 = vmatpush1.bf16.msra.mxu0 %v5024
        %5144 = vmatprep.subr.bf16.mxu0 0
        %5145 = vmatpush1.bf16.msra.mxu0 %v5027
        %5146 = vmatprep.subr.bf16.mxu0 0
        %5147 = vmatpush1.bf16.msra.mxu0 %v5030
        %5148 = vmatprep.subr.bf16.mxu0 0
        %5149 = vmatpush1.bf16.msra.mxu0 %v5033
        %5150 = vmatprep.subr.bf16.mxu0 0
        %5151 = vmatpush1.bf16.msra.mxu0 %v5036
        %5152 = vmatprep.subr.bf16.mxu0 0
        %5153 = vmatpush1.bf16.msra.mxu0 %v5039
        %5154 = vmatprep.subr.bf16.mxu0 0
        %5155 = vmatpush1.bf16.msra.mxu0 %v5042
        %5156 = vmatprep.subr.bf16.mxu0 0
        %5157 = vmatpush1.bf16.msra.mxu0 0
        %5158 = vmatprep.subr.bf16.mxu0 0
        %5159 = vmatpush1.bf16.msra.mxu0 0
        %5160 = vmatprep.subr.bf16.mxu0 0
        %5161 = vmatpush1.bf16.msra.mxu0 0
        %5162 = vmatprep.subr.bf16.mxu0 0
        %5163 = vmatpush1.bf16.msra.mxu0 0
        %5164 = vmatprep.subr.bf16.mxu0 0
        %5165 = vmatpush1.bf16.msra.mxu0 0
        %5166 = vmatprep.subr.bf16.mxu0 0
        %5167 = vmatpush1.bf16.msra.mxu0 0
        %5168 = vmatprep.subr.bf16.mxu0 0
        %5169 = vmatpush1.bf16.msra.mxu0 0
        %5170 = vmatprep.subr.bf16.mxu0 0
        %5171 = vmatpush1.bf16.msra.mxu0 0
        %5172 = vmatprep.mubr.bf16.mxu0 0
        %5173 = vmatmul.mubr.bf16.gmra.mrb[0].mxu0 %v4884
        %v5174 = vpop.f32.mrb[0].mxu0
        %v5175 = vadd.f32 %v4935, %v5174
        %v5176 = vpop.f32.mrb[0].mxu0
        %v5177 = vpop.f32.mrb[0].mxu0
        %v5178 = vadd.f32 %v4935, %v5177
        %v5179 = vpop.f32.mrb[0].mxu0
        %5180 = vmatprep.mubr.bf16.mxu0 0
        %5181 = vmatmul.mubr.bf16.gmra.mrb[0].mxu0 %v4885
        %v5182 = vpop.f32.mrb[0].mxu0
        %v5183 = vadd.f32 %v4935, %v5182
        %v5184 = vpop.f32.mrb[0].mxu0
        %v5185 = vpop.f32.mrb[0].mxu0
        %v5186 = vadd.f32 %v4935, %v5185
        %v5187 = vpop.f32.mrb[0].mxu0
        %5188 = vmatprep.mubr.bf16.mxu0 0
        %5189 = vmatmul.mubr.bf16.gmra.mrb[0].mxu0 %v4886
        %v5190 = vpop.f32.mrb[0].mxu0
        %v5191 = vadd.f32 %v4935, %v5190
        %v5192 = vpop.f32.mrb[0].mxu0
        %v5193 = vpop.f32.mrb[0].mxu0
        %v5194 = vadd.f32 %v4935, %v5193
        %v5195 = vpop.f32.mrb[0].mxu0
        %5196 = vmatprep.mubr.bf16.mxu0 0
        %5197 = vmatmul.mubr.bf16.gmra.mrb[0].mxu0 %v4887
        %v5198 = vpop.f32.mrb[0].mxu0
        %v5199 = vadd.f32 %v4935, %v5198
        %v5200 = vpop.f32.mrb[0].mxu0
        %v5201 = vpop.f32.mrb[0].mxu0
        %v5202 = vadd.f32 %v4935, %v5201
        %v5203 = vpop.f32.mrb[0].mxu0
        %5204 = vdwg.mxu0
        %v5205 = vmul.f32 %v5102, 0.17677669
        %v5206 = vmul.f32 %v5106, 0.17677669
        %v5207 = vmul.f32 %v5112, 0.17677669
        %v5208 = vmul.f32 %v5116, 0.17677669
        %v5209 = vmul.f32 %v5122, 0.17677669
        %v5210 = vmul.f32 %v5126, 0.17677669
        %v5211 = vmul.f32 %v5132, 0.17677669
        %v5212 = vmul.f32 %v5136, 0.17677669
        %v5213 = vpack.c.bf16 %v5206, %v5205
        %v5214 = vpack.c.bf16 %v5208, %v5207
        %v5215 = vpack.c.bf16 %v5210, %v5209
        %v5216 = vpack.c.bf16 %v5212, %v5211
        %v5217 = vpack.c.bf16 %v5108, %v5104
        %v5218 = vpack.c.bf16 %v5118, %v5114
        %v5219 = vpack.c.bf16 %v5128, %v5124
        %v5220 = vpack.c.bf16 %v5138, %v5134
        %v5221 = vpack.c.bf16 %v5178, %v5175
        %v5222 = vpack.c.bf16 %v5186, %v5183
        %v5223 = vpack.c.bf16 %v5194, %v5191
        %v5224 = vpack.c.bf16 %v5202, %v5199
        %v5226 = vsel %vm1123, %v5213, 0
        %v5229 = vsel %vm1123, %v5214, 0
        %v5232 = vsel %vm1123, %v5217, 0
        %v5235 = vsel %vm1123, %v5218, 0
        %5237 = vmatprep.subr.bf16.mxu0 0
        %5238 = vmatpush1.bf16.xpose.msra.mxu0 %v5232
        %5239 = vmatprep.subr.bf16.mxu0 0
        %5240 = vmatpush1.bf16.xpose.msra.mxu0 %v5235
        %5241 = vmatprep.subr.bf16.mxu0 0
        %5242 = vmatpush1.bf16.xpose.msra.mxu0 0
        %5243 = vmatprep.subr.bf16.mxu0 0
        %5244 = vmatpush1.bf16.xpose.msra.mxu0 0
        %5245 = vmatprep.subr.bf16.mxu0 0
        %5246 = vmatpush1.bf16.xpose.msra.mxu0 0
        %5247 = vmatprep.subr.bf16.mxu0 0
        %5248 = vmatpush1.bf16.xpose.msra.mxu0 0
        %5249 = vmatprep.subr.bf16.mxu0 0
        %5250 = vmatpush1.bf16.xpose.msra.mxu0 0
        %5251 = vmatprep.subr.bf16.mxu0 0
        %5252 = vmatpush1.bf16.xpose.msra.mxu0 0
        %5253 = vmatprep.subr.bf16.mxu0 0
        %5254 = vmatpush1.bf16.xpose.msra.mxu0 0
        %5255 = vmatprep.subr.bf16.mxu0 0
        %5256 = vmatpush1.bf16.xpose.msra.mxu0 0
        %5257 = vmatprep.subr.bf16.mxu0 0
        %5258 = vmatpush1.bf16.xpose.msra.mxu0 0
        %5259 = vmatprep.subr.bf16.mxu0 0
        %5260 = vmatpush1.bf16.xpose.msra.mxu0 0
        %5261 = vmatprep.subr.bf16.mxu0 0
        %5262 = vmatpush1.bf16.xpose.msra.mxu0 0
        %5263 = vmatprep.subr.bf16.mxu0 0
        %5264 = vmatpush1.bf16.xpose.msra.mxu0 0
        %5265 = vmatprep.subr.bf16.mxu0 0
        %5266 = vmatpush1.bf16.xpose.msra.mxu0 0
        %5267 = vmatprep.subr.bf16.mxu0 0
        %5268 = vmatpush1.bf16.xpose.msra.mxu0 0
        %5269 = vmatprep.mubr.bf16.mxu0 0
        %5270 = vmatmul.mubr.bf16.gmra.mrb[0].mxu0 %v5226
        %v5271 = vpop.f32.mrb[0].mxu0
        %v5272 = vadd.f32 0.0, %v5271
        %v5273 = vpop.f32.mrb[0].mxu0
        %v5274 = vpop.f32.mrb[0].mxu0
        %v5275 = vadd.f32 0.0, %v5274
        %v5276 = vpop.f32.mrb[0].mxu0
        %5277 = vmatprep.mubr.bf16.mxu0 0
        %5278 = vmatmul.mubr.bf16.gmra.mrb[0].mxu0 %v5229
        %v5279 = vpop.f32.mrb[0].mxu0
        %v5280 = vadd.f32 0.0, %v5279
        %v5281 = vpop.f32.mrb[0].mxu0
        %v5282 = vpop.f32.mrb[0].mxu0
        %v5283 = vadd.f32 0.0, %v5282
        %v5284 = vpop.f32.mrb[0].mxu0
        %5285 = vdwg.mxu0
        %v5286 = vsel %vm1123, %v5272, -inf
        %5287 = vmax.xlane.f32.xlu0 %v5286
        %v5288 = vpop.xlane.xlu0 %5287
        %v5289 = vsel %vm1123, %v5275, -inf
        %5290 = vmax.xlane.f32.xlu0 %v5289
        %v5291 = vpop.xlane.xlu0 %5290
        %v5292 = vsel %vm1123, %v5280, -inf
        %5293 = vmax.xlane.f32.xlu0 %v5292
        %v5294 = vpop.xlane.xlu0 %5293
        %v5295 = vsel %vm1123, %v5283, -inf
        %5296 = vmax.xlane.f32.xlu0 %v5295
        %v5297 = vpop.xlane.xlu0 %5296
        %v5298 = vsub.f32 %v5272, %v5288
        %v5299 = vsub.f32 %v5275, %v5291
        %v5300 = vsub.f32 %v5280, %v5294
        %v5301 = vsub.f32 %v5283, %v5297
        %v5302 = vmul.f32 %v5298, 1.442695
        %v5303 = vpow.pop %v5302
        %v5304 = vmul.f32 %v5299, 1.442695
        %v5305 = vpow.pop %v5304
        %v5306 = vmul.f32 %v5300, 1.442695
        %v5307 = vpow.pop %v5306
        %v5308 = vmul.f32 %v5301, 1.442695
        %v5309 = vpow.pop %v5308
        %v5310 = vsel %vm1123, %v5303, 0.0
        %5311 = vadd.xlane.f32.xlu0 %v5310
        %v5312 = vpop.xlane.xlu0 %5311
        %v5313 = vsel %vm1123, %v5305, 0.0
        %5314 = vadd.xlane.f32.xlu0 %v5313
        %v5315 = vpop.xlane.xlu0 %5314
        %v5316 = vsel %vm1123, %v5307, 0.0
        %5317 = vadd.xlane.f32.xlu0 %v5316
        %v5318 = vpop.xlane.xlu0 %5317
        %v5319 = vsel %vm1123, %v5309, 0.0
        %5320 = vadd.xlane.f32.xlu0 %v5319
        %v5321 = vpop.xlane.xlu0 %5320
        %v5322 = vpack.c.bf16 %v5305, %v5303
        %v5323 = vpack.c.bf16 %v5309, %v5307
        %v5325 = vsel %vm1123, %v5322, 0
        %v5328 = vsel %vm1123, %v5323, 0
        %5330 = vmatprep.subr.bf16.mxu0 0
        %5331 = vmatpush1.bf16.msra.mxu0 %v5221
        %5332 = vmatprep.subr.bf16.mxu0 0
        %5333 = vmatpush1.bf16.msra.mxu0 %v5222
        %5334 = vmatprep.subr.bf16.mxu0 0
        %5335 = vmatpush1.bf16.msra.mxu0 0
        %5336 = vmatprep.subr.bf16.mxu0 0
        %5337 = vmatpush1.bf16.msra.mxu0 0
        %5338 = vmatprep.subr.bf16.mxu0 0
        %5339 = vmatpush1.bf16.msra.mxu0 0
        %5340 = vmatprep.subr.bf16.mxu0 0
        %5341 = vmatpush1.bf16.msra.mxu0 0
        %5342 = vmatprep.subr.bf16.mxu0 0
        %5343 = vmatpush1.bf16.msra.mxu0 0
        %5344 = vmatprep.subr.bf16.mxu0 0
        %5345 = vmatpush1.bf16.msra.mxu0 0
        %5346 = vmatprep.subr.bf16.mxu0 0
        %5347 = vmatpush1.bf16.msra.mxu0 0
        %5348 = vmatprep.subr.bf16.mxu0 0
        %5349 = vmatpush1.bf16.msra.mxu0 0
        %5350 = vmatprep.subr.bf16.mxu0 0
        %5351 = vmatpush1.bf16.msra.mxu0 0
        %5352 = vmatprep.subr.bf16.mxu0 0
        %5353 = vmatpush1.bf16.msra.mxu0 0
        %5354 = vmatprep.subr.bf16.mxu0 0
        %5355 = vmatpush1.bf16.msra.mxu0 0
        %5356 = vmatprep.subr.bf16.mxu0 0
        %5357 = vmatpush1.bf16.msra.mxu0 0
        %5358 = vmatprep.subr.bf16.mxu0 0
        %5359 = vmatpush1.bf16.msra.mxu0 0
        %5360 = vmatprep.subr.bf16.mxu0 0
        %5361 = vmatpush1.bf16.msra.mxu0 0
        %5362 = vmatprep.mubr.bf16.mxu0 0
        %5363 = vmatmul.mubr.bf16.gmra.mrb[0].mxu0 %v5325
        %v5364 = vpop.f32.mrb[0].mxu0
        %v5365 = vadd.f32 0.0, %v5364
        %v5366 = vpop.f32.mrb[0].mxu0
        %v5367 = vpop.f32.mrb[0].mxu0
        %v5368 = vadd.f32 0.0, %v5367
        %v5369 = vpop.f32.mrb[0].mxu0
        %5370 = vmatprep.mubr.bf16.mxu0 0
        %5371 = vmatmul.mubr.bf16.gmra.mrb[0].mxu0 %v5328
        %v5372 = vpop.f32.mrb[0].mxu0
        %v5373 = vadd.f32 0.0, %v5372
        %v5374 = vpop.f32.mrb[0].mxu0
        %v5375 = vpop.f32.mrb[0].mxu0
        %v5376 = vadd.f32 0.0, %v5375
        %v5377 = vpop.f32.mrb[0].mxu0
        %5378 = vdwg.mxu0
        %v5379 = vrcp.pop %v5312
        %v5380 = vrcp.pop %v5315
        %v5381 = vrcp.pop %v5318
        %v5382 = vrcp.pop %v5321
        %v5383 = vmul.f32 %v5365, %v5379
        %v5384 = vmul.f32 %v5368, %v5380
        %v5385 = vmul.f32 %v5373, %v5381
        %v5386 = vmul.f32 %v5376, %v5382
        %v5387 = vpack.c.bf16 %v5384, %v5383
        %v5388 = vpack.c.bf16 %v5386, %v5385
        %s5389 = scalar_lea.vmem [#allocation11], 64
        %v5390 = vld [vmem:[%s5389] sm:$0xf]
        %v5391 = vld [vmem:[%s5389 + $0x4] sm:$0xf]
        %v5392 = vld [vmem:[%s5389 + $0x8] sm:$0xf]
        %v5393 = vld [vmem:[%s5389 + $0xc] sm:$0xf]
        %5396 = vrot.lane.b32.xlu0 %v5213, 96
        %v5397 = vpop.permute.xlu0 %5396
        %5398 = vrot.lane.b32.xlu0 %v5214, 96
        %v5399 = vpop.permute.xlu0 %5398
        %5402 = vrot.lane.b32.xlu0 %v5217, 96
        %v5403 = vpop.permute.xlu0 %5402
        %5404 = vrot.lane.b32.xlu0 %v5218, 96
        %v5405 = vpop.permute.xlu0 %5404
        %v5407 = vsel %vm1123, %v5397, 0
        %v5410 = vsel %vm1123, %v5399, 0
        %v5413 = vsel %vm1123, %v5403, 0
        %v5416 = vsel %vm1123, %v5405, 0
        %5418 = vmatprep.subr.bf16.mxu0 0
        %5419 = vmatpush1.bf16.xpose.msra.mxu0 %v5413
        %5420 = vmatprep.subr.bf16.mxu0 0
        %5421 = vmatpush1.bf16.xpose.msra.mxu0 %v5416
        %5422 = vmatprep.subr.bf16.mxu0 0
        %5423 = vmatpush1.bf16.xpose.msra.mxu0 0
        %5424 = vmatprep.subr.bf16.mxu0 0
        %5425 = vmatpush1.bf16.xpose.msra.mxu0 0
        %5426 = vmatprep.subr.bf16.mxu0 0
        %5427 = vmatpush1.bf16.xpose.msra.mxu0 0
        %5428 = vmatprep.subr.bf16.mxu0 0
        %5429 = vmatpush1.bf16.xpose.msra.mxu0 0
        %5430 = vmatprep.subr.bf16.mxu0 0
        %5431 = vmatpush1.bf16.xpose.msra.mxu0 0
        %5432 = vmatprep.subr.bf16.mxu0 0
        %5433 = vmatpush1.bf16.xpose.msra.mxu0 0
        %5434 = vmatprep.subr.bf16.mxu0 0
        %5435 = vmatpush1.bf16.xpose.msra.mxu0 0
        %5436 = vmatprep.subr.bf16.mxu0 0
        %5437 = vmatpush1.bf16.xpose.msra.mxu0 0
        %5438 = vmatprep.subr.bf16.mxu0 0
        %5439 = vmatpush1.bf16.xpose.msra.mxu0 0
        %5440 = vmatprep.subr.bf16.mxu0 0
        %5441 = vmatpush1.bf16.xpose.msra.mxu0 0
        %5442 = vmatprep.subr.bf16.mxu0 0
        %5443 = vmatpush1.bf16.xpose.msra.mxu0 0
        %5444 = vmatprep.subr.bf16.mxu0 0
        %5445 = vmatpush1.bf16.xpose.msra.mxu0 0
        %5446 = vmatprep.subr.bf16.mxu0 0
        %5447 = vmatpush1.bf16.xpose.msra.mxu0 0
        %5448 = vmatprep.subr.bf16.mxu0 0
        %5449 = vmatpush1.bf16.xpose.msra.mxu0 0
        %5450 = vmatprep.mubr.bf16.mxu0 0
        %5451 = vmatmul.mubr.bf16.gmra.mrb[0].mxu0 %v5407
        %v5452 = vpop.f32.mrb[0].mxu0
        %v5453 = vadd.f32 0.0, %v5452
        %v5454 = vpop.f32.mrb[0].mxu0
        %v5455 = vpop.f32.mrb[0].mxu0
        %v5456 = vadd.f32 0.0, %v5455
        %v5457 = vpop.f32.mrb[0].mxu0
        %5458 = vmatprep.mubr.bf16.mxu0 0
        %5459 = vmatmul.mubr.bf16.gmra.mrb[0].mxu0 %v5410
        %v5460 = vpop.f32.mrb[0].mxu0
        %v5461 = vadd.f32 0.0, %v5460
        %v5462 = vpop.f32.mrb[0].mxu0
        %v5463 = vpop.f32.mrb[0].mxu0
        %v5464 = vadd.f32 0.0, %v5463
        %v5465 = vpop.f32.mrb[0].mxu0
        %5466 = vdwg.mxu0
        %v5467 = vsel %vm1123, %v5453, -inf
        %5468 = vmax.xlane.f32.xlu0 %v5467
        %v5469 = vpop.xlane.xlu0 %5468
        %v5470 = vsel %vm1123, %v5456, -inf
        %5471 = vmax.xlane.f32.xlu0 %v5470
        %v5472 = vpop.xlane.xlu0 %5471
        %v5473 = vsel %vm1123, %v5461, -inf
        %5474 = vmax.xlane.f32.xlu0 %v5473
        %v5475 = vpop.xlane.xlu0 %5474
        %v5476 = vsel %vm1123, %v5464, -inf
        %5477 = vmax.xlane.f32.xlu0 %v5476
        %v5478 = vpop.xlane.xlu0 %5477
        %v5479 = vsub.f32 %v5453, %v5469
        %v5480 = vsub.f32 %v5456, %v5472
        %v5481 = vsub.f32 %v5461, %v5475
        %v5482 = vsub.f32 %v5464, %v5478
        %v5483 = vmul.f32 %v5479, 1.442695
        %v5484 = vpow.pop %v5483
        %v5485 = vmul.f32 %v5480, 1.442695
        %v5486 = vpow.pop %v5485
        %v5487 = vmul.f32 %v5481, 1.442695
        %v5488 = vpow.pop %v5487
        %v5489 = vmul.f32 %v5482, 1.442695
        %v5490 = vpow.pop %v5489
        %v5491 = vsel %vm1123, %v5484, 0.0
        %5492 = vadd.xlane.f32.xlu0 %v5491
        %v5493 = vpop.xlane.xlu0 %5492
        %v5494 = vsel %vm1123, %v5486, 0.0
        %5495 = vadd.xlane.f32.xlu0 %v5494
        %v5496 = vpop.xlane.xlu0 %5495
        %v5497 = vsel %vm1123, %v5488, 0.0
        %5498 = vadd.xlane.f32.xlu0 %v5497
        %v5499 = vpop.xlane.xlu0 %5498
        %v5500 = vsel %vm1123, %v5490, 0.0
        %5501 = vadd.xlane.f32.xlu0 %v5500
        %v5502 = vpop.xlane.xlu0 %5501
        %v5503 = vpack.c.bf16 %v5486, %v5484
        %v5504 = vpack.c.bf16 %v5490, %v5488
        %5507 = vrot.lane.b32.xlu0 %v5221, 96
        %v5508 = vpop.permute.xlu0 %5507
        %5509 = vrot.lane.b32.xlu0 %v5222, 96
        %v5510 = vpop.permute.xlu0 %5509
        %v5514 = vsel %vm1123, %v5503, 0
        %v5517 = vsel %vm1123, %v5504, 0
        %5519 = vmatprep.subr.bf16.mxu0 0
        %5520 = vmatpush1.bf16.msra.mxu0 %v5508
        %5521 = vmatprep.subr.bf16.mxu0 0
        %5522 = vmatpush1.bf16.msra.mxu0 %v5510
        %5523 = vmatprep.subr.bf16.mxu0 0
        %5524 = vmatpush1.bf16.msra.mxu0 0
        %5525 = vmatprep.subr.bf16.mxu0 0
        %5526 = vmatpush1.bf16.msra.mxu0 0
        %5527 = vmatprep.subr.bf16.mxu0 0
        %5528 = vmatpush1.bf16.msra.mxu0 0
        %5529 = vmatprep.subr.bf16.mxu0 0
        %5530 = vmatpush1.bf16.msra.mxu0 0
        %5531 = vmatprep.subr.bf16.mxu0 0
        %5532 = vmatpush1.bf16.msra.mxu0 0
        %5533 = vmatprep.subr.bf16.mxu0 0
        %5534 = vmatpush1.bf16.msra.mxu0 0
        %5535 = vmatprep.subr.bf16.mxu0 0
        %5536 = vmatpush1.bf16.msra.mxu0 0
        %5537 = vmatprep.subr.bf16.mxu0 0
        %5538 = vmatpush1.bf16.msra.mxu0 0
        %5539 = vmatprep.subr.bf16.mxu0 0
        %5540 = vmatpush1.bf16.msra.mxu0 0
        %5541 = vmatprep.subr.bf16.mxu0 0
        %5542 = vmatpush1.bf16.msra.mxu0 0
        %5543 = vmatprep.subr.bf16.mxu0 0
        %5544 = vmatpush1.bf16.msra.mxu0 0
        %5545 = vmatprep.subr.bf16.mxu0 0
        %5546 = vmatpush1.bf16.msra.mxu0 0
        %5547 = vmatprep.subr.bf16.mxu0 0
        %5548 = vmatpush1.bf16.msra.mxu0 0
        %5549 = vmatprep.subr.bf16.mxu0 0
        %5550 = vmatpush1.bf16.msra.mxu0 0
        %5551 = vmatprep.mubr.bf16.mxu0 0
        %5552 = vmatmul.mubr.bf16.gmra.mrb[0].mxu0 %v5514
        %v5553 = vpop.f32.mrb[0].mxu0
        %v5554 = vadd.f32 0.0, %v5553
        %v5555 = vpop.f32.mrb[0].mxu0
        %v5556 = vpop.f32.mrb[0].mxu0
        %v5557 = vadd.f32 0.0, %v5556
        %v5558 = vpop.f32.mrb[0].mxu0
        %5559 = vmatprep.mubr.bf16.mxu0 0
        %5560 = vmatmul.mubr.bf16.gmra.mrb[0].mxu0 %v5517
        %v5561 = vpop.f32.mrb[0].mxu0
        %v5562 = vadd.f32 0.0, %v5561
        %v5563 = vpop.f32.mrb[0].mxu0
        %v5564 = vpop.f32.mrb[0].mxu0
        %v5565 = vadd.f32 0.0, %v5564
        %v5566 = vpop.f32.mrb[0].mxu0
        %5567 = vdwg.mxu0
        %v5568 = vrcp.pop %v5493
        %v5569 = vrcp.pop %v5496
        %v5570 = vrcp.pop %v5499
        %v5571 = vrcp.pop %v5502
        %v5572 = vmul.f32 %v5554, %v5568
        %v5573 = vmul.f32 %v5557, %v5569
        %v5574 = vmul.f32 %v5562, %v5570
        %v5575 = vmul.f32 %v5565, %v5571
        %v5576 = vpack.c.bf16 %v5573, %v5572
        %v5577 = vpack.c.bf16 %v5575, %v5574
        %v5578 = vld [vmem:[%s5389 + $0x10] sm:$0xf]
        %v5579 = vld [vmem:[%s5389 + $0x14] sm:$0xf]
        %v5580 = vld [vmem:[%s5389 + $0x18] sm:$0xf]
        %v5581 = vld [vmem:[%s5389 + $0x1c] sm:$0xf]
        %v5586 = vunpack.c.l.b16 %v5578
        %v5587 = vunpack.c.l.b16 %v5579
        %v5588 = vunpack.c.l.b16 %v5580
        %v5589 = vunpack.c.l.b16 %v5581
        %v5590 = vpack.c.b16 %v5587, %v5586
        %v5591 = vpack.c.b16 %v5589, %v5588
        %v5595 = vsel %vm1123, %v5576, 0
        %v5598 = vsel %vm1123, %v5577, 0
        %5600 = vmatprep.subr.bf16.mxu0 0
        %5601 = vmatpush1.bf16.msra.mxu0 %v5590
        %5602 = vmatprep.subr.bf16.mxu0 0
        %5603 = vmatpush1.bf16.msra.mxu0 %v5591
        %5604 = vmatprep.subr.bf16.mxu0 0
        %5605 = vmatpush1.bf16.msra.mxu0 0
        %5606 = vmatprep.subr.bf16.mxu0 0
        %5607 = vmatpush1.bf16.msra.mxu0 0
        %5608 = vmatprep.subr.bf16.mxu0 0
        %5609 = vmatpush1.bf16.msra.mxu0 0
        %5610 = vmatprep.subr.bf16.mxu0 0
        %5611 = vmatpush1.bf16.msra.mxu0 0
        %5612 = vmatprep.subr.bf16.mxu0 0
        %5613 = vmatpush1.bf16.msra.mxu0 0
        %5614 = vmatprep.subr.bf16.mxu0 0
        %5615 = vmatpush1.bf16.msra.mxu0 0
        %5616 = vmatprep.subr.bf16.mxu0 0
        %5617 = vmatpush1.bf16.msra.mxu0 0
        %5618 = vmatprep.subr.bf16.mxu0 0
        %5619 = vmatpush1.bf16.msra.mxu0 0
        %5620 = vmatprep.subr.bf16.mxu0 0
        %5621 = vmatpush1.bf16.msra.mxu0 0
        %5622 = vmatprep.subr.bf16.mxu0 0
        %5623 = vmatpush1.bf16.msra.mxu0 0
        %5624 = vmatprep.subr.bf16.mxu0 0
        %5625 = vmatpush1.bf16.msra.mxu0 0
        %5626 = vmatprep.subr.bf16.mxu0 0
        %5627 = vmatpush1.bf16.msra.mxu0 0
        %5628 = vmatprep.subr.bf16.mxu0 0
        %5629 = vmatpush1.bf16.msra.mxu0 0
        %5630 = vmatprep.subr.bf16.mxu0 0
        %5631 = vmatpush1.bf16.msra.mxu0 0
        %5632 = vmatprep.mubr.bf16.mxu0 0
        %5633 = vmatmul.mubr.bf16.gmra.mrb[0].mxu0 %v5595
        %v5634 = vpop.f32.mrb[0].mxu0
        %v5635 = vadd.f32 0.0, %v5634
        %v5636 = vpop.f32.mrb[0].mxu0
        %v5637 = vpop.f32.mrb[0].mxu0
        %v5638 = vadd.f32 0.0, %v5637
        %v5639 = vpop.f32.mrb[0].mxu0
        %5640 = vmatprep.mubr.bf16.mxu0 0
        %5641 = vmatmul.mubr.bf16.gmra.mrb[0].mxu0 %v5598
        %v5642 = vpop.f32.mrb[0].mxu0
        %v5643 = vadd.f32 0.0, %v5642
        %v5644 = vpop.f32.mrb[0].mxu0
        %v5645 = vpop.f32.mrb[0].mxu0
        %v5646 = vadd.f32 0.0, %v5645
        %v5647 = vpop.f32.mrb[0].mxu0
        %5648 = vdwg.mxu0
        %v5653 = vunpack.c.l.b16 %v5390
        %v5654 = vunpack.c.l.b16 %v5391
        %v5655 = vunpack.c.l.b16 %v5392
        %v5656 = vunpack.c.l.b16 %v5393
        %v5657 = vpack.c.b16 %v5654, %v5653
        %v5658 = vpack.c.b16 %v5656, %v5655
        %v5662 = vsel %vm1123, %v5387, 0
        %v5665 = vsel %vm1123, %v5388, 0
        %5667 = vmatprep.subr.bf16.mxu0 0
        %5668 = vmatpush1.bf16.msra.mxu0 %v5657
        %5669 = vmatprep.subr.bf16.mxu0 0
        %5670 = vmatpush1.bf16.msra.mxu0 %v5658
        %5671 = vmatprep.subr.bf16.mxu0 0
        %5672 = vmatpush1.bf16.msra.mxu0 0
        %5673 = vmatprep.subr.bf16.mxu0 0
        %5674 = vmatpush1.bf16.msra.mxu0 0
        %5675 = vmatprep.subr.bf16.mxu0 0
        %5676 = vmatpush1.bf16.msra.mxu0 0
        %5677 = vmatprep.subr.bf16.mxu0 0
        %5678 = vmatpush1.bf16.msra.mxu0 0
        %5679 = vmatprep.subr.bf16.mxu0 0
        %5680 = vmatpush1.bf16.msra.mxu0 0
        %5681 = vmatprep.subr.bf16.mxu0 0
        %5682 = vmatpush1.bf16.msra.mxu0 0
        %5683 = vmatprep.subr.bf16.mxu0 0
        %5684 = vmatpush1.bf16.msra.mxu0 0
        %5685 = vmatprep.subr.bf16.mxu0 0
        %5686 = vmatpush1.bf16.msra.mxu0 0
        %5687 = vmatprep.subr.bf16.mxu0 0
        %5688 = vmatpush1.bf16.msra.mxu0 0
        %5689 = vmatprep.subr.bf16.mxu0 0
        %5690 = vmatpush1.bf16.msra.mxu0 0
        %5691 = vmatprep.subr.bf16.mxu0 0
        %5692 = vmatpush1.bf16.msra.mxu0 0
        %5693 = vmatprep.subr.bf16.mxu0 0
        %5694 = vmatpush1.bf16.msra.mxu0 0
        %5695 = vmatprep.subr.bf16.mxu0 0
        %5696 = vmatpush1.bf16.msra.mxu0 0
        %5697 = vmatprep.subr.bf16.mxu0 0
        %5698 = vmatpush1.bf16.msra.mxu0 0
        %5699 = vmatprep.mubr.bf16.mxu0 0
        %5700 = vmatmul.mubr.bf16.gmra.mrb[0].mxu0 %v5662
        %v5701 = vpop.f32.mrb[0].mxu0
        %v5702 = vadd.f32 %v5635, %v5701
        %v5703 = vpop.f32.mrb[0].mxu0
        %v5704 = vpop.f32.mrb[0].mxu0
        %v5705 = vadd.f32 %v5638, %v5704
        %v5706 = vpop.f32.mrb[0].mxu0
        %5707 = vmatprep.mubr.bf16.mxu0 0
        %5708 = vmatmul.mubr.bf16.gmra.mrb[0].mxu0 %v5665
        %v5709 = vpop.f32.mrb[0].mxu0
        %v5710 = vadd.f32 %v5643, %v5709
        %v5711 = vpop.f32.mrb[0].mxu0
        %v5712 = vpop.f32.mrb[0].mxu0
        %v5713 = vadd.f32 %v5646, %v5712
        %v5714 = vpop.f32.mrb[0].mxu0
        %5715 = vdwg.mxu0
        %5716 = vrot.lane.b32.xlu0 %v5213, 64
        %v5717 = vpop.permute.xlu0 %5716
        %5718 = vrot.lane.b32.xlu0 %v5214, 64
        %v5719 = vpop.permute.xlu0 %5718
        %5720 = vrot.lane.b32.xlu0 %v5217, 64
        %v5721 = vpop.permute.xlu0 %5720
        %5722 = vrot.lane.b32.xlu0 %v5218, 64
        %v5723 = vpop.permute.xlu0 %5722
        %v5725 = vsel %vm1123, %v5717, 0
        %v5728 = vsel %vm1123, %v5719, 0
        %v5731 = vsel %vm1123, %v5721, 0
        %v5734 = vsel %vm1123, %v5723, 0
        %5736 = vmatprep.subr.bf16.mxu0 0
        %5737 = vmatpush1.bf16.xpose.msra.mxu0 %v5731
        %5738 = vmatprep.subr.bf16.mxu0 0
        %5739 = vmatpush1.bf16.xpose.msra.mxu0 %v5734
        %5740 = vmatprep.subr.bf16.mxu0 0
        %5741 = vmatpush1.bf16.xpose.msra.mxu0 0
        %5742 = vmatprep.subr.bf16.mxu0 0
        %5743 = vmatpush1.bf16.xpose.msra.mxu0 0
        %5744 = vmatprep.subr.bf16.mxu0 0
        %5745 = vmatpush1.bf16.xpose.msra.mxu0 0
        %5746 = vmatprep.subr.bf16.mxu0 0
        %5747 = vmatpush1.bf16.xpose.msra.mxu0 0
        %5748 = vmatprep.subr.bf16.mxu0 0
        %5749 = vmatpush1.bf16.xpose.msra.mxu0 0
        %5750 = vmatprep.subr.bf16.mxu0 0
        %5751 = vmatpush1.bf16.xpose.msra.mxu0 0
        %5752 = vmatprep.subr.bf16.mxu0 0
        %5753 = vmatpush1.bf16.xpose.msra.mxu0 0
        %5754 = vmatprep.subr.bf16.mxu0 0
        %5755 = vmatpush1.bf16.xpose.msra.mxu0 0
        %5756 = vmatprep.subr.bf16.mxu0 0
        %5757 = vmatpush1.bf16.xpose.msra.mxu0 0
        %5758 = vmatprep.subr.bf16.mxu0 0
        %5759 = vmatpush1.bf16.xpose.msra.mxu0 0
        %5760 = vmatprep.subr.bf16.mxu0 0
        %5761 = vmatpush1.bf16.xpose.msra.mxu0 0
        %5762 = vmatprep.subr.bf16.mxu0 0
        %5763 = vmatpush1.bf16.xpose.msra.mxu0 0
        %5764 = vmatprep.subr.bf16.mxu0 0
        %5765 = vmatpush1.bf16.xpose.msra.mxu0 0
        %5766 = vmatprep.subr.bf16.mxu0 0
        %5767 = vmatpush1.bf16.xpose.msra.mxu0 0
        %5768 = vmatprep.mubr.bf16.mxu0 0
        %5769 = vmatmul.mubr.bf16.gmra.mrb[0].mxu0 %v5725
        %v5770 = vpop.f32.mrb[0].mxu0
        %v5771 = vadd.f32 0.0, %v5770
        %v5772 = vpop.f32.mrb[0].mxu0
        %v5773 = vpop.f32.mrb[0].mxu0
        %v5774 = vadd.f32 0.0, %v5773
        %v5775 = vpop.f32.mrb[0].mxu0
        %5776 = vmatprep.mubr.bf16.mxu0 0
        %5777 = vmatmul.mubr.bf16.gmra.mrb[0].mxu0 %v5728
        %v5778 = vpop.f32.mrb[0].mxu0
        %v5779 = vadd.f32 0.0, %v5778
        %v5780 = vpop.f32.mrb[0].mxu0
        %v5781 = vpop.f32.mrb[0].mxu0
        %v5782 = vadd.f32 0.0, %v5781
        %v5783 = vpop.f32.mrb[0].mxu0
        %5784 = vdwg.mxu0
        %v5785 = vsel %vm1123, %v5771, -inf
        %5786 = vmax.xlane.f32.xlu0 %v5785
        %v5787 = vpop.xlane.xlu0 %5786
        %v5788 = vsel %vm1123, %v5774, -inf
        %5789 = vmax.xlane.f32.xlu0 %v5788
        %v5790 = vpop.xlane.xlu0 %5789
        %v5791 = vsel %vm1123, %v5779, -inf
        %5792 = vmax.xlane.f32.xlu0 %v5791
        %v5793 = vpop.xlane.xlu0 %5792
        %v5794 = vsel %vm1123, %v5782, -inf
        %5795 = vmax.xlane.f32.xlu0 %v5794
        %v5796 = vpop.xlane.xlu0 %5795
        %v5797 = vsub.f32 %v5771, %v5787
        %v5798 = vsub.f32 %v5774, %v5790
        %v5799 = vsub.f32 %v5779, %v5793
        %v5800 = vsub.f32 %v5782, %v5796
        %v5801 = vmul.f32 %v5797, 1.442695
        %v5802 = vpow.pop %v5801
        %v5803 = vmul.f32 %v5798, 1.442695
        %v5804 = vpow.pop %v5803
        %v5805 = vmul.f32 %v5799, 1.442695
        %v5806 = vpow.pop %v5805
        %v5807 = vmul.f32 %v5800, 1.442695
        %v5808 = vpow.pop %v5807
        %v5809 = vsel %vm1123, %v5802, 0.0
        %5810 = vadd.xlane.f32.xlu0 %v5809
        %v5811 = vpop.xlane.xlu0 %5810
        %v5812 = vsel %vm1123, %v5804, 0.0
        %5813 = vadd.xlane.f32.xlu0 %v5812
        %v5814 = vpop.xlane.xlu0 %5813
        %v5815 = vsel %vm1123, %v5806, 0.0
        %5816 = vadd.xlane.f32.xlu0 %v5815
        %v5817 = vpop.xlane.xlu0 %5816
        %v5818 = vsel %vm1123, %v5808, 0.0
        %5819 = vadd.xlane.f32.xlu0 %v5818
        %v5820 = vpop.xlane.xlu0 %5819
        %v5821 = vpack.c.bf16 %v5804, %v5802
        %v5822 = vpack.c.bf16 %v5808, %v5806
        %5823 = vrot.lane.b32.xlu0 %v5221, 64
        %v5824 = vpop.permute.xlu0 %5823
        %5825 = vrot.lane.b32.xlu0 %v5222, 64
        %v5826 = vpop.permute.xlu0 %5825
        %v5830 = vsel %vm1123, %v5821, 0
        %v5833 = vsel %vm1123, %v5822, 0
        %5835 = vmatprep.subr.bf16.mxu0 0
        %5836 = vmatpush1.bf16.msra.mxu0 %v5824
        %5837 = vmatprep.subr.bf16.mxu0 0
        %5838 = vmatpush1.bf16.msra.mxu0 %v5826
        %5839 = vmatprep.subr.bf16.mxu0 0
        %5840 = vmatpush1.bf16.msra.mxu0 0
        %5841 = vmatprep.subr.bf16.mxu0 0
        %5842 = vmatpush1.bf16.msra.mxu0 0
        %5843 = vmatprep.subr.bf16.mxu0 0
        %5844 = vmatpush1.bf16.msra.mxu0 0
        %5845 = vmatprep.subr.bf16.mxu0 0
        %5846 = vmatpush1.bf16.msra.mxu0 0
        %5847 = vmatprep.subr.bf16.mxu0 0
        %5848 = vmatpush1.bf16.msra.mxu0 0
        %5849 = vmatprep.subr.bf16.mxu0 0
        %5850 = vmatpush1.bf16.msra.mxu0 0
        %5851 = vmatprep.subr.bf16.mxu0 0
        %5852 = vmatpush1.bf16.msra.mxu0 0
        %5853 = vmatprep.subr.bf16.mxu0 0
        %5854 = vmatpush1.bf16.msra.mxu0 0
        %5855 = vmatprep.subr.bf16.mxu0 0
        %5856 = vmatpush1.bf16.msra.mxu0 0
        %5857 = vmatprep.subr.bf16.mxu0 0
        %5858 = vmatpush1.bf16.msra.mxu0 0
        %5859 = vmatprep.subr.bf16.mxu0 0
        %5860 = vmatpush1.bf16.msra.mxu0 0
        %5861 = vmatprep.subr.bf16.mxu0 0
        %5862 = vmatpush1.bf16.msra.mxu0 0
        %5863 = vmatprep.subr.bf16.mxu0 0
        %5864 = vmatpush1.bf16.msra.mxu0 0
        %5865 = vmatprep.subr.bf16.mxu0 0
        %5866 = vmatpush1.bf16.msra.mxu0 0
        %5867 = vmatprep.mubr.bf16.mxu0 0
        %5868 = vmatmul.mubr.bf16.gmra.mrb[0].mxu0 %v5830
        %v5869 = vpop.f32.mrb[0].mxu0
        %v5870 = vadd.f32 0.0, %v5869
        %v5871 = vpop.f32.mrb[0].mxu0
        %v5872 = vpop.f32.mrb[0].mxu0
        %v5873 = vadd.f32 0.0, %v5872
        %v5874 = vpop.f32.mrb[0].mxu0
        %5875 = vmatprep.mubr.bf16.mxu0 0
        %5876 = vmatmul.mubr.bf16.gmra.mrb[0].mxu0 %v5833
        %v5877 = vpop.f32.mrb[0].mxu0
        %v5878 = vadd.f32 0.0, %v5877
        %v5879 = vpop.f32.mrb[0].mxu0
        %v5880 = vpop.f32.mrb[0].mxu0
        %v5881 = vadd.f32 0.0, %v5880
        %v5882 = vpop.f32.mrb[0].mxu0
        %5883 = vdwg.mxu0
        %v5884 = vrcp.pop %v5811
        %v5885 = vrcp.pop %v5814
        %v5886 = vrcp.pop %v5817
        %v5887 = vrcp.pop %v5820
        %v5888 = vmul.f32 %v5870, %v5884
        %v5889 = vmul.f32 %v5873, %v5885
        %v5890 = vmul.f32 %v5878, %v5886
        %v5891 = vmul.f32 %v5881, %v5887
        %v5892 = vpack.c.bf16 %v5889, %v5888
        %v5893 = vpack.c.bf16 %v5891, %v5890
        %v5894 = vld [vmem:[%s5389 + $0x20] sm:$0xf]
        %v5895 = vld [vmem:[%s5389 + $0x24] sm:$0xf]
        %v5896 = vld [vmem:[%s5389 + $0x28] sm:$0xf]
        %v5897 = vld [vmem:[%s5389 + $0x2c] sm:$0xf]
        %v5902 = vunpack.c.l.b16 %v5894
        %v5903 = vunpack.c.l.b16 %v5895
        %v5904 = vunpack.c.l.b16 %v5896
        %v5905 = vunpack.c.l.b16 %v5897
        %v5906 = vpack.c.b16 %v5903, %v5902
        %v5907 = vpack.c.b16 %v5905, %v5904
        %v5911 = vsel %vm1123, %v5892, 0
        %v5914 = vsel %vm1123, %v5893, 0
        %5916 = vmatprep.subr.bf16.mxu0 0
        %5917 = vmatpush1.bf16.msra.mxu0 %v5906
        %5918 = vmatprep.subr.bf16.mxu0 0
        %5919 = vmatpush1.bf16.msra.mxu0 %v5907
        %5920 = vmatprep.subr.bf16.mxu0 0
        %5921 = vmatpush1.bf16.msra.mxu0 0
        %5922 = vmatprep.subr.bf16.mxu0 0
        %5923 = vmatpush1.bf16.msra.mxu0 0
        %5924 = vmatprep.subr.bf16.mxu0 0
        %5925 = vmatpush1.bf16.msra.mxu0 0
        %5926 = vmatprep.subr.bf16.mxu0 0
        %5927 = vmatpush1.bf16.msra.mxu0 0
        %5928 = vmatprep.subr.bf16.mxu0 0
        %5929 = vmatpush1.bf16.msra.mxu0 0
        %5930 = vmatprep.subr.bf16.mxu0 0
        %5931 = vmatpush1.bf16.msra.mxu0 0
        %5932 = vmatprep.subr.bf16.mxu0 0
        %5933 = vmatpush1.bf16.msra.mxu0 0
        %5934 = vmatprep.subr.bf16.mxu0 0
        %5935 = vmatpush1.bf16.msra.mxu0 0
        %5936 = vmatprep.subr.bf16.mxu0 0
        %5937 = vmatpush1.bf16.msra.mxu0 0
        %5938 = vmatprep.subr.bf16.mxu0 0
        %5939 = vmatpush1.bf16.msra.mxu0 0
        %5940 = vmatprep.subr.bf16.mxu0 0
        %5941 = vmatpush1.bf16.msra.mxu0 0
        %5942 = vmatprep.subr.bf16.mxu0 0
        %5943 = vmatpush1.bf16.msra.mxu0 0
        %5944 = vmatprep.subr.bf16.mxu0 0
        %5945 = vmatpush1.bf16.msra.mxu0 0
        %5946 = vmatprep.subr.bf16.mxu0 0
        %5947 = vmatpush1.bf16.msra.mxu0 0
        %5948 = vmatprep.mubr.bf16.mxu0 0
        %5949 = vmatmul.mubr.bf16.gmra.mrb[0].mxu0 %v5911
        %v5950 = vpop.f32.mrb[0].mxu0
        %v5951 = vadd.f32 0.0, %v5950
        %v5952 = vpop.f32.mrb[0].mxu0
        %v5953 = vpop.f32.mrb[0].mxu0
        %v5954 = vadd.f32 0.0, %v5953
        %v5955 = vpop.f32.mrb[0].mxu0
        %5956 = vmatprep.mubr.bf16.mxu0 0
        %5957 = vmatmul.mubr.bf16.gmra.mrb[0].mxu0 %v5914
        %v5958 = vpop.f32.mrb[0].mxu0
        %v5959 = vadd.f32 0.0, %v5958
        %v5960 = vpop.f32.mrb[0].mxu0
        %v5961 = vpop.f32.mrb[0].mxu0
        %v5962 = vadd.f32 0.0, %v5961
        %v5963 = vpop.f32.mrb[0].mxu0
        %5964 = vdwg.mxu0
        %v5965 = vadd.f32 %v5702, %v5951
        %v5966 = vadd.f32 %v5705, %v5954
        %v5967 = vadd.f32 %v5710, %v5959
        %v5968 = vadd.f32 %v5713, %v5962
        %5969 = vrot.lane.b32.xlu0 %v5213, 32
        %v5970 = vpop.permute.xlu0 %5969
        %5971 = vrot.lane.b32.xlu0 %v5214, 32
        %v5972 = vpop.permute.xlu0 %5971
        %5973 = vrot.lane.b32.xlu0 %v5217, 32
        %v5974 = vpop.permute.xlu0 %5973
        %5975 = vrot.lane.b32.xlu0 %v5218, 32
        %v5976 = vpop.permute.xlu0 %5975
        %v5978 = vsel %vm1123, %v5970, 0
        %v5981 = vsel %vm1123, %v5972, 0
        %v5984 = vsel %vm1123, %v5974, 0
        %v5987 = vsel %vm1123, %v5976, 0
        %5989 = vmatprep.subr.bf16.mxu0 0
        %5990 = vmatpush1.bf16.xpose.msra.mxu0 %v5984
        %5991 = vmatprep.subr.bf16.mxu0 0
        %5992 = vmatpush1.bf16.xpose.msra.mxu0 %v5987
        %5993 = vmatprep.subr.bf16.mxu0 0
        %5994 = vmatpush1.bf16.xpose.msra.mxu0 0
        %5995 = vmatprep.subr.bf16.mxu0 0
        %5996 = vmatpush1.bf16.xpose.msra.mxu0 0
        %5997 = vmatprep.subr.bf16.mxu0 0
        %5998 = vmatpush1.bf16.xpose.msra.mxu0 0
        %5999 = vmatprep.subr.bf16.mxu0 0
        %6000 = vmatpush1.bf16.xpose.msra.mxu0 0
        %6001 = vmatprep.subr.bf16.mxu0 0
        %6002 = vmatpush1.bf16.xpose.msra.mxu0 0
        %6003 = vmatprep.subr.bf16.mxu0 0
        %6004 = vmatpush1.bf16.xpose.msra.mxu0 0
        %6005 = vmatprep.subr.bf16.mxu0 0
        %6006 = vmatpush1.bf16.xpose.msra.mxu0 0
        %6007 = vmatprep.subr.bf16.mxu0 0
        %6008 = vmatpush1.bf16.xpose.msra.mxu0 0
        %6009 = vmatprep.subr.bf16.mxu0 0
        %6010 = vmatpush1.bf16.xpose.msra.mxu0 0
        %6011 = vmatprep.subr.bf16.mxu0 0
        %6012 = vmatpush1.bf16.xpose.msra.mxu0 0
        %6013 = vmatprep.subr.bf16.mxu0 0
        %6014 = vmatpush1.bf16.xpose.msra.mxu0 0
        %6015 = vmatprep.subr.bf16.mxu0 0
        %6016 = vmatpush1.bf16.xpose.msra.mxu0 0
        %6017 = vmatprep.subr.bf16.mxu0 0
        %6018 = vmatpush1.bf16.xpose.msra.mxu0 0
        %6019 = vmatprep.subr.bf16.mxu0 0
        %6020 = vmatpush1.bf16.xpose.msra.mxu0 0
        %6021 = vmatprep.mubr.bf16.mxu0 0
        %6022 = vmatmul.mubr.bf16.gmra.mrb[0].mxu0 %v5978
        %v6023 = vpop.f32.mrb[0].mxu0
        %v6024 = vadd.f32 0.0, %v6023
        %v6025 = vpop.f32.mrb[0].mxu0
        %v6026 = vpop.f32.mrb[0].mxu0
        %v6027 = vadd.f32 0.0, %v6026
        %v6028 = vpop.f32.mrb[0].mxu0
        %6029 = vmatprep.mubr.bf16.mxu0 0
        %6030 = vmatmul.mubr.bf16.gmra.mrb[0].mxu0 %v5981
        %v6031 = vpop.f32.mrb[0].mxu0
        %v6032 = vadd.f32 0.0, %v6031
        %v6033 = vpop.f32.mrb[0].mxu0
        %v6034 = vpop.f32.mrb[0].mxu0
        %v6035 = vadd.f32 0.0, %v6034
        %v6036 = vpop.f32.mrb[0].mxu0
        %6037 = vdwg.mxu0
        %v6038 = vsel %vm1123, %v6024, -inf
        %6039 = vmax.xlane.f32.xlu0 %v6038
        %v6040 = vpop.xlane.xlu0 %6039
        %v6041 = vsel %vm1123, %v6027, -inf
        %6042 = vmax.xlane.f32.xlu0 %v6041
        %v6043 = vpop.xlane.xlu0 %6042
        %v6044 = vsel %vm1123, %v6032, -inf
        %6045 = vmax.xlane.f32.xlu0 %v6044
        %v6046 = vpop.xlane.xlu0 %6045
        %v6047 = vsel %vm1123, %v6035, -inf
        %6048 = vmax.xlane.f32.xlu0 %v6047
        %v6049 = vpop.xlane.xlu0 %6048
        %v6050 = vsub.f32 %v6024, %v6040
        %v6051 = vsub.f32 %v6027, %v6043
        %v6052 = vsub.f32 %v6032, %v6046
        %v6053 = vsub.f32 %v6035, %v6049
        %v6054 = vmul.f32 %v6050, 1.442695
        %v6055 = vpow.pop %v6054
        %v6056 = vmul.f32 %v6051, 1.442695
        %v6057 = vpow.pop %v6056
        %v6058 = vmul.f32 %v6052, 1.442695
        %v6059 = vpow.pop %v6058
        %v6060 = vmul.f32 %v6053, 1.442695
        %v6061 = vpow.pop %v6060
        %v6062 = vsel %vm1123, %v6055, 0.0
        %6063 = vadd.xlane.f32.xlu0 %v6062
        %v6064 = vpop.xlane.xlu0 %6063
        %v6065 = vsel %vm1123, %v6057, 0.0
        %6066 = vadd.xlane.f32.xlu0 %v6065
        %v6067 = vpop.xlane.xlu0 %6066
        %v6068 = vsel %vm1123, %v6059, 0.0
        %6069 = vadd.xlane.f32.xlu0 %v6068
        %v6070 = vpop.xlane.xlu0 %6069
        %v6071 = vsel %vm1123, %v6061, 0.0
        %6072 = vadd.xlane.f32.xlu0 %v6071
        %v6073 = vpop.xlane.xlu0 %6072
        %v6074 = vpack.c.bf16 %v6057, %v6055
        %v6075 = vpack.c.bf16 %v6061, %v6059
        %6076 = vrot.lane.b32.xlu0 %v5221, 32
        %v6077 = vpop.permute.xlu0 %6076
        %6078 = vrot.lane.b32.xlu0 %v5222, 32
        %v6079 = vpop.permute.xlu0 %6078
        %v6083 = vsel %vm1123, %v6074, 0
        %v6086 = vsel %vm1123, %v6075, 0
        %6088 = vmatprep.subr.bf16.mxu0 0
        %6089 = vmatpush1.bf16.msra.mxu0 %v6077
        %6090 = vmatprep.subr.bf16.mxu0 0
        %6091 = vmatpush1.bf16.msra.mxu0 %v6079
        %6092 = vmatprep.subr.bf16.mxu0 0
        %6093 = vmatpush1.bf16.msra.mxu0 0
        %6094 = vmatprep.subr.bf16.mxu0 0
        %6095 = vmatpush1.bf16.msra.mxu0 0
        %6096 = vmatprep.subr.bf16.mxu0 0
        %6097 = vmatpush1.bf16.msra.mxu0 0
        %6098 = vmatprep.subr.bf16.mxu0 0
        %6099 = vmatpush1.bf16.msra.mxu0 0
        %6100 = vmatprep.subr.bf16.mxu0 0
        %6101 = vmatpush1.bf16.msra.mxu0 0
        %6102 = vmatprep.subr.bf16.mxu0 0
        %6103 = vmatpush1.bf16.msra.mxu0 0
        %6104 = vmatprep.subr.bf16.mxu0 0
        %6105 = vmatpush1.bf16.msra.mxu0 0
        %6106 = vmatprep.subr.bf16.mxu0 0
        %6107 = vmatpush1.bf16.msra.mxu0 0
        %6108 = vmatprep.subr.bf16.mxu0 0
        %6109 = vmatpush1.bf16.msra.mxu0 0
        %6110 = vmatprep.subr.bf16.mxu0 0
        %6111 = vmatpush1.bf16.msra.mxu0 0
        %6112 = vmatprep.subr.bf16.mxu0 0
        %6113 = vmatpush1.bf16.msra.mxu0 0
        %6114 = vmatprep.subr.bf16.mxu0 0
        %6115 = vmatpush1.bf16.msra.mxu0 0
        %6116 = vmatprep.subr.bf16.mxu0 0
        %6117 = vmatpush1.bf16.msra.mxu0 0
        %6118 = vmatprep.subr.bf16.mxu0 0
        %6119 = vmatpush1.bf16.msra.mxu0 0
        %6120 = vmatprep.mubr.bf16.mxu0 0
        %6121 = vmatmul.mubr.bf16.gmra.mrb[0].mxu0 %v6083
        %v6122 = vpop.f32.mrb[0].mxu0
        %v6123 = vadd.f32 0.0, %v6122
        %v6124 = vpop.f32.mrb[0].mxu0
        %v6125 = vpop.f32.mrb[0].mxu0
        %v6126 = vadd.f32 0.0, %v6125
        %v6127 = vpop.f32.mrb[0].mxu0
        %6128 = vmatprep.mubr.bf16.mxu0 0
        %6129 = vmatmul.mubr.bf16.gmra.mrb[0].mxu0 %v6086
        %v6130 = vpop.f32.mrb[0].mxu0
        %v6131 = vadd.f32 0.0, %v6130
        %v6132 = vpop.f32.mrb[0].mxu0
        %v6133 = vpop.f32.mrb[0].mxu0
        %v6134 = vadd.f32 0.0, %v6133
        %v6135 = vpop.f32.mrb[0].mxu0
        %6136 = vdwg.mxu0
        %v6137 = vrcp.pop %v6064
        %v6138 = vrcp.pop %v6067
        %v6139 = vrcp.pop %v6070
        %v6140 = vrcp.pop %v6073
        %v6141 = vmul.f32 %v6123, %v6137
        %v6142 = vmul.f32 %v6126, %v6138
        %v6143 = vmul.f32 %v6131, %v6139
        %v6144 = vmul.f32 %v6134, %v6140
        %v6145 = vpack.c.bf16 %v6142, %v6141
        %v6146 = vpack.c.bf16 %v6144, %v6143
        %v6147 = vld [vmem:[%s5389 + $0x30] sm:$0xf]
        %v6148 = vld [vmem:[%s5389 + $0x34] sm:$0xf]
        %v6149 = vld [vmem:[%s5389 + $0x38] sm:$0xf]
        %v6150 = vld [vmem:[%s5389 + $0x3c] sm:$0xf]
        %v6155 = vunpack.c.l.b16 %v6147
        %v6156 = vunpack.c.l.b16 %v6148
        %v6157 = vunpack.c.l.b16 %v6149
        %v6158 = vunpack.c.l.b16 %v6150
        %v6159 = vpack.c.b16 %v6156, %v6155
        %v6160 = vpack.c.b16 %v6158, %v6157
        %v6164 = vsel %vm1123, %v6145, 0
        %v6167 = vsel %vm1123, %v6146, 0
        %6169 = vmatprep.subr.bf16.mxu0 0
        %6170 = vmatpush1.bf16.msra.mxu0 %v6159
        %6171 = vmatprep.subr.bf16.mxu0 0
        %6172 = vmatpush1.bf16.msra.mxu0 %v6160
        %6173 = vmatprep.subr.bf16.mxu0 0
        %6174 = vmatpush1.bf16.msra.mxu0 0
        %6175 = vmatprep.subr.bf16.mxu0 0
        %6176 = vmatpush1.bf16.msra.mxu0 0
        %6177 = vmatprep.subr.bf16.mxu0 0
        %6178 = vmatpush1.bf16.msra.mxu0 0
        %6179 = vmatprep.subr.bf16.mxu0 0
        %6180 = vmatpush1.bf16.msra.mxu0 0
        %6181 = vmatprep.subr.bf16.mxu0 0
        %6182 = vmatpush1.bf16.msra.mxu0 0
        %6183 = vmatprep.subr.bf16.mxu0 0
        %6184 = vmatpush1.bf16.msra.mxu0 0
        %6185 = vmatprep.subr.bf16.mxu0 0
        %6186 = vmatpush1.bf16.msra.mxu0 0
        %6187 = vmatprep.subr.bf16.mxu0 0
        %6188 = vmatpush1.bf16.msra.mxu0 0
        %6189 = vmatprep.subr.bf16.mxu0 0
        %6190 = vmatpush1.bf16.msra.mxu0 0
        %6191 = vmatprep.subr.bf16.mxu0 0
        %6192 = vmatpush1.bf16.msra.mxu0 0
        %6193 = vmatprep.subr.bf16.mxu0 0
        %6194 = vmatpush1.bf16.msra.mxu0 0
        %6195 = vmatprep.subr.bf16.mxu0 0
        %6196 = vmatpush1.bf16.msra.mxu0 0
        %6197 = vmatprep.subr.bf16.mxu0 0
        %6198 = vmatpush1.bf16.msra.mxu0 0
        %6199 = vmatprep.subr.bf16.mxu0 0
        %6200 = vmatpush1.bf16.msra.mxu0 0
        %6201 = vmatprep.mubr.bf16.mxu0 0
        %6202 = vmatmul.mubr.bf16.gmra.mrb[0].mxu0 %v6164
        %v6203 = vpop.f32.mrb[0].mxu0
        %v6204 = vadd.f32 0.0, %v6203
        %v6205 = vpop.f32.mrb[0].mxu0
        %v6206 = vpop.f32.mrb[0].mxu0
        %v6207 = vadd.f32 0.0, %v6206
        %v6208 = vpop.f32.mrb[0].mxu0
        %6209 = vmatprep.mubr.bf16.mxu0 0
        %6210 = vmatmul.mubr.bf16.gmra.mrb[0].mxu0 %v6167
        %v6211 = vpop.f32.mrb[0].mxu0
        %v6212 = vadd.f32 0.0, %v6211
        %v6213 = vpop.f32.mrb[0].mxu0
        %v6214 = vpop.f32.mrb[0].mxu0
        %v6215 = vadd.f32 0.0, %v6214
        %v6216 = vpop.f32.mrb[0].mxu0
        %6217 = vdwg.mxu0
        %v6218 = vadd.f32 %v5965, %v6204
        %v6219 = vadd.f32 %v5966, %v6207
        %v6220 = vadd.f32 %v5967, %v6212
        %v6221 = vadd.f32 %v5968, %v6215
        %v6223 = vsel %vm1123, %v5215, 0
        %v6226 = vsel %vm1123, %v5216, 0
        %v6229 = vsel %vm1123, %v5219, 0
        %v6232 = vsel %vm1123, %v5220, 0
        %6234 = vmatprep.subr.bf16.mxu0 0
        %6235 = vmatpush1.bf16.xpose.msra.mxu0 %v6229
        %6236 = vmatprep.subr.bf16.mxu0 0
        %6237 = vmatpush1.bf16.xpose.msra.mxu0 %v6232
        %6238 = vmatprep.subr.bf16.mxu0 0
        %6239 = vmatpush1.bf16.xpose.msra.mxu0 0
        %6240 = vmatprep.subr.bf16.mxu0 0
        %6241 = vmatpush1.bf16.xpose.msra.mxu0 0
        %6242 = vmatprep.subr.bf16.mxu0 0
        %6243 = vmatpush1.bf16.xpose.msra.mxu0 0
        %6244 = vmatprep.subr.bf16.mxu0 0
        %6245 = vmatpush1.bf16.xpose.msra.mxu0 0
        %6246 = vmatprep.subr.bf16.mxu0 0
        %6247 = vmatpush1.bf16.xpose.msra.mxu0 0
        %6248 = vmatprep.subr.bf16.mxu0 0
        %6249 = vmatpush1.bf16.xpose.msra.mxu0 0
        %6250 = vmatprep.subr.bf16.mxu0 0
        %6251 = vmatpush1.bf16.xpose.msra.mxu0 0
        %6252 = vmatprep.subr.bf16.mxu0 0
        %6253 = vmatpush1.bf16.xpose.msra.mxu0 0
        %6254 = vmatprep.subr.bf16.mxu0 0
        %6255 = vmatpush1.bf16.xpose.msra.mxu0 0
        %6256 = vmatprep.subr.bf16.mxu0 0
        %6257 = vmatpush1.bf16.xpose.msra.mxu0 0
        %6258 = vmatprep.subr.bf16.mxu0 0
        %6259 = vmatpush1.bf16.xpose.msra.mxu0 0
        %6260 = vmatprep.subr.bf16.mxu0 0
        %6261 = vmatpush1.bf16.xpose.msra.mxu0 0
        %6262 = vmatprep.subr.bf16.mxu0 0
        %6263 = vmatpush1.bf16.xpose.msra.mxu0 0
        %6264 = vmatprep.subr.bf16.mxu0 0
        %6265 = vmatpush1.bf16.xpose.msra.mxu0 0
        %6266 = vmatprep.mubr.bf16.mxu0 0
        %6267 = vmatmul.mubr.bf16.gmra.mrb[0].mxu0 %v6223
        %v6268 = vpop.f32.mrb[0].mxu0
        %v6269 = vadd.f32 0.0, %v6268
        %v6270 = vpop.f32.mrb[0].mxu0
        %v6271 = vpop.f32.mrb[0].mxu0
        %v6272 = vadd.f32 0.0, %v6271
        %v6273 = vpop.f32.mrb[0].mxu0
        %6274 = vmatprep.mubr.bf16.mxu0 0
        %6275 = vmatmul.mubr.bf16.gmra.mrb[0].mxu0 %v6226
        %v6276 = vpop.f32.mrb[0].mxu0
        %v6277 = vadd.f32 0.0, %v6276
        %v6278 = vpop.f32.mrb[0].mxu0
        %v6279 = vpop.f32.mrb[0].mxu0
        %v6280 = vadd.f32 0.0, %v6279
        %v6281 = vpop.f32.mrb[0].mxu0
        %6282 = vdwg.mxu0
        %v6283 = vsel %vm1123, %v6269, -inf
        %6284 = vmax.xlane.f32.xlu0 %v6283
        %v6285 = vpop.xlane.xlu0 %6284
        %v6286 = vsel %vm1123, %v6272, -inf
        %6287 = vmax.xlane.f32.xlu0 %v6286
        %v6288 = vpop.xlane.xlu0 %6287
        %v6289 = vsel %vm1123, %v6277, -inf
        %6290 = vmax.xlane.f32.xlu0 %v6289
        %v6291 = vpop.xlane.xlu0 %6290
        %v6292 = vsel %vm1123, %v6280, -inf
        %6293 = vmax.xlane.f32.xlu0 %v6292
        %v6294 = vpop.xlane.xlu0 %6293
        %v6295 = vsub.f32 %v6269, %v6285
        %v6296 = vsub.f32 %v6272, %v6288
        %v6297 = vsub.f32 %v6277, %v6291
        %v6298 = vsub.f32 %v6280, %v6294
        %v6299 = vmul.f32 %v6295, 1.442695
        %v6300 = vpow.pop %v6299
        %v6301 = vmul.f32 %v6296, 1.442695
        %v6302 = vpow.pop %v6301
        %v6303 = vmul.f32 %v6297, 1.442695
        %v6304 = vpow.pop %v6303
        %v6305 = vmul.f32 %v6298, 1.442695
        %v6306 = vpow.pop %v6305
        %v6307 = vsel %vm1123, %v6300, 0.0
        %6308 = vadd.xlane.f32.xlu0 %v6307
        %v6309 = vpop.xlane.xlu0 %6308
        %v6310 = vsel %vm1123, %v6302, 0.0
        %6311 = vadd.xlane.f32.xlu0 %v6310
        %v6312 = vpop.xlane.xlu0 %6311
        %v6313 = vsel %vm1123, %v6304, 0.0
        %6314 = vadd.xlane.f32.xlu0 %v6313
        %v6315 = vpop.xlane.xlu0 %6314
        %v6316 = vsel %vm1123, %v6306, 0.0
        %6317 = vadd.xlane.f32.xlu0 %v6316
        %v6318 = vpop.xlane.xlu0 %6317
        %v6319 = vpack.c.bf16 %v6302, %v6300
        %v6320 = vpack.c.bf16 %v6306, %v6304
        %v6322 = vsel %vm1123, %v6319, 0
        %v6325 = vsel %vm1123, %v6320, 0
        %6327 = vmatprep.subr.bf16.mxu0 0
        %6328 = vmatpush1.bf16.msra.mxu0 %v5223
        %6329 = vmatprep.subr.bf16.mxu0 0
        %6330 = vmatpush1.bf16.msra.mxu0 %v5224
        %6331 = vmatprep.subr.bf16.mxu0 0
        %6332 = vmatpush1.bf16.msra.mxu0 0
        %6333 = vmatprep.subr.bf16.mxu0 0
        %6334 = vmatpush1.bf16.msra.mxu0 0
        %6335 = vmatprep.subr.bf16.mxu0 0
        %6336 = vmatpush1.bf16.msra.mxu0 0
        %6337 = vmatprep.subr.bf16.mxu0 0
        %6338 = vmatpush1.bf16.msra.mxu0 0
        %6339 = vmatprep.subr.bf16.mxu0 0
        %6340 = vmatpush1.bf16.msra.mxu0 0
        %6341 = vmatprep.subr.bf16.mxu0 0
        %6342 = vmatpush1.bf16.msra.mxu0 0
        %6343 = vmatprep.subr.bf16.mxu0 0
        %6344 = vmatpush1.bf16.msra.mxu0 0
        %6345 = vmatprep.subr.bf16.mxu0 0
        %6346 = vmatpush1.bf16.msra.mxu0 0
        %6347 = vmatprep.subr.bf16.mxu0 0
        %6348 = vmatpush1.bf16.msra.mxu0 0
        %6349 = vmatprep.subr.bf16.mxu0 0
        %6350 = vmatpush1.bf16.msra.mxu0 0
        %6351 = vmatprep.subr.bf16.mxu0 0
        %6352 = vmatpush1.bf16.msra.mxu0 0
        %6353 = vmatprep.subr.bf16.mxu0 0
        %6354 = vmatpush1.bf16.msra.mxu0 0
        %6355 = vmatprep.subr.bf16.mxu0 0
        %6356 = vmatpush1.bf16.msra.mxu0 0
        %6357 = vmatprep.subr.bf16.mxu0 0
        %6358 = vmatpush1.bf16.msra.mxu0 0
        %6359 = vmatprep.mubr.bf16.mxu0 0
        %6360 = vmatmul.mubr.bf16.gmra.mrb[0].mxu0 %v6322
        %v6361 = vpop.f32.mrb[0].mxu0
        %v6362 = vadd.f32 0.0, %v6361
        %v6363 = vpop.f32.mrb[0].mxu0
        %v6364 = vpop.f32.mrb[0].mxu0
        %v6365 = vadd.f32 0.0, %v6364
        %v6366 = vpop.f32.mrb[0].mxu0
        %6367 = vmatprep.mubr.bf16.mxu0 0
        %6368 = vmatmul.mubr.bf16.gmra.mrb[0].mxu0 %v6325
        %v6369 = vpop.f32.mrb[0].mxu0
        %v6370 = vadd.f32 0.0, %v6369
        %v6371 = vpop.f32.mrb[0].mxu0
        %v6372 = vpop.f32.mrb[0].mxu0
        %v6373 = vadd.f32 0.0, %v6372
        %v6374 = vpop.f32.mrb[0].mxu0
        %6375 = vdwg.mxu0
        %v6376 = vrcp.pop %v6309
        %v6377 = vrcp.pop %v6312
        %v6378 = vrcp.pop %v6315
        %v6379 = vrcp.pop %v6318
        %v6380 = vmul.f32 %v6362, %v6376
        %v6381 = vmul.f32 %v6365, %v6377
        %v6382 = vmul.f32 %v6370, %v6378
        %v6383 = vmul.f32 %v6373, %v6379
        %v6384 = vpack.c.bf16 %v6381, %v6380
        %v6385 = vpack.c.bf16 %v6383, %v6382
        %6388 = vrot.lane.b32.xlu0 %v5215, 96
        %v6389 = vpop.permute.xlu0 %6388
        %6390 = vrot.lane.b32.xlu0 %v5216, 96
        %v6391 = vpop.permute.xlu0 %6390
        %6394 = vrot.lane.b32.xlu0 %v5219, 96
        %v6395 = vpop.permute.xlu0 %6394
        %6396 = vrot.lane.b32.xlu0 %v5220, 96
        %v6397 = vpop.permute.xlu0 %6396
        %v6399 = vsel %vm1123, %v6389, 0
        %v6402 = vsel %vm1123, %v6391, 0
        %v6405 = vsel %vm1123, %v6395, 0
        %v6408 = vsel %vm1123, %v6397, 0
        %6410 = vmatprep.subr.bf16.mxu0 0
        %6411 = vmatpush1.bf16.xpose.msra.mxu0 %v6405
        %6412 = vmatprep.subr.bf16.mxu0 0
        %6413 = vmatpush1.bf16.xpose.msra.mxu0 %v6408
        %6414 = vmatprep.subr.bf16.mxu0 0
        %6415 = vmatpush1.bf16.xpose.msra.mxu0 0
        %6416 = vmatprep.subr.bf16.mxu0 0
        %6417 = vmatpush1.bf16.xpose.msra.mxu0 0
        %6418 = vmatprep.subr.bf16.mxu0 0
        %6419 = vmatpush1.bf16.xpose.msra.mxu0 0
        %6420 = vmatprep.subr.bf16.mxu0 0
        %6421 = vmatpush1.bf16.xpose.msra.mxu0 0
        %6422 = vmatprep.subr.bf16.mxu0 0
        %6423 = vmatpush1.bf16.xpose.msra.mxu0 0
        %6424 = vmatprep.subr.bf16.mxu0 0
        %6425 = vmatpush1.bf16.xpose.msra.mxu0 0
        %6426 = vmatprep.subr.bf16.mxu0 0
        %6427 = vmatpush1.bf16.xpose.msra.mxu0 0
        %6428 = vmatprep.subr.bf16.mxu0 0
        %6429 = vmatpush1.bf16.xpose.msra.mxu0 0
        %6430 = vmatprep.subr.bf16.mxu0 0
        %6431 = vmatpush1.bf16.xpose.msra.mxu0 0
        %6432 = vmatprep.subr.bf16.mxu0 0
        %6433 = vmatpush1.bf16.xpose.msra.mxu0 0
        %6434 = vmatprep.subr.bf16.mxu0 0
        %6435 = vmatpush1.bf16.xpose.msra.mxu0 0
        %6436 = vmatprep.subr.bf16.mxu0 0
        %6437 = vmatpush1.bf16.xpose.msra.mxu0 0
        %6438 = vmatprep.subr.bf16.mxu0 0
        %6439 = vmatpush1.bf16.xpose.msra.mxu0 0
        %6440 = vmatprep.subr.bf16.mxu0 0
        %6441 = vmatpush1.bf16.xpose.msra.mxu0 0
        %6442 = vmatprep.mubr.bf16.mxu0 0
        %6443 = vmatmul.mubr.bf16.gmra.mrb[0].mxu0 %v6399
        %v6444 = vpop.f32.mrb[0].mxu0
        %v6445 = vadd.f32 0.0, %v6444
        %v6446 = vpop.f32.mrb[0].mxu0
        %v6447 = vpop.f32.mrb[0].mxu0
        %v6448 = vadd.f32 0.0, %v6447
        %v6449 = vpop.f32.mrb[0].mxu0
        %6450 = vmatprep.mubr.bf16.mxu0 0
        %6451 = vmatmul.mubr.bf16.gmra.mrb[0].mxu0 %v6402
        %v6452 = vpop.f32.mrb[0].mxu0
        %v6453 = vadd.f32 0.0, %v6452
        %v6454 = vpop.f32.mrb[0].mxu0
        %v6455 = vpop.f32.mrb[0].mxu0
        %v6456 = vadd.f32 0.0, %v6455
        %v6457 = vpop.f32.mrb[0].mxu0
        %6458 = vdwg.mxu0
        %v6459 = vsel %vm1123, %v6445, -inf
        %6460 = vmax.xlane.f32.xlu0 %v6459
        %v6461 = vpop.xlane.xlu0 %6460
        %v6462 = vsel %vm1123, %v6448, -inf
        %6463 = vmax.xlane.f32.xlu0 %v6462
        %v6464 = vpop.xlane.xlu0 %6463
        %v6465 = vsel %vm1123, %v6453, -inf
        %6466 = vmax.xlane.f32.xlu0 %v6465
        %v6467 = vpop.xlane.xlu0 %6466
        %v6468 = vsel %vm1123, %v6456, -inf
        %6469 = vmax.xlane.f32.xlu0 %v6468
        %v6470 = vpop.xlane.xlu0 %6469
        %v6471 = vsub.f32 %v6445, %v6461
        %v6472 = vsub.f32 %v6448, %v6464
        %v6473 = vsub.f32 %v6453, %v6467
        %v6474 = vsub.f32 %v6456, %v6470
        %v6475 = vmul.f32 %v6471, 1.442695
        %v6476 = vpow.pop %v6475
        %v6477 = vmul.f32 %v6472, 1.442695
        %v6478 = vpow.pop %v6477
        %v6479 = vmul.f32 %v6473, 1.442695
        %v6480 = vpow.pop %v6479
        %v6481 = vmul.f32 %v6474, 1.442695
        %v6482 = vpow.pop %v6481
        %v6483 = vsel %vm1123, %v6476, 0.0
        %6484 = vadd.xlane.f32.xlu0 %v6483
        %v6485 = vpop.xlane.xlu0 %6484
        %v6486 = vsel %vm1123, %v6478, 0.0
        %6487 = vadd.xlane.f32.xlu0 %v6486
        %v6488 = vpop.xlane.xlu0 %6487
        %v6489 = vsel %vm1123, %v6480, 0.0
        %6490 = vadd.xlane.f32.xlu0 %v6489
        %v6491 = vpop.xlane.xlu0 %6490
        %v6492 = vsel %vm1123, %v6482, 0.0
        %6493 = vadd.xlane.f32.xlu0 %v6492
        %v6494 = vpop.xlane.xlu0 %6493
        %v6495 = vpack.c.bf16 %v6478, %v6476
        %v6496 = vpack.c.bf16 %v6482, %v6480
        %6499 = vrot.lane.b32.xlu0 %v5223, 96
        %v6500 = vpop.permute.xlu0 %6499
        %6501 = vrot.lane.b32.xlu0 %v5224, 96
        %v6502 = vpop.permute.xlu0 %6501
        %v6506 = vsel %vm1123, %v6495, 0
        %v6509 = vsel %vm1123, %v6496, 0
        %6511 = vmatprep.subr.bf16.mxu0 0
        %6512 = vmatpush1.bf16.msra.mxu0 %v6500
        %6513 = vmatprep.subr.bf16.mxu0 0
        %6514 = vmatpush1.bf16.msra.mxu0 %v6502
        %6515 = vmatprep.subr.bf16.mxu0 0
        %6516 = vmatpush1.bf16.msra.mxu0 0
        %6517 = vmatprep.subr.bf16.mxu0 0
        %6518 = vmatpush1.bf16.msra.mxu0 0
        %6519 = vmatprep.subr.bf16.mxu0 0
        %6520 = vmatpush1.bf16.msra.mxu0 0
        %6521 = vmatprep.subr.bf16.mxu0 0
        %6522 = vmatpush1.bf16.msra.mxu0 0
        %6523 = vmatprep.subr.bf16.mxu0 0
        %6524 = vmatpush1.bf16.msra.mxu0 0
        %6525 = vmatprep.subr.bf16.mxu0 0
        %6526 = vmatpush1.bf16.msra.mxu0 0
        %6527 = vmatprep.subr.bf16.mxu0 0
        %6528 = vmatpush1.bf16.msra.mxu0 0
        %6529 = vmatprep.subr.bf16.mxu0 0
        %6530 = vmatpush1.bf16.msra.mxu0 0
        %6531 = vmatprep.subr.bf16.mxu0 0
        %6532 = vmatpush1.bf16.msra.mxu0 0
        %6533 = vmatprep.subr.bf16.mxu0 0
        %6534 = vmatpush1.bf16.msra.mxu0 0
        %6535 = vmatprep.subr.bf16.mxu0 0
        %6536 = vmatpush1.bf16.msra.mxu0 0
        %6537 = vmatprep.subr.bf16.mxu0 0
        %6538 = vmatpush1.bf16.msra.mxu0 0
        %6539 = vmatprep.subr.bf16.mxu0 0
        %6540 = vmatpush1.bf16.msra.mxu0 0
        %6541 = vmatprep.subr.bf16.mxu0 0
        %6542 = vmatpush1.bf16.msra.mxu0 0
        %6543 = vmatprep.mubr.bf16.mxu0 0
        %6544 = vmatmul.mubr.bf16.gmra.mrb[0].mxu0 %v6506
        %v6545 = vpop.f32.mrb[0].mxu0
        %v6546 = vadd.f32 0.0, %v6545
        %v6547 = vpop.f32.mrb[0].mxu0
        %v6548 = vpop.f32.mrb[0].mxu0
        %v6549 = vadd.f32 0.0, %v6548
        %v6550 = vpop.f32.mrb[0].mxu0
        %6551 = vmatprep.mubr.bf16.mxu0 0
        %6552 = vmatmul.mubr.bf16.gmra.mrb[0].mxu0 %v6509
        %v6553 = vpop.f32.mrb[0].mxu0
        %v6554 = vadd.f32 0.0, %v6553
        %v6555 = vpop.f32.mrb[0].mxu0
        %v6556 = vpop.f32.mrb[0].mxu0
        %v6557 = vadd.f32 0.0, %v6556
        %v6558 = vpop.f32.mrb[0].mxu0
        %6559 = vdwg.mxu0
        %v6560 = vrcp.pop %v6485
        %v6561 = vrcp.pop %v6488
        %v6562 = vrcp.pop %v6491
        %v6563 = vrcp.pop %v6494
        %v6564 = vmul.f32 %v6546, %v6560
        %v6565 = vmul.f32 %v6549, %v6561
        %v6566 = vmul.f32 %v6554, %v6562
        %v6567 = vmul.f32 %v6557, %v6563
        %v6568 = vpack.c.bf16 %v6565, %v6564
        %v6569 = vpack.c.bf16 %v6567, %v6566
        %v6571 = vsel %vm1123, %v6568, 0
        %v6574 = vsel %vm1123, %v6569, 0
        %6576 = vmatprep.subr.bf16.mxu0 0
        %6577 = vmatpush1.bf16.msra.mxu0 %v5590
        %6578 = vmatprep.subr.bf16.mxu0 0
        %6579 = vmatpush1.bf16.msra.mxu0 %v5591
        %6580 = vmatprep.subr.bf16.mxu0 0
        %6581 = vmatpush1.bf16.msra.mxu0 0
        %6582 = vmatprep.subr.bf16.mxu0 0
        %6583 = vmatpush1.bf16.msra.mxu0 0
        %6584 = vmatprep.subr.bf16.mxu0 0
        %6585 = vmatpush1.bf16.msra.mxu0 0
        %6586 = vmatprep.subr.bf16.mxu0 0
        %6587 = vmatpush1.bf16.msra.mxu0 0
        %6588 = vmatprep.subr.bf16.mxu0 0
        %6589 = vmatpush1.bf16.msra.mxu0 0
        %6590 = vmatprep.subr.bf16.mxu0 0
        %6591 = vmatpush1.bf16.msra.mxu0 0
        %6592 = vmatprep.subr.bf16.mxu0 0
        %6593 = vmatpush1.bf16.msra.mxu0 0
        %6594 = vmatprep.subr.bf16.mxu0 0
        %6595 = vmatpush1.bf16.msra.mxu0 0
        %6596 = vmatprep.subr.bf16.mxu0 0
        %6597 = vmatpush1.bf16.msra.mxu0 0
        %6598 = vmatprep.subr.bf16.mxu0 0
        %6599 = vmatpush1.bf16.msra.mxu0 0
        %6600 = vmatprep.subr.bf16.mxu0 0
        %6601 = vmatpush1.bf16.msra.mxu0 0
        %6602 = vmatprep.subr.bf16.mxu0 0
        %6603 = vmatpush1.bf16.msra.mxu0 0
        %6604 = vmatprep.subr.bf16.mxu0 0
        %6605 = vmatpush1.bf16.msra.mxu0 0
        %6606 = vmatprep.subr.bf16.mxu0 0
        %6607 = vmatpush1.bf16.msra.mxu0 0
        %6608 = vmatprep.mubr.bf16.mxu0 0
        %6609 = vmatmul.mubr.bf16.gmra.mrb[0].mxu0 %v6571
        %v6610 = vpop.f32.mrb[0].mxu0
        %v6611 = vadd.f32 0.0, %v6610
        %v6612 = vpop.f32.mrb[0].mxu0
        %v6613 = vpop.f32.mrb[0].mxu0
        %v6614 = vadd.f32 0.0, %v6613
        %v6615 = vpop.f32.mrb[0].mxu0
        %6616 = vmatprep.mubr.bf16.mxu0 0
        %6617 = vmatmul.mubr.bf16.gmra.mrb[0].mxu0 %v6574
        %v6618 = vpop.f32.mrb[0].mxu0
        %v6619 = vadd.f32 0.0, %v6618
        %v6620 = vpop.f32.mrb[0].mxu0
        %v6621 = vpop.f32.mrb[0].mxu0
        %v6622 = vadd.f32 0.0, %v6621
        %v6623 = vpop.f32.mrb[0].mxu0
        %6624 = vdwg.mxu0
        %v6626 = vsel %vm1123, %v6384, 0
        %v6629 = vsel %vm1123, %v6385, 0
        %6631 = vmatprep.subr.bf16.mxu0 0
        %6632 = vmatpush1.bf16.msra.mxu0 %v5657
        %6633 = vmatprep.subr.bf16.mxu0 0
        %6634 = vmatpush1.bf16.msra.mxu0 %v5658
        %6635 = vmatprep.subr.bf16.mxu0 0
        %6636 = vmatpush1.bf16.msra.mxu0 0
        %6637 = vmatprep.subr.bf16.mxu0 0
        %6638 = vmatpush1.bf16.msra.mxu0 0
        %6639 = vmatprep.subr.bf16.mxu0 0
        %6640 = vmatpush1.bf16.msra.mxu0 0
        %6641 = vmatprep.subr.bf16.mxu0 0
        %6642 = vmatpush1.bf16.msra.mxu0 0
        %6643 = vmatprep.subr.bf16.mxu0 0
        %6644 = vmatpush1.bf16.msra.mxu0 0
        %6645 = vmatprep.subr.bf16.mxu0 0
        %6646 = vmatpush1.bf16.msra.mxu0 0
        %6647 = vmatprep.subr.bf16.mxu0 0
        %6648 = vmatpush1.bf16.msra.mxu0 0
        %6649 = vmatprep.subr.bf16.mxu0 0
        %6650 = vmatpush1.bf16.msra.mxu0 0
        %6651 = vmatprep.subr.bf16.mxu0 0
        %6652 = vmatpush1.bf16.msra.mxu0 0
        %6653 = vmatprep.subr.bf16.mxu0 0
        %6654 = vmatpush1.bf16.msra.mxu0 0
        %6655 = vmatprep.subr.bf16.mxu0 0
        %6656 = vmatpush1.bf16.msra.mxu0 0
        %6657 = vmatprep.subr.bf16.mxu0 0
        %6658 = vmatpush1.bf16.msra.mxu0 0
        %6659 = vmatprep.subr.bf16.mxu0 0
        %6660 = vmatpush1.bf16.msra.mxu0 0
        %6661 = vmatprep.subr.bf16.mxu0 0
        %6662 = vmatpush1.bf16.msra.mxu0 0
        %6663 = vmatprep.mubr.bf16.mxu0 0
        %6664 = vmatmul.mubr.bf16.gmra.mrb[0].mxu0 %v6626
        %v6665 = vpop.f32.mrb[0].mxu0
        %v6666 = vadd.f32 %v6611, %v6665
        %v6667 = vpop.f32.mrb[0].mxu0
        %v6668 = vpop.f32.mrb[0].mxu0
        %v6669 = vadd.f32 %v6614, %v6668
        %v6670 = vpop.f32.mrb[0].mxu0
        %6671 = vmatprep.mubr.bf16.mxu0 0
        %6672 = vmatmul.mubr.bf16.gmra.mrb[0].mxu0 %v6629
        %v6673 = vpop.f32.mrb[0].mxu0
        %v6674 = vadd.f32 %v6619, %v6673
        %v6675 = vpop.f32.mrb[0].mxu0
        %v6676 = vpop.f32.mrb[0].mxu0
        %v6677 = vadd.f32 %v6622, %v6676
        %v6678 = vpop.f32.mrb[0].mxu0
        %6679 = vdwg.mxu0
        %6680 = vrot.lane.b32.xlu0 %v5215, 64
        %v6681 = vpop.permute.xlu0 %6680
        %6682 = vrot.lane.b32.xlu0 %v5216, 64
        %v6683 = vpop.permute.xlu0 %6682
        %6684 = vrot.lane.b32.xlu0 %v5219, 64
        %v6685 = vpop.permute.xlu0 %6684
        %6686 = vrot.lane.b32.xlu0 %v5220, 64
        %v6687 = vpop.permute.xlu0 %6686
        %v6689 = vsel %vm1123, %v6681, 0
        %v6692 = vsel %vm1123, %v6683, 0
        %v6695 = vsel %vm1123, %v6685, 0
        %v6698 = vsel %vm1123, %v6687, 0
        %6700 = vmatprep.subr.bf16.mxu0 0
        %6701 = vmatpush1.bf16.xpose.msra.mxu0 %v6695
        %6702 = vmatprep.subr.bf16.mxu0 0
        %6703 = vmatpush1.bf16.xpose.msra.mxu0 %v6698
        %6704 = vmatprep.subr.bf16.mxu0 0
        %6705 = vmatpush1.bf16.xpose.msra.mxu0 0
        %6706 = vmatprep.subr.bf16.mxu0 0
        %6707 = vmatpush1.bf16.xpose.msra.mxu0 0
        %6708 = vmatprep.subr.bf16.mxu0 0
        %6709 = vmatpush1.bf16.xpose.msra.mxu0 0
        %6710 = vmatprep.subr.bf16.mxu0 0
        %6711 = vmatpush1.bf16.xpose.msra.mxu0 0
        %6712 = vmatprep.subr.bf16.mxu0 0
        %6713 = vmatpush1.bf16.xpose.msra.mxu0 0
        %6714 = vmatprep.subr.bf16.mxu0 0
        %6715 = vmatpush1.bf16.xpose.msra.mxu0 0
        %6716 = vmatprep.subr.bf16.mxu0 0
        %6717 = vmatpush1.bf16.xpose.msra.mxu0 0
        %6718 = vmatprep.subr.bf16.mxu0 0
        %6719 = vmatpush1.bf16.xpose.msra.mxu0 0
        %6720 = vmatprep.subr.bf16.mxu0 0
        %6721 = vmatpush1.bf16.xpose.msra.mxu0 0
        %6722 = vmatprep.subr.bf16.mxu0 0
        %6723 = vmatpush1.bf16.xpose.msra.mxu0 0
        %6724 = vmatprep.subr.bf16.mxu0 0
        %6725 = vmatpush1.bf16.xpose.msra.mxu0 0
        %6726 = vmatprep.subr.bf16.mxu0 0
        %6727 = vmatpush1.bf16.xpose.msra.mxu0 0
        %6728 = vmatprep.subr.bf16.mxu0 0
        %6729 = vmatpush1.bf16.xpose.msra.mxu0 0
        %6730 = vmatprep.subr.bf16.mxu0 0
        %6731 = vmatpush1.bf16.xpose.msra.mxu0 0
        %6732 = vmatprep.mubr.bf16.mxu0 0
        %6733 = vmatmul.mubr.bf16.gmra.mrb[0].mxu0 %v6689
        %v6734 = vpop.f32.mrb[0].mxu0
        %v6735 = vadd.f32 0.0, %v6734
        %v6736 = vpop.f32.mrb[0].mxu0
        %v6737 = vpop.f32.mrb[0].mxu0
        %v6738 = vadd.f32 0.0, %v6737
        %v6739 = vpop.f32.mrb[0].mxu0
        %6740 = vmatprep.mubr.bf16.mxu0 0
        %6741 = vmatmul.mubr.bf16.gmra.mrb[0].mxu0 %v6692
        %v6742 = vpop.f32.mrb[0].mxu0
        %v6743 = vadd.f32 0.0, %v6742
        %v6744 = vpop.f32.mrb[0].mxu0
        %v6745 = vpop.f32.mrb[0].mxu0
        %v6746 = vadd.f32 0.0, %v6745
        %v6747 = vpop.f32.mrb[0].mxu0
        %6748 = vdwg.mxu0
        %v6749 = vsel %vm1123, %v6735, -inf
        %6750 = vmax.xlane.f32.xlu0 %v6749
        %v6751 = vpop.xlane.xlu0 %6750
        %v6752 = vsel %vm1123, %v6738, -inf
        %6753 = vmax.xlane.f32.xlu0 %v6752
        %v6754 = vpop.xlane.xlu0 %6753
        %v6755 = vsel %vm1123, %v6743, -inf
        %6756 = vmax.xlane.f32.xlu0 %v6755
        %v6757 = vpop.xlane.xlu0 %6756
        %v6758 = vsel %vm1123, %v6746, -inf
        %6759 = vmax.xlane.f32.xlu0 %v6758
        %v6760 = vpop.xlane.xlu0 %6759
        %v6761 = vsub.f32 %v6735, %v6751
        %v6762 = vsub.f32 %v6738, %v6754
        %v6763 = vsub.f32 %v6743, %v6757
        %v6764 = vsub.f32 %v6746, %v6760
        %v6765 = vmul.f32 %v6761, 1.442695
        %v6766 = vpow.pop %v6765
        %v6767 = vmul.f32 %v6762, 1.442695
        %v6768 = vpow.pop %v6767
        %v6769 = vmul.f32 %v6763, 1.442695
        %v6770 = vpow.pop %v6769
        %v6771 = vmul.f32 %v6764, 1.442695
        %v6772 = vpow.pop %v6771
        %v6773 = vsel %vm1123, %v6766, 0.0
        %6774 = vadd.xlane.f32.xlu0 %v6773
        %v6775 = vpop.xlane.xlu0 %6774
        %v6776 = vsel %vm1123, %v6768, 0.0
        %6777 = vadd.xlane.f32.xlu0 %v6776
        %v6778 = vpop.xlane.xlu0 %6777
        %v6779 = vsel %vm1123, %v6770, 0.0
        %6780 = vadd.xlane.f32.xlu0 %v6779
        %v6781 = vpop.xlane.xlu0 %6780
        %v6782 = vsel %vm1123, %v6772, 0.0
        %6783 = vadd.xlane.f32.xlu0 %v6782
        %v6784 = vpop.xlane.xlu0 %6783
        %v6785 = vpack.c.bf16 %v6768, %v6766
        %v6786 = vpack.c.bf16 %v6772, %v6770
        %6787 = vrot.lane.b32.xlu0 %v5223, 64
        %v6788 = vpop.permute.xlu0 %6787
        %6789 = vrot.lane.b32.xlu0 %v5224, 64
        %v6790 = vpop.permute.xlu0 %6789
        %v6794 = vsel %vm1123, %v6785, 0
        %v6797 = vsel %vm1123, %v6786, 0
        %6799 = vmatprep.subr.bf16.mxu0 0
        %6800 = vmatpush1.bf16.msra.mxu0 %v6788
        %6801 = vmatprep.subr.bf16.mxu0 0
        %6802 = vmatpush1.bf16.msra.mxu0 %v6790
        %6803 = vmatprep.subr.bf16.mxu0 0
        %6804 = vmatpush1.bf16.msra.mxu0 0
        %6805 = vmatprep.subr.bf16.mxu0 0
        %6806 = vmatpush1.bf16.msra.mxu0 0
        %6807 = vmatprep.subr.bf16.mxu0 0
        %6808 = vmatpush1.bf16.msra.mxu0 0
        %6809 = vmatprep.subr.bf16.mxu0 0
        %6810 = vmatpush1.bf16.msra.mxu0 0
        %6811 = vmatprep.subr.bf16.mxu0 0
        %6812 = vmatpush1.bf16.msra.mxu0 0
        %6813 = vmatprep.subr.bf16.mxu0 0
        %6814 = vmatpush1.bf16.msra.mxu0 0
        %6815 = vmatprep.subr.bf16.mxu0 0
        %6816 = vmatpush1.bf16.msra.mxu0 0
        %6817 = vmatprep.subr.bf16.mxu0 0
        %6818 = vmatpush1.bf16.msra.mxu0 0
        %6819 = vmatprep.subr.bf16.mxu0 0
        %6820 = vmatpush1.bf16.msra.mxu0 0
        %6821 = vmatprep.subr.bf16.mxu0 0
        %6822 = vmatpush1.bf16.msra.mxu0 0
        %6823 = vmatprep.subr.bf16.mxu0 0
        %6824 = vmatpush1.bf16.msra.mxu0 0
        %6825 = vmatprep.subr.bf16.mxu0 0
        %6826 = vmatpush1.bf16.msra.mxu0 0
        %6827 = vmatprep.subr.bf16.mxu0 0
        %6828 = vmatpush1.bf16.msra.mxu0 0
        %6829 = vmatprep.subr.bf16.mxu0 0
        %6830 = vmatpush1.bf16.msra.mxu0 0
        %6831 = vmatprep.mubr.bf16.mxu0 0
        %6832 = vmatmul.mubr.bf16.gmra.mrb[0].mxu0 %v6794
        %v6833 = vpop.f32.mrb[0].mxu0
        %v6834 = vadd.f32 0.0, %v6833
        %v6835 = vpop.f32.mrb[0].mxu0
        %v6836 = vpop.f32.mrb[0].mxu0
        %v6837 = vadd.f32 0.0, %v6836
        %v6838 = vpop.f32.mrb[0].mxu0
        %6839 = vmatprep.mubr.bf16.mxu0 0
        %6840 = vmatmul.mubr.bf16.gmra.mrb[0].mxu0 %v6797
        %v6841 = vpop.f32.mrb[0].mxu0
        %v6842 = vadd.f32 0.0, %v6841
        %v6843 = vpop.f32.mrb[0].mxu0
        %v6844 = vpop.f32.mrb[0].mxu0
        %v6845 = vadd.f32 0.0, %v6844
        %v6846 = vpop.f32.mrb[0].mxu0
        %6847 = vdwg.mxu0
        %v6848 = vrcp.pop %v6775
        %v6849 = vrcp.pop %v6778
        %v6850 = vrcp.pop %v6781
        %v6851 = vrcp.pop %v6784
        %v6852 = vmul.f32 %v6834, %v6848
        %v6853 = vmul.f32 %v6837, %v6849
        %v6854 = vmul.f32 %v6842, %v6850
        %v6855 = vmul.f32 %v6845, %v6851
        %v6856 = vpack.c.bf16 %v6853, %v6852
        %v6857 = vpack.c.bf16 %v6855, %v6854
        %v6859 = vsel %vm1123, %v6856, 0
        %v6862 = vsel %vm1123, %v6857, 0
        %6864 = vmatprep.subr.bf16.mxu0 0
        %6865 = vmatpush1.bf16.msra.mxu0 %v5906
        %6866 = vmatprep.subr.bf16.mxu0 0
        %6867 = vmatpush1.bf16.msra.mxu0 %v5907
        %6868 = vmatprep.subr.bf16.mxu0 0
        %6869 = vmatpush1.bf16.msra.mxu0 0
        %6870 = vmatprep.subr.bf16.mxu0 0
        %6871 = vmatpush1.bf16.msra.mxu0 0
        %6872 = vmatprep.subr.bf16.mxu0 0
        %6873 = vmatpush1.bf16.msra.mxu0 0
        %6874 = vmatprep.subr.bf16.mxu0 0
        %6875 = vmatpush1.bf16.msra.mxu0 0
        %6876 = vmatprep.subr.bf16.mxu0 0
        %6877 = vmatpush1.bf16.msra.mxu0 0
        %6878 = vmatprep.subr.bf16.mxu0 0
        %6879 = vmatpush1.bf16.msra.mxu0 0
        %6880 = vmatprep.subr.bf16.mxu0 0
        %6881 = vmatpush1.bf16.msra.mxu0 0
        %6882 = vmatprep.subr.bf16.mxu0 0
        %6883 = vmatpush1.bf16.msra.mxu0 0
        %6884 = vmatprep.subr.bf16.mxu0 0
        %6885 = vmatpush1.bf16.msra.mxu0 0
        %6886 = vmatprep.subr.bf16.mxu0 0
        %6887 = vmatpush1.bf16.msra.mxu0 0
        %6888 = vmatprep.subr.bf16.mxu0 0
        %6889 = vmatpush1.bf16.msra.mxu0 0
        %6890 = vmatprep.subr.bf16.mxu0 0
        %6891 = vmatpush1.bf16.msra.mxu0 0
        %6892 = vmatprep.subr.bf16.mxu0 0
        %6893 = vmatpush1.bf16.msra.mxu0 0
        %6894 = vmatprep.subr.bf16.mxu0 0
        %6895 = vmatpush1.bf16.msra.mxu0 0
        %6896 = vmatprep.mubr.bf16.mxu0 0
        %6897 = vmatmul.mubr.bf16.gmra.mrb[0].mxu0 %v6859
        %v6898 = vpop.f32.mrb[0].mxu0
        %v6899 = vadd.f32 0.0, %v6898
        %v6900 = vpop.f32.mrb[0].mxu0
        %v6901 = vpop.f32.mrb[0].mxu0
        %v6902 = vadd.f32 0.0, %v6901
        %v6903 = vpop.f32.mrb[0].mxu0
        %6904 = vmatprep.mubr.bf16.mxu0 0
        %6905 = vmatmul.mubr.bf16.gmra.mrb[0].mxu0 %v6862
        %v6906 = vpop.f32.mrb[0].mxu0
        %v6907 = vadd.f32 0.0, %v6906
        %v6908 = vpop.f32.mrb[0].mxu0
        %v6909 = vpop.f32.mrb[0].mxu0
        %v6910 = vadd.f32 0.0, %v6909
        %v6911 = vpop.f32.mrb[0].mxu0
        %6912 = vdwg.mxu0
        %v6913 = vadd.f32 %v6666, %v6899
        %v6914 = vadd.f32 %v6669, %v6902
        %v6915 = vadd.f32 %v6674, %v6907
        %v6916 = vadd.f32 %v6677, %v6910
        %6917 = vrot.lane.b32.xlu0 %v5215, 32
        %v6918 = vpop.permute.xlu0 %6917
        %6919 = vrot.lane.b32.xlu0 %v5216, 32
        %v6920 = vpop.permute.xlu0 %6919
        %6921 = vrot.lane.b32.xlu0 %v5219, 32
        %v6922 = vpop.permute.xlu0 %6921
        %6923 = vrot.lane.b32.xlu0 %v5220, 32
        %v6924 = vpop.permute.xlu0 %6923
        %v6926 = vsel %vm1123, %v6918, 0
        %v6929 = vsel %vm1123, %v6920, 0
        %v6932 = vsel %vm1123, %v6922, 0
        %v6935 = vsel %vm1123, %v6924, 0
        %6937 = vmatprep.subr.bf16.mxu0 0
        %6938 = vmatpush1.bf16.xpose.msra.mxu0 %v6932
        %6939 = vmatprep.subr.bf16.mxu0 0
        %6940 = vmatpush1.bf16.xpose.msra.mxu0 %v6935
        %6941 = vmatprep.subr.bf16.mxu0 0
        %6942 = vmatpush1.bf16.xpose.msra.mxu0 0
        %6943 = vmatprep.subr.bf16.mxu0 0
        %6944 = vmatpush1.bf16.xpose.msra.mxu0 0
        %6945 = vmatprep.subr.bf16.mxu0 0
        %6946 = vmatpush1.bf16.xpose.msra.mxu0 0
        %6947 = vmatprep.subr.bf16.mxu0 0
        %6948 = vmatpush1.bf16.xpose.msra.mxu0 0
        %6949 = vmatprep.subr.bf16.mxu0 0
        %6950 = vmatpush1.bf16.xpose.msra.mxu0 0
        %6951 = vmatprep.subr.bf16.mxu0 0
        %6952 = vmatpush1.bf16.xpose.msra.mxu0 0
        %6953 = vmatprep.subr.bf16.mxu0 0
        %6954 = vmatpush1.bf16.xpose.msra.mxu0 0
        %6955 = vmatprep.subr.bf16.mxu0 0
        %6956 = vmatpush1.bf16.xpose.msra.mxu0 0
        %6957 = vmatprep.subr.bf16.mxu0 0
        %6958 = vmatpush1.bf16.xpose.msra.mxu0 0
        %6959 = vmatprep.subr.bf16.mxu0 0
        %6960 = vmatpush1.bf16.xpose.msra.mxu0 0
        %6961 = vmatprep.subr.bf16.mxu0 0
        %6962 = vmatpush1.bf16.xpose.msra.mxu0 0
        %6963 = vmatprep.subr.bf16.mxu0 0
        %6964 = vmatpush1.bf16.xpose.msra.mxu0 0
        %6965 = vmatprep.subr.bf16.mxu0 0
        %6966 = vmatpush1.bf16.xpose.msra.mxu0 0
        %6967 = vmatprep.subr.bf16.mxu0 0
        %6968 = vmatpush1.bf16.xpose.msra.mxu0 0
        %6969 = vmatprep.mubr.bf16.mxu0 0
        %6970 = vmatmul.mubr.bf16.gmra.mrb[0].mxu0 %v6926
        %v6971 = vpop.f32.mrb[0].mxu0
        %v6972 = vadd.f32 0.0, %v6971
        %v6973 = vpop.f32.mrb[0].mxu0
        %v6974 = vpop.f32.mrb[0].mxu0
        %v6975 = vadd.f32 0.0, %v6974
        %v6976 = vpop.f32.mrb[0].mxu0
        %6977 = vmatprep.mubr.bf16.mxu0 0
        %6978 = vmatmul.mubr.bf16.gmra.mrb[0].mxu0 %v6929
        %v6979 = vpop.f32.mrb[0].mxu0
        %v6980 = vadd.f32 0.0, %v6979
        %v6981 = vpop.f32.mrb[0].mxu0
        %v6982 = vpop.f32.mrb[0].mxu0
        %v6983 = vadd.f32 0.0, %v6982
        %v6984 = vpop.f32.mrb[0].mxu0
        %6985 = vdwg.mxu0
        %v6986 = vsel %vm1123, %v6972, -inf
        %6987 = vmax.xlane.f32.xlu0 %v6986
        %v6988 = vpop.xlane.xlu0 %6987
        %v6989 = vsel %vm1123, %v6975, -inf
        %6990 = vmax.xlane.f32.xlu0 %v6989
        %v6991 = vpop.xlane.xlu0 %6990
        %v6992 = vsel %vm1123, %v6980, -inf
        %6993 = vmax.xlane.f32.xlu0 %v6992
        %v6994 = vpop.xlane.xlu0 %6993
        %v6995 = vsel %vm1123, %v6983, -inf
        %6996 = vmax.xlane.f32.xlu0 %v6995
        %v6997 = vpop.xlane.xlu0 %6996
        %v6998 = vsub.f32 %v6972, %v6988
        %v6999 = vsub.f32 %v6975, %v6991
        %v7000 = vsub.f32 %v6980, %v6994
        %v7001 = vsub.f32 %v6983, %v6997
        %v7002 = vmul.f32 %v6998, 1.442695
        %v7003 = vpow.pop %v7002
        %v7004 = vmul.f32 %v6999, 1.442695
        %v7005 = vpow.pop %v7004
        %v7006 = vmul.f32 %v7000, 1.442695
        %v7007 = vpow.pop %v7006
        %v7008 = vmul.f32 %v7001, 1.442695
        %v7009 = vpow.pop %v7008
        %v7010 = vsel %vm1123, %v7003, 0.0
        %7011 = vadd.xlane.f32.xlu0 %v7010
        %v7012 = vpop.xlane.xlu0 %7011
        %v7013 = vsel %vm1123, %v7005, 0.0
        %7014 = vadd.xlane.f32.xlu0 %v7013
        %v7015 = vpop.xlane.xlu0 %7014
        %v7016 = vsel %vm1123, %v7007, 0.0
        %7017 = vadd.xlane.f32.xlu0 %v7016
        %v7018 = vpop.xlane.xlu0 %7017
        %v7019 = vsel %vm1123, %v7009, 0.0
        %7020 = vadd.xlane.f32.xlu0 %v7019
        %v7021 = vpop.xlane.xlu0 %7020
        %v7022 = vpack.c.bf16 %v7005, %v7003
        %v7023 = vpack.c.bf16 %v7009, %v7007
        %7024 = vrot.lane.b32.xlu0 %v5223, 32
        %v7025 = vpop.permute.xlu0 %7024
        %7026 = vrot.lane.b32.xlu0 %v5224, 32
        %v7027 = vpop.permute.xlu0 %7026
        %v7031 = vsel %vm1123, %v7022, 0
        %v7034 = vsel %vm1123, %v7023, 0
        %7036 = vmatprep.subr.bf16.mxu0 0
        %7037 = vmatpush1.bf16.msra.mxu0 %v7025
        %7038 = vmatprep.subr.bf16.mxu0 0
        %7039 = vmatpush1.bf16.msra.mxu0 %v7027
        %7040 = vmatprep.subr.bf16.mxu0 0
        %7041 = vmatpush1.bf16.msra.mxu0 0
        %7042 = vmatprep.subr.bf16.mxu0 0
        %7043 = vmatpush1.bf16.msra.mxu0 0
        %7044 = vmatprep.subr.bf16.mxu0 0
        %7045 = vmatpush1.bf16.msra.mxu0 0
        %7046 = vmatprep.subr.bf16.mxu0 0
        %7047 = vmatpush1.bf16.msra.mxu0 0
        %7048 = vmatprep.subr.bf16.mxu0 0
        %7049 = vmatpush1.bf16.msra.mxu0 0
        %7050 = vmatprep.subr.bf16.mxu0 0
        %7051 = vmatpush1.bf16.msra.mxu0 0
        %7052 = vmatprep.subr.bf16.mxu0 0
        %7053 = vmatpush1.bf16.msra.mxu0 0
        %7054 = vmatprep.subr.bf16.mxu0 0
        %7055 = vmatpush1.bf16.msra.mxu0 0
        %7056 = vmatprep.subr.bf16.mxu0 0
        %7057 = vmatpush1.bf16.msra.mxu0 0
        %7058 = vmatprep.subr.bf16.mxu0 0
        %7059 = vmatpush1.bf16.msra.mxu0 0
        %7060 = vmatprep.subr.bf16.mxu0 0
        %7061 = vmatpush1.bf16.msra.mxu0 0
        %7062 = vmatprep.subr.bf16.mxu0 0
        %7063 = vmatpush1.bf16.msra.mxu0 0
        %7064 = vmatprep.subr.bf16.mxu0 0
        %7065 = vmatpush1.bf16.msra.mxu0 0
        %7066 = vmatprep.subr.bf16.mxu0 0
        %7067 = vmatpush1.bf16.msra.mxu0 0
        %7068 = vmatprep.mubr.bf16.mxu0 0
        %7069 = vmatmul.mubr.bf16.gmra.mrb[0].mxu0 %v7031
        %v7070 = vpop.f32.mrb[0].mxu0
        %v7071 = vadd.f32 0.0, %v7070
        %v7072 = vpop.f32.mrb[0].mxu0
        %v7073 = vpop.f32.mrb[0].mxu0
        %v7074 = vadd.f32 0.0, %v7073
        %v7075 = vpop.f32.mrb[0].mxu0
        %7076 = vmatprep.mubr.bf16.mxu0 0
        %7077 = vmatmul.mubr.bf16.gmra.mrb[0].mxu0 %v7034
        %v7078 = vpop.f32.mrb[0].mxu0
        %v7079 = vadd.f32 0.0, %v7078
        %v7080 = vpop.f32.mrb[0].mxu0
        %v7081 = vpop.f32.mrb[0].mxu0
        %v7082 = vadd.f32 0.0, %v7081
        %v7083 = vpop.f32.mrb[0].mxu0
        %7084 = vdwg.mxu0
        %v7085 = vrcp.pop %v7012
        %v7086 = vrcp.pop %v7015
        %v7087 = vrcp.pop %v7018
        %v7088 = vrcp.pop %v7021
        %v7089 = vmul.f32 %v7071, %v7085
        %v7090 = vmul.f32 %v7074, %v7086
        %v7091 = vmul.f32 %v7079, %v7087
        %v7092 = vmul.f32 %v7082, %v7088
        %v7093 = vpack.c.bf16 %v7090, %v7089
        %v7094 = vpack.c.bf16 %v7092, %v7091
        %v7096 = vsel %vm1123, %v7093, 0
        %v7099 = vsel %vm1123, %v7094, 0
        %7101 = vmatprep.subr.bf16.mxu0 0
        %7102 = vmatpush1.bf16.msra.mxu0 %v6159
        %7103 = vmatprep.subr.bf16.mxu0 0
        %7104 = vmatpush1.bf16.msra.mxu0 %v6160
        %7105 = vmatprep.subr.bf16.mxu0 0
        %7106 = vmatpush1.bf16.msra.mxu0 0
        %7107 = vmatprep.subr.bf16.mxu0 0
        %7108 = vmatpush1.bf16.msra.mxu0 0
        %7109 = vmatprep.subr.bf16.mxu0 0
        %7110 = vmatpush1.bf16.msra.mxu0 0
        %7111 = vmatprep.subr.bf16.mxu0 0
        %7112 = vmatpush1.bf16.msra.mxu0 0
        %7113 = vmatprep.subr.bf16.mxu0 0
        %7114 = vmatpush1.bf16.msra.mxu0 0
        %7115 = vmatprep.subr.bf16.mxu0 0
        %7116 = vmatpush1.bf16.msra.mxu0 0
        %7117 = vmatprep.subr.bf16.mxu0 0
        %7118 = vmatpush1.bf16.msra.mxu0 0
        %7119 = vmatprep.subr.bf16.mxu0 0
        %7120 = vmatpush1.bf16.msra.mxu0 0
        %7121 = vmatprep.subr.bf16.mxu0 0
        %7122 = vmatpush1.bf16.msra.mxu0 0
        %7123 = vmatprep.subr.bf16.mxu0 0
        %7124 = vmatpush1.bf16.msra.mxu0 0
        %7125 = vmatprep.subr.bf16.mxu0 0
        %7126 = vmatpush1.bf16.msra.mxu0 0
        %7127 = vmatprep.subr.bf16.mxu0 0
        %7128 = vmatpush1.bf16.msra.mxu0 0
        %7129 = vmatprep.subr.bf16.mxu0 0
        %7130 = vmatpush1.bf16.msra.mxu0 0
        %7131 = vmatprep.subr.bf16.mxu0 0
        %7132 = vmatpush1.bf16.msra.mxu0 0
        %7133 = vmatprep.mubr.bf16.mxu0 0
        %7134 = vmatmul.mubr.bf16.gmra.mrb[0].mxu0 %v7096
        %v7135 = vpop.f32.mrb[0].mxu0
        %v7136 = vadd.f32 0.0, %v7135
        %v7137 = vpop.f32.mrb[0].mxu0
        %v7138 = vpop.f32.mrb[0].mxu0
        %v7139 = vadd.f32 0.0, %v7138
        %v7140 = vpop.f32.mrb[0].mxu0
        %7141 = vmatprep.mubr.bf16.mxu0 0
        %7142 = vmatmul.mubr.bf16.gmra.mrb[0].mxu0 %v7099
        %v7143 = vpop.f32.mrb[0].mxu0
        %v7144 = vadd.f32 0.0, %v7143
        %v7145 = vpop.f32.mrb[0].mxu0
        %v7146 = vpop.f32.mrb[0].mxu0
        %v7147 = vadd.f32 0.0, %v7146
        %v7148 = vpop.f32.mrb[0].mxu0
        %7149 = vdwg.mxu0
        %v7150 = vadd.f32 %v6913, %v7136
        %v7151 = vadd.f32 %v6914, %v7139
        %v7152 = vadd.f32 %v6915, %v7144
        %v7153 = vadd.f32 %v6916, %v7147
        %v7154 = vadd.f32 %v4770, %v6218
        %v7155 = vadd.f32 %v4771, %v6219
        %v7156 = vadd.f32 %v4772, %v6220
        %v7157 = vadd.f32 %v4773, %v6221
        %v7158 = vadd.f32 %v4774, %v7150
        %v7159 = vadd.f32 %v4775, %v7151
        %v7160 = vadd.f32 %v4776, %v7152
        %v7161 = vadd.f32 %v4777, %v7153
        %v7162 = vld [vmem:[#allocation14 + $0x21] ss:$0 sm:$0xff]
        %v7163 = vadd.f32 %v7154, %v7162
        %v7164 = vadd.f32 %v7155, %v7162
        %v7165 = vadd.f32 %v7156, %v7162
        %v7166 = vadd.f32 %v7157, %v7162
        %v7167 = vadd.f32 %v7158, %v7162
        %v7168 = vadd.f32 %v7159, %v7162
        %v7169 = vadd.f32 %v7160, %v7162
        %v7170 = vadd.f32 %v7161, %v7162
        %7171 = vadd.xlane.f32.xlu0 %v7163
        %v7172 = vpop.xlane.xlu0 %7171
        %7173 = vadd.xlane.f32.xlu0 %v7164
        %v7174 = vpop.xlane.xlu0 %7173
        %7175 = vadd.xlane.f32.xlu0 %v7165
        %v7176 = vpop.xlane.xlu0 %7175
        %7177 = vadd.xlane.f32.xlu0 %v7166
        %v7178 = vpop.xlane.xlu0 %7177
        %7179 = vadd.xlane.f32.xlu0 %v7167
        %v7180 = vpop.xlane.xlu0 %7179
        %7181 = vadd.xlane.f32.xlu0 %v7168
        %v7182 = vpop.xlane.xlu0 %7181
        %7183 = vadd.xlane.f32.xlu0 %v7169
        %v7184 = vpop.xlane.xlu0 %7183
        %7185 = vadd.xlane.f32.xlu0 %v7170
        %v7186 = vpop.xlane.xlu0 %7185
        %v7187 = vmul.f32 %v7172, %v1481
        %v7188 = vmul.f32 %v7174, %v1481
        %v7189 = vmul.f32 %v7176, %v1481
        %v7190 = vmul.f32 %v7178, %v1481
        %v7191 = vmul.f32 %v7180, %v1481
        %v7192 = vmul.f32 %v7182, %v1481
        %v7193 = vmul.f32 %v7184, %v1481
        %v7194 = vmul.f32 %v7186, %v1481
        %v7195 = vsub.f32 %v7163, %v7187
        %v7196 = vsub.f32 %v7164, %v7188
        %v7197 = vsub.f32 %v7165, %v7189
        %v7198 = vsub.f32 %v7166, %v7190
        %v7199 = vsub.f32 %v7167, %v7191
        %v7200 = vsub.f32 %v7168, %v7192
        %v7201 = vsub.f32 %v7169, %v7193
        %v7202 = vsub.f32 %v7170, %v7194
        %v7203 = vmul.f32 %v7195, %v7195
        %v7204 = vmul.f32 %v7196, %v7196
        %v7205 = vmul.f32 %v7197, %v7197
        %v7206 = vmul.f32 %v7198, %v7198
        %v7207 = vmul.f32 %v7199, %v7199
        %v7208 = vmul.f32 %v7200, %v7200
        %v7209 = vmul.f32 %v7201, %v7201
        %v7210 = vmul.f32 %v7202, %v7202
        %7211 = vadd.xlane.f32.xlu0 %v7203
        %v7212 = vpop.xlane.xlu0 %7211
        %7213 = vadd.xlane.f32.xlu0 %v7204
        %v7214 = vpop.xlane.xlu0 %7213
        %7215 = vadd.xlane.f32.xlu0 %v7205
        %v7216 = vpop.xlane.xlu0 %7215
        %7217 = vadd.xlane.f32.xlu0 %v7206
        %v7218 = vpop.xlane.xlu0 %7217
        %7219 = vadd.xlane.f32.xlu0 %v7207
        %v7220 = vpop.xlane.xlu0 %7219
        %7221 = vadd.xlane.f32.xlu0 %v7208
        %v7222 = vpop.xlane.xlu0 %7221
        %7223 = vadd.xlane.f32.xlu0 %v7209
        %v7224 = vpop.xlane.xlu0 %7223
        %7225 = vadd.xlane.f32.xlu0 %v7210
        %v7226 = vpop.xlane.xlu0 %7225
        %v7227 = vmul.f32 %v7212, %v1481
        %v7228 = vmul.f32 %v7214, %v1481
        %v7229 = vmul.f32 %v7216, %v1481
        %v7230 = vmul.f32 %v7218, %v1481
        %v7231 = vmul.f32 %v7220, %v1481
        %v7232 = vmul.f32 %v7222, %v1481
        %v7233 = vmul.f32 %v7224, %v1481
        %v7234 = vmul.f32 %v7226, %v1481
        %v7235 = vadd.f32 %v7227, 1e-05
        %v7236 = vadd.f32 %v7228, 1e-05
        %v7237 = vadd.f32 %v7229, 1e-05
        %v7238 = vadd.f32 %v7230, 1e-05
        %v7239 = vadd.f32 %v7231, 1e-05
        %v7240 = vadd.f32 %v7232, 1e-05
        %v7241 = vadd.f32 %v7233, 1e-05
        %v7242 = vadd.f32 %v7234, 1e-05
        %v7243 = vrsqrt.pop %v7235
        %v7244 = vrsqrt.pop %v7236
        %v7245 = vrsqrt.pop %v7237
        %v7246 = vrsqrt.pop %v7238
        %v7247 = vrsqrt.pop %v7239
        %v7248 = vrsqrt.pop %v7240
        %v7249 = vrsqrt.pop %v7241
        %v7250 = vrsqrt.pop %v7242
        %v7251 = vmul.f32 %v7195, %v7243
        %v7252 = vmul.f32 %v7196, %v7244
        %v7253 = vmul.f32 %v7197, %v7245
        %v7254 = vmul.f32 %v7198, %v7246
        %v7255 = vmul.f32 %v7199, %v7247
        %v7256 = vmul.f32 %v7200, %v7248
        %v7257 = vmul.f32 %v7201, %v7249
        %v7258 = vmul.f32 %v7202, %v7250
        %v7259 = vld [vmem:[#allocation14 + $0x26] ss:$0 sm:$0xff]
        %v7260 = vmul.f32 %v7251, %v7259
        %v7261 = vmul.f32 %v7252, %v7259
        %v7262 = vmul.f32 %v7253, %v7259
        %v7263 = vmul.f32 %v7254, %v7259
        %v7264 = vmul.f32 %v7255, %v7259
        %v7265 = vmul.f32 %v7256, %v7259
        %v7266 = vmul.f32 %v7257, %v7259
        %v7267 = vmul.f32 %v7258, %v7259
        %v7268 = vld [vmem:[#allocation14 + $0x27] ss:$0 sm:$0xff]
        %v7269 = vadd.f32 %v7260, %v7268
        %v7270 = vadd.f32 %v7261, %v7268
        %v7271 = vadd.f32 %v7262, %v7268
        %v7272 = vadd.f32 %v7263, %v7268
        %v7273 = vadd.f32 %v7264, %v7268
        %v7274 = vadd.f32 %v7265, %v7268
        %v7275 = vadd.f32 %v7266, %v7268
        %v7276 = vadd.f32 %v7267, %v7268
        %v7277 = vpack.c.bf16 %v7270, %v7269
        %v7278 = vpack.c.bf16 %v7272, %v7271
        %v7279 = vpack.c.bf16 %v7274, %v7273
        %v7280 = vpack.c.bf16 %v7276, %v7275
        %s7281 = scalar_lea.vmem %s9, 256
        %v7282 = vld [vmem:[%s7281] sm:$0xff]
        %v7283 = vld [vmem:[%s7281 + $0x8] sm:$0xff]
        %v7284 = vld [vmem:[%s7281 + $0x10] sm:$0xff]
        %v7285 = vld [vmem:[%s7281 + $0x18] sm:$0xff]
        %v7286 = vld [vmem:[%s7281 + $0x20] sm:$0xff]
        %v7287 = vld [vmem:[%s7281 + $0x28] sm:$0xff]
        %v7288 = vld [vmem:[%s7281 + $0x30] sm:$0xff]
        %v7289 = vld [vmem:[%s7281 + $0x38] sm:$0xff]
        %v7290 = vld [vmem:[%s7281 + $0x40] sm:$0xff]
        %v7291 = vld [vmem:[%s7281 + $0x48] sm:$0xff]
        %v7292 = vld [vmem:[%s7281 + $0x50] sm:$0xff]
        %v7293 = vld [vmem:[%s7281 + $0x58] sm:$0xff]
        %v7294 = vld [vmem:[%s7281 + $0x60] sm:$0xff]
        %v7295 = vld [vmem:[%s7281 + $0x68] sm:$0xff]
        %v7296 = vld [vmem:[%s7281 + $0x70] sm:$0xff]
        %v7297 = vld [vmem:[%s7281 + $0x78] sm:$0xff]
        %v7298 = vld [vmem:[%s7281 + $0x80] sm:$0xff]
        %v7299 = vld [vmem:[%s7281 + $0x88] sm:$0xff]
        %v7300 = vld [vmem:[%s7281 + $0x90] sm:$0xff]
        %v7301 = vld [vmem:[%s7281 + $0x98] sm:$0xff]
        %v7302 = vld [vmem:[%s7281 + $0xa0] sm:$0xff]
        %v7303 = vld [vmem:[%s7281 + $0xa8] sm:$0xff]
        %v7304 = vld [vmem:[%s7281 + $0xb0] sm:$0xff]
        %v7305 = vld [vmem:[%s7281 + $0xb8] sm:$0xff]
        %v7306 = vld [vmem:[%s7281 + $0xc0] sm:$0xff]
        %v7307 = vld [vmem:[%s7281 + $0xc8] sm:$0xff]
        %v7308 = vld [vmem:[%s7281 + $0xd0] sm:$0xff]
        %v7309 = vld [vmem:[%s7281 + $0xd8] sm:$0xff]
        %v7310 = vld [vmem:[%s7281 + $0xe0] sm:$0xff]
        %v7311 = vld [vmem:[%s7281 + $0xe8] sm:$0xff]
        %v7312 = vld [vmem:[%s7281 + $0xf0] sm:$0xff]
        %v7313 = vld [vmem:[%s7281 + $0xf8] sm:$0xff]
        %s7314 = scalar_lea.vmem [#allocation14], 34
        %v7315 = vld [vmem:[%s7314] ss:$8 sm:$0xf]
        %v7317 = vlaneseq
        %v7318 = vshrl.u32 %v7317, 7
        %v7319 = vsub.s32 0, %v7318
        %v7320 = vrot.slane %v7315, %v7319
        %v7321 = vlaneseq
        %v7322 = vshrl.u32 %v7321, 7
        %v7323 = vsub.s32 1, %v7322
        %v7324 = vrot.slane %v7315, %v7323
        %v7325 = vlaneseq
        %v7326 = vshrl.u32 %v7325, 7
        %v7327 = vsub.s32 2, %v7326
        %v7328 = vrot.slane %v7315, %v7327
        %v7329 = vlaneseq
        %v7330 = vshrl.u32 %v7329, 7
        %v7331 = vsub.s32 3, %v7330
        %v7332 = vrot.slane %v7315, %v7331
        %v7369 = vunpack.c.l.b16 %v7282
        %v7370 = vunpack.c.h.b16 %v7282
        %v7371 = vunpack.c.l.b16 %v7283
        %v7372 = vunpack.c.h.b16 %v7283
        %v7373 = vunpack.c.l.b16 %v7284
        %v7374 = vunpack.c.h.b16 %v7284
        %v7375 = vunpack.c.l.b16 %v7285
        %v7376 = vunpack.c.h.b16 %v7285
        %v7377 = vunpack.c.l.b16 %v7286
        %v7378 = vunpack.c.h.b16 %v7286
        %v7379 = vunpack.c.l.b16 %v7287
        %v7380 = vunpack.c.h.b16 %v7287
        %v7381 = vunpack.c.l.b16 %v7288
        %v7382 = vunpack.c.h.b16 %v7288
        %v7383 = vunpack.c.l.b16 %v7289
        %v7384 = vunpack.c.h.b16 %v7289
        %v7385 = vunpack.c.l.b16 %v7290
        %v7386 = vunpack.c.h.b16 %v7290
        %v7387 = vunpack.c.l.b16 %v7291
        %v7388 = vunpack.c.h.b16 %v7291
        %v7389 = vunpack.c.l.b16 %v7292
        %v7390 = vunpack.c.h.b16 %v7292
        %v7391 = vunpack.c.l.b16 %v7293
        %v7392 = vunpack.c.h.b16 %v7293
        %v7393 = vunpack.c.l.b16 %v7294
        %v7394 = vunpack.c.h.b16 %v7294
        %v7395 = vunpack.c.l.b16 %v7295
        %v7396 = vunpack.c.h.b16 %v7295
        %v7397 = vunpack.c.l.b16 %v7296
        %v7398 = vunpack.c.h.b16 %v7296
        %v7399 = vunpack.c.l.b16 %v7297
        %v7400 = vunpack.c.h.b16 %v7297
        %v7401 = vunpack.c.l.b16 %v7298
        %v7402 = vunpack.c.h.b16 %v7298
        %v7403 = vunpack.c.l.b16 %v7299
        %v7404 = vunpack.c.h.b16 %v7299
        %v7405 = vunpack.c.l.b16 %v7300
        %v7406 = vunpack.c.h.b16 %v7300
        %v7407 = vunpack.c.l.b16 %v7301
        %v7408 = vunpack.c.h.b16 %v7301
        %v7409 = vunpack.c.l.b16 %v7302
        %v7410 = vunpack.c.h.b16 %v7302
        %v7411 = vunpack.c.l.b16 %v7303
        %v7412 = vunpack.c.h.b16 %v7303
        %v7413 = vunpack.c.l.b16 %v7304
        %v7414 = vunpack.c.h.b16 %v7304
        %v7415 = vunpack.c.l.b16 %v7305
        %v7416 = vunpack.c.h.b16 %v7305
        %v7417 = vunpack.c.l.b16 %v7306
        %v7418 = vunpack.c.h.b16 %v7306
        %v7419 = vunpack.c.l.b16 %v7307
        %v7420 = vunpack.c.h.b16 %v7307
        %v7421 = vunpack.c.l.b16 %v7308
        %v7422 = vunpack.c.h.b16 %v7308
        %v7423 = vunpack.c.l.b16 %v7309
        %v7424 = vunpack.c.h.b16 %v7309
        %v7425 = vunpack.c.l.b16 %v7310
        %v7426 = vunpack.c.h.b16 %v7310
        %v7427 = vunpack.c.l.b16 %v7311
        %v7428 = vunpack.c.h.b16 %v7311
        %v7429 = vunpack.c.l.b16 %v7312
        %v7430 = vunpack.c.h.b16 %v7312
        %v7431 = vunpack.c.l.b16 %v7313
        %v7432 = vunpack.c.h.b16 %v7313
        %v7433 = vpack.c.b16 %v7373, %v7369
        %v7434 = vpack.c.b16 %v7374, %v7370
        %v7435 = vpack.c.b16 %v7375, %v7371
        %v7436 = vpack.c.b16 %v7376, %v7372
        %v7437 = vpack.c.b16 %v7381, %v7377
        %v7438 = vpack.c.b16 %v7382, %v7378
        %v7439 = vpack.c.b16 %v7383, %v7379
        %v7440 = vpack.c.b16 %v7384, %v7380
        %v7441 = vpack.c.b16 %v7389, %v7385
        %v7442 = vpack.c.b16 %v7390, %v7386
        %v7443 = vpack.c.b16 %v7391, %v7387
        %v7444 = vpack.c.b16 %v7392, %v7388
        %v7445 = vpack.c.b16 %v7397, %v7393
        %v7446 = vpack.c.b16 %v7398, %v7394
        %v7447 = vpack.c.b16 %v7399, %v7395
        %v7448 = vpack.c.b16 %v7400, %v7396
        %v7449 = vpack.c.b16 %v7405, %v7401
        %v7450 = vpack.c.b16 %v7406, %v7402
        %v7451 = vpack.c.b16 %v7407, %v7403
        %v7452 = vpack.c.b16 %v7408, %v7404
        %v7453 = vpack.c.b16 %v7413, %v7409
        %v7454 = vpack.c.b16 %v7414, %v7410
        %v7455 = vpack.c.b16 %v7415, %v7411
        %v7456 = vpack.c.b16 %v7416, %v7412
        %v7457 = vpack.c.b16 %v7421, %v7417
        %v7458 = vpack.c.b16 %v7422, %v7418
        %v7459 = vpack.c.b16 %v7423, %v7419
        %v7460 = vpack.c.b16 %v7424, %v7420
        %v7461 = vpack.c.b16 %v7429, %v7425
        %v7462 = vpack.c.b16 %v7430, %v7426
        %v7463 = vpack.c.b16 %v7431, %v7427
        %v7464 = vpack.c.b16 %v7432, %v7428
        %7497 = vmatprep.subr.bf16.mxu0 %v7434
        %7498 = vmatpush1.bf16.msra.mxu0 %v7433
        %7499 = vmatprep.subr.bf16.mxu0 %v7438
        %7500 = vmatpush1.bf16.msra.mxu0 %v7437
        %7501 = vmatprep.subr.bf16.mxu0 %v7442
        %7502 = vmatpush1.bf16.msra.mxu0 %v7441
        %7503 = vmatprep.subr.bf16.mxu0 %v7446
        %7504 = vmatpush1.bf16.msra.mxu0 %v7445
        %7505 = vmatprep.subr.bf16.mxu0 %v7450
        %7506 = vmatpush1.bf16.msra.mxu0 %v7449
        %7507 = vmatprep.subr.bf16.mxu0 %v7454
        %7508 = vmatpush1.bf16.msra.mxu0 %v7453
        %7509 = vmatprep.subr.bf16.mxu0 %v7458
        %7510 = vmatpush1.bf16.msra.mxu0 %v7457
        %7511 = vmatprep.subr.bf16.mxu0 %v7462
        %7512 = vmatpush1.bf16.msra.mxu0 %v7461
        %7513 = vmatprep.subr.bf16.mxu0 0
        %7514 = vmatpush1.bf16.msra.mxu0 0
        %7515 = vmatprep.subr.bf16.mxu0 0
        %7516 = vmatpush1.bf16.msra.mxu0 0
        %7517 = vmatprep.subr.bf16.mxu0 0
        %7518 = vmatpush1.bf16.msra.mxu0 0
        %7519 = vmatprep.subr.bf16.mxu0 0
        %7520 = vmatpush1.bf16.msra.mxu0 0
        %7521 = vmatprep.subr.bf16.mxu0 0
        %7522 = vmatpush1.bf16.msra.mxu0 0
        %7523 = vmatprep.subr.bf16.mxu0 0
        %7524 = vmatpush1.bf16.msra.mxu0 0
        %7525 = vmatprep.subr.bf16.mxu0 0
        %7526 = vmatpush1.bf16.msra.mxu0 0
        %7527 = vmatprep.subr.bf16.mxu0 0
        %7528 = vmatpush1.bf16.msra.mxu0 0
        %7529 = vmatprep.mubr.bf16.mxu0 0
        %7530 = vmatmul.mubr.bf16.gmra.mrb[0].mxu0 %v7277
        %v7531 = vpop.f32.mrb[0].mxu0
        %v7532 = vadd.f32 %v7320, %v7531
        %v7533 = vpop.f32.mrb[0].mxu0
        %v7534 = vadd.f32 %v7324, %v7533
        %v7535 = vpop.f32.mrb[0].mxu0
        %v7536 = vadd.f32 %v7320, %v7535
        %v7537 = vpop.f32.mrb[0].mxu0
        %v7538 = vadd.f32 %v7324, %v7537
        %7539 = vmatprep.mubr.bf16.mxu0 0
        %7540 = vmatmul.mubr.bf16.gmra.mrb[0].mxu0 %v7278
        %v7541 = vpop.f32.mrb[0].mxu0
        %v7542 = vadd.f32 %v7320, %v7541
        %v7543 = vpop.f32.mrb[0].mxu0
        %v7544 = vadd.f32 %v7324, %v7543
        %v7545 = vpop.f32.mrb[0].mxu0
        %v7546 = vadd.f32 %v7320, %v7545
        %v7547 = vpop.f32.mrb[0].mxu0
        %v7548 = vadd.f32 %v7324, %v7547
        %7549 = vmatprep.mubr.bf16.mxu0 0
        %7550 = vmatmul.mubr.bf16.gmra.mrb[0].mxu0 %v7279
        %v7551 = vpop.f32.mrb[0].mxu0
        %v7552 = vadd.f32 %v7320, %v7551
        %v7553 = vpop.f32.mrb[0].mxu0
        %v7554 = vadd.f32 %v7324, %v7553
        %v7555 = vpop.f32.mrb[0].mxu0
        %v7556 = vadd.f32 %v7320, %v7555
        %v7557 = vpop.f32.mrb[0].mxu0
        %v7558 = vadd.f32 %v7324, %v7557
        %7559 = vmatprep.mubr.bf16.mxu0 0
        %7560 = vmatmul.mubr.bf16.gmra.mrb[0].mxu0 %v7280
        %v7561 = vpop.f32.mrb[0].mxu0
        %v7562 = vadd.f32 %v7320, %v7561
        %v7563 = vpop.f32.mrb[0].mxu0
        %v7564 = vadd.f32 %v7324, %v7563
        %v7565 = vpop.f32.mrb[0].mxu0
        %v7566 = vadd.f32 %v7320, %v7565
        %v7567 = vpop.f32.mrb[0].mxu0
        %v7568 = vadd.f32 %v7324, %v7567
        %7569 = vdwg.mxu0
        %7570 = vmatprep.subr.bf16.mxu0 %v7436
        %7571 = vmatpush1.bf16.msra.mxu0 %v7435
        %7572 = vmatprep.subr.bf16.mxu0 %v7440
        %7573 = vmatpush1.bf16.msra.mxu0 %v7439
        %7574 = vmatprep.subr.bf16.mxu0 %v7444
        %7575 = vmatpush1.bf16.msra.mxu0 %v7443
        %7576 = vmatprep.subr.bf16.mxu0 %v7448
        %7577 = vmatpush1.bf16.msra.mxu0 %v7447
        %7578 = vmatprep.subr.bf16.mxu0 %v7452
        %7579 = vmatpush1.bf16.msra.mxu0 %v7451
        %7580 = vmatprep.subr.bf16.mxu0 %v7456
        %7581 = vmatpush1.bf16.msra.mxu0 %v7455
        %7582 = vmatprep.subr.bf16.mxu0 %v7460
        %7583 = vmatpush1.bf16.msra.mxu0 %v7459
        %7584 = vmatprep.subr.bf16.mxu0 %v7464
        %7585 = vmatpush1.bf16.msra.mxu0 %v7463
        %7586 = vmatprep.subr.bf16.mxu0 0
        %7587 = vmatpush1.bf16.msra.mxu0 0
        %7588 = vmatprep.subr.bf16.mxu0 0
        %7589 = vmatpush1.bf16.msra.mxu0 0
        %7590 = vmatprep.subr.bf16.mxu0 0
        %7591 = vmatpush1.bf16.msra.mxu0 0
        %7592 = vmatprep.subr.bf16.mxu0 0
        %7593 = vmatpush1.bf16.msra.mxu0 0
        %7594 = vmatprep.subr.bf16.mxu0 0
        %7595 = vmatpush1.bf16.msra.mxu0 0
        %7596 = vmatprep.subr.bf16.mxu0 0
        %7597 = vmatpush1.bf16.msra.mxu0 0
        %7598 = vmatprep.subr.bf16.mxu0 0
        %7599 = vmatpush1.bf16.msra.mxu0 0
        %7600 = vmatprep.subr.bf16.mxu0 0
        %7601 = vmatpush1.bf16.msra.mxu0 0
        %7602 = vmatprep.mubr.bf16.mxu0 0
        %7603 = vmatmul.mubr.bf16.gmra.mrb[0].mxu0 %v7277
        %v7604 = vpop.f32.mrb[0].mxu0
        %v7605 = vadd.f32 %v7328, %v7604
        %v7606 = vpop.f32.mrb[0].mxu0
        %v7607 = vadd.f32 %v7332, %v7606
        %v7608 = vpop.f32.mrb[0].mxu0
        %v7609 = vadd.f32 %v7328, %v7608
        %v7610 = vpop.f32.mrb[0].mxu0
        %v7611 = vadd.f32 %v7332, %v7610
        %7612 = vmatprep.mubr.bf16.mxu0 0
        %7613 = vmatmul.mubr.bf16.gmra.mrb[0].mxu0 %v7278
        %v7614 = vpop.f32.mrb[0].mxu0
        %v7615 = vadd.f32 %v7328, %v7614
        %v7616 = vpop.f32.mrb[0].mxu0
        %v7617 = vadd.f32 %v7332, %v7616
        %v7618 = vpop.f32.mrb[0].mxu0
        %v7619 = vadd.f32 %v7328, %v7618
        %v7620 = vpop.f32.mrb[0].mxu0
        %v7621 = vadd.f32 %v7332, %v7620
        %7622 = vmatprep.mubr.bf16.mxu0 0
        %7623 = vmatmul.mubr.bf16.gmra.mrb[0].mxu0 %v7279
        %v7624 = vpop.f32.mrb[0].mxu0
        %v7625 = vadd.f32 %v7328, %v7624
        %v7626 = vpop.f32.mrb[0].mxu0
        %v7627 = vadd.f32 %v7332, %v7626
        %v7628 = vpop.f32.mrb[0].mxu0
        %v7629 = vadd.f32 %v7328, %v7628
        %v7630 = vpop.f32.mrb[0].mxu0
        %v7631 = vadd.f32 %v7332, %v7630
        %7632 = vmatprep.mubr.bf16.mxu0 0
        %7633 = vmatmul.mubr.bf16.gmra.mrb[0].mxu0 %v7280
        %v7634 = vpop.f32.mrb[0].mxu0
        %v7635 = vadd.f32 %v7328, %v7634
        %v7636 = vpop.f32.mrb[0].mxu0
        %v7637 = vadd.f32 %v7332, %v7636
        %v7638 = vpop.f32.mrb[0].mxu0
        %v7639 = vadd.f32 %v7328, %v7638
        %v7640 = vpop.f32.mrb[0].mxu0
        %v7641 = vadd.f32 %v7332, %v7640
        %7642 = vdwg.mxu0
        %v7643 = vmax.f32 %v7532, 0.0
        %v7644 = vmax.f32 %v7534, 0.0
        %v7645 = vmax.f32 %v7605, 0.0
        %v7646 = vmax.f32 %v7607, 0.0
        %v7647 = vmax.f32 %v7536, 0.0
        %v7648 = vmax.f32 %v7538, 0.0
        %v7649 = vmax.f32 %v7609, 0.0
        %v7650 = vmax.f32 %v7611, 0.0
        %v7651 = vmax.f32 %v7542, 0.0
        %v7652 = vmax.f32 %v7544, 0.0
        %v7653 = vmax.f32 %v7615, 0.0
        %v7654 = vmax.f32 %v7617, 0.0
        %v7655 = vmax.f32 %v7546, 0.0
        %v7656 = vmax.f32 %v7548, 0.0
        %v7657 = vmax.f32 %v7619, 0.0
        %v7658 = vmax.f32 %v7621, 0.0
        %v7659 = vmax.f32 %v7552, 0.0
        %v7660 = vmax.f32 %v7554, 0.0
        %v7661 = vmax.f32 %v7625, 0.0
        %v7662 = vmax.f32 %v7627, 0.0
        %v7663 = vmax.f32 %v7556, 0.0
        %v7664 = vmax.f32 %v7558, 0.0
        %v7665 = vmax.f32 %v7629, 0.0
        %v7666 = vmax.f32 %v7631, 0.0
        %v7667 = vmax.f32 %v7562, 0.0
        %v7668 = vmax.f32 %v7564, 0.0
        %v7669 = vmax.f32 %v7635, 0.0
        %v7670 = vmax.f32 %v7637, 0.0
        %v7671 = vmax.f32 %v7566, 0.0
        %v7672 = vmax.f32 %v7568, 0.0
        %v7673 = vmax.f32 %v7639, 0.0
        %v7674 = vmax.f32 %v7641, 0.0
        %v7675 = vpack.c.bf16 %v7647, %v7643
        %v7676 = vpack.c.bf16 %v7648, %v7644
        %v7677 = vpack.c.bf16 %v7649, %v7645
        %v7678 = vpack.c.bf16 %v7650, %v7646
        %v7679 = vpack.c.bf16 %v7655, %v7651
        %v7680 = vpack.c.bf16 %v7656, %v7652
        %v7681 = vpack.c.bf16 %v7657, %v7653
        %v7682 = vpack.c.bf16 %v7658, %v7654
        %v7683 = vpack.c.bf16 %v7663, %v7659
        %v7684 = vpack.c.bf16 %v7664, %v7660
        %v7685 = vpack.c.bf16 %v7665, %v7661
        %v7686 = vpack.c.bf16 %v7666, %v7662
        %v7687 = vpack.c.bf16 %v7671, %v7667
        %v7688 = vpack.c.bf16 %v7672, %v7668
        %v7689 = vpack.c.bf16 %v7673, %v7669
        %v7690 = vpack.c.bf16 %v7674, %v7670
        %s7691 = scalar_lea.vmem [#allocation13], 256
        %v7692 = vld [vmem:[%s7691] sm:$0xf]
        %v7693 = vld [vmem:[%s7691 + $0x4] sm:$0xf]
        %v7694 = vld [vmem:[%s7691 + $0x8] sm:$0xf]
        %v7695 = vld [vmem:[%s7691 + $0xc] sm:$0xf]
        %v7696 = vld [vmem:[%s7691 + $0x10] sm:$0xf]
        %v7697 = vld [vmem:[%s7691 + $0x14] sm:$0xf]
        %v7698 = vld [vmem:[%s7691 + $0x18] sm:$0xf]
        %v7699 = vld [vmem:[%s7691 + $0x1c] sm:$0xf]
        %v7700 = vld [vmem:[%s7691 + $0x20] sm:$0xf]
        %v7701 = vld [vmem:[%s7691 + $0x24] sm:$0xf]
        %v7702 = vld [vmem:[%s7691 + $0x28] sm:$0xf]
        %v7703 = vld [vmem:[%s7691 + $0x2c] sm:$0xf]
        %v7704 = vld [vmem:[%s7691 + $0x30] sm:$0xf]
        %v7705 = vld [vmem:[%s7691 + $0x34] sm:$0xf]
        %v7706 = vld [vmem:[%s7691 + $0x38] sm:$0xf]
        %v7707 = vld [vmem:[%s7691 + $0x3c] sm:$0xf]
        %v7708 = vld [vmem:[%s7691 + $0x40] sm:$0xf]
        %v7709 = vld [vmem:[%s7691 + $0x44] sm:$0xf]
        %v7710 = vld [vmem:[%s7691 + $0x48] sm:$0xf]
        %v7711 = vld [vmem:[%s7691 + $0x4c] sm:$0xf]
        %v7712 = vld [vmem:[%s7691 + $0x50] sm:$0xf]
        %v7713 = vld [vmem:[%s7691 + $0x54] sm:$0xf]
        %v7714 = vld [vmem:[%s7691 + $0x58] sm:$0xf]
        %v7715 = vld [vmem:[%s7691 + $0x5c] sm:$0xf]
        %v7716 = vld [vmem:[%s7691 + $0x60] sm:$0xf]
        %v7717 = vld [vmem:[%s7691 + $0x64] sm:$0xf]
        %v7718 = vld [vmem:[%s7691 + $0x68] sm:$0xf]
        %v7719 = vld [vmem:[%s7691 + $0x6c] sm:$0xf]
        %v7720 = vld [vmem:[%s7691 + $0x70] sm:$0xf]
        %v7721 = vld [vmem:[%s7691 + $0x74] sm:$0xf]
        %v7722 = vld [vmem:[%s7691 + $0x78] sm:$0xf]
        %v7723 = vld [vmem:[%s7691 + $0x7c] sm:$0xf]
        %v7724 = vld [vmem:[%s7691 + $0x80] sm:$0xf]
        %v7725 = vld [vmem:[%s7691 + $0x84] sm:$0xf]
        %v7726 = vld [vmem:[%s7691 + $0x88] sm:$0xf]
        %v7727 = vld [vmem:[%s7691 + $0x8c] sm:$0xf]
        %v7728 = vld [vmem:[%s7691 + $0x90] sm:$0xf]
        %v7729 = vld [vmem:[%s7691 + $0x94] sm:$0xf]
        %v7730 = vld [vmem:[%s7691 + $0x98] sm:$0xf]
        %v7731 = vld [vmem:[%s7691 + $0x9c] sm:$0xf]
        %v7732 = vld [vmem:[%s7691 + $0xa0] sm:$0xf]
        %v7733 = vld [vmem:[%s7691 + $0xa4] sm:$0xf]
        %v7734 = vld [vmem:[%s7691 + $0xa8] sm:$0xf]
        %v7735 = vld [vmem:[%s7691 + $0xac] sm:$0xf]
        %v7736 = vld [vmem:[%s7691 + $0xb0] sm:$0xf]
        %v7737 = vld [vmem:[%s7691 + $0xb4] sm:$0xf]
        %v7738 = vld [vmem:[%s7691 + $0xb8] sm:$0xf]
        %v7739 = vld [vmem:[%s7691 + $0xbc] sm:$0xf]
        %v7740 = vld [vmem:[%s7691 + $0xc0] sm:$0xf]
        %v7741 = vld [vmem:[%s7691 + $0xc4] sm:$0xf]
        %v7742 = vld [vmem:[%s7691 + $0xc8] sm:$0xf]
        %v7743 = vld [vmem:[%s7691 + $0xcc] sm:$0xf]
        %v7744 = vld [vmem:[%s7691 + $0xd0] sm:$0xf]
        %v7745 = vld [vmem:[%s7691 + $0xd4] sm:$0xf]
        %v7746 = vld [vmem:[%s7691 + $0xd8] sm:$0xf]
        %v7747 = vld [vmem:[%s7691 + $0xdc] sm:$0xf]
        %v7748 = vld [vmem:[%s7691 + $0xe0] sm:$0xf]
        %v7749 = vld [vmem:[%s7691 + $0xe4] sm:$0xf]
        %v7750 = vld [vmem:[%s7691 + $0xe8] sm:$0xf]
        %v7751 = vld [vmem:[%s7691 + $0xec] sm:$0xf]
        %v7752 = vld [vmem:[%s7691 + $0xf0] sm:$0xf]
        %v7753 = vld [vmem:[%s7691 + $0xf4] sm:$0xf]
        %v7754 = vld [vmem:[%s7691 + $0xf8] sm:$0xf]
        %v7755 = vld [vmem:[%s7691 + $0xfc] sm:$0xf]
        %v7820 = vunpack.c.l.b16 %v7692
        %v7821 = vunpack.c.l.b16 %v7693
        %v7822 = vunpack.c.l.b16 %v7694
        %v7823 = vunpack.c.l.b16 %v7695
        %v7824 = vunpack.c.l.b16 %v7696
        %v7825 = vunpack.c.l.b16 %v7697
        %v7826 = vunpack.c.l.b16 %v7698
        %v7827 = vunpack.c.l.b16 %v7699
        %v7828 = vunpack.c.l.b16 %v7700
        %v7829 = vunpack.c.l.b16 %v7701
        %v7830 = vunpack.c.l.b16 %v7702
        %v7831 = vunpack.c.l.b16 %v7703
        %v7832 = vunpack.c.l.b16 %v7704
        %v7833 = vunpack.c.l.b16 %v7705
        %v7834 = vunpack.c.l.b16 %v7706
        %v7835 = vunpack.c.l.b16 %v7707
        %v7836 = vunpack.c.l.b16 %v7708
        %v7837 = vunpack.c.l.b16 %v7709
        %v7838 = vunpack.c.l.b16 %v7710
        %v7839 = vunpack.c.l.b16 %v7711
        %v7840 = vunpack.c.l.b16 %v7712
        %v7841 = vunpack.c.l.b16 %v7713
        %v7842 = vunpack.c.l.b16 %v7714
        %v7843 = vunpack.c.l.b16 %v7715
        %v7844 = vunpack.c.l.b16 %v7716
        %v7845 = vunpack.c.l.b16 %v7717
        %v7846 = vunpack.c.l.b16 %v7718
        %v7847 = vunpack.c.l.b16 %v7719
        %v7848 = vunpack.c.l.b16 %v7720
        %v7849 = vunpack.c.l.b16 %v7721
        %v7850 = vunpack.c.l.b16 %v7722
        %v7851 = vunpack.c.l.b16 %v7723
        %v7852 = vunpack.c.l.b16 %v7724
        %v7853 = vunpack.c.l.b16 %v7725
        %v7854 = vunpack.c.l.b16 %v7726
        %v7855 = vunpack.c.l.b16 %v7727
        %v7856 = vunpack.c.l.b16 %v7728
        %v7857 = vunpack.c.l.b16 %v7729
        %v7858 = vunpack.c.l.b16 %v7730
        %v7859 = vunpack.c.l.b16 %v7731
        %v7860 = vunpack.c.l.b16 %v7732
        %v7861 = vunpack.c.l.b16 %v7733
        %v7862 = vunpack.c.l.b16 %v7734
        %v7863 = vunpack.c.l.b16 %v7735
        %v7864 = vunpack.c.l.b16 %v7736
        %v7865 = vunpack.c.l.b16 %v7737
        %v7866 = vunpack.c.l.b16 %v7738
        %v7867 = vunpack.c.l.b16 %v7739
        %v7868 = vunpack.c.l.b16 %v7740
        %v7869 = vunpack.c.l.b16 %v7741
        %v7870 = vunpack.c.l.b16 %v7742
        %v7871 = vunpack.c.l.b16 %v7743
        %v7872 = vunpack.c.l.b16 %v7744
        %v7873 = vunpack.c.l.b16 %v7745
        %v7874 = vunpack.c.l.b16 %v7746
        %v7875 = vunpack.c.l.b16 %v7747
        %v7876 = vunpack.c.l.b16 %v7748
        %v7877 = vunpack.c.l.b16 %v7749
        %v7878 = vunpack.c.l.b16 %v7750
        %v7879 = vunpack.c.l.b16 %v7751
        %v7880 = vunpack.c.l.b16 %v7752
        %v7881 = vunpack.c.l.b16 %v7753
        %v7882 = vunpack.c.l.b16 %v7754
        %v7883 = vunpack.c.l.b16 %v7755
        %v7884 = vpack.c.b16 %v7821, %v7820
        %v7885 = vpack.c.b16 %v7823, %v7822
        %v7886 = vpack.c.b16 %v7825, %v7824
        %v7887 = vpack.c.b16 %v7827, %v7826
        %v7888 = vpack.c.b16 %v7829, %v7828
        %v7889 = vpack.c.b16 %v7831, %v7830
        %v7890 = vpack.c.b16 %v7833, %v7832
        %v7891 = vpack.c.b16 %v7835, %v7834
        %v7892 = vpack.c.b16 %v7837, %v7836
        %v7893 = vpack.c.b16 %v7839, %v7838
        %v7894 = vpack.c.b16 %v7841, %v7840
        %v7895 = vpack.c.b16 %v7843, %v7842
        %v7896 = vpack.c.b16 %v7845, %v7844
        %v7897 = vpack.c.b16 %v7847, %v7846
        %v7898 = vpack.c.b16 %v7849, %v7848
        %v7899 = vpack.c.b16 %v7851, %v7850
        %v7900 = vpack.c.b16 %v7853, %v7852
        %v7901 = vpack.c.b16 %v7855, %v7854
        %v7902 = vpack.c.b16 %v7857, %v7856
        %v7903 = vpack.c.b16 %v7859, %v7858
        %v7904 = vpack.c.b16 %v7861, %v7860
        %v7905 = vpack.c.b16 %v7863, %v7862
        %v7906 = vpack.c.b16 %v7865, %v7864
        %v7907 = vpack.c.b16 %v7867, %v7866
        %v7908 = vpack.c.b16 %v7869, %v7868
        %v7909 = vpack.c.b16 %v7871, %v7870
        %v7910 = vpack.c.b16 %v7873, %v7872
        %v7911 = vpack.c.b16 %v7875, %v7874
        %v7912 = vpack.c.b16 %v7877, %v7876
        %v7913 = vpack.c.b16 %v7879, %v7878
        %v7914 = vpack.c.b16 %v7881, %v7880
        %v7915 = vpack.c.b16 %v7883, %v7882
        %7948 = vmatprep.subr.bf16.mxu0 0
        %7949 = vmatpush1.bf16.msra.mxu0 %v7884
        %7950 = vmatprep.subr.bf16.mxu0 0
        %7951 = vmatpush1.bf16.msra.mxu0 %v7885
        %7952 = vmatprep.subr.bf16.mxu0 0
        %7953 = vmatpush1.bf16.msra.mxu0 %v7886
        %7954 = vmatprep.subr.bf16.mxu0 0
        %7955 = vmatpush1.bf16.msra.mxu0 %v7887
        %7956 = vmatprep.subr.bf16.mxu0 0
        %7957 = vmatpush1.bf16.msra.mxu0 %v7888
        %7958 = vmatprep.subr.bf16.mxu0 0
        %7959 = vmatpush1.bf16.msra.mxu0 %v7889
        %7960 = vmatprep.subr.bf16.mxu0 0
        %7961 = vmatpush1.bf16.msra.mxu0 %v7890
        %7962 = vmatprep.subr.bf16.mxu0 0
        %7963 = vmatpush1.bf16.msra.mxu0 %v7891
        %7964 = vmatprep.subr.bf16.mxu0 0
        %7965 = vmatpush1.bf16.msra.mxu0 %v7892
        %7966 = vmatprep.subr.bf16.mxu0 0
        %7967 = vmatpush1.bf16.msra.mxu0 %v7893
        %7968 = vmatprep.subr.bf16.mxu0 0
        %7969 = vmatpush1.bf16.msra.mxu0 %v7894
        %7970 = vmatprep.subr.bf16.mxu0 0
        %7971 = vmatpush1.bf16.msra.mxu0 %v7895
        %7972 = vmatprep.subr.bf16.mxu0 0
        %7973 = vmatpush1.bf16.msra.mxu0 %v7896
        %7974 = vmatprep.subr.bf16.mxu0 0
        %7975 = vmatpush1.bf16.msra.mxu0 %v7897
        %7976 = vmatprep.subr.bf16.mxu0 0
        %7977 = vmatpush1.bf16.msra.mxu0 %v7898
        %7978 = vmatprep.subr.bf16.mxu0 0
        %7979 = vmatpush1.bf16.msra.mxu0 %v7899
        %7980 = vmatprep.mubr.bf16.mxu0 %v7676
        %7981 = vmatmul.mubr.bf16.gmra.mrb[0].mxu0 %v7675
        %v7982 = vpop.f32.mrb[0].mxu0
        %v7983 = vadd.f32 0.0, %v7982
        %v7984 = vpop.f32.mrb[0].mxu0
        %v7985 = vpop.f32.mrb[0].mxu0
        %v7986 = vpop.f32.mrb[0].mxu0
        %7987 = vmatprep.mubr.bf16.mxu0 %v7680
        %7988 = vmatmul.mubr.bf16.gmra.mrb[0].mxu0 %v7679
        %v7989 = vpop.f32.mrb[0].mxu0
        %v7990 = vpop.f32.mrb[0].mxu0
        %v7991 = vpop.f32.mrb[0].mxu0
        %v7992 = vpop.f32.mrb[0].mxu0
        %7993 = vmatprep.mubr.bf16.mxu0 %v7684
        %7994 = vmatmul.mubr.bf16.gmra.mrb[0].mxu0 %v7683
        %v7995 = vpop.f32.mrb[0].mxu0
        %v7996 = vadd.f32 0.0, %v7995
        %v7997 = vpop.f32.mrb[0].mxu0
        %v7998 = vpop.f32.mrb[0].mxu0
        %v7999 = vpop.f32.mrb[0].mxu0
        %8000 = vmatprep.mubr.bf16.mxu0 %v7688
        %8001 = vmatmul.mubr.bf16.gmra.mrb[0].mxu0 %v7687
        %v8002 = vpop.f32.mrb[0].mxu0
        %v8003 = vpop.f32.mrb[0].mxu0
        %v8004 = vpop.f32.mrb[0].mxu0
        %v8005 = vpop.f32.mrb[0].mxu0
        %8006 = vdwg.mxu0
        %8007 = vmatprep.subr.bf16.mxu0 0
        %8008 = vmatpush1.bf16.msra.mxu0 %v7900
        %8009 = vmatprep.subr.bf16.mxu0 0
        %8010 = vmatpush1.bf16.msra.mxu0 %v7901
        %8011 = vmatprep.subr.bf16.mxu0 0
        %8012 = vmatpush1.bf16.msra.mxu0 %v7902
        %8013 = vmatprep.subr.bf16.mxu0 0
        %8014 = vmatpush1.bf16.msra.mxu0 %v7903
        %8015 = vmatprep.subr.bf16.mxu0 0
        %8016 = vmatpush1.bf16.msra.mxu0 %v7904
        %8017 = vmatprep.subr.bf16.mxu0 0
        %8018 = vmatpush1.bf16.msra.mxu0 %v7905
        %8019 = vmatprep.subr.bf16.mxu0 0
        %8020 = vmatpush1.bf16.msra.mxu0 %v7906
        %8021 = vmatprep.subr.bf16.mxu0 0
        %8022 = vmatpush1.bf16.msra.mxu0 %v7907
        %8023 = vmatprep.subr.bf16.mxu0 0
        %8024 = vmatpush1.bf16.msra.mxu0 %v7908
        %8025 = vmatprep.subr.bf16.mxu0 0
        %8026 = vmatpush1.bf16.msra.mxu0 %v7909
        %8027 = vmatprep.subr.bf16.mxu0 0
        %8028 = vmatpush1.bf16.msra.mxu0 %v7910
        %8029 = vmatprep.subr.bf16.mxu0 0
        %8030 = vmatpush1.bf16.msra.mxu0 %v7911
        %8031 = vmatprep.subr.bf16.mxu0 0
        %8032 = vmatpush1.bf16.msra.mxu0 %v7912
        %8033 = vmatprep.subr.bf16.mxu0 0
        %8034 = vmatpush1.bf16.msra.mxu0 %v7913
        %8035 = vmatprep.subr.bf16.mxu0 0
        %8036 = vmatpush1.bf16.msra.mxu0 %v7914
        %8037 = vmatprep.subr.bf16.mxu0 0
        %8038 = vmatpush1.bf16.msra.mxu0 %v7915
        %8039 = vmatprep.mubr.bf16.mxu0 %v7678
        %8040 = vmatmul.mubr.bf16.gmra.mrb[0].mxu0 %v7677
        %v8041 = vpop.f32.mrb[0].mxu0
        %v8042 = vadd.f32 %v7983, %v8041
        %v8043 = vpop.f32.mrb[0].mxu0
        %v8044 = vpop.f32.mrb[0].mxu0
        %v8045 = vpop.f32.mrb[0].mxu0
        %8046 = vmatprep.mubr.bf16.mxu0 %v7682
        %8047 = vmatmul.mubr.bf16.gmra.mrb[0].mxu0 %v7681
        %v8048 = vpop.f32.mrb[0].mxu0
        %v8049 = vpop.f32.mrb[0].mxu0
        %v8050 = vpop.f32.mrb[0].mxu0
        %v8051 = vpop.f32.mrb[0].mxu0
        %8052 = vmatprep.mubr.bf16.mxu0 %v7686
        %8053 = vmatmul.mubr.bf16.gmra.mrb[0].mxu0 %v7685
        %v8054 = vpop.f32.mrb[0].mxu0
        %v8055 = vadd.f32 %v7996, %v8054
        %v8056 = vpop.f32.mrb[0].mxu0
        %v8057 = vpop.f32.mrb[0].mxu0
        %v8058 = vpop.f32.mrb[0].mxu0
        %8059 = vmatprep.mubr.bf16.mxu0 %v7690
        %8060 = vmatmul.mubr.bf16.gmra.mrb[0].mxu0 %v7689
        %v8061 = vpop.f32.mrb[0].mxu0
        %v8062 = vpop.f32.mrb[0].mxu0
        %v8063 = vpop.f32.mrb[0].mxu0
        %v8064 = vpop.f32.mrb[0].mxu0
        %8065 = vdwg.mxu0
        %v8066 = vadd.f32 %v7163, %v8042
        %v8067 = vadd.f32 %v7167, %v8055
        %v8068 = vld [vmem:[#allocation14 + $0x23] ss:$0 sm:$0xff]
        %v8069 = vadd.f32 %v8066, %v8068
        %v8070 = vadd.f32 %v8067, %v8068
        %8071 = vadd.xlane.f32.xlu0 %v8069
        %v8072 = vpop.xlane.xlu0 %8071
        %8073 = vadd.xlane.f32.xlu0 %v8070
        %v8074 = vpop.xlane.xlu0 %8073
        %v8075 = vmul.f32 %v8072, %v1481
        %v8076 = vmul.f32 %v8074, %v1481
        %v8077 = vsub.f32 %v8069, %v8075
        %v8078 = vsub.f32 %v8070, %v8076
        %v8079 = vmul.f32 %v8077, %v8077
        %v8080 = vmul.f32 %v8078, %v8078
        %8081 = vadd.xlane.f32.xlu0 %v8079
        %v8082 = vpop.xlane.xlu0 %8081
        %8083 = vadd.xlane.f32.xlu0 %v8080
        %v8084 = vpop.xlane.xlu0 %8083
        %v8085 = vmul.f32 %v8082, %v1481
        %v8086 = vmul.f32 %v8084, %v1481
        %v8087 = vadd.f32 %v8085, 1e-05
        %v8088 = vadd.f32 %v8086, 1e-05
        %v8089 = vrsqrt.pop %v8087
        %v8090 = vrsqrt.pop %v8088
        %v8091 = vmul.f32 %v8077, %v8089
        %v8092 = vmul.f32 %v8078, %v8090
        %v8093 = vld [vmem:[#allocation14 + $0x40] ss:$0 sm:$0xff]
        %v8094 = vmul.f32 %v8091, %v8093
        %v8095 = vmul.f32 %v8092, %v8093
        %v8096 = vld [vmem:[#allocation14 + $0x41] ss:$0 sm:$0xff]
        %v8097 = vadd.f32 %v8094, %v8096
        %v8098 = vadd.f32 %v8095, %v8096
        %8099 = vst [vmem:[%s563] sm:$0x1] %v8097
        %8100 = vst [vmem:[%s563 + $0x1] sm:$0x1] %v8098
        %s8101 = sand.u32 %s308, 1
        %s8102 = scalar_lea.sflag [#allocation4], %s8101
        %s8103 = sand.u32 %s308, 1
        %s8104 = smul.addr %s8103, 2
        %s8105 = scalar_lea.vmem [#allocation16], %s8104
        // Predicated region
        $region101: #{tpu_custom_call.1} parent=67 // pred_check
          %p8106 = pneg %p318
        $region102: #{tpu_custom_call.1} parent=67 // pred_check_branch
          %8108 = sbr.rel (%p8106) target = $region104
        $region103: #{tpu_custom_call.1} parent=67 // pred_region
          %s8110 = ssub.s32 32, 32
          %8111 = vsyncadd %s8102, %s8110
          %s8112 = smul.addr %s33, 32
          %s8113 = scalar_lea.hbm %s12, %s8112
          %s8115 = sshll.u32 %s8105, 4
          %s8116 = int_to_ptr.vmem [resolvable:$true] %s8115
          %8118 = dma.vmem_to_hbm [thread:$0]  %s8116, 32, %s8113, %s8102
        $region104: #{tpu_custom_call.1} parent=67 // pred_fallthru
          _
      $region68: #{tpu_custom_call.1} parent=5 // pred_fallthru
        _
      %p8119 = scmp.le.s32.totalorder 2, %s28
      // Predicated region
      $region105: #{tpu_custom_call.1} parent=5 // pred_check
        %p8120 = pneg %p8119
      $region106: #{tpu_custom_call.1} parent=5 // pred_check_branch
        %8122 = sbr.rel (%p8120) target = $region108
      $region107: #{tpu_custom_call.1} parent=5 // pred_region
        %s8123 = ssub.s32 %s28, 2
        // Predicated region
        $region109: #{tpu_custom_call.1} parent=107 // pred_check
          %p8124 = pneg %p324
        $region110: #{tpu_custom_call.1} parent=107 // pred_check_branch
          %8126 = sbr.rel (%p8124) target = $region112
        $region111: #{tpu_custom_call.1} parent=107 // pred_region
          %s8127 = sand.u32 %s309, 1
          %s8128 = scalar_lea.sflag [#allocation4], %s8127
          %s8129 = sand.u32 %s309, 1
          %s8130 = smul.addr %s8129, 2
          %s8131 = scalar_lea.vmem [#allocation16], %s8130
          %8132 = dma.done %s8128, 32
        $region112: #{tpu_custom_call.1} parent=107 // pred_fallthru
          _
      $region108: #{tpu_custom_call.1} parent=5 // pred_fallthru
        _
    $region6: #{tpu_custom_call.1} parent=1 // loop_footer
      %s32 = sadd.s32 1, %s28
    $region7: #{tpu_custom_call.1} parent=1 // loop_footer_branch
      %27 = sbr.rel target = $region3
    $region8: #{tpu_custom_call.1} parent=1 // loop_exit
      _
    %8133 = vsyncpa [#allocation3], 1
    %s8134 = scalar_lea.sflag [#allocation3], 1
    %8135 = vsyncpa %s8134, 1
    %8136 = vsyncpa [#allocation6], 1
    %8137 = vsyncpa [#allocation9], 1
    %8138 = vsyncpa [#allocation12], 1
    %8139 = vsyncpa [#allocation15], 1
    %8140 = vsyncpa [#allocation4], 1
    %s8141 = scalar_lea.sflag [#allocation4], 1
    %8142 = vsyncpa %s8141, 1

</llo_original>
